<compile_context>
chip_gen: v7x
topology: tpu7x:2x2x1
jax: 0.10.0
libtpu: 0.0.40
codegen_flags: <defaults>
</compile_context>

<pallas_src>
import functools

import jax
import jax.numpy as jnp
from jax.experimental import pallas as pl
from jax.experimental.pallas import tpu as pltpu

_BN_EPS = 1e-3


def _round_up(v, m):
    return ((v + m - 1) // m) * m


# ---------------------------------------------------------------------------
# Fused C2f kernel (one grid step == one image, whole padded plane in VMEM)
# ---------------------------------------------------------------------------
def _make_c2f_kernel(n, c, W, P, C2, shortcut, halo_store):
    """Builds the kernel body for a given static config.

    Data layout inside the kernel: every activation is a 2-D [P, C] slab where
    P = (H+2)*(W+2) is the row-flattened, zero-padded spatial frame.  A 3x3 tap
    (kh, kw) then becomes a contiguous row shift by (kh-1)*(W+2)+(kw-1), so the
    conv is 9 shifted [P, Cin] @ [Cin, Cout] matmuls.  Frame-border rows are
    forced to zero with a [P, 1] mask before every 3x3 conv; only interior rows
    are read back by the host wrapper.
    """
    max_shift = W + 3  # max |row shift| of a 3x3 tap in the flattened frame
    assert halo_store >= max_shift and halo_store % 8 == 0

    def silu(v):
        return v * jax.nn.sigmoid(v)

    def kernel(*args):
        xpf_ref, mask_ref = args[0], args[1]
        w1a_ref, w1b_ref, b1a_ref, b1b_ref = args[2:6]
        pos = 6
        m_refs = []
        for _ in range(n):
            m_refs.append(args[pos:pos + 4])
            pos += 4
        wcv2_refs = args[pos:pos + (2 + n)]
        pos += (2 + n)
        bcv2_ref = args[pos]
        o_ref = args[pos + 1]
        ext_ref = args[pos + 2]  # VMEM scratch: (P + 2*halo_store, c) f32 shift buffer

        x = xpf_ref[...]        # (P, C1) bf16
        mask = mask_ref[...]    # (P, 1)  f32, 1.0 on interior rows, 0.0 on frame border

        # ---- cv1 (1x1 conv, BN folded) + SiLU, emitted directly as the 2 chunks.
        y0 = silu(jnp.dot(x, w1a_ref[...], preferred_element_type=jnp.float32)
                  + b1a_ref[...])
        y1 = silu(jnp.dot(x, w1b_ref[...], preferred_element_type=jnp.float32)
                  + b1b_ref[...])

        # Zero the shift buffer each grid step.  (Scratch is per-core; with a
        # "parallel" batch axis on a 2-TC chip a pid==0-gated init would leave
        # the second core's halo uninitialized, so the init is unconditional.)
        # The interior rows are fully overwritten before every 3x3 conv; the
        # halo rows are never written again, so they stay zero.
        ext_ref[...] = jnp.zeros_like(ext_ref)

        def conv3x3(inp_f32, w_ref, b_ref):
            # Mask frame-border rows and park the slab in the shift buffer.
            # halo_store is a multiple of 8 -> sublane-aligned store.
            ext_ref[pl.ds(halo_store, P), :] = inp_f32 * mask
            acc = jnp.zeros((P, c), jnp.float32)
            for t in range(9):
                kh, kw = t // 3, t % 3
                off = (kh - 1) * (W + 2) + (kw - 1)
                sl = ext_ref[pl.ds(halo_store + off, P), :].astype(jnp.bfloat16)
                acc = acc + jnp.dot(sl, w_ref[t],
                                    preferred_element_type=jnp.float32)
            return silu(acc + b_ref[...])

        # ---- n Bottlenecks (two 3x3 convs each); intermediates never leave VMEM.
        chunks = [y0, y1]
        cur = y1
        for i in range(n):
            w1_ref, b1_ref, w2_ref, b2_ref = m_refs[i]
            t1 = conv3x3(cur, w1_ref, b1_ref)
            t2 = conv3x3(t1, w2_ref, b2_ref)
            if shortcut:
                t2 = t2 + cur
            chunks.append(t2)
            cur = t2

        # ---- cv2 (1x1 conv) as a sum over channel chunks (no concatenate).
        acc = jnp.zeros((P, C2), jnp.float32)
        for yk, wk_ref in zip(chunks, wcv2_refs):
            acc = acc + jnp.dot(yk.astype(jnp.bfloat16), wk_ref[...],
                                preferred_element_type=jnp.float32)
        out = silu(acc + bcv2_ref[...])
        o_ref[...] = out.astype(o_ref.dtype)

    return kernel


# ---------------------------------------------------------------------------
# Host wrapper
# ---------------------------------------------------------------------------
def c2f_forward(x_nchw, params, *, shortcut=False):
    """C2f forward. x_nchw: [N, C1, H, W] float32 (PyTorch layout)."""
    N, C1, H, W = x_nchw.shape
    n = len(params["m"])
    c = params["w_cv1a"].shape[1]
    C2 = params["b_cv2"].shape[-1]
    Hp, Wp = H + 2, W + 2
    P = Hp * Wp
    halo_store = _round_up(W + 3, 8)   # aligned store offset into the shift buffer

    # NCHW -> NHWC, zero-pad the spatial frame by 1, flatten rows, cast to bf16.
    x = jnp.transpose(x_nchw, (0, 2, 3, 1))
    xp = jnp.pad(x, ((0, 0), (1, 1), (1, 1), (0, 0)))
    xpf = xp.reshape(N, P, C1).astype(jnp.bfloat16)

    # Interior-row mask of the padded frame.
    rr = jnp.arange(Hp)[:, None]
    cc = jnp.arange(Wp)[None, :]
    interior = (rr >= 1) & (rr <= H) & (cc >= 1) & (cc <= W)
    mask = interior.reshape(P, 1).astype(jnp.float32)

    # Flatten parameters in the order the kernel unpacks them.
    flat = [params["w_cv1a"], params["w_cv1b"], params["b_cv1a"], params["b_cv1b"]]
    for blk in params["m"]:
        flat += [blk["w1"], blk["b1"], blk["w2"], blk["b2"]]
    flat += list(params["w_cv2"])
    flat.append(params["b_cv2"])

    kernel = _make_c2f_kernel(n=n, c=c, W=W, P=P, C2=C2, shortcut=shortcut,
                              halo_store=halo_store)

    def _const_spec(a):
        if a.ndim == 2:
            return pl.BlockSpec(a.shape, lambda i: (0, 0))
        return pl.BlockSpec(a.shape, lambda i: (0, 0, 0))

    in_specs = [pl.BlockSpec((None, P, C1), lambda i: (i, 0, 0)),
                _const_spec(mask)]
    in_specs += [_const_spec(a) for a in flat]

    out_pf = pl.pallas_call(
        kernel,
        out_shape=jax.ShapeDtypeStruct((N, P, C2), jnp.float32),
        grid=(N,),
        in_specs=in_specs,
        out_specs=pl.BlockSpec((None, P, C2), lambda i: (i, 0, 0)),
        scratch_shapes=[pltpu.VMEM((P + 2 * halo_store, c), jnp.float32)],
        compiler_params=pltpu.CompilerParams(
            dimension_semantics=("parallel",)),
    )(xpf, mask, *flat)

    out = out_pf.reshape(N, Hp, Wp, C2)[:, 1:H + 1, 1:W + 1, :]
    return jnp.transpose(out, (0, 3, 1, 2))


# ---------------------------------------------------------------------------
# Parameter construction (deterministic, synthetic; BN folded at build time)
# ---------------------------------------------------------------------------
def _fold_bn(w, gamma, beta, mean, var):
    scale = gamma / jnp.sqrt(var + _BN_EPS)          # (Cout,)
    w_f = (w * scale).astype(jnp.bfloat16)           # fold scale into weight columns
    bias = ((beta - mean * scale).astype(jnp.float32))[None, :]
    return w_f, bias


def _conv_params(key, cin, cout, k):
    kw_, kg, kb, km, kv = jax.random.split(key, 5)
    if k == 1:
        w = jax.random.normal(kw_, (cin, cout), jnp.float32) * 0.2
    else:
        w = jax.random.normal(kw_, (k, k, cin, cout), jnp.float32) * 0.2
    gamma = 1.0 + 0.1 * jax.random.normal(kg, (cout,), jnp.float32)
    beta = 0.1 * jax.random.normal(kb, (cout,), jnp.float32)
    mean = 0.1 * jax.random.normal(km, (cout,), jnp.float32)
    var = 0.9 + 0.1 * jnp.abs(jax.random.normal(kv, (cout,), jnp.float32))
    wf, bias = _fold_bn(w, gamma, beta, mean, var)
    if k != 1:
        wf = wf.reshape(k * k, cin, cout)            # (9, Cin, Cout), taps kh*3+kw
    return wf, bias


def make_c2f_params(key, c1, c2, n=1, e=0.5):
    c = int(c2 * e)
    keys = jax.random.split(key, 2 + 2 * n)
    w_cv1, b_cv1 = _conv_params(keys[0], c1, 2 * c, 1)
    w_cv2, b_cv2 = _conv_params(keys[1], (2 + n) * c, c2, 1)
    params = {
        "w_cv1a": w_cv1[:, :c], "w_cv1b": w_cv1[:, c:],
        "b_cv1a": b_cv1[:, :c], "b_cv1b": b_cv1[:, c:],
        # cv2 weights pre-split along K into per-chunk blocks (sum-over-chunks form)
        "w_cv2": tuple(w_cv2[k * c:(k + 1) * c, :] for k in range(2 + n)),
        "b_cv2": b_cv2,
        "m": [],
    }
    for i in range(n):
        w1, b1 = _conv_params(keys[2 + 2 * i], c, c, 3)
        w2, b2 = _conv_params(keys[3 + 2 * i], c, c, 3)
        params["m"].append({"w1": w1, "b1": b1, "w2": w2, "b2": b2})
    return params


# ---------------------------------------------------------------------------
# Pure-JAX f32 reference (independent path: lax.conv for the 3x3s)
# ---------------------------------------------------------------------------
def _silu(v):
    return v * jax.nn.sigmoid(v)


def c2f_reference(x_nchw, params, *, shortcut=False):
    f32 = jnp.float32
    x = jnp.transpose(x_nchw, (0, 2, 3, 1)).astype(f32)

    def conv1x1(v, w, b):
        y = jnp.einsum("nhwc,cd->nhwd", v, w.astype(f32)) + b.reshape(1, 1, 1, -1)
        return _silu(y)

    def conv3x3(v, w9, b):
        k = w9.reshape(3, 3, w9.shape[1], w9.shape[2]).astype(f32)
        y = jax.lax.conv_general_dilated(
            v, k, window_strides=(1, 1), padding="SAME",
            dimension_numbers=("NHWC", "HWIO", "NHWC"))
        return _silu(y + b.reshape(1, 1, 1, -1))

    y0 = conv1x1(x, params["w_cv1a"], params["b_cv1a"])
    y1 = conv1x1(x, params["w_cv1b"], params["b_cv1b"])
    ys = [y0, y1]
    cur = y1
    for blk in params["m"]:
        t = conv3x3(cur, blk["w1"], blk["b1"])
        t = conv3x3(t, blk["w2"], blk["b2"])
        if shortcut:
            t = cur + t
        ys.append(t)
        cur = t
    acc = 0.0
    for yk, wk in zip(ys, params["w_cv2"]):
        acc = acc + jnp.einsum("nhwc,cd->nhwd", yk, wk.astype(f32))
    out = _silu(acc + params["b_cv2"].reshape(1, 1, 1, -1))
    return jnp.transpose(out, (0, 3, 1, 2))


# ---------------------------------------------------------------------------
if __name__ == "__main__":
    key = jax.random.PRNGKey(0)
    kx, kp = jax.random.split(key)

    # Module config matching C2f defaults: n=1, shortcut=False, e=0.5.
    N, C1, H, W = 2, 4, 16, 16
    C2, n, shortcut = 4, 1, False

    x = jax.random.normal(kx, (N, C1, H, W), jnp.float32)   # PyTorch NCHW input
    params = make_c2f_params(kp, C1, C2, n=n, e=0.5)

    fwd = jax.jit(functools.partial(c2f_forward, shortcut=shortcut))
    out = jax.block_until_ready(fwd(x, params))

    assert out.shape == (N, C2, H, W), out.shape
    assert bool(jnp.all(jnp.isfinite(out)))

    ref = jax.block_until_ready(c2f_reference(x, params, shortcut=shortcut))
    max_err = float(jnp.max(jnp.abs(out - ref)))
    assert max_err < 5e-2, f"max abs error vs reference: {max_err}"

    print("KERNEL_OK")
</pallas_src>

<mosaic_0001>
module attributes {stable_mosaic.version = 11 : i64} {
  func.func @kernel(%arg0: i32, %arg1: memref<1x324x4xbf16, #tpu.memory_space<vmem>>, %arg2: memref<324x1xf32, #tpu.memory_space<vmem>>, %arg3: memref<4x2xbf16, #tpu.memory_space<vmem>>, %arg4: memref<4x2xbf16, #tpu.memory_space<vmem>>, %arg5: memref<1x2xf32, #tpu.memory_space<vmem>>, %arg6: memref<1x2xf32, #tpu.memory_space<vmem>>, %arg7: memref<9x2x2xbf16, #tpu.memory_space<vmem>>, %arg8: memref<1x2xf32, #tpu.memory_space<vmem>>, %arg9: memref<9x2x2xbf16, #tpu.memory_space<vmem>>, %arg10: memref<1x2xf32, #tpu.memory_space<vmem>>, %arg11: memref<2x4xbf16, #tpu.memory_space<vmem>>, %arg12: memref<2x4xbf16, #tpu.memory_space<vmem>>, %arg13: memref<2x4xbf16, #tpu.memory_space<vmem>>, %arg14: memref<1x4xf32, #tpu.memory_space<vmem>>, %arg15: memref<1x324x4xf32, #tpu.memory_space<vmem>>, %arg16: memref<372x2xf32, #tpu.memory_space<vmem>>) attributes {dimension_semantics = [#tpu.dimension_semantics<parallel>], iteration_bounds = array<i64: 2>, scalar_prefetch = 0 : i64, scratch_operands = 1 : i64, tpu.core_type = #tpu.core_type<tc>, window_params = [{transform_indices = @transform_0, window_bounds = array<i64: 1, 324, 4>}, {pipeline_mode = #tpu.pipeline_mode<synchronous>, transform_indices = @transform_1, window_bounds = array<i64: 324, 1>}, {pipeline_mode = #tpu.pipeline_mode<synchronous>, transform_indices = @transform_2, window_bounds = array<i64: 4, 2>}, {pipeline_mode = #tpu.pipeline_mode<synchronous>, transform_indices = @transform_3, window_bounds = array<i64: 4, 2>}, {pipeline_mode = #tpu.pipeline_mode<synchronous>, transform_indices = @transform_4, window_bounds = array<i64: 1, 2>}, {pipeline_mode = #tpu.pipeline_mode<synchronous>, transform_indices = @transform_5, window_bounds = array<i64: 1, 2>}, {pipeline_mode = #tpu.pipeline_mode<synchronous>, transform_indices = @transform_6, window_bounds = array<i64: 9, 2, 2>}, {pipeline_mode = #tpu.pipeline_mode<synchronous>, transform_indices = @transform_7, window_bounds = array<i64: 1, 2>}, {pipeline_mode = #tpu.pipeline_mode<synchronous>, transform_indices = @transform_8, window_bounds = array<i64: 9, 2, 2>}, {pipeline_mode = #tpu.pipeline_mode<synchronous>, transform_indices = @transform_9, window_bounds = array<i64: 1, 2>}, {pipeline_mode = #tpu.pipeline_mode<synchronous>, transform_indices = @transform_10, window_bounds = array<i64: 2, 4>}, {pipeline_mode = #tpu.pipeline_mode<synchronous>, transform_indices = @transform_11, window_bounds = array<i64: 2, 4>}, {pipeline_mode = #tpu.pipeline_mode<synchronous>, transform_indices = @transform_12, window_bounds = array<i64: 2, 4>}, {pipeline_mode = #tpu.pipeline_mode<synchronous>, transform_indices = @transform_13, window_bounds = array<i64: 1, 4>}, {transform_indices = @transform_14, window_bounds = array<i64: 1, 324, 4>}]} {
    %c0 = arith.constant 0 : index
    %c0_0 = arith.constant 0 : index
    %c0_1 = arith.constant 0 : index
    %0 = vector.load %arg1[%c0, %c0_0, %c0_1] : memref<1x324x4xbf16, #tpu.memory_space<vmem>>, vector<1x324x4xbf16>
    %1 = vector.shape_cast %0 : vector<1x324x4xbf16> to vector<324x4xbf16>
    %c0_2 = arith.constant 0 : index
    %c0_3 = arith.constant 0 : index
    %2 = vector.load %arg2[%c0_2, %c0_3] : memref<324x1xf32, #tpu.memory_space<vmem>>, vector<324x1xf32>
    %c0_4 = arith.constant 0 : index
    %c0_5 = arith.constant 0 : index
    %3 = vector.load %arg3[%c0_4, %c0_5] : memref<4x2xbf16, #tpu.memory_space<vmem>>, vector<4x2xbf16>
    %cst = arith.constant dense<0.000000e+00> : vector<324x2xf32>
    %4 = tpu.matmul %1, %3, %cst {dimension_numbers = #tpu.dot_dimension_numbers<[1], [0], [0], [1], [0, 0, 1, 1], [], []>} : vector<324x4xbf16>, vector<4x2xbf16>, vector<324x2xf32> -> vector<324x2xf32>
    %c0_6 = arith.constant 0 : index
    %c0_7 = arith.constant 0 : index
    %5 = vector.load %arg5[%c0_6, %c0_7] : memref<1x2xf32, #tpu.memory_space<vmem>>, vector<1x2xf32>
    %6 = vector.broadcast %5 : vector<1x2xf32> to vector<324x2xf32>
    %7 = arith.addf %4, %6 : vector<324x2xf32>
    %8 = arith.negf %7 : vector<324x2xf32>
    %9 = math.exp %8 : vector<324x2xf32>
    %cst_8 = arith.constant 1.000000e+00 : f32
    %10 = vector.broadcast %cst_8 : f32 to vector<324x2xf32>
    %11 = arith.addf %10, %9 : vector<324x2xf32>
    %12 = arith.divf %10, %11 : vector<324x2xf32>
    %13 = arith.mulf %7, %12 : vector<324x2xf32>
    %c0_9 = arith.constant 0 : index
    %c0_10 = arith.constant 0 : index
    %14 = vector.load %arg4[%c0_9, %c0_10] : memref<4x2xbf16, #tpu.memory_space<vmem>>, vector<4x2xbf16>
    %cst_11 = arith.constant dense<0.000000e+00> : vector<324x2xf32>
    %15 = tpu.matmul %1, %14, %cst_11 {dimension_numbers = #tpu.dot_dimension_numbers<[1], [0], [0], [1], [0, 0, 1, 1], [], []>} : vector<324x4xbf16>, vector<4x2xbf16>, vector<324x2xf32> -> vector<324x2xf32>
    %c0_12 = arith.constant 0 : index
    %c0_13 = arith.constant 0 : index
    %16 = vector.load %arg6[%c0_12, %c0_13] : memref<1x2xf32, #tpu.memory_space<vmem>>, vector<1x2xf32>
    %17 = vector.broadcast %16 : vector<1x2xf32> to vector<324x2xf32>
    %18 = arith.addf %15, %17 : vector<324x2xf32>
    %19 = arith.negf %18 : vector<324x2xf32>
    %20 = math.exp %19 : vector<324x2xf32>
    %cst_14 = arith.constant 1.000000e+00 : f32
    %21 = vector.broadcast %cst_14 : f32 to vector<324x2xf32>
    %22 = arith.addf %21, %20 : vector<324x2xf32>
    %23 = arith.divf %21, %22 : vector<324x2xf32>
    %24 = arith.mulf %18, %23 : vector<324x2xf32>
    %cst_15 = arith.constant 0.000000e+00 : f32
    %25 = vector.broadcast %cst_15 : f32 to vector<372x2xf32>
    %c0_16 = arith.constant 0 : index
    %c0_17 = arith.constant 0 : index
    %26 = vector.load %arg16[%c0_16, %c0_17] : memref<372x2xf32, #tpu.memory_space<vmem>>, vector<372x2xf32>
    tpu.vector_store %arg16[%c0_16, %c0_17], %25 {strides = array<i32>} : memref<372x2xf32, #tpu.memory_space<vmem>>, vector<372x2xf32>,
    %27 = vector.broadcast %2 : vector<324x1xf32> to vector<324x2xf32>
    %28 = arith.mulf %24, %27 : vector<324x2xf32>
    %c24 = arith.constant 24 : index
    %c0_18 = arith.constant 0 : index
    %29 = vector.load %arg16[%c24, %c0_18] : memref<372x2xf32, #tpu.memory_space<vmem>>, vector<324x2xf32>
    tpu.vector_store %arg16[%c24, %c0_18], %28 {strides = array<i32>} : memref<372x2xf32, #tpu.memory_space<vmem>>, vector<324x2xf32>,
    %cst_19 = arith.constant 0.000000e+00 : f32
    %30 = vector.broadcast %cst_19 : f32 to vector<324x2xf32>
    %c5 = arith.constant 5 : index
    %c0_20 = arith.constant 0 : index
    %31 = vector.load %arg16[%c5, %c0_20] : memref<372x2xf32, #tpu.memory_space<vmem>>, vector<324x2xf32>
    %32 = arith.truncf %31 : vector<324x2xf32> to vector<324x2xbf16>
    %c0_21 = arith.constant 0 : index
    %c0_22 = arith.constant 0 : index
    %c0_23 = arith.constant 0 : index
    %33 = vector.load %arg7[%c0_21, %c0_22, %c0_23] : memref<9x2x2xbf16, #tpu.memory_space<vmem>>, vector<1x2x2xbf16>
    %34 = vector.shape_cast %33 : vector<1x2x2xbf16> to vector<2x2xbf16>
    %cst_24 = arith.constant dense<0.000000e+00> : vector<324x2xf32>
    %35 = tpu.matmul %32, %34, %cst_24 {dimension_numbers = #tpu.dot_dimension_numbers<[1], [0], [0], [1], [0, 0, 1, 1], [], []>} : vector<324x2xbf16>, vector<2x2xbf16>, vector<324x2xf32> -> vector<324x2xf32>
    %36 = arith.addf %30, %35 : vector<324x2xf32>
    %c6 = arith.constant 6 : index
    %c0_25 = arith.constant 0 : index
    %37 = vector.load %arg16[%c6, %c0_25] : memref<372x2xf32, #tpu.memory_space<vmem>>, vector<324x2xf32>
    %38 = arith.truncf %37 : vector<324x2xf32> to vector<324x2xbf16>
    %c1 = arith.constant 1 : index
    %c0_26 = arith.constant 0 : index
    %c0_27 = arith.constant 0 : index
    %39 = vector.load %arg7[%c1, %c0_26, %c0_27] : memref<9x2x2xbf16, #tpu.memory_space<vmem>>, vector<1x2x2xbf16>
    %40 = vector.shape_cast %39 : vector<1x2x2xbf16> to vector<2x2xbf16>
    %cst_28 = arith.constant dense<0.000000e+00> : vector<324x2xf32>
    %41 = tpu.matmul %38, %40, %cst_28 {dimension_numbers = #tpu.dot_dimension_numbers<[1], [0], [0], [1], [0, 0, 1, 1], [], []>} : vector<324x2xbf16>, vector<2x2xbf16>, vector<324x2xf32> -> vector<324x2xf32>
    %42 = arith.addf %36, %41 : vector<324x2xf32>
    %c7 = arith.constant 7 : index
    %c0_29 = arith.constant 0 : index
    %43 = vector.load %arg16[%c7, %c0_29] : memref<372x2xf32, #tpu.memory_space<vmem>>, vector<324x2xf32>
    %44 = arith.truncf %43 : vector<324x2xf32> to vector<324x2xbf16>
    %c2 = arith.constant 2 : index
    %c0_30 = arith.constant 0 : index
    %c0_31 = arith.constant 0 : index
    %45 = vector.load %arg7[%c2, %c0_30, %c0_31] : memref<9x2x2xbf16, #tpu.memory_space<vmem>>, vector<1x2x2xbf16>
    %46 = vector.shape_cast %45 : vector<1x2x2xbf16> to vector<2x2xbf16>
    %cst_32 = arith.constant dense<0.000000e+00> : vector<324x2xf32>
    %47 = tpu.matmul %44, %46, %cst_32 {dimension_numbers = #tpu.dot_dimension_numbers<[1], [0], [0], [1], [0, 0, 1, 1], [], []>} : vector<324x2xbf16>, vector<2x2xbf16>, vector<324x2xf32> -> vector<324x2xf32>
    %48 = arith.addf %42, %47 : vector<324x2xf32>
    %c23 = arith.constant 23 : index
    %c0_33 = arith.constant 0 : index
    %49 = vector.load %arg16[%c23, %c0_33] : memref<372x2xf32, #tpu.memory_space<vmem>>, vector<324x2xf32>
    %50 = arith.truncf %49 : vector<324x2xf32> to vector<324x2xbf16>
    %c3 = arith.constant 3 : index
    %c0_34 = arith.constant 0 : index
    %c0_35 = arith.constant 0 : index
    %51 = vector.load %arg7[%c3, %c0_34, %c0_35] : memref<9x2x2xbf16, #tpu.memory_space<vmem>>, vector<1x2x2xbf16>
    %52 = vector.shape_cast %51 : vector<1x2x2xbf16> to vector<2x2xbf16>
    %cst_36 = arith.constant dense<0.000000e+00> : vector<324x2xf32>
    %53 = tpu.matmul %50, %52, %cst_36 {dimension_numbers = #tpu.dot_dimension_numbers<[1], [0], [0], [1], [0, 0, 1, 1], [], []>} : vector<324x2xbf16>, vector<2x2xbf16>, vector<324x2xf32> -> vector<324x2xf32>
    %54 = arith.addf %48, %53 : vector<324x2xf32>
    %c24_37 = arith.constant 24 : index
    %c0_38 = arith.constant 0 : index
    %55 = vector.load %arg16[%c24_37, %c0_38] : memref<372x2xf32, #tpu.memory_space<vmem>>, vector<324x2xf32>
    %56 = arith.truncf %55 : vector<324x2xf32> to vector<324x2xbf16>
    %c4 = arith.constant 4 : index
    %c0_39 = arith.constant 0 : index
    %c0_40 = arith.constant 0 : index
    %57 = vector.load %arg7[%c4, %c0_39, %c0_40] : memref<9x2x2xbf16, #tpu.memory_space<vmem>>, vector<1x2x2xbf16>
    %58 = vector.shape_cast %57 : vector<1x2x2xbf16> to vector<2x2xbf16>
    %cst_41 = arith.constant dense<0.000000e+00> : vector<324x2xf32>
    %59 = tpu.matmul %56, %58, %cst_41 {dimension_numbers = #tpu.dot_dimension_numbers<[1], [0], [0], [1], [0, 0, 1, 1], [], []>} : vector<324x2xbf16>, vector<2x2xbf16>, vector<324x2xf32> -> vector<324x2xf32>
    %60 = arith.addf %54, %59 : vector<324x2xf32>
    %c25 = arith.constant 25 : index
    %c0_42 = arith.constant 0 : index
    %61 = vector.load %arg16[%c25, %c0_42] : memref<372x2xf32, #tpu.memory_space<vmem>>, vector<324x2xf32>
    %62 = arith.truncf %61 : vector<324x2xf32> to vector<324x2xbf16>
    %c5_43 = arith.constant 5 : index
    %c0_44 = arith.constant 0 : index
    %c0_45 = arith.constant 0 : index
    %63 = vector.load %arg7[%c5_43, %c0_44, %c0_45] : memref<9x2x2xbf16, #tpu.memory_space<vmem>>, vector<1x2x2xbf16>
    %64 = vector.shape_cast %63 : vector<1x2x2xbf16> to vector<2x2xbf16>
    %cst_46 = arith.constant dense<0.000000e+00> : vector<324x2xf32>
    %65 = tpu.matmul %62, %64, %cst_46 {dimension_numbers = #tpu.dot_dimension_numbers<[1], [0], [0], [1], [0, 0, 1, 1], [], []>} : vector<324x2xbf16>, vector<2x2xbf16>, vector<324x2xf32> -> vector<324x2xf32>
    %66 = arith.addf %60, %65 : vector<324x2xf32>
    %c41 = arith.constant 41 : index
    %c0_47 = arith.constant 0 : index
    %67 = vector.load %arg16[%c41, %c0_47] : memref<372x2xf32, #tpu.memory_space<vmem>>, vector<324x2xf32>
    %68 = arith.truncf %67 : vector<324x2xf32> to vector<324x2xbf16>
    %c6_48 = arith.constant 6 : index
    %c0_49 = arith.constant 0 : index
    %c0_50 = arith.constant 0 : index
    %69 = vector.load %arg7[%c6_48, %c0_49, %c0_50] : memref<9x2x2xbf16, #tpu.memory_space<vmem>>, vector<1x2x2xbf16>
    %70 = vector.shape_cast %69 : vector<1x2x2xbf16> to vector<2x2xbf16>
    %cst_51 = arith.constant dense<0.000000e+00> : vector<324x2xf32>
    %71 = tpu.matmul %68, %70, %cst_51 {dimension_numbers = #tpu.dot_dimension_numbers<[1], [0], [0], [1], [0, 0, 1, 1], [], []>} : vector<324x2xbf16>, vector<2x2xbf16>, vector<324x2xf32> -> vector<324x2xf32>
    %72 = arith.addf %66, %71 : vector<324x2xf32>
    %c42 = arith.constant 42 : index
    %c0_52 = arith.constant 0 : index
    %73 = vector.load %arg16[%c42, %c0_52] : memref<372x2xf32, #tpu.memory_space<vmem>>, vector<324x2xf32>
    %74 = arith.truncf %73 : vector<324x2xf32> to vector<324x2xbf16>
    %c7_53 = arith.constant 7 : index
    %c0_54 = arith.constant 0 : index
    %c0_55 = arith.constant 0 : index
    %75 = vector.load %arg7[%c7_53, %c0_54, %c0_55] : memref<9x2x2xbf16, #tpu.memory_space<vmem>>, vector<1x2x2xbf16>
    %76 = vector.shape_cast %75 : vector<1x2x2xbf16> to vector<2x2xbf16>
    %cst_56 = arith.constant dense<0.000000e+00> : vector<324x2xf32>
    %77 = tpu.matmul %74, %76, %cst_56 {dimension_numbers = #tpu.dot_dimension_numbers<[1], [0], [0], [1], [0, 0, 1, 1], [], []>} : vector<324x2xbf16>, vector<2x2xbf16>, vector<324x2xf32> -> vector<324x2xf32>
    %78 = arith.addf %72, %77 : vector<324x2xf32>
    %c43 = arith.constant 43 : index
    %c0_57 = arith.constant 0 : index
    %79 = vector.load %arg16[%c43, %c0_57] : memref<372x2xf32, #tpu.memory_space<vmem>>, vector<324x2xf32>
    %80 = arith.truncf %79 : vector<324x2xf32> to vector<324x2xbf16>
    %c8 = arith.constant 8 : index
    %c0_58 = arith.constant 0 : index
    %c0_59 = arith.constant 0 : index
    %81 = vector.load %arg7[%c8, %c0_58, %c0_59] : memref<9x2x2xbf16, #tpu.memory_space<vmem>>, vector<1x2x2xbf16>
    %82 = vector.shape_cast %81 : vector<1x2x2xbf16> to vector<2x2xbf16>
    %cst_60 = arith.constant dense<0.000000e+00> : vector<324x2xf32>
    %83 = tpu.matmul %80, %82, %cst_60 {dimension_numbers = #tpu.dot_dimension_numbers<[1], [0], [0], [1], [0, 0, 1, 1], [], []>} : vector<324x2xbf16>, vector<2x2xbf16>, vector<324x2xf32> -> vector<324x2xf32>
    %84 = arith.addf %78, %83 : vector<324x2xf32>
    %c0_61 = arith.constant 0 : index
    %c0_62 = arith.constant 0 : index
    %85 = vector.load %arg8[%c0_61, %c0_62] : memref<1x2xf32, #tpu.memory_space<vmem>>, vector<1x2xf32>
    %86 = vector.broadcast %85 : vector<1x2xf32> to vector<324x2xf32>
    %87 = arith.addf %84, %86 : vector<324x2xf32>
    %88 = arith.negf %87 : vector<324x2xf32>
    %89 = math.exp %88 : vector<324x2xf32>
    %cst_63 = arith.constant 1.000000e+00 : f32
    %90 = vector.broadcast %cst_63 : f32 to vector<324x2xf32>
    %91 = arith.addf %90, %89 : vector<324x2xf32>
    %92 = arith.divf %90, %91 : vector<324x2xf32>
    %93 = arith.mulf %87, %92 : vector<324x2xf32>
    %94 = vector.broadcast %2 : vector<324x1xf32> to vector<324x2xf32>
    %95 = arith.mulf %93, %94 : vector<324x2xf32>
    %c24_64 = arith.constant 24 : index
    %c0_65 = arith.constant 0 : index
    %96 = vector.load %arg16[%c24_64, %c0_65] : memref<372x2xf32, #tpu.memory_space<vmem>>, vector<324x2xf32>
    tpu.vector_store %arg16[%c24_64, %c0_65], %95 {strides = array<i32>} : memref<372x2xf32, #tpu.memory_space<vmem>>, vector<324x2xf32>,
    %cst_66 = arith.constant 0.000000e+00 : f32
    %97 = vector.broadcast %cst_66 : f32 to vector<324x2xf32>
    %c5_67 = arith.constant 5 : index
    %c0_68 = arith.constant 0 : index
    %98 = vector.load %arg16[%c5_67, %c0_68] : memref<372x2xf32, #tpu.memory_space<vmem>>, vector<324x2xf32>
    %99 = arith.truncf %98 : vector<324x2xf32> to vector<324x2xbf16>
    %c0_69 = arith.constant 0 : index
    %c0_70 = arith.constant 0 : index
    %c0_71 = arith.constant 0 : index
    %100 = vector.load %arg9[%c0_69, %c0_70, %c0_71] : memref<9x2x2xbf16, #tpu.memory_space<vmem>>, vector<1x2x2xbf16>
    %101 = vector.shape_cast %100 : vector<1x2x2xbf16> to vector<2x2xbf16>
    %cst_72 = arith.constant dense<0.000000e+00> : vector<324x2xf32>
    %102 = tpu.matmul %99, %101, %cst_72 {dimension_numbers = #tpu.dot_dimension_numbers<[1], [0], [0], [1], [0, 0, 1, 1], [], []>} : vector<324x2xbf16>, vector<2x2xbf16>, vector<324x2xf32> -> vector<324x2xf32>
    %103 = arith.addf %97, %102 : vector<324x2xf32>
    %c6_73 = arith.constant 6 : index
    %c0_74 = arith.constant 0 : index
    %104 = vector.load %arg16[%c6_73, %c0_74] : memref<372x2xf32, #tpu.memory_space<vmem>>, vector<324x2xf32>
    %105 = arith.truncf %104 : vector<324x2xf32> to vector<324x2xbf16>
    %c1_75 = arith.constant 1 : index
    %c0_76 = arith.constant 0 : index
    %c0_77 = arith.constant 0 : index
    %106 = vector.load %arg9[%c1_75, %c0_76, %c0_77] : memref<9x2x2xbf16, #tpu.memory_space<vmem>>, vector<1x2x2xbf16>
    %107 = vector.shape_cast %106 : vector<1x2x2xbf16> to vector<2x2xbf16>
    %cst_78 = arith.constant dense<0.000000e+00> : vector<324x2xf32>
    %108 = tpu.matmul %105, %107, %cst_78 {dimension_numbers = #tpu.dot_dimension_numbers<[1], [0], [0], [1], [0, 0, 1, 1], [], []>} : vector<324x2xbf16>, vector<2x2xbf16>, vector<324x2xf32> -> vector<324x2xf32>
    %109 = arith.addf %103, %108 : vector<324x2xf32>
    %c7_79 = arith.constant 7 : index
    %c0_80 = arith.constant 0 : index
    %110 = vector.load %arg16[%c7_79, %c0_80] : memref<372x2xf32, #tpu.memory_space<vmem>>, vector<324x2xf32>
    %111 = arith.truncf %110 : vector<324x2xf32> to vector<324x2xbf16>
    %c2_81 = arith.constant 2 : index
    %c0_82 = arith.constant 0 : index
    %c0_83 = arith.constant 0 : index
    %112 = vector.load %arg9[%c2_81, %c0_82, %c0_83] : memref<9x2x2xbf16, #tpu.memory_space<vmem>>, vector<1x2x2xbf16>
    %113 = vector.shape_cast %112 : vector<1x2x2xbf16> to vector<2x2xbf16>
    %cst_84 = arith.constant dense<0.000000e+00> : vector<324x2xf32>
    %114 = tpu.matmul %111, %113, %cst_84 {dimension_numbers = #tpu.dot_dimension_numbers<[1], [0], [0], [1], [0, 0, 1, 1], [], []>} : vector<324x2xbf16>, vector<2x2xbf16>, vector<324x2xf32> -> vector<324x2xf32>
    %115 = arith.addf %109, %114 : vector<324x2xf32>
    %c23_85 = arith.constant 23 : index
    %c0_86 = arith.constant 0 : index
    %116 = vector.load %arg16[%c23_85, %c0_86] : memref<372x2xf32, #tpu.memory_space<vmem>>, vector<324x2xf32>
    %117 = arith.truncf %116 : vector<324x2xf32> to vector<324x2xbf16>
    %c3_87 = arith.constant 3 : index
    %c0_88 = arith.constant 0 : index
    %c0_89 = arith.constant 0 : index
    %118 = vector.load %arg9[%c3_87, %c0_88, %c0_89] : memref<9x2x2xbf16, #tpu.memory_space<vmem>>, vector<1x2x2xbf16>
    %119 = vector.shape_cast %118 : vector<1x2x2xbf16> to vector<2x2xbf16>
    %cst_90 = arith.constant dense<0.000000e+00> : vector<324x2xf32>
    %120 = tpu.matmul %117, %119, %cst_90 {dimension_numbers = #tpu.dot_dimension_numbers<[1], [0], [0], [1], [0, 0, 1, 1], [], []>} : vector<324x2xbf16>, vector<2x2xbf16>, vector<324x2xf32> -> vector<324x2xf32>
    %121 = arith.addf %115, %120 : vector<324x2xf32>
    %c24_91 = arith.constant 24 : index
    %c0_92 = arith.constant 0 : index
    %122 = vector.load %arg16[%c24_91, %c0_92] : memref<372x2xf32, #tpu.memory_space<vmem>>, vector<324x2xf32>
    %123 = arith.truncf %122 : vector<324x2xf32> to vector<324x2xbf16>
    %c4_93 = arith.constant 4 : index
    %c0_94 = arith.constant 0 : index
    %c0_95 = arith.constant 0 : index
    %124 = vector.load %arg9[%c4_93, %c0_94, %c0_95] : memref<9x2x2xbf16, #tpu.memory_space<vmem>>, vector<1x2x2xbf16>
    %125 = vector.shape_cast %124 : vector<1x2x2xbf16> to vector<2x2xbf16>
    %cst_96 = arith.constant dense<0.000000e+00> : vector<324x2xf32>
    %126 = tpu.matmul %123, %125, %cst_96 {dimension_numbers = #tpu.dot_dimension_numbers<[1], [0], [0], [1], [0, 0, 1, 1], [], []>} : vector<324x2xbf16>, vector<2x2xbf16>, vector<324x2xf32> -> vector<324x2xf32>
    %127 = arith.addf %121, %126 : vector<324x2xf32>
    %c25_97 = arith.constant 25 : index
    %c0_98 = arith.constant 0 : index
    %128 = vector.load %arg16[%c25_97, %c0_98] : memref<372x2xf32, #tpu.memory_space<vmem>>, vector<324x2xf32>
    %129 = arith.truncf %128 : vector<324x2xf32> to vector<324x2xbf16>
    %c5_99 = arith.constant 5 : index
    %c0_100 = arith.constant 0 : index
    %c0_101 = arith.constant 0 : index
    %130 = vector.load %arg9[%c5_99, %c0_100, %c0_101] : memref<9x2x2xbf16, #tpu.memory_space<vmem>>, vector<1x2x2xbf16>
    %131 = vector.shape_cast %130 : vector<1x2x2xbf16> to vector<2x2xbf16>
    %cst_102 = arith.constant dense<0.000000e+00> : vector<324x2xf32>
    %132 = tpu.matmul %129, %131, %cst_102 {dimension_numbers = #tpu.dot_dimension_numbers<[1], [0], [0], [1], [0, 0, 1, 1], [], []>} : vector<324x2xbf16>, vector<2x2xbf16>, vector<324x2xf32> -> vector<324x2xf32>
    %133 = arith.addf %127, %132 : vector<324x2xf32>
    %c41_103 = arith.constant 41 : index
    %c0_104 = arith.constant 0 : index
    %134 = vector.load %arg16[%c41_103, %c0_104] : memref<372x2xf32, #tpu.memory_space<vmem>>, vector<324x2xf32>
    %135 = arith.truncf %134 : vector<324x2xf32> to vector<324x2xbf16>
    %c6_105 = arith.constant 6 : index
    %c0_106 = arith.constant 0 : index
    %c0_107 = arith.constant 0 : index
    %136 = vector.load %arg9[%c6_105, %c0_106, %c0_107] : memref<9x2x2xbf16, #tpu.memory_space<vmem>>, vector<1x2x2xbf16>
    %137 = vector.shape_cast %136 : vector<1x2x2xbf16> to vector<2x2xbf16>
    %cst_108 = arith.constant dense<0.000000e+00> : vector<324x2xf32>
    %138 = tpu.matmul %135, %137, %cst_108 {dimension_numbers = #tpu.dot_dimension_numbers<[1], [0], [0], [1], [0, 0, 1, 1], [], []>} : vector<324x2xbf16>, vector<2x2xbf16>, vector<324x2xf32> -> vector<324x2xf32>
    %139 = arith.addf %133, %138 : vector<324x2xf32>
    %c42_109 = arith.constant 42 : index
    %c0_110 = arith.constant 0 : index
    %140 = vector.load %arg16[%c42_109, %c0_110] : memref<372x2xf32, #tpu.memory_space<vmem>>, vector<324x2xf32>
    %141 = arith.truncf %140 : vector<324x2xf32> to vector<324x2xbf16>
    %c7_111 = arith.constant 7 : index
    %c0_112 = arith.constant 0 : index
    %c0_113 = arith.constant 0 : index
    %142 = vector.load %arg9[%c7_111, %c0_112, %c0_113] : memref<9x2x2xbf16, #tpu.memory_space<vmem>>, vector<1x2x2xbf16>
    %143 = vector.shape_cast %142 : vector<1x2x2xbf16> to vector<2x2xbf16>
    %cst_114 = arith.constant dense<0.000000e+00> : vector<324x2xf32>
    %144 = tpu.matmul %141, %143, %cst_114 {dimension_numbers = #tpu.dot_dimension_numbers<[1], [0], [0], [1], [0, 0, 1, 1], [], []>} : vector<324x2xbf16>, vector<2x2xbf16>, vector<324x2xf32> -> vector<324x2xf32>
    %145 = arith.addf %139, %144 : vector<324x2xf32>
    %c43_115 = arith.constant 43 : index
    %c0_116 = arith.constant 0 : index
    %146 = vector.load %arg16[%c43_115, %c0_116] : memref<372x2xf32, #tpu.memory_space<vmem>>, vector<324x2xf32>
    %147 = arith.truncf %146 : vector<324x2xf32> to vector<324x2xbf16>
    %c8_117 = arith.constant 8 : index
    %c0_118 = arith.constant 0 : index
    %c0_119 = arith.constant 0 : index
    %148 = vector.load %arg9[%c8_117, %c0_118, %c0_119] : memref<9x2x2xbf16, #tpu.memory_space<vmem>>, vector<1x2x2xbf16>
    %149 = vector.shape_cast %148 : vector<1x2x2xbf16> to vector<2x2xbf16>
    %cst_120 = arith.constant dense<0.000000e+00> : vector<324x2xf32>
    %150 = tpu.matmul %147, %149, %cst_120 {dimension_numbers = #tpu.dot_dimension_numbers<[1], [0], [0], [1], [0, 0, 1, 1], [], []>} : vector<324x2xbf16>, vector<2x2xbf16>, vector<324x2xf32> -> vector<324x2xf32>
    %151 = arith.addf %145, %150 : vector<324x2xf32>
    %c0_121 = arith.constant 0 : index
    %c0_122 = arith.constant 0 : index
    %152 = vector.load %arg10[%c0_121, %c0_122] : memref<1x2xf32, #tpu.memory_space<vmem>>, vector<1x2xf32>
    %153 = vector.broadcast %152 : vector<1x2xf32> to vector<324x2xf32>
    %154 = arith.addf %151, %153 : vector<324x2xf32>
    %155 = arith.negf %154 : vector<324x2xf32>
    %156 = math.exp %155 : vector<324x2xf32>
    %cst_123 = arith.constant 1.000000e+00 : f32
    %157 = vector.broadcast %cst_123 : f32 to vector<324x2xf32>
    %158 = arith.addf %157, %156 : vector<324x2xf32>
    %159 = arith.divf %157, %158 : vector<324x2xf32>
    %160 = arith.mulf %154, %159 : vector<324x2xf32>
    %cst_124 = arith.constant 0.000000e+00 : f32
    %161 = vector.broadcast %cst_124 : f32 to vector<324x4xf32>
    %162 = arith.truncf %13 : vector<324x2xf32> to vector<324x2xbf16>
    %c0_125 = arith.constant 0 : index
    %c0_126 = arith.constant 0 : index
    %163 = vector.load %arg11[%c0_125, %c0_126] : memref<2x4xbf16, #tpu.memory_space<vmem>>, vector<2x4xbf16>
    %cst_127 = arith.constant dense<0.000000e+00> : vector<324x4xf32>
    %164 = tpu.matmul %162, %163, %cst_127 {dimension_numbers = #tpu.dot_dimension_numbers<[1], [0], [0], [1], [0, 0, 1, 1], [], []>} : vector<324x2xbf16>, vector<2x4xbf16>, vector<324x4xf32> -> vector<324x4xf32>
    %165 = arith.addf %161, %164 : vector<324x4xf32>
    %166 = arith.truncf %24 : vector<324x2xf32> to vector<324x2xbf16>
    %c0_128 = arith.constant 0 : index
    %c0_129 = arith.constant 0 : index
    %167 = vector.load %arg12[%c0_128, %c0_129] : memref<2x4xbf16, #tpu.memory_space<vmem>>, vector<2x4xbf16>
    %cst_130 = arith.constant dense<0.000000e+00> : vector<324x4xf32>
    %168 = tpu.matmul %166, %167, %cst_130 {dimension_numbers = #tpu.dot_dimension_numbers<[1], [0], [0], [1], [0, 0, 1, 1], [], []>} : vector<324x2xbf16>, vector<2x4xbf16>, vector<324x4xf32> -> vector<324x4xf32>
    %169 = arith.addf %165, %168 : vector<324x4xf32>
    %170 = arith.truncf %160 : vector<324x2xf32> to vector<324x2xbf16>
    %c0_131 = arith.constant 0 : index
    %c0_132 = arith.constant 0 : index
    %171 = vector.load %arg13[%c0_131, %c0_132] : memref<2x4xbf16, #tpu.memory_space<vmem>>, vector<2x4xbf16>
    %cst_133 = arith.constant dense<0.000000e+00> : vector<324x4xf32>
    %172 = tpu.matmul %170, %171, %cst_133 {dimension_numbers = #tpu.dot_dimension_numbers<[1], [0], [0], [1], [0, 0, 1, 1], [], []>} : vector<324x2xbf16>, vector<2x4xbf16>, vector<324x4xf32> -> vector<324x4xf32>
    %173 = arith.addf %169, %172 : vector<324x4xf32>
    %c0_134 = arith.constant 0 : index
    %c0_135 = arith.constant 0 : index
    %174 = vector.load %arg14[%c0_134, %c0_135] : memref<1x4xf32, #tpu.memory_space<vmem>>, vector<1x4xf32>
    %175 = vector.broadcast %174 : vector<1x4xf32> to vector<324x4xf32>
    %176 = arith.addf %173, %175 : vector<324x4xf32>
    %177 = arith.negf %176 : vector<324x4xf32>
    %178 = math.exp %177 : vector<324x4xf32>
    %cst_136 = arith.constant 1.000000e+00 : f32
    %179 = vector.broadcast %cst_136 : f32 to vector<324x4xf32>
    %180 = arith.addf %179, %178 : vector<324x4xf32>
    %181 = arith.divf %179, %180 : vector<324x4xf32>
    %182 = arith.mulf %176, %181 : vector<324x4xf32>
    %c0_137 = arith.constant 0 : index
    %c0_138 = arith.constant 0 : index
    %c0_139 = arith.constant 0 : index
    %183 = vector.load %arg15[%c0_137, %c0_138, %c0_139] : memref<1x324x4xf32, #tpu.memory_space<vmem>>, vector<1x324x4xf32>
    %184 = vector.shape_cast %183 : vector<1x324x4xf32> to vector<324x4xf32>
    %185 = vector.shape_cast %182 : vector<324x4xf32> to vector<1x324x4xf32>
    tpu.vector_store %arg15[%c0_137, %c0_138, %c0_139], %185 {strides = array<i32>} : memref<1x324x4xf32, #tpu.memory_space<vmem>>, vector<1x324x4xf32>,
    return
  }
  func.func @transform_0(%arg0: i32) -> (i32, i32, i32) {
    %c0_i32 = arith.constant 0 : i32
    %c0_i32_0 = arith.constant 0 : i32
    %c0_i32_1 = arith.constant 0 : i32
    return %arg0, %c0_i32, %c0_i32_0 : i32, i32, i32
  }
  func.func @transform_1(%arg0: i32) -> (i32, i32) {
    %c0_i32 = arith.constant 0 : i32
    %c0_i32_0 = arith.constant 0 : i32
    %c0_i32_1 = arith.constant 0 : i32
    return %c0_i32, %c0_i32_0 : i32, i32
  }
  func.func @transform_2(%arg0: i32) -> (i32, i32) {
    %c0_i32 = arith.constant 0 : i32
    %c0_i32_0 = arith.constant 0 : i32
    %c0_i32_1 = arith.constant 0 : i32
    return %c0_i32, %c0_i32_0 : i32, i32
  }
  func.func @transform_3(%arg0: i32) -> (i32, i32) {
    %c0_i32 = arith.constant 0 : i32
    %c0_i32_0 = arith.constant 0 : i32
    %c0_i32_1 = arith.constant 0 : i32
    return %c0_i32, %c0_i32_0 : i32, i32
  }
  func.func @transform_4(%arg0: i32) -> (i32, i32) {
    %c0_i32 = arith.constant 0 : i32
    %c0_i32_0 = arith.constant 0 : i32
    %c0_i32_1 = arith.constant 0 : i32
    return %c0_i32, %c0_i32_0 : i32, i32
  }
  func.func @transform_5(%arg0: i32) -> (i32, i32) {
    %c0_i32 = arith.constant 0 : i32
    %c0_i32_0 = arith.constant 0 : i32
    %c0_i32_1 = arith.constant 0 : i32
    return %c0_i32, %c0_i32_0 : i32, i32
  }
  func.func @transform_6(%arg0: i32) -> (i32, i32, i32) {
    %c0_i32 = arith.constant 0 : i32
    %c0_i32_0 = arith.constant 0 : i32
    %c0_i32_1 = arith.constant 0 : i32
    %c0_i32_2 = arith.constant 0 : i32
    return %c0_i32, %c0_i32_0, %c0_i32_1 : i32, i32, i32
  }
  func.func @transform_7(%arg0: i32) -> (i32, i32) {
    %c0_i32 = arith.constant 0 : i32
    %c0_i32_0 = arith.constant 0 : i32
    %c0_i32_1 = arith.constant 0 : i32
    return %c0_i32, %c0_i32_0 : i32, i32
  }
  func.func @transform_8(%arg0: i32) -> (i32, i32, i32) {
    %c0_i32 = arith.constant 0 : i32
    %c0_i32_0 = arith.constant 0 : i32
    %c0_i32_1 = arith.constant 0 : i32
    %c0_i32_2 = arith.constant 0 : i32
    return %c0_i32, %c0_i32_0, %c0_i32_1 : i32, i32, i32
  }
  func.func @transform_9(%arg0: i32) -> (i32, i32) {
    %c0_i32 = arith.constant 0 : i32
    %c0_i32_0 = arith.constant 0 : i32
    %c0_i32_1 = arith.constant 0 : i32
    return %c0_i32, %c0_i32_0 : i32, i32
  }
  func.func @transform_10(%arg0: i32) -> (i32, i32) {
    %c0_i32 = arith.constant 0 : i32
    %c0_i32_0 = arith.constant 0 : i32
    %c0_i32_1 = arith.constant 0 : i32
    return %c0_i32, %c0_i32_0 : i32, i32
  }
  func.func @transform_11(%arg0: i32) -> (i32, i32) {
    %c0_i32 = arith.constant 0 : i32
    %c0_i32_0 = arith.constant 0 : i32
    %c0_i32_1 = arith.constant 0 : i32
    return %c0_i32, %c0_i32_0 : i32, i32
  }
  func.func @transform_12(%arg0: i32) -> (i32, i32) {
    %c0_i32 = arith.constant 0 : i32
    %c0_i32_0 = arith.constant 0 : i32
    %c0_i32_1 = arith.constant 0 : i32
    return %c0_i32, %c0_i32_0 : i32, i32
  }
  func.func @transform_13(%arg0: i32) -> (i32, i32) {
    %c0_i32 = arith.constant 0 : i32
    %c0_i32_0 = arith.constant 0 : i32
    %c0_i32_1 = arith.constant 0 : i32
    return %c0_i32, %c0_i32_0 : i32, i32
  }
  func.func @transform_14(%arg0: i32) -> (i32, i32, i32) {
    %c0_i32 = arith.constant 0 : i32
    %c0_i32_0 = arith.constant 0 : i32
    %c0_i32_1 = arith.constant 0 : i32
    return %arg0, %c0_i32, %c0_i32_0 : i32, i32, i32
  }
}

</mosaic_0001>

<llo_original>
// kernel: c2f_forward.1
$region0: #{c2f_forward.1}
  #allocation0 [shape = 'u32[]', space=smem, size = 0x4, offset = 0x4, fixed_abs, tag = 'smem constant byte address 0x4 - core index']
  #allocation1 [shape = 'u32[144,128]{1,0:T(1,128)}', space=vmem, size = 0x12000, scoped, tag = 'internal scratch']
  #allocation2 [shape = 'f32[372,2]{1,0:T(8,128)}', space=vmem, size = 0x2f000, scoped, tag = 'scratch operand']
  %s0 = inlined_call_operand.vmem [shape: bf16[2,324,4], index: 0, kind: input, shape index: {}]
  %s1 = inlined_call_operand.vmem [shape: f32[324,1], index: 1, kind: input, shape index: {}]
  %s2 = inlined_call_operand.vmem [shape: bf16[4,2], index: 2, kind: input, shape index: {}]
  %s3 = inlined_call_operand.vmem [shape: bf16[4,2], index: 3, kind: input, shape index: {}]
  %s4 = inlined_call_operand.vmem [shape: f32[1,2], index: 4, kind: input, shape index: {}]
  %s5 = inlined_call_operand.vmem [shape: f32[1,2], index: 5, kind: input, shape index: {}]
  %s6 = inlined_call_operand.vmem [shape: bf16[9,2,2], index: 6, kind: input, shape index: {}]
  %s7 = inlined_call_operand.vmem [shape: f32[1,2], index: 7, kind: input, shape index: {}]
  %s8 = inlined_call_operand.vmem [shape: bf16[9,2,2], index: 8, kind: input, shape index: {}]
  %s9 = inlined_call_operand.vmem [shape: f32[1,2], index: 9, kind: input, shape index: {}]
  %s10 = inlined_call_operand.vmem [shape: bf16[2,4], index: 10, kind: input, shape index: {}]
  %s11 = inlined_call_operand.vmem [shape: bf16[2,4], index: 11, kind: input, shape index: {}]
  %s12 = inlined_call_operand.vmem [shape: bf16[2,4], index: 12, kind: input, shape index: {}]
  %s13 = inlined_call_operand.vmem [shape: f32[1,4], index: 13, kind: input, shape index: {}]
  %s14 = inlined_call_operand.vmem [shape: f32[2,324,4], index: 14, kind: output, shape index: {}]
  %s15 = sld [smem:[#allocation0]]
  $region89: #{c2f_forward.1} parent=0
    _
  %s17 = ssub.s32 1, %s15
  %s18 = scalar_select 0, %s17, %s15
  loop: start=0, step=1, limit=4
  $region2: #{c2f_forward.1} parent=0 // loop_pre_header
    _
  $region3: #{c2f_forward.1} parent=0 // loop_header
    %s20 = sphi 0, %s24
    %p21 = scmp.ge.s32.totalorder %s20, 4
    %s30 = sphi 0, %s32
    %s33 = sphi 0, %s30
    %s34 = sphi 0, %s33
    %s50 = sphi 0, %s34
    %s54 = sphi 0, %s54
    %s56 = sphi 0, %s54
    %s57 = sphi 0, %s56
    %s71 = sphi 0, %s57
    %s75 = sphi 0, %s75
    %s77 = sphi 0, %s75
    %s78 = sphi 0, %s77
    %s92 = sphi 0, %s78
    %s96 = sphi 0, %s96
    %s98 = sphi 0, %s96
    %s99 = sphi 0, %s98
    %s113 = sphi 0, %s99
    %s117 = sphi 0, %s117
    %s119 = sphi 0, %s117
    %s120 = sphi 0, %s119
    %s134 = sphi 0, %s120
    %s138 = sphi 0, %s138
    %s140 = sphi 0, %s138
    %s141 = sphi 0, %s140
    %s155 = sphi 0, %s141
    %s159 = sphi 0, %s159
    %s161 = sphi 0, %s159
    %s162 = sphi 0, %s161
    %s176 = sphi 0, %s162
    %s180 = sphi 0, %s180
    %s182 = sphi 0, %s180
    %s183 = sphi 0, %s182
    %s197 = sphi 0, %s183
    %s201 = sphi 0, %s201
    %s203 = sphi 0, %s201
    %s204 = sphi 0, %s203
    %s218 = sphi 0, %s204
    %s222 = sphi 0, %s222
    %s224 = sphi 0, %s222
    %s225 = sphi 0, %s224
    %s239 = sphi 0, %s225
    %s243 = sphi 0, %s243
    %s245 = sphi 0, %s243
    %s246 = sphi 0, %s245
    %s260 = sphi 0, %s246
    %s264 = sphi 0, %s264
    %s266 = sphi 0, %s264
    %s267 = sphi 0, %s266
    %s281 = sphi 0, %s267
    %s285 = sphi 0, %s285
    %s287 = sphi 0, %s285
    %s288 = sphi 0, %s287
    %s302 = sphi 0, %s288
    %s306 = sphi 0, %s306
    %s308 = sphi 0, %s306
    %s309 = sphi 0, %s308
    %s323 = sphi 0, %s309
    %s329 = sphi 0, %s331
    %s332 = sphi 0, %s329
    %s333 = sphi 0, %s332
    %s349 = sphi 0, %s333
  $region4: #{c2f_forward.1} parent=0 // loop_header_branch
    %23 = sbr.rel (%p21) target = $region8
  $region5: #{c2f_forward.1} parent=0 // loop_body
    %s25 = ssub.s32 %s20, 1
    %s26 = ssub.s32 %s20, 2
    %s27 = sadd.s32 %s20, 1
    %s28 = ssub.s32 %s20, %s27
    %p29 = scmp.eq.s32.totalorder %s28, 0
    %s31 = sadd.s32 %s30, 1
    %s32 = scalar_select %p29, %s30, %s31
    %p35 = pneg %p29
    %p36 = scmp.eq.s32.totalorder %s20, 1
    %p37 = por %p35, %p36
    %p38 = scmp.ne.s32.totalorder %s30, %s33
    %p39 = scmp.eq.s32.totalorder %s20, 0
    %p40 = por %p38, %p39
    %p41 = scmp.ne.s32.totalorder %s30, %s33
    %p42 = scmp.eq.s32.totalorder %s25, 1
    %p43 = por %p41, %p42
    %p44 = scmp.ne.s32.totalorder %s33, %s34
    %p45 = scmp.eq.s32.totalorder %s25, 0
    %p46 = por %p44, %p45
    %p47 = scmp.ne.s32.totalorder %s33, %s34
    %p48 = scmp.eq.s32.totalorder %s26, 1
    %p49 = por %p47, %p48
    %p51 = scmp.ne.s32.totalorder %s34, %s50
    %p52 = scmp.eq.s32.totalorder %s26, 0
    %p53 = por %p51, %p52
    %s55 = sadd.s32 %s54, 1
    %p58 = scmp.eq.s32.totalorder %s20, 1
    %p59 = scmp.ne.s32.totalorder %s54, %s56
    %p60 = scmp.eq.s32.totalorder %s20, 0
    %p61 = por %p59, %p60
    %p62 = scmp.ne.s32.totalorder %s54, %s56
    %p63 = scmp.eq.s32.totalorder %s25, 1
    %p64 = por %p62, %p63
    %p65 = scmp.ne.s32.totalorder %s56, %s57
    %p66 = scmp.eq.s32.totalorder %s25, 0
    %p67 = por %p65, %p66
    %p68 = scmp.ne.s32.totalorder %s56, %s57
    %p69 = scmp.eq.s32.totalorder %s26, 1
    %p70 = por %p68, %p69
    %p72 = scmp.ne.s32.totalorder %s57, %s71
    %p73 = scmp.eq.s32.totalorder %s26, 0
    %p74 = por %p72, %p73
    %s76 = sadd.s32 %s75, 1
    %p79 = scmp.eq.s32.totalorder %s20, 1
    %p80 = scmp.ne.s32.totalorder %s75, %s77
    %p81 = scmp.eq.s32.totalorder %s20, 0
    %p82 = por %p80, %p81
    %p83 = scmp.ne.s32.totalorder %s75, %s77
    %p84 = scmp.eq.s32.totalorder %s25, 1
    %p85 = por %p83, %p84
    %p86 = scmp.ne.s32.totalorder %s77, %s78
    %p87 = scmp.eq.s32.totalorder %s25, 0
    %p88 = por %p86, %p87
    %p89 = scmp.ne.s32.totalorder %s77, %s78
    %p90 = scmp.eq.s32.totalorder %s26, 1
    %p91 = por %p89, %p90
    %p93 = scmp.ne.s32.totalorder %s78, %s92
    %p94 = scmp.eq.s32.totalorder %s26, 0
    %p95 = por %p93, %p94
    %s97 = sadd.s32 %s96, 1
    %p100 = scmp.eq.s32.totalorder %s20, 1
    %p101 = scmp.ne.s32.totalorder %s96, %s98
    %p102 = scmp.eq.s32.totalorder %s20, 0
    %p103 = por %p101, %p102
    %p104 = scmp.ne.s32.totalorder %s96, %s98
    %p105 = scmp.eq.s32.totalorder %s25, 1
    %p106 = por %p104, %p105
    %p107 = scmp.ne.s32.totalorder %s98, %s99
    %p108 = scmp.eq.s32.totalorder %s25, 0
    %p109 = por %p107, %p108
    %p110 = scmp.ne.s32.totalorder %s98, %s99
    %p111 = scmp.eq.s32.totalorder %s26, 1
    %p112 = por %p110, %p111
    %p114 = scmp.ne.s32.totalorder %s99, %s113
    %p115 = scmp.eq.s32.totalorder %s26, 0
    %p116 = por %p114, %p115
    %s118 = sadd.s32 %s117, 1
    %p121 = scmp.eq.s32.totalorder %s20, 1
    %p122 = scmp.ne.s32.totalorder %s117, %s119
    %p123 = scmp.eq.s32.totalorder %s20, 0
    %p124 = por %p122, %p123
    %p125 = scmp.ne.s32.totalorder %s117, %s119
    %p126 = scmp.eq.s32.totalorder %s25, 1
    %p127 = por %p125, %p126
    %p128 = scmp.ne.s32.totalorder %s119, %s120
    %p129 = scmp.eq.s32.totalorder %s25, 0
    %p130 = por %p128, %p129
    %p131 = scmp.ne.s32.totalorder %s119, %s120
    %p132 = scmp.eq.s32.totalorder %s26, 1
    %p133 = por %p131, %p132
    %p135 = scmp.ne.s32.totalorder %s120, %s134
    %p136 = scmp.eq.s32.totalorder %s26, 0
    %p137 = por %p135, %p136
    %s139 = sadd.s32 %s138, 1
    %p142 = scmp.eq.s32.totalorder %s20, 1
    %p143 = scmp.ne.s32.totalorder %s138, %s140
    %p144 = scmp.eq.s32.totalorder %s20, 0
    %p145 = por %p143, %p144
    %p146 = scmp.ne.s32.totalorder %s138, %s140
    %p147 = scmp.eq.s32.totalorder %s25, 1
    %p148 = por %p146, %p147
    %p149 = scmp.ne.s32.totalorder %s140, %s141
    %p150 = scmp.eq.s32.totalorder %s25, 0
    %p151 = por %p149, %p150
    %p152 = scmp.ne.s32.totalorder %s140, %s141
    %p153 = scmp.eq.s32.totalorder %s26, 1
    %p154 = por %p152, %p153
    %p156 = scmp.ne.s32.totalorder %s141, %s155
    %p157 = scmp.eq.s32.totalorder %s26, 0
    %p158 = por %p156, %p157
    %s160 = sadd.s32 %s159, 1
    %p163 = scmp.eq.s32.totalorder %s20, 1
    %p164 = scmp.ne.s32.totalorder %s159, %s161
    %p165 = scmp.eq.s32.totalorder %s20, 0
    %p166 = por %p164, %p165
    %p167 = scmp.ne.s32.totalorder %s159, %s161
    %p168 = scmp.eq.s32.totalorder %s25, 1
    %p169 = por %p167, %p168
    %p170 = scmp.ne.s32.totalorder %s161, %s162
    %p171 = scmp.eq.s32.totalorder %s25, 0
    %p172 = por %p170, %p171
    %p173 = scmp.ne.s32.totalorder %s161, %s162
    %p174 = scmp.eq.s32.totalorder %s26, 1
    %p175 = por %p173, %p174
    %p177 = scmp.ne.s32.totalorder %s162, %s176
    %p178 = scmp.eq.s32.totalorder %s26, 0
    %p179 = por %p177, %p178
    %s181 = sadd.s32 %s180, 1
    %p184 = scmp.eq.s32.totalorder %s20, 1
    %p185 = scmp.ne.s32.totalorder %s180, %s182
    %p186 = scmp.eq.s32.totalorder %s20, 0
    %p187 = por %p185, %p186
    %p188 = scmp.ne.s32.totalorder %s180, %s182
    %p189 = scmp.eq.s32.totalorder %s25, 1
    %p190 = por %p188, %p189
    %p191 = scmp.ne.s32.totalorder %s182, %s183
    %p192 = scmp.eq.s32.totalorder %s25, 0
    %p193 = por %p191, %p192
    %p194 = scmp.ne.s32.totalorder %s182, %s183
    %p195 = scmp.eq.s32.totalorder %s26, 1
    %p196 = por %p194, %p195
    %p198 = scmp.ne.s32.totalorder %s183, %s197
    %p199 = scmp.eq.s32.totalorder %s26, 0
    %p200 = por %p198, %p199
    %s202 = sadd.s32 %s201, 1
    %p205 = scmp.eq.s32.totalorder %s20, 1
    %p206 = scmp.ne.s32.totalorder %s201, %s203
    %p207 = scmp.eq.s32.totalorder %s20, 0
    %p208 = por %p206, %p207
    %p209 = scmp.ne.s32.totalorder %s201, %s203
    %p210 = scmp.eq.s32.totalorder %s25, 1
    %p211 = por %p209, %p210
    %p212 = scmp.ne.s32.totalorder %s203, %s204
    %p213 = scmp.eq.s32.totalorder %s25, 0
    %p214 = por %p212, %p213
    %p215 = scmp.ne.s32.totalorder %s203, %s204
    %p216 = scmp.eq.s32.totalorder %s26, 1
    %p217 = por %p215, %p216
    %p219 = scmp.ne.s32.totalorder %s204, %s218
    %p220 = scmp.eq.s32.totalorder %s26, 0
    %p221 = por %p219, %p220
    %s223 = sadd.s32 %s222, 1
    %p226 = scmp.eq.s32.totalorder %s20, 1
    %p227 = scmp.ne.s32.totalorder %s222, %s224
    %p228 = scmp.eq.s32.totalorder %s20, 0
    %p229 = por %p227, %p228
    %p230 = scmp.ne.s32.totalorder %s222, %s224
    %p231 = scmp.eq.s32.totalorder %s25, 1
    %p232 = por %p230, %p231
    %p233 = scmp.ne.s32.totalorder %s224, %s225
    %p234 = scmp.eq.s32.totalorder %s25, 0
    %p235 = por %p233, %p234
    %p236 = scmp.ne.s32.totalorder %s224, %s225
    %p237 = scmp.eq.s32.totalorder %s26, 1
    %p238 = por %p236, %p237
    %p240 = scmp.ne.s32.totalorder %s225, %s239
    %p241 = scmp.eq.s32.totalorder %s26, 0
    %p242 = por %p240, %p241
    %s244 = sadd.s32 %s243, 1
    %p247 = scmp.eq.s32.totalorder %s20, 1
    %p248 = scmp.ne.s32.totalorder %s243, %s245
    %p249 = scmp.eq.s32.totalorder %s20, 0
    %p250 = por %p248, %p249
    %p251 = scmp.ne.s32.totalorder %s243, %s245
    %p252 = scmp.eq.s32.totalorder %s25, 1
    %p253 = por %p251, %p252
    %p254 = scmp.ne.s32.totalorder %s245, %s246
    %p255 = scmp.eq.s32.totalorder %s25, 0
    %p256 = por %p254, %p255
    %p257 = scmp.ne.s32.totalorder %s245, %s246
    %p258 = scmp.eq.s32.totalorder %s26, 1
    %p259 = por %p257, %p258
    %p261 = scmp.ne.s32.totalorder %s246, %s260
    %p262 = scmp.eq.s32.totalorder %s26, 0
    %p263 = por %p261, %p262
    %s265 = sadd.s32 %s264, 1
    %p268 = scmp.eq.s32.totalorder %s20, 1
    %p269 = scmp.ne.s32.totalorder %s264, %s266
    %p270 = scmp.eq.s32.totalorder %s20, 0
    %p271 = por %p269, %p270
    %p272 = scmp.ne.s32.totalorder %s264, %s266
    %p273 = scmp.eq.s32.totalorder %s25, 1
    %p274 = por %p272, %p273
    %p275 = scmp.ne.s32.totalorder %s266, %s267
    %p276 = scmp.eq.s32.totalorder %s25, 0
    %p277 = por %p275, %p276
    %p278 = scmp.ne.s32.totalorder %s266, %s267
    %p279 = scmp.eq.s32.totalorder %s26, 1
    %p280 = por %p278, %p279
    %p282 = scmp.ne.s32.totalorder %s267, %s281
    %p283 = scmp.eq.s32.totalorder %s26, 0
    %p284 = por %p282, %p283
    %s286 = sadd.s32 %s285, 1
    %p289 = scmp.eq.s32.totalorder %s20, 1
    %p290 = scmp.ne.s32.totalorder %s285, %s287
    %p291 = scmp.eq.s32.totalorder %s20, 0
    %p292 = por %p290, %p291
    %p293 = scmp.ne.s32.totalorder %s285, %s287
    %p294 = scmp.eq.s32.totalorder %s25, 1
    %p295 = por %p293, %p294
    %p296 = scmp.ne.s32.totalorder %s287, %s288
    %p297 = scmp.eq.s32.totalorder %s25, 0
    %p298 = por %p296, %p297
    %p299 = scmp.ne.s32.totalorder %s287, %s288
    %p300 = scmp.eq.s32.totalorder %s26, 1
    %p301 = por %p299, %p300
    %p303 = scmp.ne.s32.totalorder %s288, %s302
    %p304 = scmp.eq.s32.totalorder %s26, 0
    %p305 = por %p303, %p304
    %s307 = sadd.s32 %s306, 1
    %p310 = scmp.eq.s32.totalorder %s20, 1
    %p311 = scmp.ne.s32.totalorder %s306, %s308
    %p312 = scmp.eq.s32.totalorder %s20, 0
    %p313 = por %p311, %p312
    %p314 = scmp.ne.s32.totalorder %s306, %s308
    %p315 = scmp.eq.s32.totalorder %s25, 1
    %p316 = por %p314, %p315
    %p317 = scmp.ne.s32.totalorder %s308, %s309
    %p318 = scmp.eq.s32.totalorder %s25, 0
    %p319 = por %p317, %p318
    %p320 = scmp.ne.s32.totalorder %s308, %s309
    %p321 = scmp.eq.s32.totalorder %s26, 1
    %p322 = por %p320, %p321
    %p324 = scmp.ne.s32.totalorder %s309, %s323
    %p325 = scmp.eq.s32.totalorder %s26, 0
    %p326 = por %p324, %p325
    %s327 = ssub.s32 %s20, %s27
    %p328 = scmp.eq.s32.totalorder %s327, 0
    %s330 = sadd.s32 %s329, 1
    %s331 = scalar_select %p328, %s329, %s330
    %p334 = pneg %p328
    %p335 = scmp.eq.s32.totalorder %s20, 1
    %p336 = por %p334, %p335
    %p337 = scmp.ne.s32.totalorder %s329, %s332
    %p338 = scmp.eq.s32.totalorder %s20, 0
    %p339 = por %p337, %p338
    %p340 = scmp.ne.s32.totalorder %s329, %s332
    %p341 = scmp.eq.s32.totalorder %s25, 1
    %p342 = por %p340, %p341
    %p343 = scmp.ne.s32.totalorder %s332, %s333
    %p344 = scmp.eq.s32.totalorder %s25, 0
    %p345 = por %p343, %p344
    %p346 = scmp.ne.s32.totalorder %s332, %s333
    %p347 = scmp.eq.s32.totalorder %s26, 1
    %p348 = por %p346, %p347
    %p350 = scmp.ne.s32.totalorder %s333, %s349
    %p351 = scmp.eq.s32.totalorder %s26, 0
    %p352 = por %p350, %p351
    %p353 = scmp.le.s32.totalorder 1, %s20
    %p354 = scmp.lt.s32.totalorder %s20, 3
    %p355 = pnand %p353, %p354
    %p356 = pneg %p355
    // Predicated region
    $region9: #{c2f_forward.1} parent=5 // pred_check
      _
    $region10: #{c2f_forward.1} parent=5 // pred_check_branch
      %358 = sbr.rel (%p355) target = $region12
    $region11: #{c2f_forward.1} parent=5 // pred_region
      %s359 = ssub.s32 %s20, 1
      // Predicated region
      $region13: #{c2f_forward.1} parent=11 // pred_check
        %p360 = pneg %p67
      $region14: #{c2f_forward.1} parent=11 // pred_check_branch
        %362 = sbr.rel (%p360) target = $region16
      $region15: #{c2f_forward.1} parent=11 // pred_region
        _
      $region16: #{c2f_forward.1} parent=11 // pred_fallthru
        _
      // Predicated region
      $region17: #{c2f_forward.1} parent=11 // pred_check
        %p363 = pneg %p88
      $region18: #{c2f_forward.1} parent=11 // pred_check_branch
        %365 = sbr.rel (%p363) target = $region20
      $region19: #{c2f_forward.1} parent=11 // pred_region
        _
      $region20: #{c2f_forward.1} parent=11 // pred_fallthru
        _
      // Predicated region
      $region21: #{c2f_forward.1} parent=11 // pred_check
        %p366 = pneg %p109
      $region22: #{c2f_forward.1} parent=11 // pred_check_branch
        %368 = sbr.rel (%p366) target = $region24
      $region23: #{c2f_forward.1} parent=11 // pred_region
        _
      $region24: #{c2f_forward.1} parent=11 // pred_fallthru
        _
      // Predicated region
      $region25: #{c2f_forward.1} parent=11 // pred_check
        %p369 = pneg %p130
      $region26: #{c2f_forward.1} parent=11 // pred_check_branch
        %371 = sbr.rel (%p369) target = $region28
      $region27: #{c2f_forward.1} parent=11 // pred_region
        _
      $region28: #{c2f_forward.1} parent=11 // pred_fallthru
        _
      // Predicated region
      $region29: #{c2f_forward.1} parent=11 // pred_check
        %p372 = pneg %p151
      $region30: #{c2f_forward.1} parent=11 // pred_check_branch
        %374 = sbr.rel (%p372) target = $region32
      $region31: #{c2f_forward.1} parent=11 // pred_region
        _
      $region32: #{c2f_forward.1} parent=11 // pred_fallthru
        _
      // Predicated region
      $region33: #{c2f_forward.1} parent=11 // pred_check
        %p375 = pneg %p172
      $region34: #{c2f_forward.1} parent=11 // pred_check_branch
        %377 = sbr.rel (%p375) target = $region36
      $region35: #{c2f_forward.1} parent=11 // pred_region
        _
      $region36: #{c2f_forward.1} parent=11 // pred_fallthru
        _
      // Predicated region
      $region37: #{c2f_forward.1} parent=11 // pred_check
        %p378 = pneg %p193
      $region38: #{c2f_forward.1} parent=11 // pred_check_branch
        %380 = sbr.rel (%p378) target = $region40
      $region39: #{c2f_forward.1} parent=11 // pred_region
        _
      $region40: #{c2f_forward.1} parent=11 // pred_fallthru
        _
      // Predicated region
      $region41: #{c2f_forward.1} parent=11 // pred_check
        %p381 = pneg %p214
      $region42: #{c2f_forward.1} parent=11 // pred_check_branch
        %383 = sbr.rel (%p381) target = $region44
      $region43: #{c2f_forward.1} parent=11 // pred_region
        _
      $region44: #{c2f_forward.1} parent=11 // pred_fallthru
        _
      // Predicated region
      $region45: #{c2f_forward.1} parent=11 // pred_check
        %p384 = pneg %p235
      $region46: #{c2f_forward.1} parent=11 // pred_check_branch
        %386 = sbr.rel (%p384) target = $region48
      $region47: #{c2f_forward.1} parent=11 // pred_region
        _
      $region48: #{c2f_forward.1} parent=11 // pred_fallthru
        _
      // Predicated region
      $region49: #{c2f_forward.1} parent=11 // pred_check
        %p387 = pneg %p256
      $region50: #{c2f_forward.1} parent=11 // pred_check_branch
        %389 = sbr.rel (%p387) target = $region52
      $region51: #{c2f_forward.1} parent=11 // pred_region
        _
      $region52: #{c2f_forward.1} parent=11 // pred_fallthru
        _
      // Predicated region
      $region53: #{c2f_forward.1} parent=11 // pred_check
        %p390 = pneg %p277
      $region54: #{c2f_forward.1} parent=11 // pred_check_branch
        %392 = sbr.rel (%p390) target = $region56
      $region55: #{c2f_forward.1} parent=11 // pred_region
        _
      $region56: #{c2f_forward.1} parent=11 // pred_fallthru
        _
      // Predicated region
      $region57: #{c2f_forward.1} parent=11 // pred_check
        %p393 = pneg %p298
      $region58: #{c2f_forward.1} parent=11 // pred_check_branch
        %395 = sbr.rel (%p393) target = $region60
      $region59: #{c2f_forward.1} parent=11 // pred_region
        _
      $region60: #{c2f_forward.1} parent=11 // pred_fallthru
        _
      // Predicated region
      $region61: #{c2f_forward.1} parent=11 // pred_check
        %p396 = pneg %p319
      $region62: #{c2f_forward.1} parent=11 // pred_check_branch
        %398 = sbr.rel (%p396) target = $region64
      $region63: #{c2f_forward.1} parent=11 // pred_region
        _
      $region64: #{c2f_forward.1} parent=11 // pred_fallthru
        _
    $region12: #{c2f_forward.1} parent=5 // pred_fallthru
      _
    %p399 = scmp.lt.s32.totalorder %s20, 2
    // Predicated region
    $region65: #{c2f_forward.1} parent=5 // pred_check
      %p400 = pneg %p399
    $region66: #{c2f_forward.1} parent=5 // pred_check_branch
      %402 = sbr.rel (%p400) target = $region68
    $region67: #{c2f_forward.1} parent=5 // pred_region
      // Predicated region
      $region69: #{c2f_forward.1} parent=67 // pred_check
        %p403 = pneg %p40
      $region70: #{c2f_forward.1} parent=67 // pred_check_branch
        %405 = sbr.rel (%p403) target = $region72
      $region71: #{c2f_forward.1} parent=67 // pred_region
        %p406 = scmp.lt.s32.totalorder %s20, 1
        %s407 = scalar_select %p406, %s20, 1
        %s408 = smul.addr %s407, 41
        %s409 = smul.addr %s408, 4
        %s410 = scalar_lea.vmem %s0, %s409
      $region72: #{c2f_forward.1} parent=67 // pred_fallthru
        _
    $region68: #{c2f_forward.1} parent=5 // pred_fallthru
      _
    %p411 = scmp.le.s32.totalorder 1, %s20
    %p412 = scmp.lt.s32.totalorder %s20, 3
    %p413 = pnand %p411, %p412
    %p414 = pneg %p413
    // Predicated region
    $region73: #{c2f_forward.1} parent=5 // pred_check
      _
    $region74: #{c2f_forward.1} parent=5 // pred_check_branch
      %416 = sbr.rel (%p413) target = $region76
    $region75: #{c2f_forward.1} parent=5 // pred_region
      %s417 = ssub.s32 %s20, 1
      %p418 = scmp.lt.s32.totalorder %s25, 1
      %s419 = scalar_select %p418, %s25, 1
      %s420 = smul.addr %s419, 41
      %s421 = smul.addr %s420, 4
      %s422 = scalar_lea.vmem %s0, %s421
      %p423 = pneg %p46
      %p424 = pneg %p43
      %p425 = pneg %p67
      %p426 = pneg %p64
      %p427 = pneg %p88
      %p428 = pneg %p85
      %p429 = pneg %p109
      %p430 = pneg %p106
      %p431 = pneg %p130
      %p432 = pneg %p127
      %p433 = pneg %p151
      %p434 = pneg %p148
      %p435 = pneg %p172
      %p436 = pneg %p169
      %p437 = pneg %p193
      %p438 = pneg %p190
      %p439 = pneg %p214
      %p440 = pneg %p211
      %p441 = pneg %p235
      %p442 = pneg %p232
      %p443 = pneg %p256
      %p444 = pneg %p253
      %p445 = pneg %p277
      %p446 = pneg %p274
      %p447 = pneg %p298
      %p448 = pneg %p295
      %p449 = pneg %p319
      %p450 = pneg %p316
      %p451 = pneg %p345
      %p452 = pneg %p342
      %p453 = scmp.lt.s32.totalorder %s25, 1
      %s454 = scalar_select %p453, %s25, 1
      %s455 = smul.addr %s454, 41
      %s456 = smul.addr %s455, 8
      %s457 = scalar_lea.vmem %s14, %s456
      %p458 = scmp.lt.s32.totalorder %s25, 1
      %s459 = scalar_select %p458, %s25, 1
      %s460 = smul.addr %s459, 41
      %s461 = smul.addr %s460, 4
      %s462 = scalar_lea.vmem %s0, %s461
      %p463 = scmp.lt.s32.totalorder %s25, 1
      %s464 = scalar_select %p463, %s25, 1
      %s465 = smul.addr %s464, 41
      %s466 = smul.addr %s465, 8
      %s467 = scalar_lea.vmem %s14, %s466
      %v469 = vld [vmem:[%s462] sm:$0xf]
      %v470 = vld [vmem:[%s462 + $0x4] sm:$0xf]
      %v471 = vld [vmem:[%s462 + $0x8] sm:$0xf]
      %v472 = vld [vmem:[%s462 + $0xc] sm:$0xf]
      %v473 = vld [vmem:[%s462 + $0x10] sm:$0xf]
      %v474 = vld [vmem:[%s462 + $0x14] sm:$0xf]
      %v475 = vld [vmem:[%s462 + $0x18] sm:$0xf]
      %v476 = vld [vmem:[%s462 + $0x1c] sm:$0xf]
      %v477 = vld [vmem:[%s462 + $0x20] sm:$0xf]
      %v478 = vld [vmem:[%s462 + $0x24] sm:$0xf]
      %v479 = vld [vmem:[%s462 + $0x28] sm:$0xf]
      %v480 = vld [vmem:[%s462 + $0x2c] sm:$0xf]
      %v481 = vld [vmem:[%s462 + $0x30] sm:$0xf]
      %v482 = vld [vmem:[%s462 + $0x34] sm:$0xf]
      %v483 = vld [vmem:[%s462 + $0x38] sm:$0xf]
      %v484 = vld [vmem:[%s462 + $0x3c] sm:$0xf]
      %v485 = vld [vmem:[%s462 + $0x40] sm:$0xf]
      %v486 = vld [vmem:[%s462 + $0x44] sm:$0xf]
      %v487 = vld [vmem:[%s462 + $0x48] sm:$0xf]
      %v488 = vld [vmem:[%s462 + $0x4c] sm:$0xf]
      %v489 = vld [vmem:[%s462 + $0x50] sm:$0xf]
      %v490 = vld [vmem:[%s462 + $0x54] sm:$0xf]
      %v491 = vld [vmem:[%s462 + $0x58] sm:$0xf]
      %v492 = vld [vmem:[%s462 + $0x5c] sm:$0xf]
      %v493 = vld [vmem:[%s462 + $0x60] sm:$0xf]
      %v494 = vld [vmem:[%s462 + $0x64] sm:$0xf]
      %v495 = vld [vmem:[%s462 + $0x68] sm:$0xf]
      %v496 = vld [vmem:[%s462 + $0x6c] sm:$0xf]
      %v497 = vld [vmem:[%s462 + $0x70] sm:$0xf]
      %v498 = vld [vmem:[%s462 + $0x74] sm:$0xf]
      %v499 = vld [vmem:[%s462 + $0x78] sm:$0xf]
      %v500 = vld [vmem:[%s462 + $0x7c] sm:$0xf]
      %v501 = vld [vmem:[%s462 + $0x80] sm:$0xf]
      %v502 = vld [vmem:[%s462 + $0x84] sm:$0xf]
      %v503 = vld [vmem:[%s462 + $0x88] sm:$0xf]
      %v504 = vld [vmem:[%s462 + $0x8c] sm:$0xf]
      %v505 = vld [vmem:[%s462 + $0x90] sm:$0xf]
      %v506 = vld [vmem:[%s462 + $0x94] sm:$0xf]
      %v507 = vld [vmem:[%s462 + $0x98] sm:$0xf]
      %v508 = vld [vmem:[%s462 + $0x9c] sm:$0xf]
      %v509 = vld [vmem:[%s462 + $0xa0] sm:$0x3]
      %v510 = vld [vmem:[%s1] sm:$0xff]
      %v511 = vld [vmem:[%s1 + $0x8] sm:$0xff]
      %v512 = vld [vmem:[%s1 + $0x10] sm:$0xff]
      %v513 = vld [vmem:[%s1 + $0x18] sm:$0xff]
      %v514 = vld [vmem:[%s1 + $0x20] sm:$0xff]
      %v515 = vld [vmem:[%s1 + $0x28] sm:$0xff]
      %v516 = vld [vmem:[%s1 + $0x30] sm:$0xff]
      %v517 = vld [vmem:[%s1 + $0x38] sm:$0xff]
      %v518 = vld [vmem:[%s1 + $0x40] sm:$0xff]
      %v519 = vld [vmem:[%s1 + $0x48] sm:$0xff]
      %v520 = vld [vmem:[%s1 + $0x50] sm:$0xff]
      %v521 = vld [vmem:[%s1 + $0x58] sm:$0xff]
      %v522 = vld [vmem:[%s1 + $0x60] sm:$0xff]
      %v523 = vld [vmem:[%s1 + $0x68] sm:$0xff]
      %v524 = vld [vmem:[%s1 + $0x70] sm:$0xff]
      %v525 = vld [vmem:[%s1 + $0x78] sm:$0xff]
      %v526 = vld [vmem:[%s1 + $0x80] sm:$0xff]
      %v527 = vld [vmem:[%s1 + $0x88] sm:$0xff]
      %v528 = vld [vmem:[%s1 + $0x90] sm:$0xff]
      %v529 = vld [vmem:[%s1 + $0x98] sm:$0xff]
      %v530 = vld [vmem:[%s1 + $0xa0] sm:$0xff]
      %v531 = vld [vmem:[%s1 + $0xa8] sm:$0xff]
      %v532 = vld [vmem:[%s1 + $0xb0] sm:$0xff]
      %v533 = vld [vmem:[%s1 + $0xb8] sm:$0xff]
      %v534 = vld [vmem:[%s1 + $0xc0] sm:$0xff]
      %v535 = vld [vmem:[%s1 + $0xc8] sm:$0xff]
      %v536 = vld [vmem:[%s1 + $0xd0] sm:$0xff]
      %v537 = vld [vmem:[%s1 + $0xd8] sm:$0xff]
      %v538 = vld [vmem:[%s1 + $0xe0] sm:$0xff]
      %v539 = vld [vmem:[%s1 + $0xe8] sm:$0xff]
      %v540 = vld [vmem:[%s1 + $0xf0] sm:$0xff]
      %v541 = vld [vmem:[%s1 + $0xf8] sm:$0xff]
      %v542 = vld [vmem:[%s1 + $0x100] sm:$0xff]
      %v543 = vld [vmem:[%s1 + $0x108] sm:$0xff]
      %v544 = vld [vmem:[%s1 + $0x110] sm:$0xff]
      %v545 = vld [vmem:[%s1 + $0x118] sm:$0xff]
      %v546 = vld [vmem:[%s1 + $0x120] sm:$0xff]
      %v547 = vld [vmem:[%s1 + $0x128] sm:$0xff]
      %v548 = vld [vmem:[%s1 + $0x130] sm:$0xff]
      %v549 = vld [vmem:[%s1 + $0x138] sm:$0xff]
      %v550 = vld [vmem:[%s1 + $0x140] sm:$0xf]
      %v551 = vld [vmem:[%s2] sm:$0x3]
      %v552 = vld [vmem:[%s4] sm:$0x1]
      %v554 = vlaneseq
      %v555 = vshrl.u32 %v554, 7
      %v556 = vsub.s32 0, %v555
      %v557 = vrot.slane %v552, %v556
      %v600 = vunpack.c.l.b16 %v469
      %v601 = vunpack.c.l.b16 %v470
      %v602 = vunpack.c.l.b16 %v471
      %v603 = vunpack.c.l.b16 %v472
      %v604 = vunpack.c.l.b16 %v473
      %v605 = vunpack.c.l.b16 %v474
      %v606 = vunpack.c.l.b16 %v475
      %v607 = vunpack.c.l.b16 %v476
      %v608 = vunpack.c.l.b16 %v477
      %v609 = vunpack.c.l.b16 %v478
      %v610 = vunpack.c.l.b16 %v479
      %v611 = vunpack.c.l.b16 %v480
      %v612 = vunpack.c.l.b16 %v481
      %v613 = vunpack.c.l.b16 %v482
      %v614 = vunpack.c.l.b16 %v483
      %v615 = vunpack.c.l.b16 %v484
      %v616 = vunpack.c.l.b16 %v485
      %v617 = vunpack.c.l.b16 %v486
      %v618 = vunpack.c.l.b16 %v487
      %v619 = vunpack.c.l.b16 %v488
      %v620 = vunpack.c.l.b16 %v489
      %v621 = vunpack.c.l.b16 %v490
      %v622 = vunpack.c.l.b16 %v491
      %v623 = vunpack.c.l.b16 %v492
      %v624 = vunpack.c.l.b16 %v493
      %v625 = vunpack.c.l.b16 %v494
      %v626 = vunpack.c.l.b16 %v495
      %v627 = vunpack.c.l.b16 %v496
      %v628 = vunpack.c.l.b16 %v497
      %v629 = vunpack.c.l.b16 %v498
      %v630 = vunpack.c.l.b16 %v499
      %v631 = vunpack.c.l.b16 %v500
      %v632 = vunpack.c.l.b16 %v501
      %v633 = vunpack.c.l.b16 %v502
      %v634 = vunpack.c.l.b16 %v503
      %v635 = vunpack.c.l.b16 %v504
      %v636 = vunpack.c.l.b16 %v505
      %v637 = vunpack.c.l.b16 %v506
      %v638 = vunpack.c.l.b16 %v507
      %v639 = vunpack.c.l.b16 %v508
      %v640 = vunpack.c.l.b16 %v509
      %v641 = vpack.c.b16 %v601, %v600
      %v642 = vpack.c.b16 %v603, %v602
      %v643 = vpack.c.b16 %v605, %v604
      %v644 = vpack.c.b16 %v607, %v606
      %v645 = vpack.c.b16 %v609, %v608
      %v646 = vpack.c.b16 %v611, %v610
      %v647 = vpack.c.b16 %v613, %v612
      %v648 = vpack.c.b16 %v615, %v614
      %v649 = vpack.c.b16 %v617, %v616
      %v650 = vpack.c.b16 %v619, %v618
      %v651 = vpack.c.b16 %v621, %v620
      %v652 = vpack.c.b16 %v623, %v622
      %v653 = vpack.c.b16 %v625, %v624
      %v654 = vpack.c.b16 %v627, %v626
      %v655 = vpack.c.b16 %v629, %v628
      %v656 = vpack.c.b16 %v631, %v630
      %v657 = vpack.c.b16 %v633, %v632
      %v658 = vpack.c.b16 %v635, %v634
      %v659 = vpack.c.b16 %v637, %v636
      %v660 = vpack.c.b16 %v639, %v638
      %v661 = vpack.c.b16 %v640, %v640
      %vm662 = vcmask 31744
      %v664 = vsel %vm662, %v641, 0
      %v667 = vsel %vm662, %v642, 0
      %v670 = vsel %vm662, %v643, 0
      %v673 = vsel %vm662, %v644, 0
      %v676 = vsel %vm662, %v645, 0
      %v679 = vsel %vm662, %v646, 0
      %v682 = vsel %vm662, %v647, 0
      %v685 = vsel %vm662, %v648, 0
      %v688 = vsel %vm662, %v649, 0
      %v691 = vsel %vm662, %v650, 0
      %v694 = vsel %vm662, %v651, 0
      %v697 = vsel %vm662, %v652, 0
      %v700 = vsel %vm662, %v653, 0
      %v703 = vsel %vm662, %v654, 0
      %v706 = vsel %vm662, %v655, 0
      %v709 = vsel %vm662, %v656, 0
      %v712 = vsel %vm662, %v657, 0
      %v715 = vsel %vm662, %v658, 0
      %v718 = vsel %vm662, %v659, 0
      %v721 = vsel %vm662, %v660, 0
      %v724 = vsel %vm662, %v661, 0
      %vm726 = vcmask 1041408
      %v728 = vsel %vm726, %v551, 0
      %730 = vmatprep.subr.bf16.mxu0 0
      %731 = vmatpush1.bf16.msra.mxu0 %v728
      %732 = vmatprep.subr.bf16.mxu0 0
      %733 = vmatpush1.bf16.msra.mxu0 0
      %734 = vmatprep.subr.bf16.mxu0 0
      %735 = vmatpush1.bf16.msra.mxu0 0
      %736 = vmatprep.subr.bf16.mxu0 0
      %737 = vmatpush1.bf16.msra.mxu0 0
      %738 = vmatprep.subr.bf16.mxu0 0
      %739 = vmatpush1.bf16.msra.mxu0 0
      %740 = vmatprep.subr.bf16.mxu0 0
      %741 = vmatpush1.bf16.msra.mxu0 0
      %742 = vmatprep.subr.bf16.mxu0 0
      %743 = vmatpush1.bf16.msra.mxu0 0
      %744 = vmatprep.subr.bf16.mxu0 0
      %745 = vmatpush1.bf16.msra.mxu0 0
      %746 = vmatprep.subr.bf16.mxu0 0
      %747 = vmatpush1.bf16.msra.mxu0 0
      %748 = vmatprep.subr.bf16.mxu0 0
      %749 = vmatpush1.bf16.msra.mxu0 0
      %750 = vmatprep.subr.bf16.mxu0 0
      %751 = vmatpush1.bf16.msra.mxu0 0
      %752 = vmatprep.subr.bf16.mxu0 0
      %753 = vmatpush1.bf16.msra.mxu0 0
      %754 = vmatprep.subr.bf16.mxu0 0
      %755 = vmatpush1.bf16.msra.mxu0 0
      %756 = vmatprep.subr.bf16.mxu0 0
      %757 = vmatpush1.bf16.msra.mxu0 0
      %758 = vmatprep.subr.bf16.mxu0 0
      %759 = vmatpush1.bf16.msra.mxu0 0
      %760 = vmatprep.subr.bf16.mxu0 0
      %761 = vmatpush1.bf16.msra.mxu0 0
      %762 = vmatprep.mubr.bf16.mxu0 0
      %763 = vmatmul.mubr.bf16.gmra.mrb[0].mxu0 %v664
      %v764 = vpop.f32.mrb[0].mxu0
      %v765 = vadd.f32 %v557, %v764
      %v766 = vpop.f32.mrb[0].mxu0
      %v767 = vpop.f32.mrb[0].mxu0
      %v768 = vadd.f32 %v557, %v767
      %v769 = vpop.f32.mrb[0].mxu0
      %770 = vmatprep.mubr.bf16.mxu0 0
      %771 = vmatmul.mubr.bf16.gmra.mrb[0].mxu0 %v667
      %v772 = vpop.f32.mrb[0].mxu0
      %v773 = vadd.f32 %v557, %v772
      %v774 = vpop.f32.mrb[0].mxu0
      %v775 = vpop.f32.mrb[0].mxu0
      %v776 = vadd.f32 %v557, %v775
      %v777 = vpop.f32.mrb[0].mxu0
      %778 = vmatprep.mubr.bf16.mxu0 0
      %779 = vmatmul.mubr.bf16.gmra.mrb[0].mxu0 %v670
      %v780 = vpop.f32.mrb[0].mxu0
      %v781 = vadd.f32 %v557, %v780
      %v782 = vpop.f32.mrb[0].mxu0
      %v783 = vpop.f32.mrb[0].mxu0
      %v784 = vadd.f32 %v557, %v783
      %v785 = vpop.f32.mrb[0].mxu0
      %786 = vmatprep.mubr.bf16.mxu0 0
      %787 = vmatmul.mubr.bf16.gmra.mrb[0].mxu0 %v673
      %v788 = vpop.f32.mrb[0].mxu0
      %v789 = vadd.f32 %v557, %v788
      %v790 = vpop.f32.mrb[0].mxu0
      %v791 = vpop.f32.mrb[0].mxu0
      %v792 = vadd.f32 %v557, %v791
      %v793 = vpop.f32.mrb[0].mxu0
      %794 = vmatprep.mubr.bf16.mxu0 0
      %795 = vmatmul.mubr.bf16.gmra.mrb[0].mxu0 %v676
      %v796 = vpop.f32.mrb[0].mxu0
      %v797 = vadd.f32 %v557, %v796
      %v798 = vpop.f32.mrb[0].mxu0
      %v799 = vpop.f32.mrb[0].mxu0
      %v800 = vadd.f32 %v557, %v799
      %v801 = vpop.f32.mrb[0].mxu0
      %802 = vmatprep.mubr.bf16.mxu0 0
      %803 = vmatmul.mubr.bf16.gmra.mrb[0].mxu0 %v679
      %v804 = vpop.f32.mrb[0].mxu0
      %v805 = vadd.f32 %v557, %v804
      %v806 = vpop.f32.mrb[0].mxu0
      %v807 = vpop.f32.mrb[0].mxu0
      %v808 = vadd.f32 %v557, %v807
      %v809 = vpop.f32.mrb[0].mxu0
      %810 = vmatprep.mubr.bf16.mxu0 0
      %811 = vmatmul.mubr.bf16.gmra.mrb[0].mxu0 %v682
      %v812 = vpop.f32.mrb[0].mxu0
      %v813 = vadd.f32 %v557, %v812
      %v814 = vpop.f32.mrb[0].mxu0
      %v815 = vpop.f32.mrb[0].mxu0
      %v816 = vadd.f32 %v557, %v815
      %v817 = vpop.f32.mrb[0].mxu0
      %818 = vmatprep.mubr.bf16.mxu0 0
      %819 = vmatmul.mubr.bf16.gmra.mrb[0].mxu0 %v685
      %v820 = vpop.f32.mrb[0].mxu0
      %v821 = vadd.f32 %v557, %v820
      %v822 = vpop.f32.mrb[0].mxu0
      %v823 = vpop.f32.mrb[0].mxu0
      %v824 = vadd.f32 %v557, %v823
      %v825 = vpop.f32.mrb[0].mxu0
      %826 = vmatprep.mubr.bf16.mxu0 0
      %827 = vmatmul.mubr.bf16.gmra.mrb[0].mxu0 %v688
      %v828 = vpop.f32.mrb[0].mxu0
      %v829 = vadd.f32 %v557, %v828
      %v830 = vpop.f32.mrb[0].mxu0
      %v831 = vpop.f32.mrb[0].mxu0
      %v832 = vadd.f32 %v557, %v831
      %v833 = vpop.f32.mrb[0].mxu0
      %834 = vmatprep.mubr.bf16.mxu0 0
      %835 = vmatmul.mubr.bf16.gmra.mrb[0].mxu0 %v691
      %v836 = vpop.f32.mrb[0].mxu0
      %v837 = vadd.f32 %v557, %v836
      %v838 = vpop.f32.mrb[0].mxu0
      %v839 = vpop.f32.mrb[0].mxu0
      %v840 = vadd.f32 %v557, %v839
      %v841 = vpop.f32.mrb[0].mxu0
      %842 = vmatprep.mubr.bf16.mxu0 0
      %843 = vmatmul.mubr.bf16.gmra.mrb[0].mxu0 %v694
      %v844 = vpop.f32.mrb[0].mxu0
      %v845 = vadd.f32 %v557, %v844
      %v846 = vpop.f32.mrb[0].mxu0
      %v847 = vpop.f32.mrb[0].mxu0
      %v848 = vadd.f32 %v557, %v847
      %v849 = vpop.f32.mrb[0].mxu0
      %850 = vmatprep.mubr.bf16.mxu0 0
      %851 = vmatmul.mubr.bf16.gmra.mrb[0].mxu0 %v697
      %v852 = vpop.f32.mrb[0].mxu0
      %v853 = vadd.f32 %v557, %v852
      %v854 = vpop.f32.mrb[0].mxu0
      %v855 = vpop.f32.mrb[0].mxu0
      %v856 = vadd.f32 %v557, %v855
      %v857 = vpop.f32.mrb[0].mxu0
      %858 = vmatprep.mubr.bf16.mxu0 0
      %859 = vmatmul.mubr.bf16.gmra.mrb[0].mxu0 %v700
      %v860 = vpop.f32.mrb[0].mxu0
      %v861 = vadd.f32 %v557, %v860
      %v862 = vpop.f32.mrb[0].mxu0
      %v863 = vpop.f32.mrb[0].mxu0
      %v864 = vadd.f32 %v557, %v863
      %v865 = vpop.f32.mrb[0].mxu0
      %866 = vmatprep.mubr.bf16.mxu0 0
      %867 = vmatmul.mubr.bf16.gmra.mrb[0].mxu0 %v703
      %v868 = vpop.f32.mrb[0].mxu0
      %v869 = vadd.f32 %v557, %v868
      %v870 = vpop.f32.mrb[0].mxu0
      %v871 = vpop.f32.mrb[0].mxu0
      %v872 = vadd.f32 %v557, %v871
      %v873 = vpop.f32.mrb[0].mxu0
      %874 = vmatprep.mubr.bf16.mxu0 0
      %875 = vmatmul.mubr.bf16.gmra.mrb[0].mxu0 %v706
      %v876 = vpop.f32.mrb[0].mxu0
      %v877 = vadd.f32 %v557, %v876
      %v878 = vpop.f32.mrb[0].mxu0
      %v879 = vpop.f32.mrb[0].mxu0
      %v880 = vadd.f32 %v557, %v879
      %v881 = vpop.f32.mrb[0].mxu0
      %882 = vmatprep.mubr.bf16.mxu0 0
      %883 = vmatmul.mubr.bf16.gmra.mrb[0].mxu0 %v709
      %v884 = vpop.f32.mrb[0].mxu0
      %v885 = vadd.f32 %v557, %v884
      %v886 = vpop.f32.mrb[0].mxu0
      %v887 = vpop.f32.mrb[0].mxu0
      %v888 = vadd.f32 %v557, %v887
      %v889 = vpop.f32.mrb[0].mxu0
      %890 = vmatprep.mubr.bf16.mxu0 0
      %891 = vmatmul.mubr.bf16.gmra.mrb[0].mxu0 %v712
      %v892 = vpop.f32.mrb[0].mxu0
      %v893 = vadd.f32 %v557, %v892
      %v894 = vpop.f32.mrb[0].mxu0
      %v895 = vpop.f32.mrb[0].mxu0
      %v896 = vadd.f32 %v557, %v895
      %v897 = vpop.f32.mrb[0].mxu0
      %898 = vmatprep.mubr.bf16.mxu0 0
      %899 = vmatmul.mubr.bf16.gmra.mrb[0].mxu0 %v715
      %v900 = vpop.f32.mrb[0].mxu0
      %v901 = vadd.f32 %v557, %v900
      %v902 = vpop.f32.mrb[0].mxu0
      %v903 = vpop.f32.mrb[0].mxu0
      %v904 = vadd.f32 %v557, %v903
      %v905 = vpop.f32.mrb[0].mxu0
      %906 = vmatprep.mubr.bf16.mxu0 0
      %907 = vmatmul.mubr.bf16.gmra.mrb[0].mxu0 %v718
      %v908 = vpop.f32.mrb[0].mxu0
      %v909 = vadd.f32 %v557, %v908
      %v910 = vpop.f32.mrb[0].mxu0
      %v911 = vpop.f32.mrb[0].mxu0
      %v912 = vadd.f32 %v557, %v911
      %v913 = vpop.f32.mrb[0].mxu0
      %914 = vmatprep.mubr.bf16.mxu0 0
      %915 = vmatmul.mubr.bf16.gmra.mrb[0].mxu0 %v721
      %v916 = vpop.f32.mrb[0].mxu0
      %v917 = vadd.f32 %v557, %v916
      %v918 = vpop.f32.mrb[0].mxu0
      %v919 = vpop.f32.mrb[0].mxu0
      %v920 = vadd.f32 %v557, %v919
      %v921 = vpop.f32.mrb[0].mxu0
      %922 = vmatprep.mubr.bf16.mxu0 0
      %923 = vmatmul.mubr.bf16.gmra.mrb[0].mxu0 %v724
      %v924 = vpop.f32.mrb[0].mxu0
      %v925 = vadd.f32 %v557, %v924
      %v926 = vpop.f32.mrb[0].mxu0
      %v927 = vpop.f32.mrb[0].mxu0
      %v928 = vpop.f32.mrb[0].mxu0
      %929 = vdwg.mxu0
      %v930 = vxor.u32 %v765, 2147483648
      %v931 = vxor.u32 %v768, 2147483648
      %v932 = vxor.u32 %v773, 2147483648
      %v933 = vxor.u32 %v776, 2147483648
      %v934 = vxor.u32 %v781, 2147483648
      %v935 = vxor.u32 %v784, 2147483648
      %v936 = vxor.u32 %v789, 2147483648
      %v937 = vxor.u32 %v792, 2147483648
      %v938 = vxor.u32 %v797, 2147483648
      %v939 = vxor.u32 %v800, 2147483648
      %v940 = vxor.u32 %v805, 2147483648
      %v941 = vxor.u32 %v808, 2147483648
      %v942 = vxor.u32 %v813, 2147483648
      %v943 = vxor.u32 %v816, 2147483648
      %v944 = vxor.u32 %v821, 2147483648
      %v945 = vxor.u32 %v824, 2147483648
      %v946 = vxor.u32 %v829, 2147483648
      %v947 = vxor.u32 %v832, 2147483648
      %v948 = vxor.u32 %v837, 2147483648
      %v949 = vxor.u32 %v840, 2147483648
      %v950 = vxor.u32 %v845, 2147483648
      %v951 = vxor.u32 %v848, 2147483648
      %v952 = vxor.u32 %v853, 2147483648
      %v953 = vxor.u32 %v856, 2147483648
      %v954 = vxor.u32 %v861, 2147483648
      %v955 = vxor.u32 %v864, 2147483648
      %v956 = vxor.u32 %v869, 2147483648
      %v957 = vxor.u32 %v872, 2147483648
      %v958 = vxor.u32 %v877, 2147483648
      %v959 = vxor.u32 %v880, 2147483648
      %v960 = vxor.u32 %v885, 2147483648
      %v961 = vxor.u32 %v888, 2147483648
      %v962 = vxor.u32 %v893, 2147483648
      %v963 = vxor.u32 %v896, 2147483648
      %v964 = vxor.u32 %v901, 2147483648
      %v965 = vxor.u32 %v904, 2147483648
      %v966 = vxor.u32 %v909, 2147483648
      %v967 = vxor.u32 %v912, 2147483648
      %v968 = vxor.u32 %v917, 2147483648
      %v969 = vxor.u32 %v920, 2147483648
      %v970 = vxor.u32 %v925, 2147483648
      %v971 = vmul.f32 %v930, 1.442695
      %v972 = vpow.pop %v971
      %v973 = vmul.f32 %v931, 1.442695
      %v974 = vpow.pop %v973
      %v975 = vmul.f32 %v932, 1.442695
      %v976 = vpow.pop %v975
      %v977 = vmul.f32 %v933, 1.442695
      %v978 = vpow.pop %v977
      %v979 = vmul.f32 %v934, 1.442695
      %v980 = vpow.pop %v979
      %v981 = vmul.f32 %v935, 1.442695
      %v982 = vpow.pop %v981
      %v983 = vmul.f32 %v936, 1.442695
      %v984 = vpow.pop %v983
      %v985 = vmul.f32 %v937, 1.442695
      %v986 = vpow.pop %v985
      %v987 = vmul.f32 %v938, 1.442695
      %v988 = vpow.pop %v987
      %v989 = vmul.f32 %v939, 1.442695
      %v990 = vpow.pop %v989
      %v991 = vmul.f32 %v940, 1.442695
      %v992 = vpow.pop %v991
      %v993 = vmul.f32 %v941, 1.442695
      %v994 = vpow.pop %v993
      %v995 = vmul.f32 %v942, 1.442695
      %v996 = vpow.pop %v995
      %v997 = vmul.f32 %v943, 1.442695
      %v998 = vpow.pop %v997
      %v999 = vmul.f32 %v944, 1.442695
      %v1000 = vpow.pop %v999
      %v1001 = vmul.f32 %v945, 1.442695
      %v1002 = vpow.pop %v1001
      %v1003 = vmul.f32 %v946, 1.442695
      %v1004 = vpow.pop %v1003
      %v1005 = vmul.f32 %v947, 1.442695
      %v1006 = vpow.pop %v1005
      %v1007 = vmul.f32 %v948, 1.442695
      %v1008 = vpow.pop %v1007
      %v1009 = vmul.f32 %v949, 1.442695
      %v1010 = vpow.pop %v1009
      %v1011 = vmul.f32 %v950, 1.442695
      %v1012 = vpow.pop %v1011
      %v1013 = vmul.f32 %v951, 1.442695
      %v1014 = vpow.pop %v1013
      %v1015 = vmul.f32 %v952, 1.442695
      %v1016 = vpow.pop %v1015
      %v1017 = vmul.f32 %v953, 1.442695
      %v1018 = vpow.pop %v1017
      %v1019 = vmul.f32 %v954, 1.442695
      %v1020 = vpow.pop %v1019
      %v1021 = vmul.f32 %v955, 1.442695
      %v1022 = vpow.pop %v1021
      %v1023 = vmul.f32 %v956, 1.442695
      %v1024 = vpow.pop %v1023
      %v1025 = vmul.f32 %v957, 1.442695
      %v1026 = vpow.pop %v1025
      %v1027 = vmul.f32 %v958, 1.442695
      %v1028 = vpow.pop %v1027
      %v1029 = vmul.f32 %v959, 1.442695
      %v1030 = vpow.pop %v1029
      %v1031 = vmul.f32 %v960, 1.442695
      %v1032 = vpow.pop %v1031
      %v1033 = vmul.f32 %v961, 1.442695
      %v1034 = vpow.pop %v1033
      %v1035 = vmul.f32 %v962, 1.442695
      %v1036 = vpow.pop %v1035
      %v1037 = vmul.f32 %v963, 1.442695
      %v1038 = vpow.pop %v1037
      %v1039 = vmul.f32 %v964, 1.442695
      %v1040 = vpow.pop %v1039
      %v1041 = vmul.f32 %v965, 1.442695
      %v1042 = vpow.pop %v1041
      %v1043 = vmul.f32 %v966, 1.442695
      %v1044 = vpow.pop %v1043
      %v1045 = vmul.f32 %v967, 1.442695
      %v1046 = vpow.pop %v1045
      %v1047 = vmul.f32 %v968, 1.442695
      %v1048 = vpow.pop %v1047
      %v1049 = vmul.f32 %v969, 1.442695
      %v1050 = vpow.pop %v1049
      %v1051 = vmul.f32 %v970, 1.442695
      %v1052 = vpow.pop %v1051
      %v1053 = vadd.f32 %v972, 1.0
      %v1054 = vadd.f32 %v974, 1.0
      %v1055 = vadd.f32 %v976, 1.0
      %v1056 = vadd.f32 %v978, 1.0
      %v1057 = vadd.f32 %v980, 1.0
      %v1058 = vadd.f32 %v982, 1.0
      %v1059 = vadd.f32 %v984, 1.0
      %v1060 = vadd.f32 %v986, 1.0
      %v1061 = vadd.f32 %v988, 1.0
      %v1062 = vadd.f32 %v990, 1.0
      %v1063 = vadd.f32 %v992, 1.0
      %v1064 = vadd.f32 %v994, 1.0
      %v1065 = vadd.f32 %v996, 1.0
      %v1066 = vadd.f32 %v998, 1.0
      %v1067 = vadd.f32 %v1000, 1.0
      %v1068 = vadd.f32 %v1002, 1.0
      %v1069 = vadd.f32 %v1004, 1.0
      %v1070 = vadd.f32 %v1006, 1.0
      %v1071 = vadd.f32 %v1008, 1.0
      %v1072 = vadd.f32 %v1010, 1.0
      %v1073 = vadd.f32 %v1012, 1.0
      %v1074 = vadd.f32 %v1014, 1.0
      %v1075 = vadd.f32 %v1016, 1.0
      %v1076 = vadd.f32 %v1018, 1.0
      %v1077 = vadd.f32 %v1020, 1.0
      %v1078 = vadd.f32 %v1022, 1.0
      %v1079 = vadd.f32 %v1024, 1.0
      %v1080 = vadd.f32 %v1026, 1.0
      %v1081 = vadd.f32 %v1028, 1.0
      %v1082 = vadd.f32 %v1030, 1.0
      %v1083 = vadd.f32 %v1032, 1.0
      %v1084 = vadd.f32 %v1034, 1.0
      %v1085 = vadd.f32 %v1036, 1.0
      %v1086 = vadd.f32 %v1038, 1.0
      %v1087 = vadd.f32 %v1040, 1.0
      %v1088 = vadd.f32 %v1042, 1.0
      %v1089 = vadd.f32 %v1044, 1.0
      %v1090 = vadd.f32 %v1046, 1.0
      %v1091 = vadd.f32 %v1048, 1.0
      %v1092 = vadd.f32 %v1050, 1.0
      %v1093 = vadd.f32 %v1052, 1.0
      %v1094 = vrcp.pop %v1053
      %v1095 = vmul.f32 1.0, %v1094
      %v1096 = vrcp.pop %v1054
      %v1097 = vmul.f32 1.0, %v1096
      %v1098 = vrcp.pop %v1055
      %v1099 = vmul.f32 1.0, %v1098
      %v1100 = vrcp.pop %v1056
      %v1101 = vmul.f32 1.0, %v1100
      %v1102 = vrcp.pop %v1057
      %v1103 = vmul.f32 1.0, %v1102
      %v1104 = vrcp.pop %v1058
      %v1105 = vmul.f32 1.0, %v1104
      %v1106 = vrcp.pop %v1059
      %v1107 = vmul.f32 1.0, %v1106
      %v1108 = vrcp.pop %v1060
      %v1109 = vmul.f32 1.0, %v1108
      %v1110 = vrcp.pop %v1061
      %v1111 = vmul.f32 1.0, %v1110
      %v1112 = vrcp.pop %v1062
      %v1113 = vmul.f32 1.0, %v1112
      %v1114 = vrcp.pop %v1063
      %v1115 = vmul.f32 1.0, %v1114
      %v1116 = vrcp.pop %v1064
      %v1117 = vmul.f32 1.0, %v1116
      %v1118 = vrcp.pop %v1065
      %v1119 = vmul.f32 1.0, %v1118
      %v1120 = vrcp.pop %v1066
      %v1121 = vmul.f32 1.0, %v1120
      %v1122 = vrcp.pop %v1067
      %v1123 = vmul.f32 1.0, %v1122
      %v1124 = vrcp.pop %v1068
      %v1125 = vmul.f32 1.0, %v1124
      %v1126 = vrcp.pop %v1069
      %v1127 = vmul.f32 1.0, %v1126
      %v1128 = vrcp.pop %v1070
      %v1129 = vmul.f32 1.0, %v1128
      %v1130 = vrcp.pop %v1071
      %v1131 = vmul.f32 1.0, %v1130
      %v1132 = vrcp.pop %v1072
      %v1133 = vmul.f32 1.0, %v1132
      %v1134 = vrcp.pop %v1073
      %v1135 = vmul.f32 1.0, %v1134
      %v1136 = vrcp.pop %v1074
      %v1137 = vmul.f32 1.0, %v1136
      %v1138 = vrcp.pop %v1075
      %v1139 = vmul.f32 1.0, %v1138
      %v1140 = vrcp.pop %v1076
      %v1141 = vmul.f32 1.0, %v1140
      %v1142 = vrcp.pop %v1077
      %v1143 = vmul.f32 1.0, %v1142
      %v1144 = vrcp.pop %v1078
      %v1145 = vmul.f32 1.0, %v1144
      %v1146 = vrcp.pop %v1079
      %v1147 = vmul.f32 1.0, %v1146
      %v1148 = vrcp.pop %v1080
      %v1149 = vmul.f32 1.0, %v1148
      %v1150 = vrcp.pop %v1081
      %v1151 = vmul.f32 1.0, %v1150
      %v1152 = vrcp.pop %v1082
      %v1153 = vmul.f32 1.0, %v1152
      %v1154 = vrcp.pop %v1083
      %v1155 = vmul.f32 1.0, %v1154
      %v1156 = vrcp.pop %v1084
      %v1157 = vmul.f32 1.0, %v1156
      %v1158 = vrcp.pop %v1085
      %v1159 = vmul.f32 1.0, %v1158
      %v1160 = vrcp.pop %v1086
      %v1161 = vmul.f32 1.0, %v1160
      %v1162 = vrcp.pop %v1087
      %v1163 = vmul.f32 1.0, %v1162
      %v1164 = vrcp.pop %v1088
      %v1165 = vmul.f32 1.0, %v1164
      %v1166 = vrcp.pop %v1089
      %v1167 = vmul.f32 1.0, %v1166
      %v1168 = vrcp.pop %v1090
      %v1169 = vmul.f32 1.0, %v1168
      %v1170 = vrcp.pop %v1091
      %v1171 = vmul.f32 1.0, %v1170
      %v1172 = vrcp.pop %v1092
      %v1173 = vmul.f32 1.0, %v1172
      %v1174 = vrcp.pop %v1093
      %v1175 = vmul.f32 1.0, %v1174
      %v1176 = vmul.f32 %v765, %v1095
      %v1177 = vmul.f32 %v768, %v1097
      %v1178 = vmul.f32 %v773, %v1099
      %v1179 = vmul.f32 %v776, %v1101
      %v1180 = vmul.f32 %v781, %v1103
      %v1181 = vmul.f32 %v784, %v1105
      %v1182 = vmul.f32 %v789, %v1107
      %v1183 = vmul.f32 %v792, %v1109
      %v1184 = vmul.f32 %v797, %v1111
      %v1185 = vmul.f32 %v800, %v1113
      %v1186 = vmul.f32 %v805, %v1115
      %v1187 = vmul.f32 %v808, %v1117
      %v1188 = vmul.f32 %v813, %v1119
      %v1189 = vmul.f32 %v816, %v1121
      %v1190 = vmul.f32 %v821, %v1123
      %v1191 = vmul.f32 %v824, %v1125
      %v1192 = vmul.f32 %v829, %v1127
      %v1193 = vmul.f32 %v832, %v1129
      %v1194 = vmul.f32 %v837, %v1131
      %v1195 = vmul.f32 %v840, %v1133
      %v1196 = vmul.f32 %v845, %v1135
      %v1197 = vmul.f32 %v848, %v1137
      %v1198 = vmul.f32 %v853, %v1139
      %v1199 = vmul.f32 %v856, %v1141
      %v1200 = vmul.f32 %v861, %v1143
      %v1201 = vmul.f32 %v864, %v1145
      %v1202 = vmul.f32 %v869, %v1147
      %v1203 = vmul.f32 %v872, %v1149
      %v1204 = vmul.f32 %v877, %v1151
      %v1205 = vmul.f32 %v880, %v1153
      %v1206 = vmul.f32 %v885, %v1155
      %v1207 = vmul.f32 %v888, %v1157
      %v1208 = vmul.f32 %v893, %v1159
      %v1209 = vmul.f32 %v896, %v1161
      %v1210 = vmul.f32 %v901, %v1163
      %v1211 = vmul.f32 %v904, %v1165
      %v1212 = vmul.f32 %v909, %v1167
      %v1213 = vmul.f32 %v912, %v1169
      %v1214 = vmul.f32 %v917, %v1171
      %v1215 = vmul.f32 %v920, %v1173
      %v1216 = vmul.f32 %v925, %v1175
      %v1217 = vld [vmem:[%s3] sm:$0x3]
      %v1218 = vld [vmem:[%s5] sm:$0x1]
      %v1220 = vlaneseq
      %v1221 = vshrl.u32 %v1220, 7
      %v1222 = vsub.s32 0, %v1221
      %v1223 = vrot.slane %v1218, %v1222
      %v1226 = vsel %vm726, %v1217, 0
      %1228 = vmatprep.subr.bf16.mxu0 0
      %1229 = vmatpush1.bf16.msra.mxu0 %v1226
      %1230 = vmatprep.subr.bf16.mxu0 0
      %1231 = vmatpush1.bf16.msra.mxu0 0
      %1232 = vmatprep.subr.bf16.mxu0 0
      %1233 = vmatpush1.bf16.msra.mxu0 0
      %1234 = vmatprep.subr.bf16.mxu0 0
      %1235 = vmatpush1.bf16.msra.mxu0 0
      %1236 = vmatprep.subr.bf16.mxu0 0
      %1237 = vmatpush1.bf16.msra.mxu0 0
      %1238 = vmatprep.subr.bf16.mxu0 0
      %1239 = vmatpush1.bf16.msra.mxu0 0
      %1240 = vmatprep.subr.bf16.mxu0 0
      %1241 = vmatpush1.bf16.msra.mxu0 0
      %1242 = vmatprep.subr.bf16.mxu0 0
      %1243 = vmatpush1.bf16.msra.mxu0 0
      %1244 = vmatprep.subr.bf16.mxu0 0
      %1245 = vmatpush1.bf16.msra.mxu0 0
      %1246 = vmatprep.subr.bf16.mxu0 0
      %1247 = vmatpush1.bf16.msra.mxu0 0
      %1248 = vmatprep.subr.bf16.mxu0 0
      %1249 = vmatpush1.bf16.msra.mxu0 0
      %1250 = vmatprep.subr.bf16.mxu0 0
      %1251 = vmatpush1.bf16.msra.mxu0 0
      %1252 = vmatprep.subr.bf16.mxu0 0
      %1253 = vmatpush1.bf16.msra.mxu0 0
      %1254 = vmatprep.subr.bf16.mxu0 0
      %1255 = vmatpush1.bf16.msra.mxu0 0
      %1256 = vmatprep.subr.bf16.mxu0 0
      %1257 = vmatpush1.bf16.msra.mxu0 0
      %1258 = vmatprep.subr.bf16.mxu0 0
      %1259 = vmatpush1.bf16.msra.mxu0 0
      %1260 = vmatprep.mubr.bf16.mxu0 0
      %1261 = vmatmul.mubr.bf16.gmra.mrb[0].mxu0 %v664
      %v1262 = vpop.f32.mrb[0].mxu0
      %v1263 = vadd.f32 %v1223, %v1262
      %v1264 = vpop.f32.mrb[0].mxu0
      %v1265 = vpop.f32.mrb[0].mxu0
      %v1266 = vadd.f32 %v1223, %v1265
      %v1267 = vpop.f32.mrb[0].mxu0
      %1268 = vmatprep.mubr.bf16.mxu0 0
      %1269 = vmatmul.mubr.bf16.gmra.mrb[0].mxu0 %v667
      %v1270 = vpop.f32.mrb[0].mxu0
      %v1271 = vadd.f32 %v1223, %v1270
      %v1272 = vpop.f32.mrb[0].mxu0
      %v1273 = vpop.f32.mrb[0].mxu0
      %v1274 = vadd.f32 %v1223, %v1273
      %v1275 = vpop.f32.mrb[0].mxu0
      %1276 = vmatprep.mubr.bf16.mxu0 0
      %1277 = vmatmul.mubr.bf16.gmra.mrb[0].mxu0 %v670
      %v1278 = vpop.f32.mrb[0].mxu0
      %v1279 = vadd.f32 %v1223, %v1278
      %v1280 = vpop.f32.mrb[0].mxu0
      %v1281 = vpop.f32.mrb[0].mxu0
      %v1282 = vadd.f32 %v1223, %v1281
      %v1283 = vpop.f32.mrb[0].mxu0
      %1284 = vmatprep.mubr.bf16.mxu0 0
      %1285 = vmatmul.mubr.bf16.gmra.mrb[0].mxu0 %v673
      %v1286 = vpop.f32.mrb[0].mxu0
      %v1287 = vadd.f32 %v1223, %v1286
      %v1288 = vpop.f32.mrb[0].mxu0
      %v1289 = vpop.f32.mrb[0].mxu0
      %v1290 = vadd.f32 %v1223, %v1289
      %v1291 = vpop.f32.mrb[0].mxu0
      %1292 = vmatprep.mubr.bf16.mxu0 0
      %1293 = vmatmul.mubr.bf16.gmra.mrb[0].mxu0 %v676
      %v1294 = vpop.f32.mrb[0].mxu0
      %v1295 = vadd.f32 %v1223, %v1294
      %v1296 = vpop.f32.mrb[0].mxu0
      %v1297 = vpop.f32.mrb[0].mxu0
      %v1298 = vadd.f32 %v1223, %v1297
      %v1299 = vpop.f32.mrb[0].mxu0
      %1300 = vmatprep.mubr.bf16.mxu0 0
      %1301 = vmatmul.mubr.bf16.gmra.mrb[0].mxu0 %v679
      %v1302 = vpop.f32.mrb[0].mxu0
      %v1303 = vadd.f32 %v1223, %v1302
      %v1304 = vpop.f32.mrb[0].mxu0
      %v1305 = vpop.f32.mrb[0].mxu0
      %v1306 = vadd.f32 %v1223, %v1305
      %v1307 = vpop.f32.mrb[0].mxu0
      %1308 = vmatprep.mubr.bf16.mxu0 0
      %1309 = vmatmul.mubr.bf16.gmra.mrb[0].mxu0 %v682
      %v1310 = vpop.f32.mrb[0].mxu0
      %v1311 = vadd.f32 %v1223, %v1310
      %v1312 = vpop.f32.mrb[0].mxu0
      %v1313 = vpop.f32.mrb[0].mxu0
      %v1314 = vadd.f32 %v1223, %v1313
      %v1315 = vpop.f32.mrb[0].mxu0
      %1316 = vmatprep.mubr.bf16.mxu0 0
      %1317 = vmatmul.mubr.bf16.gmra.mrb[0].mxu0 %v685
      %v1318 = vpop.f32.mrb[0].mxu0
      %v1319 = vadd.f32 %v1223, %v1318
      %v1320 = vpop.f32.mrb[0].mxu0
      %v1321 = vpop.f32.mrb[0].mxu0
      %v1322 = vadd.f32 %v1223, %v1321
      %v1323 = vpop.f32.mrb[0].mxu0
      %1324 = vmatprep.mubr.bf16.mxu0 0
      %1325 = vmatmul.mubr.bf16.gmra.mrb[0].mxu0 %v688
      %v1326 = vpop.f32.mrb[0].mxu0
      %v1327 = vadd.f32 %v1223, %v1326
      %v1328 = vpop.f32.mrb[0].mxu0
      %v1329 = vpop.f32.mrb[0].mxu0
      %v1330 = vadd.f32 %v1223, %v1329
      %v1331 = vpop.f32.mrb[0].mxu0
      %1332 = vmatprep.mubr.bf16.mxu0 0
      %1333 = vmatmul.mubr.bf16.gmra.mrb[0].mxu0 %v691
      %v1334 = vpop.f32.mrb[0].mxu0
      %v1335 = vadd.f32 %v1223, %v1334
      %v1336 = vpop.f32.mrb[0].mxu0
      %v1337 = vpop.f32.mrb[0].mxu0
      %v1338 = vadd.f32 %v1223, %v1337
      %v1339 = vpop.f32.mrb[0].mxu0
      %1340 = vmatprep.mubr.bf16.mxu0 0
      %1341 = vmatmul.mubr.bf16.gmra.mrb[0].mxu0 %v694
      %v1342 = vpop.f32.mrb[0].mxu0
      %v1343 = vadd.f32 %v1223, %v1342
      %v1344 = vpop.f32.mrb[0].mxu0
      %v1345 = vpop.f32.mrb[0].mxu0
      %v1346 = vadd.f32 %v1223, %v1345
      %v1347 = vpop.f32.mrb[0].mxu0
      %1348 = vmatprep.mubr.bf16.mxu0 0
      %1349 = vmatmul.mubr.bf16.gmra.mrb[0].mxu0 %v697
      %v1350 = vpop.f32.mrb[0].mxu0
      %v1351 = vadd.f32 %v1223, %v1350
      %v1352 = vpop.f32.mrb[0].mxu0
      %v1353 = vpop.f32.mrb[0].mxu0
      %v1354 = vadd.f32 %v1223, %v1353
      %v1355 = vpop.f32.mrb[0].mxu0
      %1356 = vmatprep.mubr.bf16.mxu0 0
      %1357 = vmatmul.mubr.bf16.gmra.mrb[0].mxu0 %v700
      %v1358 = vpop.f32.mrb[0].mxu0
      %v1359 = vadd.f32 %v1223, %v1358
      %v1360 = vpop.f32.mrb[0].mxu0
      %v1361 = vpop.f32.mrb[0].mxu0
      %v1362 = vadd.f32 %v1223, %v1361
      %v1363 = vpop.f32.mrb[0].mxu0
      %1364 = vmatprep.mubr.bf16.mxu0 0
      %1365 = vmatmul.mubr.bf16.gmra.mrb[0].mxu0 %v703
      %v1366 = vpop.f32.mrb[0].mxu0
      %v1367 = vadd.f32 %v1223, %v1366
      %v1368 = vpop.f32.mrb[0].mxu0
      %v1369 = vpop.f32.mrb[0].mxu0
      %v1370 = vadd.f32 %v1223, %v1369
      %v1371 = vpop.f32.mrb[0].mxu0
      %1372 = vmatprep.mubr.bf16.mxu0 0
      %1373 = vmatmul.mubr.bf16.gmra.mrb[0].mxu0 %v706
      %v1374 = vpop.f32.mrb[0].mxu0
      %v1375 = vadd.f32 %v1223, %v1374
      %v1376 = vpop.f32.mrb[0].mxu0
      %v1377 = vpop.f32.mrb[0].mxu0
      %v1378 = vadd.f32 %v1223, %v1377
      %v1379 = vpop.f32.mrb[0].mxu0
      %1380 = vmatprep.mubr.bf16.mxu0 0
      %1381 = vmatmul.mubr.bf16.gmra.mrb[0].mxu0 %v709
      %v1382 = vpop.f32.mrb[0].mxu0
      %v1383 = vadd.f32 %v1223, %v1382
      %v1384 = vpop.f32.mrb[0].mxu0
      %v1385 = vpop.f32.mrb[0].mxu0
      %v1386 = vadd.f32 %v1223, %v1385
      %v1387 = vpop.f32.mrb[0].mxu0
      %1388 = vmatprep.mubr.bf16.mxu0 0
      %1389 = vmatmul.mubr.bf16.gmra.mrb[0].mxu0 %v712
      %v1390 = vpop.f32.mrb[0].mxu0
      %v1391 = vadd.f32 %v1223, %v1390
      %v1392 = vpop.f32.mrb[0].mxu0
      %v1393 = vpop.f32.mrb[0].mxu0
      %v1394 = vadd.f32 %v1223, %v1393
      %v1395 = vpop.f32.mrb[0].mxu0
      %1396 = vmatprep.mubr.bf16.mxu0 0
      %1397 = vmatmul.mubr.bf16.gmra.mrb[0].mxu0 %v715
      %v1398 = vpop.f32.mrb[0].mxu0
      %v1399 = vadd.f32 %v1223, %v1398
      %v1400 = vpop.f32.mrb[0].mxu0
      %v1401 = vpop.f32.mrb[0].mxu0
      %v1402 = vadd.f32 %v1223, %v1401
      %v1403 = vpop.f32.mrb[0].mxu0
      %1404 = vmatprep.mubr.bf16.mxu0 0
      %1405 = vmatmul.mubr.bf16.gmra.mrb[0].mxu0 %v718
      %v1406 = vpop.f32.mrb[0].mxu0
      %v1407 = vadd.f32 %v1223, %v1406
      %v1408 = vpop.f32.mrb[0].mxu0
      %v1409 = vpop.f32.mrb[0].mxu0
      %v1410 = vadd.f32 %v1223, %v1409
      %v1411 = vpop.f32.mrb[0].mxu0
      %1412 = vmatprep.mubr.bf16.mxu0 0
      %1413 = vmatmul.mubr.bf16.gmra.mrb[0].mxu0 %v721
      %v1414 = vpop.f32.mrb[0].mxu0
      %v1415 = vadd.f32 %v1223, %v1414
      %v1416 = vpop.f32.mrb[0].mxu0
      %v1417 = vpop.f32.mrb[0].mxu0
      %v1418 = vadd.f32 %v1223, %v1417
      %v1419 = vpop.f32.mrb[0].mxu0
      %1420 = vmatprep.mubr.bf16.mxu0 0
      %1421 = vmatmul.mubr.bf16.gmra.mrb[0].mxu0 %v724
      %v1422 = vpop.f32.mrb[0].mxu0
      %v1423 = vadd.f32 %v1223, %v1422
      %v1424 = vpop.f32.mrb[0].mxu0
      %v1425 = vpop.f32.mrb[0].mxu0
      %v1426 = vpop.f32.mrb[0].mxu0
      %1427 = vdwg.mxu0
      %v1428 = vxor.u32 %v1263, 2147483648
      %v1429 = vxor.u32 %v1266, 2147483648
      %v1430 = vxor.u32 %v1271, 2147483648
      %v1431 = vxor.u32 %v1274, 2147483648
      %v1432 = vxor.u32 %v1279, 2147483648
      %v1433 = vxor.u32 %v1282, 2147483648
      %v1434 = vxor.u32 %v1287, 2147483648
      %v1435 = vxor.u32 %v1290, 2147483648
      %v1436 = vxor.u32 %v1295, 2147483648
      %v1437 = vxor.u32 %v1298, 2147483648
      %v1438 = vxor.u32 %v1303, 2147483648
      %v1439 = vxor.u32 %v1306, 2147483648
      %v1440 = vxor.u32 %v1311, 2147483648
      %v1441 = vxor.u32 %v1314, 2147483648
      %v1442 = vxor.u32 %v1319, 2147483648
      %v1443 = vxor.u32 %v1322, 2147483648
      %v1444 = vxor.u32 %v1327, 2147483648
      %v1445 = vxor.u32 %v1330, 2147483648
      %v1446 = vxor.u32 %v1335, 2147483648
      %v1447 = vxor.u32 %v1338, 2147483648
      %v1448 = vxor.u32 %v1343, 2147483648
      %v1449 = vxor.u32 %v1346, 2147483648
      %v1450 = vxor.u32 %v1351, 2147483648
      %v1451 = vxor.u32 %v1354, 2147483648
      %v1452 = vxor.u32 %v1359, 2147483648
      %v1453 = vxor.u32 %v1362, 2147483648
      %v1454 = vxor.u32 %v1367, 2147483648
      %v1455 = vxor.u32 %v1370, 2147483648
      %v1456 = vxor.u32 %v1375, 2147483648
      %v1457 = vxor.u32 %v1378, 2147483648
      %v1458 = vxor.u32 %v1383, 2147483648
      %v1459 = vxor.u32 %v1386, 2147483648
      %v1460 = vxor.u32 %v1391, 2147483648
      %v1461 = vxor.u32 %v1394, 2147483648
      %v1462 = vxor.u32 %v1399, 2147483648
      %v1463 = vxor.u32 %v1402, 2147483648
      %v1464 = vxor.u32 %v1407, 2147483648
      %v1465 = vxor.u32 %v1410, 2147483648
      %v1466 = vxor.u32 %v1415, 2147483648
      %v1467 = vxor.u32 %v1418, 2147483648
      %v1468 = vxor.u32 %v1423, 2147483648
      %v1469 = vmul.f32 %v1428, 1.442695
      %v1470 = vpow.pop %v1469
      %v1471 = vmul.f32 %v1429, 1.442695
      %v1472 = vpow.pop %v1471
      %v1473 = vmul.f32 %v1430, 1.442695
      %v1474 = vpow.pop %v1473
      %v1475 = vmul.f32 %v1431, 1.442695
      %v1476 = vpow.pop %v1475
      %v1477 = vmul.f32 %v1432, 1.442695
      %v1478 = vpow.pop %v1477
      %v1479 = vmul.f32 %v1433, 1.442695
      %v1480 = vpow.pop %v1479
      %v1481 = vmul.f32 %v1434, 1.442695
      %v1482 = vpow.pop %v1481
      %v1483 = vmul.f32 %v1435, 1.442695
      %v1484 = vpow.pop %v1483
      %v1485 = vmul.f32 %v1436, 1.442695
      %v1486 = vpow.pop %v1485
      %v1487 = vmul.f32 %v1437, 1.442695
      %v1488 = vpow.pop %v1487
      %v1489 = vmul.f32 %v1438, 1.442695
      %v1490 = vpow.pop %v1489
      %v1491 = vmul.f32 %v1439, 1.442695
      %v1492 = vpow.pop %v1491
      %v1493 = vmul.f32 %v1440, 1.442695
      %v1494 = vpow.pop %v1493
      %v1495 = vmul.f32 %v1441, 1.442695
      %v1496 = vpow.pop %v1495
      %v1497 = vmul.f32 %v1442, 1.442695
      %v1498 = vpow.pop %v1497
      %v1499 = vmul.f32 %v1443, 1.442695
      %v1500 = vpow.pop %v1499
      %v1501 = vmul.f32 %v1444, 1.442695
      %v1502 = vpow.pop %v1501
      %v1503 = vmul.f32 %v1445, 1.442695
      %v1504 = vpow.pop %v1503
      %v1505 = vmul.f32 %v1446, 1.442695
      %v1506 = vpow.pop %v1505
      %v1507 = vmul.f32 %v1447, 1.442695
      %v1508 = vpow.pop %v1507
      %v1509 = vmul.f32 %v1448, 1.442695
      %v1510 = vpow.pop %v1509
      %v1511 = vmul.f32 %v1449, 1.442695
      %v1512 = vpow.pop %v1511
      %v1513 = vmul.f32 %v1450, 1.442695
      %v1514 = vpow.pop %v1513
      %v1515 = vmul.f32 %v1451, 1.442695
      %v1516 = vpow.pop %v1515
      %v1517 = vmul.f32 %v1452, 1.442695
      %v1518 = vpow.pop %v1517
      %v1519 = vmul.f32 %v1453, 1.442695
      %v1520 = vpow.pop %v1519
      %v1521 = vmul.f32 %v1454, 1.442695
      %v1522 = vpow.pop %v1521
      %v1523 = vmul.f32 %v1455, 1.442695
      %v1524 = vpow.pop %v1523
      %v1525 = vmul.f32 %v1456, 1.442695
      %v1526 = vpow.pop %v1525
      %v1527 = vmul.f32 %v1457, 1.442695
      %v1528 = vpow.pop %v1527
      %v1529 = vmul.f32 %v1458, 1.442695
      %v1530 = vpow.pop %v1529
      %v1531 = vmul.f32 %v1459, 1.442695
      %v1532 = vpow.pop %v1531
      %v1533 = vmul.f32 %v1460, 1.442695
      %v1534 = vpow.pop %v1533
      %v1535 = vmul.f32 %v1461, 1.442695
      %v1536 = vpow.pop %v1535
      %v1537 = vmul.f32 %v1462, 1.442695
      %v1538 = vpow.pop %v1537
      %v1539 = vmul.f32 %v1463, 1.442695
      %v1540 = vpow.pop %v1539
      %v1541 = vmul.f32 %v1464, 1.442695
      %v1542 = vpow.pop %v1541
      %v1543 = vmul.f32 %v1465, 1.442695
      %v1544 = vpow.pop %v1543
      %v1545 = vmul.f32 %v1466, 1.442695
      %v1546 = vpow.pop %v1545
      %v1547 = vmul.f32 %v1467, 1.442695
      %v1548 = vpow.pop %v1547
      %v1549 = vmul.f32 %v1468, 1.442695
      %v1550 = vpow.pop %v1549
      %v1551 = vadd.f32 %v1470, 1.0
      %v1552 = vadd.f32 %v1472, 1.0
      %v1553 = vadd.f32 %v1474, 1.0
      %v1554 = vadd.f32 %v1476, 1.0
      %v1555 = vadd.f32 %v1478, 1.0
      %v1556 = vadd.f32 %v1480, 1.0
      %v1557 = vadd.f32 %v1482, 1.0
      %v1558 = vadd.f32 %v1484, 1.0
      %v1559 = vadd.f32 %v1486, 1.0
      %v1560 = vadd.f32 %v1488, 1.0
      %v1561 = vadd.f32 %v1490, 1.0
      %v1562 = vadd.f32 %v1492, 1.0
      %v1563 = vadd.f32 %v1494, 1.0
      %v1564 = vadd.f32 %v1496, 1.0
      %v1565 = vadd.f32 %v1498, 1.0
      %v1566 = vadd.f32 %v1500, 1.0
      %v1567 = vadd.f32 %v1502, 1.0
      %v1568 = vadd.f32 %v1504, 1.0
      %v1569 = vadd.f32 %v1506, 1.0
      %v1570 = vadd.f32 %v1508, 1.0
      %v1571 = vadd.f32 %v1510, 1.0
      %v1572 = vadd.f32 %v1512, 1.0
      %v1573 = vadd.f32 %v1514, 1.0
      %v1574 = vadd.f32 %v1516, 1.0
      %v1575 = vadd.f32 %v1518, 1.0
      %v1576 = vadd.f32 %v1520, 1.0
      %v1577 = vadd.f32 %v1522, 1.0
      %v1578 = vadd.f32 %v1524, 1.0
      %v1579 = vadd.f32 %v1526, 1.0
      %v1580 = vadd.f32 %v1528, 1.0
      %v1581 = vadd.f32 %v1530, 1.0
      %v1582 = vadd.f32 %v1532, 1.0
      %v1583 = vadd.f32 %v1534, 1.0
      %v1584 = vadd.f32 %v1536, 1.0
      %v1585 = vadd.f32 %v1538, 1.0
      %v1586 = vadd.f32 %v1540, 1.0
      %v1587 = vadd.f32 %v1542, 1.0
      %v1588 = vadd.f32 %v1544, 1.0
      %v1589 = vadd.f32 %v1546, 1.0
      %v1590 = vadd.f32 %v1548, 1.0
      %v1591 = vadd.f32 %v1550, 1.0
      %v1592 = vrcp.pop %v1551
      %v1593 = vmul.f32 1.0, %v1592
      %v1594 = vrcp.pop %v1552
      %v1595 = vmul.f32 1.0, %v1594
      %v1596 = vrcp.pop %v1553
      %v1597 = vmul.f32 1.0, %v1596
      %v1598 = vrcp.pop %v1554
      %v1599 = vmul.f32 1.0, %v1598
      %v1600 = vrcp.pop %v1555
      %v1601 = vmul.f32 1.0, %v1600
      %v1602 = vrcp.pop %v1556
      %v1603 = vmul.f32 1.0, %v1602
      %v1604 = vrcp.pop %v1557
      %v1605 = vmul.f32 1.0, %v1604
      %v1606 = vrcp.pop %v1558
      %v1607 = vmul.f32 1.0, %v1606
      %v1608 = vrcp.pop %v1559
      %v1609 = vmul.f32 1.0, %v1608
      %v1610 = vrcp.pop %v1560
      %v1611 = vmul.f32 1.0, %v1610
      %v1612 = vrcp.pop %v1561
      %v1613 = vmul.f32 1.0, %v1612
      %v1614 = vrcp.pop %v1562
      %v1615 = vmul.f32 1.0, %v1614
      %v1616 = vrcp.pop %v1563
      %v1617 = vmul.f32 1.0, %v1616
      %v1618 = vrcp.pop %v1564
      %v1619 = vmul.f32 1.0, %v1618
      %v1620 = vrcp.pop %v1565
      %v1621 = vmul.f32 1.0, %v1620
      %v1622 = vrcp.pop %v1566
      %v1623 = vmul.f32 1.0, %v1622
      %v1624 = vrcp.pop %v1567
      %v1625 = vmul.f32 1.0, %v1624
      %v1626 = vrcp.pop %v1568
      %v1627 = vmul.f32 1.0, %v1626
      %v1628 = vrcp.pop %v1569
      %v1629 = vmul.f32 1.0, %v1628
      %v1630 = vrcp.pop %v1570
      %v1631 = vmul.f32 1.0, %v1630
      %v1632 = vrcp.pop %v1571
      %v1633 = vmul.f32 1.0, %v1632
      %v1634 = vrcp.pop %v1572
      %v1635 = vmul.f32 1.0, %v1634
      %v1636 = vrcp.pop %v1573
      %v1637 = vmul.f32 1.0, %v1636
      %v1638 = vrcp.pop %v1574
      %v1639 = vmul.f32 1.0, %v1638
      %v1640 = vrcp.pop %v1575
      %v1641 = vmul.f32 1.0, %v1640
      %v1642 = vrcp.pop %v1576
      %v1643 = vmul.f32 1.0, %v1642
      %v1644 = vrcp.pop %v1577
      %v1645 = vmul.f32 1.0, %v1644
      %v1646 = vrcp.pop %v1578
      %v1647 = vmul.f32 1.0, %v1646
      %v1648 = vrcp.pop %v1579
      %v1649 = vmul.f32 1.0, %v1648
      %v1650 = vrcp.pop %v1580
      %v1651 = vmul.f32 1.0, %v1650
      %v1652 = vrcp.pop %v1581
      %v1653 = vmul.f32 1.0, %v1652
      %v1654 = vrcp.pop %v1582
      %v1655 = vmul.f32 1.0, %v1654
      %v1656 = vrcp.pop %v1583
      %v1657 = vmul.f32 1.0, %v1656
      %v1658 = vrcp.pop %v1584
      %v1659 = vmul.f32 1.0, %v1658
      %v1660 = vrcp.pop %v1585
      %v1661 = vmul.f32 1.0, %v1660
      %v1662 = vrcp.pop %v1586
      %v1663 = vmul.f32 1.0, %v1662
      %v1664 = vrcp.pop %v1587
      %v1665 = vmul.f32 1.0, %v1664
      %v1666 = vrcp.pop %v1588
      %v1667 = vmul.f32 1.0, %v1666
      %v1668 = vrcp.pop %v1589
      %v1669 = vmul.f32 1.0, %v1668
      %v1670 = vrcp.pop %v1590
      %v1671 = vmul.f32 1.0, %v1670
      %v1672 = vrcp.pop %v1591
      %v1673 = vmul.f32 1.0, %v1672
      %v1674 = vmul.f32 %v1263, %v1593
      %v1675 = vmul.f32 %v1266, %v1595
      %v1676 = vmul.f32 %v1271, %v1597
      %v1677 = vmul.f32 %v1274, %v1599
      %v1678 = vmul.f32 %v1279, %v1601
      %v1679 = vmul.f32 %v1282, %v1603
      %v1680 = vmul.f32 %v1287, %v1605
      %v1681 = vmul.f32 %v1290, %v1607
      %v1682 = vmul.f32 %v1295, %v1609
      %v1683 = vmul.f32 %v1298, %v1611
      %v1684 = vmul.f32 %v1303, %v1613
      %v1685 = vmul.f32 %v1306, %v1615
      %v1686 = vmul.f32 %v1311, %v1617
      %v1687 = vmul.f32 %v1314, %v1619
      %v1688 = vmul.f32 %v1319, %v1621
      %v1689 = vmul.f32 %v1322, %v1623
      %v1690 = vmul.f32 %v1327, %v1625
      %v1691 = vmul.f32 %v1330, %v1627
      %v1692 = vmul.f32 %v1335, %v1629
      %v1693 = vmul.f32 %v1338, %v1631
      %v1694 = vmul.f32 %v1343, %v1633
      %v1695 = vmul.f32 %v1346, %v1635
      %v1696 = vmul.f32 %v1351, %v1637
      %v1697 = vmul.f32 %v1354, %v1639
      %v1698 = vmul.f32 %v1359, %v1641
      %v1699 = vmul.f32 %v1362, %v1643
      %v1700 = vmul.f32 %v1367, %v1645
      %v1701 = vmul.f32 %v1370, %v1647
      %v1702 = vmul.f32 %v1375, %v1649
      %v1703 = vmul.f32 %v1378, %v1651
      %v1704 = vmul.f32 %v1383, %v1653
      %v1705 = vmul.f32 %v1386, %v1655
      %v1706 = vmul.f32 %v1391, %v1657
      %v1707 = vmul.f32 %v1394, %v1659
      %v1708 = vmul.f32 %v1399, %v1661
      %v1709 = vmul.f32 %v1402, %v1663
      %v1710 = vmul.f32 %v1407, %v1665
      %v1711 = vmul.f32 %v1410, %v1667
      %v1712 = vmul.f32 %v1415, %v1669
      %v1713 = vmul.f32 %v1418, %v1671
      %v1714 = vmul.f32 %v1423, %v1673
      %vm1715 = vcmask 15360
      %1716 = vst.msk [vmem:[#allocation2] sm:$0xff] %vm1715, 0.0
      %1717 = vst.msk [vmem:[#allocation2 + $0x8] sm:$0xff] %vm1715, 0.0
      %1718 = vst.msk [vmem:[#allocation2 + $0x10] sm:$0xff] %vm1715, 0.0
      %1719 = vst.msk [vmem:[#allocation2 + $0x18] sm:$0xff] %vm1715, 0.0
      %1720 = vst.msk [vmem:[#allocation2 + $0x20] sm:$0xff] %vm1715, 0.0
      %1721 = vst.msk [vmem:[#allocation2 + $0x28] sm:$0xff] %vm1715, 0.0
      %1722 = vst.msk [vmem:[#allocation2 + $0x30] sm:$0xff] %vm1715, 0.0
      %1723 = vst.msk [vmem:[#allocation2 + $0x38] sm:$0xff] %vm1715, 0.0
      %1724 = vst.msk [vmem:[#allocation2 + $0x40] sm:$0xff] %vm1715, 0.0
      %1725 = vst.msk [vmem:[#allocation2 + $0x48] sm:$0xff] %vm1715, 0.0
      %1726 = vst.msk [vmem:[#allocation2 + $0x50] sm:$0xff] %vm1715, 0.0
      %1727 = vst.msk [vmem:[#allocation2 + $0x58] sm:$0xff] %vm1715, 0.0
      %1728 = vst.msk [vmem:[#allocation2 + $0x60] sm:$0xff] %vm1715, 0.0
      %1729 = vst.msk [vmem:[#allocation2 + $0x68] sm:$0xff] %vm1715, 0.0
      %1730 = vst.msk [vmem:[#allocation2 + $0x70] sm:$0xff] %vm1715, 0.0
      %1731 = vst.msk [vmem:[#allocation2 + $0x78] sm:$0xff] %vm1715, 0.0
      %1732 = vst.msk [vmem:[#allocation2 + $0x80] sm:$0xff] %vm1715, 0.0
      %1733 = vst.msk [vmem:[#allocation2 + $0x88] sm:$0xff] %vm1715, 0.0
      %1734 = vst.msk [vmem:[#allocation2 + $0x90] sm:$0xff] %vm1715, 0.0
      %1735 = vst.msk [vmem:[#allocation2 + $0x98] sm:$0xff] %vm1715, 0.0
      %1736 = vst.msk [vmem:[#allocation2 + $0xa0] sm:$0xff] %vm1715, 0.0
      %1737 = vst.msk [vmem:[#allocation2 + $0xa8] sm:$0xff] %vm1715, 0.0
      %1738 = vst.msk [vmem:[#allocation2 + $0xb0] sm:$0xff] %vm1715, 0.0
      %1739 = vst.msk [vmem:[#allocation2 + $0xb8] sm:$0xff] %vm1715, 0.0
      %1740 = vst.msk [vmem:[#allocation2 + $0xc0] sm:$0xff] %vm1715, 0.0
      %1741 = vst.msk [vmem:[#allocation2 + $0xc8] sm:$0xff] %vm1715, 0.0
      %1742 = vst.msk [vmem:[#allocation2 + $0xd0] sm:$0xff] %vm1715, 0.0
      %1743 = vst.msk [vmem:[#allocation2 + $0xd8] sm:$0xff] %vm1715, 0.0
      %1744 = vst.msk [vmem:[#allocation2 + $0xe0] sm:$0xff] %vm1715, 0.0
      %1745 = vst.msk [vmem:[#allocation2 + $0xe8] sm:$0xff] %vm1715, 0.0
      %1746 = vst.msk [vmem:[#allocation2 + $0xf0] sm:$0xff] %vm1715, 0.0
      %1747 = vst.msk [vmem:[#allocation2 + $0xf8] sm:$0xff] %vm1715, 0.0
      %1748 = vst.msk [vmem:[#allocation2 + $0x100] sm:$0xff] %vm1715, 0.0
      %1749 = vst.msk [vmem:[#allocation2 + $0x108] sm:$0xff] %vm1715, 0.0
      %1750 = vst.msk [vmem:[#allocation2 + $0x110] sm:$0xff] %vm1715, 0.0
      %1751 = vst.msk [vmem:[#allocation2 + $0x118] sm:$0xff] %vm1715, 0.0
      %1752 = vst.msk [vmem:[#allocation2 + $0x120] sm:$0xff] %vm1715, 0.0
      %1753 = vst.msk [vmem:[#allocation2 + $0x128] sm:$0xff] %vm1715, 0.0
      %1754 = vst.msk [vmem:[#allocation2 + $0x130] sm:$0xff] %vm1715, 0.0
      %1755 = vst.msk [vmem:[#allocation2 + $0x138] sm:$0xff] %vm1715, 0.0
      %1756 = vst.msk [vmem:[#allocation2 + $0x140] sm:$0xff] %vm1715, 0.0
      %1757 = vst.msk [vmem:[#allocation2 + $0x148] sm:$0xff] %vm1715, 0.0
      %1758 = vst.msk [vmem:[#allocation2 + $0x150] sm:$0xff] %vm1715, 0.0
      %1759 = vst.msk [vmem:[#allocation2 + $0x158] sm:$0xff] %vm1715, 0.0
      %1760 = vst.msk [vmem:[#allocation2 + $0x160] sm:$0xff] %vm1715, 0.0
      %1761 = vst.msk [vmem:[#allocation2 + $0x168] sm:$0xff] %vm1715, 0.0
      %vm1762 = vcmask 11264
      %1763 = vst.msk [vmem:[#allocation2 + $0x170] sm:$0xf] %vm1762, 0.0
      %1765 = vset.pattern.permute.xlu0 0
      %1766 = vperm.xlu0 %1765, %v510
      %v1767 = vpop.permute.xlu0 %1766
      %1770 = vset.pattern.permute.xlu0 0
      %1771 = vperm.xlu0 %1770, %v511
      %v1772 = vpop.permute.xlu0 %1771
      %1775 = vset.pattern.permute.xlu0 0
      %1776 = vperm.xlu0 %1775, %v512
      %v1777 = vpop.permute.xlu0 %1776
      %1780 = vset.pattern.permute.xlu0 0
      %1781 = vperm.xlu0 %1780, %v513
      %v1782 = vpop.permute.xlu0 %1781
      %1785 = vset.pattern.permute.xlu0 0
      %1786 = vperm.xlu0 %1785, %v514
      %v1787 = vpop.permute.xlu0 %1786
      %1790 = vset.pattern.permute.xlu0 0
      %1791 = vperm.xlu0 %1790, %v515
      %v1792 = vpop.permute.xlu0 %1791
      %1795 = vset.pattern.permute.xlu0 0
      %1796 = vperm.xlu0 %1795, %v516
      %v1797 = vpop.permute.xlu0 %1796
      %1800 = vset.pattern.permute.xlu0 0
      %1801 = vperm.xlu0 %1800, %v517
      %v1802 = vpop.permute.xlu0 %1801
      %1805 = vset.pattern.permute.xlu0 0
      %1806 = vperm.xlu0 %1805, %v518
      %v1807 = vpop.permute.xlu0 %1806
      %1810 = vset.pattern.permute.xlu0 0
      %1811 = vperm.xlu0 %1810, %v519
      %v1812 = vpop.permute.xlu0 %1811
      %1815 = vset.pattern.permute.xlu0 0
      %1816 = vperm.xlu0 %1815, %v520
      %v1817 = vpop.permute.xlu0 %1816
      %1820 = vset.pattern.permute.xlu0 0
      %1821 = vperm.xlu0 %1820, %v521
      %v1822 = vpop.permute.xlu0 %1821
      %1825 = vset.pattern.permute.xlu0 0
      %1826 = vperm.xlu0 %1825, %v522
      %v1827 = vpop.permute.xlu0 %1826
      %1830 = vset.pattern.permute.xlu0 0
      %1831 = vperm.xlu0 %1830, %v523
      %v1832 = vpop.permute.xlu0 %1831
      %1835 = vset.pattern.permute.xlu0 0
      %1836 = vperm.xlu0 %1835, %v524
      %v1837 = vpop.permute.xlu0 %1836
      %1840 = vset.pattern.permute.xlu0 0
      %1841 = vperm.xlu0 %1840, %v525
      %v1842 = vpop.permute.xlu0 %1841
      %1845 = vset.pattern.permute.xlu0 0
      %1846 = vperm.xlu0 %1845, %v526
      %v1847 = vpop.permute.xlu0 %1846
      %1850 = vset.pattern.permute.xlu0 0
      %1851 = vperm.xlu0 %1850, %v527
      %v1852 = vpop.permute.xlu0 %1851
      %1855 = vset.pattern.permute.xlu0 0
      %1856 = vperm.xlu0 %1855, %v528
      %v1857 = vpop.permute.xlu0 %1856
      %1860 = vset.pattern.permute.xlu0 0
      %1861 = vperm.xlu0 %1860, %v529
      %v1862 = vpop.permute.xlu0 %1861
      %1865 = vset.pattern.permute.xlu0 0
      %1866 = vperm.xlu0 %1865, %v530
      %v1867 = vpop.permute.xlu0 %1866
      %1870 = vset.pattern.permute.xlu0 0
      %1871 = vperm.xlu0 %1870, %v531
      %v1872 = vpop.permute.xlu0 %1871
      %1875 = vset.pattern.permute.xlu0 0
      %1876 = vperm.xlu0 %1875, %v532
      %v1877 = vpop.permute.xlu0 %1876
      %1880 = vset.pattern.permute.xlu0 0
      %1881 = vperm.xlu0 %1880, %v533
      %v1882 = vpop.permute.xlu0 %1881
      %1885 = vset.pattern.permute.xlu0 0
      %1886 = vperm.xlu0 %1885, %v534
      %v1887 = vpop.permute.xlu0 %1886
      %1890 = vset.pattern.permute.xlu0 0
      %1891 = vperm.xlu0 %1890, %v535
      %v1892 = vpop.permute.xlu0 %1891
      %1895 = vset.pattern.permute.xlu0 0
      %1896 = vperm.xlu0 %1895, %v536
      %v1897 = vpop.permute.xlu0 %1896
      %1900 = vset.pattern.permute.xlu0 0
      %1901 = vperm.xlu0 %1900, %v537
      %v1902 = vpop.permute.xlu0 %1901
      %1905 = vset.pattern.permute.xlu0 0
      %1906 = vperm.xlu0 %1905, %v538
      %v1907 = vpop.permute.xlu0 %1906
      %1910 = vset.pattern.permute.xlu0 0
      %1911 = vperm.xlu0 %1910, %v539
      %v1912 = vpop.permute.xlu0 %1911
      %1915 = vset.pattern.permute.xlu0 0
      %1916 = vperm.xlu0 %1915, %v540
      %v1917 = vpop.permute.xlu0 %1916
      %1920 = vset.pattern.permute.xlu0 0
      %1921 = vperm.xlu0 %1920, %v541
      %v1922 = vpop.permute.xlu0 %1921
      %1925 = vset.pattern.permute.xlu0 0
      %1926 = vperm.xlu0 %1925, %v542
      %v1927 = vpop.permute.xlu0 %1926
      %1930 = vset.pattern.permute.xlu0 0
      %1931 = vperm.xlu0 %1930, %v543
      %v1932 = vpop.permute.xlu0 %1931
      %1935 = vset.pattern.permute.xlu0 0
      %1936 = vperm.xlu0 %1935, %v544
      %v1937 = vpop.permute.xlu0 %1936
      %1940 = vset.pattern.permute.xlu0 0
      %1941 = vperm.xlu0 %1940, %v545
      %v1942 = vpop.permute.xlu0 %1941
      %1945 = vset.pattern.permute.xlu0 0
      %1946 = vperm.xlu0 %1945, %v546
      %v1947 = vpop.permute.xlu0 %1946
      %1950 = vset.pattern.permute.xlu0 0
      %1951 = vperm.xlu0 %1950, %v547
      %v1952 = vpop.permute.xlu0 %1951
      %1955 = vset.pattern.permute.xlu0 0
      %1956 = vperm.xlu0 %1955, %v548
      %v1957 = vpop.permute.xlu0 %1956
      %1960 = vset.pattern.permute.xlu0 0
      %1961 = vperm.xlu0 %1960, %v549
      %v1962 = vpop.permute.xlu0 %1961
      %1965 = vset.pattern.permute.xlu0 0
      %1966 = vperm.xlu0 %1965, %v550
      %v1967 = vpop.permute.xlu0 %1966
      %v1969 = vmul.f32 %v1674, %v1767
      %v1970 = vmul.f32 %v1675, %v1772
      %v1971 = vmul.f32 %v1676, %v1777
      %v1972 = vmul.f32 %v1677, %v1782
      %v1973 = vmul.f32 %v1678, %v1787
      %v1974 = vmul.f32 %v1679, %v1792
      %v1975 = vmul.f32 %v1680, %v1797
      %v1976 = vmul.f32 %v1681, %v1802
      %v1977 = vmul.f32 %v1682, %v1807
      %v1978 = vmul.f32 %v1683, %v1812
      %v1979 = vmul.f32 %v1684, %v1817
      %v1980 = vmul.f32 %v1685, %v1822
      %v1981 = vmul.f32 %v1686, %v1827
      %v1982 = vmul.f32 %v1687, %v1832
      %v1983 = vmul.f32 %v1688, %v1837
      %v1984 = vmul.f32 %v1689, %v1842
      %v1985 = vmul.f32 %v1690, %v1847
      %v1986 = vmul.f32 %v1691, %v1852
      %v1987 = vmul.f32 %v1692, %v1857
      %v1988 = vmul.f32 %v1693, %v1862
      %v1989 = vmul.f32 %v1694, %v1867
      %v1990 = vmul.f32 %v1695, %v1872
      %v1991 = vmul.f32 %v1696, %v1877
      %v1992 = vmul.f32 %v1697, %v1882
      %v1993 = vmul.f32 %v1698, %v1887
      %v1994 = vmul.f32 %v1699, %v1892
      %v1995 = vmul.f32 %v1700, %v1897
      %v1996 = vmul.f32 %v1701, %v1902
      %v1997 = vmul.f32 %v1702, %v1907
      %v1998 = vmul.f32 %v1703, %v1912
      %v1999 = vmul.f32 %v1704, %v1917
      %v2000 = vmul.f32 %v1705, %v1922
      %v2001 = vmul.f32 %v1706, %v1927
      %v2002 = vmul.f32 %v1707, %v1932
      %v2003 = vmul.f32 %v1708, %v1937
      %v2004 = vmul.f32 %v1709, %v1942
      %v2005 = vmul.f32 %v1710, %v1947
      %v2006 = vmul.f32 %v1711, %v1952
      %v2007 = vmul.f32 %v1712, %v1957
      %v2008 = vmul.f32 %v1713, %v1962
      %v2009 = vmul.f32 %v1714, %v1967
      %2010 = vst.msk [vmem:[#allocation2 + $0x18] sm:$0xff] %vm1715, %v1969
      %2011 = vst.msk [vmem:[#allocation2 + $0x20] sm:$0xff] %vm1715, %v1970
      %2012 = vst.msk [vmem:[#allocation2 + $0x28] sm:$0xff] %vm1715, %v1971
      %2013 = vst.msk [vmem:[#allocation2 + $0x30] sm:$0xff] %vm1715, %v1972
      %2014 = vst.msk [vmem:[#allocation2 + $0x38] sm:$0xff] %vm1715, %v1973
      %2015 = vst.msk [vmem:[#allocation2 + $0x40] sm:$0xff] %vm1715, %v1974
      %2016 = vst.msk [vmem:[#allocation2 + $0x48] sm:$0xff] %vm1715, %v1975
      %2017 = vst.msk [vmem:[#allocation2 + $0x50] sm:$0xff] %vm1715, %v1976
      %2018 = vst.msk [vmem:[#allocation2 + $0x58] sm:$0xff] %vm1715, %v1977
      %2019 = vst.msk [vmem:[#allocation2 + $0x60] sm:$0xff] %vm1715, %v1978
      %2020 = vst.msk [vmem:[#allocation2 + $0x68] sm:$0xff] %vm1715, %v1979
      %2021 = vst.msk [vmem:[#allocation2 + $0x70] sm:$0xff] %vm1715, %v1980
      %2022 = vst.msk [vmem:[#allocation2 + $0x78] sm:$0xff] %vm1715, %v1981
      %2023 = vst.msk [vmem:[#allocation2 + $0x80] sm:$0xff] %vm1715, %v1982
      %2024 = vst.msk [vmem:[#allocation2 + $0x88] sm:$0xff] %vm1715, %v1983
      %2025 = vst.msk [vmem:[#allocation2 + $0x90] sm:$0xff] %vm1715, %v1984
      %2026 = vst.msk [vmem:[#allocation2 + $0x98] sm:$0xff] %vm1715, %v1985
      %2027 = vst.msk [vmem:[#allocation2 + $0xa0] sm:$0xff] %vm1715, %v1986
      %2028 = vst.msk [vmem:[#allocation2 + $0xa8] sm:$0xff] %vm1715, %v1987
      %2029 = vst.msk [vmem:[#allocation2 + $0xb0] sm:$0xff] %vm1715, %v1988
      %2030 = vst.msk [vmem:[#allocation2 + $0xb8] sm:$0xff] %vm1715, %v1989
      %2031 = vst.msk [vmem:[#allocation2 + $0xc0] sm:$0xff] %vm1715, %v1990
      %2032 = vst.msk [vmem:[#allocation2 + $0xc8] sm:$0xff] %vm1715, %v1991
      %2033 = vst.msk [vmem:[#allocation2 + $0xd0] sm:$0xff] %vm1715, %v1992
      %2034 = vst.msk [vmem:[#allocation2 + $0xd8] sm:$0xff] %vm1715, %v1993
      %2035 = vst.msk [vmem:[#allocation2 + $0xe0] sm:$0xff] %vm1715, %v1994
      %2036 = vst.msk [vmem:[#allocation2 + $0xe8] sm:$0xff] %vm1715, %v1995
      %2037 = vst.msk [vmem:[#allocation2 + $0xf0] sm:$0xff] %vm1715, %v1996
      %2038 = vst.msk [vmem:[#allocation2 + $0xf8] sm:$0xff] %vm1715, %v1997
      %2039 = vst.msk [vmem:[#allocation2 + $0x100] sm:$0xff] %vm1715, %v1998
      %2040 = vst.msk [vmem:[#allocation2 + $0x108] sm:$0xff] %vm1715, %v1999
      %2041 = vst.msk [vmem:[#allocation2 + $0x110] sm:$0xff] %vm1715, %v2000
      %2042 = vst.msk [vmem:[#allocation2 + $0x118] sm:$0xff] %vm1715, %v2001
      %2043 = vst.msk [vmem:[#allocation2 + $0x120] sm:$0xff] %vm1715, %v2002
      %2044 = vst.msk [vmem:[#allocation2 + $0x128] sm:$0xff] %vm1715, %v2003
      %2045 = vst.msk [vmem:[#allocation2 + $0x130] sm:$0xff] %vm1715, %v2004
      %2046 = vst.msk [vmem:[#allocation2 + $0x138] sm:$0xff] %vm1715, %v2005
      %2047 = vst.msk [vmem:[#allocation2 + $0x140] sm:$0xff] %vm1715, %v2006
      %2048 = vst.msk [vmem:[#allocation2 + $0x148] sm:$0xff] %vm1715, %v2007
      %2049 = vst.msk [vmem:[#allocation2 + $0x150] sm:$0xff] %vm1715, %v2008
      %2050 = vst.msk [vmem:[#allocation2 + $0x158] sm:$0xf] %vm1762, %v2009
      %v2051 = vld [vmem:[#allocation2 + $0x5] sm:$0xff]
      %v2052 = vld [vmem:[#allocation2 + $0xd] sm:$0xff]
      %v2053 = vld [vmem:[#allocation2 + $0x15] sm:$0xff]
      %v2054 = vld [vmem:[#allocation2 + $0x1d] sm:$0xff]
      %v2055 = vld [vmem:[#allocation2 + $0x25] sm:$0xff]
      %v2056 = vld [vmem:[#allocation2 + $0x2d] sm:$0xff]
      %v2057 = vld [vmem:[#allocation2 + $0x35] sm:$0xff]
      %v2058 = vld [vmem:[#allocation2 + $0x3d] sm:$0xff]
      %v2059 = vld [vmem:[#allocation2 + $0x45] sm:$0xff]
      %v2060 = vld [vmem:[#allocation2 + $0x4d] sm:$0xff]
      %v2061 = vld [vmem:[#allocation2 + $0x55] sm:$0xff]
      %v2062 = vld [vmem:[#allocation2 + $0x5d] sm:$0xff]
      %v2063 = vld [vmem:[#allocation2 + $0x65] sm:$0xff]
      %v2064 = vld [vmem:[#allocation2 + $0x6d] sm:$0xff]
      %v2065 = vld [vmem:[#allocation2 + $0x75] sm:$0xff]
      %v2066 = vld [vmem:[#allocation2 + $0x7d] sm:$0xff]
      %v2067 = vld [vmem:[#allocation2 + $0x85] sm:$0xff]
      %v2068 = vld [vmem:[#allocation2 + $0x8d] sm:$0xff]
      %v2069 = vld [vmem:[#allocation2 + $0x95] sm:$0xff]
      %v2070 = vld [vmem:[#allocation2 + $0x9d] sm:$0xff]
      %v2071 = vld [vmem:[#allocation2 + $0xa5] sm:$0xff]
      %v2072 = vld [vmem:[#allocation2 + $0xad] sm:$0xff]
      %v2073 = vld [vmem:[#allocation2 + $0xb5] sm:$0xff]
      %v2074 = vld [vmem:[#allocation2 + $0xbd] sm:$0xff]
      %v2075 = vld [vmem:[#allocation2 + $0xc5] sm:$0xff]
      %v2076 = vld [vmem:[#allocation2 + $0xcd] sm:$0xff]
      %v2077 = vld [vmem:[#allocation2 + $0xd5] sm:$0xff]
      %v2078 = vld [vmem:[#allocation2 + $0xdd] sm:$0xff]
      %v2079 = vld [vmem:[#allocation2 + $0xe5] sm:$0xff]
      %v2080 = vld [vmem:[#allocation2 + $0xed] sm:$0xff]
      %v2081 = vld [vmem:[#allocation2 + $0xf5] sm:$0xff]
      %v2082 = vld [vmem:[#allocation2 + $0xfd] sm:$0xff]
      %v2083 = vld [vmem:[#allocation2 + $0x105] sm:$0xff]
      %v2084 = vld [vmem:[#allocation2 + $0x10d] sm:$0xff]
      %v2085 = vld [vmem:[#allocation2 + $0x115] sm:$0xff]
      %v2086 = vld [vmem:[#allocation2 + $0x11d] sm:$0xff]
      %v2087 = vld [vmem:[#allocation2 + $0x125] sm:$0xff]
      %v2088 = vld [vmem:[#allocation2 + $0x12d] sm:$0xff]
      %v2089 = vld [vmem:[#allocation2 + $0x135] sm:$0xff]
      %v2090 = vld [vmem:[#allocation2 + $0x13d] sm:$0xff]
      %v2091 = vld [vmem:[#allocation2 + $0x145] sm:$0xf]
      %v2092 = vpack.c.bf16 %v2052, %v2051
      %v2093 = vpack.c.bf16 %v2054, %v2053
      %v2094 = vpack.c.bf16 %v2056, %v2055
      %v2095 = vpack.c.bf16 %v2058, %v2057
      %v2096 = vpack.c.bf16 %v2060, %v2059
      %v2097 = vpack.c.bf16 %v2062, %v2061
      %v2098 = vpack.c.bf16 %v2064, %v2063
      %v2099 = vpack.c.bf16 %v2066, %v2065
      %v2100 = vpack.c.bf16 %v2068, %v2067
      %v2101 = vpack.c.bf16 %v2070, %v2069
      %v2102 = vpack.c.bf16 %v2072, %v2071
      %v2103 = vpack.c.bf16 %v2074, %v2073
      %v2104 = vpack.c.bf16 %v2076, %v2075
      %v2105 = vpack.c.bf16 %v2078, %v2077
      %v2106 = vpack.c.bf16 %v2080, %v2079
      %v2107 = vpack.c.bf16 %v2082, %v2081
      %v2108 = vpack.c.bf16 %v2084, %v2083
      %v2109 = vpack.c.bf16 %v2086, %v2085
      %v2110 = vpack.c.bf16 %v2088, %v2087
      %v2111 = vpack.c.bf16 %v2090, %v2089
      %v2112 = vpack.c.bf16 %v2091, %v2091
      %v2113 = vld [vmem:[%s6] sm:$0x1]
      %v2114 = vld [vmem:[#allocation2 + $0x6] sm:$0xff]
      %v2115 = vld [vmem:[#allocation2 + $0xe] sm:$0xff]
      %v2116 = vld [vmem:[#allocation2 + $0x16] sm:$0xff]
      %v2117 = vld [vmem:[#allocation2 + $0x1e] sm:$0xff]
      %v2118 = vld [vmem:[#allocation2 + $0x26] sm:$0xff]
      %v2119 = vld [vmem:[#allocation2 + $0x2e] sm:$0xff]
      %v2120 = vld [vmem:[#allocation2 + $0x36] sm:$0xff]
      %v2121 = vld [vmem:[#allocation2 + $0x3e] sm:$0xff]
      %v2122 = vld [vmem:[#allocation2 + $0x46] sm:$0xff]
      %v2123 = vld [vmem:[#allocation2 + $0x4e] sm:$0xff]
      %v2124 = vld [vmem:[#allocation2 + $0x56] sm:$0xff]
      %v2125 = vld [vmem:[#allocation2 + $0x5e] sm:$0xff]
      %v2126 = vld [vmem:[#allocation2 + $0x66] sm:$0xff]
      %v2127 = vld [vmem:[#allocation2 + $0x6e] sm:$0xff]
      %v2128 = vld [vmem:[#allocation2 + $0x76] sm:$0xff]
      %v2129 = vld [vmem:[#allocation2 + $0x7e] sm:$0xff]
      %v2130 = vld [vmem:[#allocation2 + $0x86] sm:$0xff]
      %v2131 = vld [vmem:[#allocation2 + $0x8e] sm:$0xff]
      %v2132 = vld [vmem:[#allocation2 + $0x96] sm:$0xff]
      %v2133 = vld [vmem:[#allocation2 + $0x9e] sm:$0xff]
      %v2134 = vld [vmem:[#allocation2 + $0xa6] sm:$0xff]
      %v2135 = vld [vmem:[#allocation2 + $0xae] sm:$0xff]
      %v2136 = vld [vmem:[#allocation2 + $0xb6] sm:$0xff]
      %v2137 = vld [vmem:[#allocation2 + $0xbe] sm:$0xff]
      %v2138 = vld [vmem:[#allocation2 + $0xc6] sm:$0xff]
      %v2139 = vld [vmem:[#allocation2 + $0xce] sm:$0xff]
      %v2140 = vld [vmem:[#allocation2 + $0xd6] sm:$0xff]
      %v2141 = vld [vmem:[#allocation2 + $0xde] sm:$0xff]
      %v2142 = vld [vmem:[#allocation2 + $0xe6] sm:$0xff]
      %v2143 = vld [vmem:[#allocation2 + $0xee] sm:$0xff]
      %v2144 = vld [vmem:[#allocation2 + $0xf6] sm:$0xff]
      %v2145 = vld [vmem:[#allocation2 + $0xfe] sm:$0xff]
      %v2146 = vld [vmem:[#allocation2 + $0x106] sm:$0xff]
      %v2147 = vld [vmem:[#allocation2 + $0x10e] sm:$0xff]
      %v2148 = vld [vmem:[#allocation2 + $0x116] sm:$0xff]
      %v2149 = vld [vmem:[#allocation2 + $0x11e] sm:$0xff]
      %v2150 = vld [vmem:[#allocation2 + $0x126] sm:$0xff]
      %v2151 = vld [vmem:[#allocation2 + $0x12e] sm:$0xff]
      %v2152 = vld [vmem:[#allocation2 + $0x136] sm:$0xff]
      %v2153 = vld [vmem:[#allocation2 + $0x13e] sm:$0xff]
      %v2154 = vld [vmem:[#allocation2 + $0x146] sm:$0xf]
      %v2155 = vpack.c.bf16 %v2115, %v2114
      %v2156 = vpack.c.bf16 %v2117, %v2116
      %v2157 = vpack.c.bf16 %v2119, %v2118
      %v2158 = vpack.c.bf16 %v2121, %v2120
      %v2159 = vpack.c.bf16 %v2123, %v2122
      %v2160 = vpack.c.bf16 %v2125, %v2124
      %v2161 = vpack.c.bf16 %v2127, %v2126
      %v2162 = vpack.c.bf16 %v2129, %v2128
      %v2163 = vpack.c.bf16 %v2131, %v2130
      %v2164 = vpack.c.bf16 %v2133, %v2132
      %v2165 = vpack.c.bf16 %v2135, %v2134
      %v2166 = vpack.c.bf16 %v2137, %v2136
      %v2167 = vpack.c.bf16 %v2139, %v2138
      %v2168 = vpack.c.bf16 %v2141, %v2140
      %v2169 = vpack.c.bf16 %v2143, %v2142
      %v2170 = vpack.c.bf16 %v2145, %v2144
      %v2171 = vpack.c.bf16 %v2147, %v2146
      %v2172 = vpack.c.bf16 %v2149, %v2148
      %v2173 = vpack.c.bf16 %v2151, %v2150
      %v2174 = vpack.c.bf16 %v2153, %v2152
      %v2175 = vpack.c.bf16 %v2154, %v2154
      %s2176 = scalar_lea.vmem %s6, 1
      %v2177 = vld [vmem:[%s2176] sm:$0x1]
      %v2179 = vsel %vm1715, %v2155, 0
      %v2182 = vsel %vm1715, %v2156, 0
      %v2185 = vsel %vm1715, %v2157, 0
      %v2188 = vsel %vm1715, %v2158, 0
      %v2191 = vsel %vm1715, %v2159, 0
      %v2194 = vsel %vm1715, %v2160, 0
      %v2197 = vsel %vm1715, %v2161, 0
      %v2200 = vsel %vm1715, %v2162, 0
      %v2203 = vsel %vm1715, %v2163, 0
      %v2206 = vsel %vm1715, %v2164, 0
      %v2209 = vsel %vm1715, %v2165, 0
      %v2212 = vsel %vm1715, %v2166, 0
      %v2215 = vsel %vm1715, %v2167, 0
      %v2218 = vsel %vm1715, %v2168, 0
      %v2221 = vsel %vm1715, %v2169, 0
      %v2224 = vsel %vm1715, %v2170, 0
      %v2227 = vsel %vm1715, %v2171, 0
      %v2230 = vsel %vm1715, %v2172, 0
      %v2233 = vsel %vm1715, %v2173, 0
      %v2236 = vsel %vm1715, %v2174, 0
      %v2239 = vsel %vm1715, %v2175, 0
      %vm2241 = vcmask 1040384
      %v2243 = vsel %vm2241, %v2177, 0
      %2245 = vmatprep.subr.bf16.mxu0 0
      %2246 = vmatpush1.bf16.msra.mxu0 %v2243
      %2247 = vmatprep.subr.bf16.mxu0 0
      %2248 = vmatpush1.bf16.msra.mxu0 0
      %2249 = vmatprep.subr.bf16.mxu0 0
      %2250 = vmatpush1.bf16.msra.mxu0 0
      %2251 = vmatprep.subr.bf16.mxu0 0
      %2252 = vmatpush1.bf16.msra.mxu0 0
      %2253 = vmatprep.subr.bf16.mxu0 0
      %2254 = vmatpush1.bf16.msra.mxu0 0
      %2255 = vmatprep.subr.bf16.mxu0 0
      %2256 = vmatpush1.bf16.msra.mxu0 0
      %2257 = vmatprep.subr.bf16.mxu0 0
      %2258 = vmatpush1.bf16.msra.mxu0 0
      %2259 = vmatprep.subr.bf16.mxu0 0
      %2260 = vmatpush1.bf16.msra.mxu0 0
      %2261 = vmatprep.subr.bf16.mxu0 0
      %2262 = vmatpush1.bf16.msra.mxu0 0
      %2263 = vmatprep.subr.bf16.mxu0 0
      %2264 = vmatpush1.bf16.msra.mxu0 0
      %2265 = vmatprep.subr.bf16.mxu0 0
      %2266 = vmatpush1.bf16.msra.mxu0 0
      %2267 = vmatprep.subr.bf16.mxu0 0
      %2268 = vmatpush1.bf16.msra.mxu0 0
      %2269 = vmatprep.subr.bf16.mxu0 0
      %2270 = vmatpush1.bf16.msra.mxu0 0
      %2271 = vmatprep.subr.bf16.mxu0 0
      %2272 = vmatpush1.bf16.msra.mxu0 0
      %2273 = vmatprep.subr.bf16.mxu0 0
      %2274 = vmatpush1.bf16.msra.mxu0 0
      %2275 = vmatprep.subr.bf16.mxu0 0
      %2276 = vmatpush1.bf16.msra.mxu0 0
      %2277 = vmatprep.mubr.bf16.mxu0 0
      %2278 = vmatmul.mubr.bf16.gmra.mrb[0].mxu0 %v2179
      %v2279 = vpop.f32.mrb[0].mxu0
      %v2280 = vadd.f32 0.0, %v2279
      %v2281 = vpop.f32.mrb[0].mxu0
      %v2282 = vpop.f32.mrb[0].mxu0
      %v2283 = vadd.f32 0.0, %v2282
      %v2284 = vpop.f32.mrb[0].mxu0
      %2285 = vmatprep.mubr.bf16.mxu0 0
      %2286 = vmatmul.mubr.bf16.gmra.mrb[0].mxu0 %v2182
      %v2287 = vpop.f32.mrb[0].mxu0
      %v2288 = vadd.f32 0.0, %v2287
      %v2289 = vpop.f32.mrb[0].mxu0
      %v2290 = vpop.f32.mrb[0].mxu0
      %v2291 = vadd.f32 0.0, %v2290
      %v2292 = vpop.f32.mrb[0].mxu0
      %2293 = vmatprep.mubr.bf16.mxu0 0
      %2294 = vmatmul.mubr.bf16.gmra.mrb[0].mxu0 %v2185
      %v2295 = vpop.f32.mrb[0].mxu0
      %v2296 = vadd.f32 0.0, %v2295
      %v2297 = vpop.f32.mrb[0].mxu0
      %v2298 = vpop.f32.mrb[0].mxu0
      %v2299 = vadd.f32 0.0, %v2298
      %v2300 = vpop.f32.mrb[0].mxu0
      %2301 = vmatprep.mubr.bf16.mxu0 0
      %2302 = vmatmul.mubr.bf16.gmra.mrb[0].mxu0 %v2188
      %v2303 = vpop.f32.mrb[0].mxu0
      %v2304 = vadd.f32 0.0, %v2303
      %v2305 = vpop.f32.mrb[0].mxu0
      %v2306 = vpop.f32.mrb[0].mxu0
      %v2307 = vadd.f32 0.0, %v2306
      %v2308 = vpop.f32.mrb[0].mxu0
      %2309 = vmatprep.mubr.bf16.mxu0 0
      %2310 = vmatmul.mubr.bf16.gmra.mrb[0].mxu0 %v2191
      %v2311 = vpop.f32.mrb[0].mxu0
      %v2312 = vadd.f32 0.0, %v2311
      %v2313 = vpop.f32.mrb[0].mxu0
      %v2314 = vpop.f32.mrb[0].mxu0
      %v2315 = vadd.f32 0.0, %v2314
      %v2316 = vpop.f32.mrb[0].mxu0
      %2317 = vmatprep.mubr.bf16.mxu0 0
      %2318 = vmatmul.mubr.bf16.gmra.mrb[0].mxu0 %v2194
      %v2319 = vpop.f32.mrb[0].mxu0
      %v2320 = vadd.f32 0.0, %v2319
      %v2321 = vpop.f32.mrb[0].mxu0
      %v2322 = vpop.f32.mrb[0].mxu0
      %v2323 = vadd.f32 0.0, %v2322
      %v2324 = vpop.f32.mrb[0].mxu0
      %2325 = vmatprep.mubr.bf16.mxu0 0
      %2326 = vmatmul.mubr.bf16.gmra.mrb[0].mxu0 %v2197
      %v2327 = vpop.f32.mrb[0].mxu0
      %v2328 = vadd.f32 0.0, %v2327
      %v2329 = vpop.f32.mrb[0].mxu0
      %v2330 = vpop.f32.mrb[0].mxu0
      %v2331 = vadd.f32 0.0, %v2330
      %v2332 = vpop.f32.mrb[0].mxu0
      %2333 = vmatprep.mubr.bf16.mxu0 0
      %2334 = vmatmul.mubr.bf16.gmra.mrb[0].mxu0 %v2200
      %v2335 = vpop.f32.mrb[0].mxu0
      %v2336 = vadd.f32 0.0, %v2335
      %v2337 = vpop.f32.mrb[0].mxu0
      %v2338 = vpop.f32.mrb[0].mxu0
      %v2339 = vadd.f32 0.0, %v2338
      %v2340 = vpop.f32.mrb[0].mxu0
      %2341 = vmatprep.mubr.bf16.mxu0 0
      %2342 = vmatmul.mubr.bf16.gmra.mrb[0].mxu0 %v2203
      %v2343 = vpop.f32.mrb[0].mxu0
      %v2344 = vadd.f32 0.0, %v2343
      %v2345 = vpop.f32.mrb[0].mxu0
      %v2346 = vpop.f32.mrb[0].mxu0
      %v2347 = vadd.f32 0.0, %v2346
      %v2348 = vpop.f32.mrb[0].mxu0
      %2349 = vmatprep.mubr.bf16.mxu0 0
      %2350 = vmatmul.mubr.bf16.gmra.mrb[0].mxu0 %v2206
      %v2351 = vpop.f32.mrb[0].mxu0
      %v2352 = vadd.f32 0.0, %v2351
      %v2353 = vpop.f32.mrb[0].mxu0
      %v2354 = vpop.f32.mrb[0].mxu0
      %v2355 = vadd.f32 0.0, %v2354
      %v2356 = vpop.f32.mrb[0].mxu0
      %2357 = vmatprep.mubr.bf16.mxu0 0
      %2358 = vmatmul.mubr.bf16.gmra.mrb[0].mxu0 %v2209
      %v2359 = vpop.f32.mrb[0].mxu0
      %v2360 = vadd.f32 0.0, %v2359
      %v2361 = vpop.f32.mrb[0].mxu0
      %v2362 = vpop.f32.mrb[0].mxu0
      %v2363 = vadd.f32 0.0, %v2362
      %v2364 = vpop.f32.mrb[0].mxu0
      %2365 = vmatprep.mubr.bf16.mxu0 0
      %2366 = vmatmul.mubr.bf16.gmra.mrb[0].mxu0 %v2212
      %v2367 = vpop.f32.mrb[0].mxu0
      %v2368 = vadd.f32 0.0, %v2367
      %v2369 = vpop.f32.mrb[0].mxu0
      %v2370 = vpop.f32.mrb[0].mxu0
      %v2371 = vadd.f32 0.0, %v2370
      %v2372 = vpop.f32.mrb[0].mxu0
      %2373 = vmatprep.mubr.bf16.mxu0 0
      %2374 = vmatmul.mubr.bf16.gmra.mrb[0].mxu0 %v2215
      %v2375 = vpop.f32.mrb[0].mxu0
      %v2376 = vadd.f32 0.0, %v2375
      %v2377 = vpop.f32.mrb[0].mxu0
      %v2378 = vpop.f32.mrb[0].mxu0
      %v2379 = vadd.f32 0.0, %v2378
      %v2380 = vpop.f32.mrb[0].mxu0
      %2381 = vmatprep.mubr.bf16.mxu0 0
      %2382 = vmatmul.mubr.bf16.gmra.mrb[0].mxu0 %v2218
      %v2383 = vpop.f32.mrb[0].mxu0
      %v2384 = vadd.f32 0.0, %v2383
      %v2385 = vpop.f32.mrb[0].mxu0
      %v2386 = vpop.f32.mrb[0].mxu0
      %v2387 = vadd.f32 0.0, %v2386
      %v2388 = vpop.f32.mrb[0].mxu0
      %2389 = vmatprep.mubr.bf16.mxu0 0
      %2390 = vmatmul.mubr.bf16.gmra.mrb[0].mxu0 %v2221
      %v2391 = vpop.f32.mrb[0].mxu0
      %v2392 = vadd.f32 0.0, %v2391
      %v2393 = vpop.f32.mrb[0].mxu0
      %v2394 = vpop.f32.mrb[0].mxu0
      %v2395 = vadd.f32 0.0, %v2394
      %v2396 = vpop.f32.mrb[0].mxu0
      %2397 = vmatprep.mubr.bf16.mxu0 0
      %2398 = vmatmul.mubr.bf16.gmra.mrb[0].mxu0 %v2224
      %v2399 = vpop.f32.mrb[0].mxu0
      %v2400 = vadd.f32 0.0, %v2399
      %v2401 = vpop.f32.mrb[0].mxu0
      %v2402 = vpop.f32.mrb[0].mxu0
      %v2403 = vadd.f32 0.0, %v2402
      %v2404 = vpop.f32.mrb[0].mxu0
      %2405 = vmatprep.mubr.bf16.mxu0 0
      %2406 = vmatmul.mubr.bf16.gmra.mrb[0].mxu0 %v2227
      %v2407 = vpop.f32.mrb[0].mxu0
      %v2408 = vadd.f32 0.0, %v2407
      %v2409 = vpop.f32.mrb[0].mxu0
      %v2410 = vpop.f32.mrb[0].mxu0
      %v2411 = vadd.f32 0.0, %v2410
      %v2412 = vpop.f32.mrb[0].mxu0
      %2413 = vmatprep.mubr.bf16.mxu0 0
      %2414 = vmatmul.mubr.bf16.gmra.mrb[0].mxu0 %v2230
      %v2415 = vpop.f32.mrb[0].mxu0
      %v2416 = vadd.f32 0.0, %v2415
      %v2417 = vpop.f32.mrb[0].mxu0
      %v2418 = vpop.f32.mrb[0].mxu0
      %v2419 = vadd.f32 0.0, %v2418
      %v2420 = vpop.f32.mrb[0].mxu0
      %2421 = vmatprep.mubr.bf16.mxu0 0
      %2422 = vmatmul.mubr.bf16.gmra.mrb[0].mxu0 %v2233
      %v2423 = vpop.f32.mrb[0].mxu0
      %v2424 = vadd.f32 0.0, %v2423
      %v2425 = vpop.f32.mrb[0].mxu0
      %v2426 = vpop.f32.mrb[0].mxu0
      %v2427 = vadd.f32 0.0, %v2426
      %v2428 = vpop.f32.mrb[0].mxu0
      %2429 = vmatprep.mubr.bf16.mxu0 0
      %2430 = vmatmul.mubr.bf16.gmra.mrb[0].mxu0 %v2236
      %v2431 = vpop.f32.mrb[0].mxu0
      %v2432 = vadd.f32 0.0, %v2431
      %v2433 = vpop.f32.mrb[0].mxu0
      %v2434 = vpop.f32.mrb[0].mxu0
      %v2435 = vadd.f32 0.0, %v2434
      %v2436 = vpop.f32.mrb[0].mxu0
      %2437 = vmatprep.mubr.bf16.mxu0 0
      %2438 = vmatmul.mubr.bf16.gmra.mrb[0].mxu0 %v2239
      %v2439 = vpop.f32.mrb[0].mxu0
      %v2440 = vadd.f32 0.0, %v2439
      %v2441 = vpop.f32.mrb[0].mxu0
      %v2442 = vpop.f32.mrb[0].mxu0
      %v2443 = vpop.f32.mrb[0].mxu0
      %2444 = vdwg.mxu0
      %v2446 = vsel %vm1715, %v2092, 0
      %v2449 = vsel %vm1715, %v2093, 0
      %v2452 = vsel %vm1715, %v2094, 0
      %v2455 = vsel %vm1715, %v2095, 0
      %v2458 = vsel %vm1715, %v2096, 0
      %v2461 = vsel %vm1715, %v2097, 0
      %v2464 = vsel %vm1715, %v2098, 0
      %v2467 = vsel %vm1715, %v2099, 0
      %v2470 = vsel %vm1715, %v2100, 0
      %v2473 = vsel %vm1715, %v2101, 0
      %v2476 = vsel %vm1715, %v2102, 0
      %v2479 = vsel %vm1715, %v2103, 0
      %v2482 = vsel %vm1715, %v2104, 0
      %v2485 = vsel %vm1715, %v2105, 0
      %v2488 = vsel %vm1715, %v2106, 0
      %v2491 = vsel %vm1715, %v2107, 0
      %v2494 = vsel %vm1715, %v2108, 0
      %v2497 = vsel %vm1715, %v2109, 0
      %v2500 = vsel %vm1715, %v2110, 0
      %v2503 = vsel %vm1715, %v2111, 0
      %v2506 = vsel %vm1715, %v2112, 0
      %v2509 = vsel %vm2241, %v2113, 0
      %2511 = vmatprep.subr.bf16.mxu0 0
      %2512 = vmatpush1.bf16.msra.mxu0 %v2509
      %2513 = vmatprep.subr.bf16.mxu0 0
      %2514 = vmatpush1.bf16.msra.mxu0 0
      %2515 = vmatprep.subr.bf16.mxu0 0
      %2516 = vmatpush1.bf16.msra.mxu0 0
      %2517 = vmatprep.subr.bf16.mxu0 0
      %2518 = vmatpush1.bf16.msra.mxu0 0
      %2519 = vmatprep.subr.bf16.mxu0 0
      %2520 = vmatpush1.bf16.msra.mxu0 0
      %2521 = vmatprep.subr.bf16.mxu0 0
      %2522 = vmatpush1.bf16.msra.mxu0 0
      %2523 = vmatprep.subr.bf16.mxu0 0
      %2524 = vmatpush1.bf16.msra.mxu0 0
      %2525 = vmatprep.subr.bf16.mxu0 0
      %2526 = vmatpush1.bf16.msra.mxu0 0
      %2527 = vmatprep.subr.bf16.mxu0 0
      %2528 = vmatpush1.bf16.msra.mxu0 0
      %2529 = vmatprep.subr.bf16.mxu0 0
      %2530 = vmatpush1.bf16.msra.mxu0 0
      %2531 = vmatprep.subr.bf16.mxu0 0
      %2532 = vmatpush1.bf16.msra.mxu0 0
      %2533 = vmatprep.subr.bf16.mxu0 0
      %2534 = vmatpush1.bf16.msra.mxu0 0
      %2535 = vmatprep.subr.bf16.mxu0 0
      %2536 = vmatpush1.bf16.msra.mxu0 0
      %2537 = vmatprep.subr.bf16.mxu0 0
      %2538 = vmatpush1.bf16.msra.mxu0 0
      %2539 = vmatprep.subr.bf16.mxu0 0
      %2540 = vmatpush1.bf16.msra.mxu0 0
      %2541 = vmatprep.subr.bf16.mxu0 0
      %2542 = vmatpush1.bf16.msra.mxu0 0
      %2543 = vmatprep.mubr.bf16.mxu0 0
      %2544 = vmatmul.mubr.bf16.gmra.mrb[0].mxu0 %v2446
      %v2545 = vpop.f32.mrb[0].mxu0
      %v2546 = vadd.f32 %v2280, %v2545
      %v2547 = vpop.f32.mrb[0].mxu0
      %v2548 = vpop.f32.mrb[0].mxu0
      %v2549 = vadd.f32 %v2283, %v2548
      %v2550 = vpop.f32.mrb[0].mxu0
      %2551 = vmatprep.mubr.bf16.mxu0 0
      %2552 = vmatmul.mubr.bf16.gmra.mrb[0].mxu0 %v2449
      %v2553 = vpop.f32.mrb[0].mxu0
      %v2554 = vadd.f32 %v2288, %v2553
      %v2555 = vpop.f32.mrb[0].mxu0
      %v2556 = vpop.f32.mrb[0].mxu0
      %v2557 = vadd.f32 %v2291, %v2556
      %v2558 = vpop.f32.mrb[0].mxu0
      %2559 = vmatprep.mubr.bf16.mxu0 0
      %2560 = vmatmul.mubr.bf16.gmra.mrb[0].mxu0 %v2452
      %v2561 = vpop.f32.mrb[0].mxu0
      %v2562 = vadd.f32 %v2296, %v2561
      %v2563 = vpop.f32.mrb[0].mxu0
      %v2564 = vpop.f32.mrb[0].mxu0
      %v2565 = vadd.f32 %v2299, %v2564
      %v2566 = vpop.f32.mrb[0].mxu0
      %2567 = vmatprep.mubr.bf16.mxu0 0
      %2568 = vmatmul.mubr.bf16.gmra.mrb[0].mxu0 %v2455
      %v2569 = vpop.f32.mrb[0].mxu0
      %v2570 = vadd.f32 %v2304, %v2569
      %v2571 = vpop.f32.mrb[0].mxu0
      %v2572 = vpop.f32.mrb[0].mxu0
      %v2573 = vadd.f32 %v2307, %v2572
      %v2574 = vpop.f32.mrb[0].mxu0
      %2575 = vmatprep.mubr.bf16.mxu0 0
      %2576 = vmatmul.mubr.bf16.gmra.mrb[0].mxu0 %v2458
      %v2577 = vpop.f32.mrb[0].mxu0
      %v2578 = vadd.f32 %v2312, %v2577
      %v2579 = vpop.f32.mrb[0].mxu0
      %v2580 = vpop.f32.mrb[0].mxu0
      %v2581 = vadd.f32 %v2315, %v2580
      %v2582 = vpop.f32.mrb[0].mxu0
      %2583 = vmatprep.mubr.bf16.mxu0 0
      %2584 = vmatmul.mubr.bf16.gmra.mrb[0].mxu0 %v2461
      %v2585 = vpop.f32.mrb[0].mxu0
      %v2586 = vadd.f32 %v2320, %v2585
      %v2587 = vpop.f32.mrb[0].mxu0
      %v2588 = vpop.f32.mrb[0].mxu0
      %v2589 = vadd.f32 %v2323, %v2588
      %v2590 = vpop.f32.mrb[0].mxu0
      %2591 = vmatprep.mubr.bf16.mxu0 0
      %2592 = vmatmul.mubr.bf16.gmra.mrb[0].mxu0 %v2464
      %v2593 = vpop.f32.mrb[0].mxu0
      %v2594 = vadd.f32 %v2328, %v2593
      %v2595 = vpop.f32.mrb[0].mxu0
      %v2596 = vpop.f32.mrb[0].mxu0
      %v2597 = vadd.f32 %v2331, %v2596
      %v2598 = vpop.f32.mrb[0].mxu0
      %2599 = vmatprep.mubr.bf16.mxu0 0
      %2600 = vmatmul.mubr.bf16.gmra.mrb[0].mxu0 %v2467
      %v2601 = vpop.f32.mrb[0].mxu0
      %v2602 = vadd.f32 %v2336, %v2601
      %v2603 = vpop.f32.mrb[0].mxu0
      %v2604 = vpop.f32.mrb[0].mxu0
      %v2605 = vadd.f32 %v2339, %v2604
      %v2606 = vpop.f32.mrb[0].mxu0
      %2607 = vmatprep.mubr.bf16.mxu0 0
      %2608 = vmatmul.mubr.bf16.gmra.mrb[0].mxu0 %v2470
      %v2609 = vpop.f32.mrb[0].mxu0
      %v2610 = vadd.f32 %v2344, %v2609
      %v2611 = vpop.f32.mrb[0].mxu0
      %v2612 = vpop.f32.mrb[0].mxu0
      %v2613 = vadd.f32 %v2347, %v2612
      %v2614 = vpop.f32.mrb[0].mxu0
      %2615 = vmatprep.mubr.bf16.mxu0 0
      %2616 = vmatmul.mubr.bf16.gmra.mrb[0].mxu0 %v2473
      %v2617 = vpop.f32.mrb[0].mxu0
      %v2618 = vadd.f32 %v2352, %v2617
      %v2619 = vpop.f32.mrb[0].mxu0
      %v2620 = vpop.f32.mrb[0].mxu0
      %v2621 = vadd.f32 %v2355, %v2620
      %v2622 = vpop.f32.mrb[0].mxu0
      %2623 = vmatprep.mubr.bf16.mxu0 0
      %2624 = vmatmul.mubr.bf16.gmra.mrb[0].mxu0 %v2476
      %v2625 = vpop.f32.mrb[0].mxu0
      %v2626 = vadd.f32 %v2360, %v2625
      %v2627 = vpop.f32.mrb[0].mxu0
      %v2628 = vpop.f32.mrb[0].mxu0
      %v2629 = vadd.f32 %v2363, %v2628
      %v2630 = vpop.f32.mrb[0].mxu0
      %2631 = vmatprep.mubr.bf16.mxu0 0
      %2632 = vmatmul.mubr.bf16.gmra.mrb[0].mxu0 %v2479
      %v2633 = vpop.f32.mrb[0].mxu0
      %v2634 = vadd.f32 %v2368, %v2633
      %v2635 = vpop.f32.mrb[0].mxu0
      %v2636 = vpop.f32.mrb[0].mxu0
      %v2637 = vadd.f32 %v2371, %v2636
      %v2638 = vpop.f32.mrb[0].mxu0
      %2639 = vmatprep.mubr.bf16.mxu0 0
      %2640 = vmatmul.mubr.bf16.gmra.mrb[0].mxu0 %v2482
      %v2641 = vpop.f32.mrb[0].mxu0
      %v2642 = vadd.f32 %v2376, %v2641
      %v2643 = vpop.f32.mrb[0].mxu0
      %v2644 = vpop.f32.mrb[0].mxu0
      %v2645 = vadd.f32 %v2379, %v2644
      %v2646 = vpop.f32.mrb[0].mxu0
      %2647 = vmatprep.mubr.bf16.mxu0 0
      %2648 = vmatmul.mubr.bf16.gmra.mrb[0].mxu0 %v2485
      %v2649 = vpop.f32.mrb[0].mxu0
      %v2650 = vadd.f32 %v2384, %v2649
      %v2651 = vpop.f32.mrb[0].mxu0
      %v2652 = vpop.f32.mrb[0].mxu0
      %v2653 = vadd.f32 %v2387, %v2652
      %v2654 = vpop.f32.mrb[0].mxu0
      %2655 = vmatprep.mubr.bf16.mxu0 0
      %2656 = vmatmul.mubr.bf16.gmra.mrb[0].mxu0 %v2488
      %v2657 = vpop.f32.mrb[0].mxu0
      %v2658 = vadd.f32 %v2392, %v2657
      %v2659 = vpop.f32.mrb[0].mxu0
      %v2660 = vpop.f32.mrb[0].mxu0
      %v2661 = vadd.f32 %v2395, %v2660
      %v2662 = vpop.f32.mrb[0].mxu0
      %2663 = vmatprep.mubr.bf16.mxu0 0
      %2664 = vmatmul.mubr.bf16.gmra.mrb[0].mxu0 %v2491
      %v2665 = vpop.f32.mrb[0].mxu0
      %v2666 = vadd.f32 %v2400, %v2665
      %v2667 = vpop.f32.mrb[0].mxu0
      %v2668 = vpop.f32.mrb[0].mxu0
      %v2669 = vadd.f32 %v2403, %v2668
      %v2670 = vpop.f32.mrb[0].mxu0
      %2671 = vmatprep.mubr.bf16.mxu0 0
      %2672 = vmatmul.mubr.bf16.gmra.mrb[0].mxu0 %v2494
      %v2673 = vpop.f32.mrb[0].mxu0
      %v2674 = vadd.f32 %v2408, %v2673
      %v2675 = vpop.f32.mrb[0].mxu0
      %v2676 = vpop.f32.mrb[0].mxu0
      %v2677 = vadd.f32 %v2411, %v2676
      %v2678 = vpop.f32.mrb[0].mxu0
      %2679 = vmatprep.mubr.bf16.mxu0 0
      %2680 = vmatmul.mubr.bf16.gmra.mrb[0].mxu0 %v2497
      %v2681 = vpop.f32.mrb[0].mxu0
      %v2682 = vadd.f32 %v2416, %v2681
      %v2683 = vpop.f32.mrb[0].mxu0
      %v2684 = vpop.f32.mrb[0].mxu0
      %v2685 = vadd.f32 %v2419, %v2684
      %v2686 = vpop.f32.mrb[0].mxu0
      %2687 = vmatprep.mubr.bf16.mxu0 0
      %2688 = vmatmul.mubr.bf16.gmra.mrb[0].mxu0 %v2500
      %v2689 = vpop.f32.mrb[0].mxu0
      %v2690 = vadd.f32 %v2424, %v2689
      %v2691 = vpop.f32.mrb[0].mxu0
      %v2692 = vpop.f32.mrb[0].mxu0
      %v2693 = vadd.f32 %v2427, %v2692
      %v2694 = vpop.f32.mrb[0].mxu0
      %2695 = vmatprep.mubr.bf16.mxu0 0
      %2696 = vmatmul.mubr.bf16.gmra.mrb[0].mxu0 %v2503
      %v2697 = vpop.f32.mrb[0].mxu0
      %v2698 = vadd.f32 %v2432, %v2697
      %v2699 = vpop.f32.mrb[0].mxu0
      %v2700 = vpop.f32.mrb[0].mxu0
      %v2701 = vadd.f32 %v2435, %v2700
      %v2702 = vpop.f32.mrb[0].mxu0
      %2703 = vmatprep.mubr.bf16.mxu0 0
      %2704 = vmatmul.mubr.bf16.gmra.mrb[0].mxu0 %v2506
      %v2705 = vpop.f32.mrb[0].mxu0
      %v2706 = vadd.f32 %v2440, %v2705
      %v2707 = vpop.f32.mrb[0].mxu0
      %v2708 = vpop.f32.mrb[0].mxu0
      %v2709 = vpop.f32.mrb[0].mxu0
      %2710 = vdwg.mxu0
      %v2711 = vld [vmem:[#allocation2 + $0x7] sm:$0xff]
      %v2712 = vld [vmem:[#allocation2 + $0xf] sm:$0xff]
      %v2713 = vld [vmem:[#allocation2 + $0x17] sm:$0xff]
      %v2714 = vld [vmem:[#allocation2 + $0x1f] sm:$0xff]
      %v2715 = vld [vmem:[#allocation2 + $0x27] sm:$0xff]
      %v2716 = vld [vmem:[#allocation2 + $0x2f] sm:$0xff]
      %v2717 = vld [vmem:[#allocation2 + $0x37] sm:$0xff]
      %v2718 = vld [vmem:[#allocation2 + $0x3f] sm:$0xff]
      %v2719 = vld [vmem:[#allocation2 + $0x47] sm:$0xff]
      %v2720 = vld [vmem:[#allocation2 + $0x4f] sm:$0xff]
      %v2721 = vld [vmem:[#allocation2 + $0x57] sm:$0xff]
      %v2722 = vld [vmem:[#allocation2 + $0x5f] sm:$0xff]
      %v2723 = vld [vmem:[#allocation2 + $0x67] sm:$0xff]
      %v2724 = vld [vmem:[#allocation2 + $0x6f] sm:$0xff]
      %v2725 = vld [vmem:[#allocation2 + $0x77] sm:$0xff]
      %v2726 = vld [vmem:[#allocation2 + $0x7f] sm:$0xff]
      %v2727 = vld [vmem:[#allocation2 + $0x87] sm:$0xff]
      %v2728 = vld [vmem:[#allocation2 + $0x8f] sm:$0xff]
      %v2729 = vld [vmem:[#allocation2 + $0x97] sm:$0xff]
      %v2730 = vld [vmem:[#allocation2 + $0x9f] sm:$0xff]
      %v2731 = vld [vmem:[#allocation2 + $0xa7] sm:$0xff]
      %v2732 = vld [vmem:[#allocation2 + $0xaf] sm:$0xff]
      %v2733 = vld [vmem:[#allocation2 + $0xb7] sm:$0xff]
      %v2734 = vld [vmem:[#allocation2 + $0xbf] sm:$0xff]
      %v2735 = vld [vmem:[#allocation2 + $0xc7] sm:$0xff]
      %v2736 = vld [vmem:[#allocation2 + $0xcf] sm:$0xff]
      %v2737 = vld [vmem:[#allocation2 + $0xd7] sm:$0xff]
      %v2738 = vld [vmem:[#allocation2 + $0xdf] sm:$0xff]
      %v2739 = vld [vmem:[#allocation2 + $0xe7] sm:$0xff]
      %v2740 = vld [vmem:[#allocation2 + $0xef] sm:$0xff]
      %v2741 = vld [vmem:[#allocation2 + $0xf7] sm:$0xff]
      %v2742 = vld [vmem:[#allocation2 + $0xff] sm:$0xff]
      %v2743 = vld [vmem:[#allocation2 + $0x107] sm:$0xff]
      %v2744 = vld [vmem:[#allocation2 + $0x10f] sm:$0xff]
      %v2745 = vld [vmem:[#allocation2 + $0x117] sm:$0xff]
      %v2746 = vld [vmem:[#allocation2 + $0x11f] sm:$0xff]
      %v2747 = vld [vmem:[#allocation2 + $0x127] sm:$0xff]
      %v2748 = vld [vmem:[#allocation2 + $0x12f] sm:$0xff]
      %v2749 = vld [vmem:[#allocation2 + $0x137] sm:$0xff]
      %v2750 = vld [vmem:[#allocation2 + $0x13f] sm:$0xff]
      %v2751 = vld [vmem:[#allocation2 + $0x147] sm:$0xf]
      %v2752 = vpack.c.bf16 %v2712, %v2711
      %v2753 = vpack.c.bf16 %v2714, %v2713
      %v2754 = vpack.c.bf16 %v2716, %v2715
      %v2755 = vpack.c.bf16 %v2718, %v2717
      %v2756 = vpack.c.bf16 %v2720, %v2719
      %v2757 = vpack.c.bf16 %v2722, %v2721
      %v2758 = vpack.c.bf16 %v2724, %v2723
      %v2759 = vpack.c.bf16 %v2726, %v2725
      %v2760 = vpack.c.bf16 %v2728, %v2727
      %v2761 = vpack.c.bf16 %v2730, %v2729
      %v2762 = vpack.c.bf16 %v2732, %v2731
      %v2763 = vpack.c.bf16 %v2734, %v2733
      %v2764 = vpack.c.bf16 %v2736, %v2735
      %v2765 = vpack.c.bf16 %v2738, %v2737
      %v2766 = vpack.c.bf16 %v2740, %v2739
      %v2767 = vpack.c.bf16 %v2742, %v2741
      %v2768 = vpack.c.bf16 %v2744, %v2743
      %v2769 = vpack.c.bf16 %v2746, %v2745
      %v2770 = vpack.c.bf16 %v2748, %v2747
      %v2771 = vpack.c.bf16 %v2750, %v2749
      %v2772 = vpack.c.bf16 %v2751, %v2751
      %s2773 = scalar_lea.vmem %s6, 2
      %v2774 = vld [vmem:[%s2773] sm:$0x1]
      %v2776 = vsel %vm1715, %v2752, 0
      %v2779 = vsel %vm1715, %v2753, 0
      %v2782 = vsel %vm1715, %v2754, 0
      %v2785 = vsel %vm1715, %v2755, 0
      %v2788 = vsel %vm1715, %v2756, 0
      %v2791 = vsel %vm1715, %v2757, 0
      %v2794 = vsel %vm1715, %v2758, 0
      %v2797 = vsel %vm1715, %v2759, 0
      %v2800 = vsel %vm1715, %v2760, 0
      %v2803 = vsel %vm1715, %v2761, 0
      %v2806 = vsel %vm1715, %v2762, 0
      %v2809 = vsel %vm1715, %v2763, 0
      %v2812 = vsel %vm1715, %v2764, 0
      %v2815 = vsel %vm1715, %v2765, 0
      %v2818 = vsel %vm1715, %v2766, 0
      %v2821 = vsel %vm1715, %v2767, 0
      %v2824 = vsel %vm1715, %v2768, 0
      %v2827 = vsel %vm1715, %v2769, 0
      %v2830 = vsel %vm1715, %v2770, 0
      %v2833 = vsel %vm1715, %v2771, 0
      %v2836 = vsel %vm1715, %v2772, 0
      %v2839 = vsel %vm2241, %v2774, 0
      %2841 = vmatprep.subr.bf16.mxu0 0
      %2842 = vmatpush1.bf16.msra.mxu0 %v2839
      %2843 = vmatprep.subr.bf16.mxu0 0
      %2844 = vmatpush1.bf16.msra.mxu0 0
      %2845 = vmatprep.subr.bf16.mxu0 0
      %2846 = vmatpush1.bf16.msra.mxu0 0
      %2847 = vmatprep.subr.bf16.mxu0 0
      %2848 = vmatpush1.bf16.msra.mxu0 0
      %2849 = vmatprep.subr.bf16.mxu0 0
      %2850 = vmatpush1.bf16.msra.mxu0 0
      %2851 = vmatprep.subr.bf16.mxu0 0
      %2852 = vmatpush1.bf16.msra.mxu0 0
      %2853 = vmatprep.subr.bf16.mxu0 0
      %2854 = vmatpush1.bf16.msra.mxu0 0
      %2855 = vmatprep.subr.bf16.mxu0 0
      %2856 = vmatpush1.bf16.msra.mxu0 0
      %2857 = vmatprep.subr.bf16.mxu0 0
      %2858 = vmatpush1.bf16.msra.mxu0 0
      %2859 = vmatprep.subr.bf16.mxu0 0
      %2860 = vmatpush1.bf16.msra.mxu0 0
      %2861 = vmatprep.subr.bf16.mxu0 0
      %2862 = vmatpush1.bf16.msra.mxu0 0
      %2863 = vmatprep.subr.bf16.mxu0 0
      %2864 = vmatpush1.bf16.msra.mxu0 0
      %2865 = vmatprep.subr.bf16.mxu0 0
      %2866 = vmatpush1.bf16.msra.mxu0 0
      %2867 = vmatprep.subr.bf16.mxu0 0
      %2868 = vmatpush1.bf16.msra.mxu0 0
      %2869 = vmatprep.subr.bf16.mxu0 0
      %2870 = vmatpush1.bf16.msra.mxu0 0
      %2871 = vmatprep.subr.bf16.mxu0 0
      %2872 = vmatpush1.bf16.msra.mxu0 0
      %2873 = vmatprep.mubr.bf16.mxu0 0
      %2874 = vmatmul.mubr.bf16.gmra.mrb[0].mxu0 %v2776
      %v2875 = vpop.f32.mrb[0].mxu0
      %v2876 = vadd.f32 0.0, %v2875
      %v2877 = vpop.f32.mrb[0].mxu0
      %v2878 = vpop.f32.mrb[0].mxu0
      %v2879 = vadd.f32 0.0, %v2878
      %v2880 = vpop.f32.mrb[0].mxu0
      %2881 = vmatprep.mubr.bf16.mxu0 0
      %2882 = vmatmul.mubr.bf16.gmra.mrb[0].mxu0 %v2779
      %v2883 = vpop.f32.mrb[0].mxu0
      %v2884 = vadd.f32 0.0, %v2883
      %v2885 = vpop.f32.mrb[0].mxu0
      %v2886 = vpop.f32.mrb[0].mxu0
      %v2887 = vadd.f32 0.0, %v2886
      %v2888 = vpop.f32.mrb[0].mxu0
      %2889 = vmatprep.mubr.bf16.mxu0 0
      %2890 = vmatmul.mubr.bf16.gmra.mrb[0].mxu0 %v2782
      %v2891 = vpop.f32.mrb[0].mxu0
      %v2892 = vadd.f32 0.0, %v2891
      %v2893 = vpop.f32.mrb[0].mxu0
      %v2894 = vpop.f32.mrb[0].mxu0
      %v2895 = vadd.f32 0.0, %v2894
      %v2896 = vpop.f32.mrb[0].mxu0
      %2897 = vmatprep.mubr.bf16.mxu0 0
      %2898 = vmatmul.mubr.bf16.gmra.mrb[0].mxu0 %v2785
      %v2899 = vpop.f32.mrb[0].mxu0
      %v2900 = vadd.f32 0.0, %v2899
      %v2901 = vpop.f32.mrb[0].mxu0
      %v2902 = vpop.f32.mrb[0].mxu0
      %v2903 = vadd.f32 0.0, %v2902
      %v2904 = vpop.f32.mrb[0].mxu0
      %2905 = vmatprep.mubr.bf16.mxu0 0
      %2906 = vmatmul.mubr.bf16.gmra.mrb[0].mxu0 %v2788
      %v2907 = vpop.f32.mrb[0].mxu0
      %v2908 = vadd.f32 0.0, %v2907
      %v2909 = vpop.f32.mrb[0].mxu0
      %v2910 = vpop.f32.mrb[0].mxu0
      %v2911 = vadd.f32 0.0, %v2910
      %v2912 = vpop.f32.mrb[0].mxu0
      %2913 = vmatprep.mubr.bf16.mxu0 0
      %2914 = vmatmul.mubr.bf16.gmra.mrb[0].mxu0 %v2791
      %v2915 = vpop.f32.mrb[0].mxu0
      %v2916 = vadd.f32 0.0, %v2915
      %v2917 = vpop.f32.mrb[0].mxu0
      %v2918 = vpop.f32.mrb[0].mxu0
      %v2919 = vadd.f32 0.0, %v2918
      %v2920 = vpop.f32.mrb[0].mxu0
      %2921 = vmatprep.mubr.bf16.mxu0 0
      %2922 = vmatmul.mubr.bf16.gmra.mrb[0].mxu0 %v2794
      %v2923 = vpop.f32.mrb[0].mxu0
      %v2924 = vadd.f32 0.0, %v2923
      %v2925 = vpop.f32.mrb[0].mxu0
      %v2926 = vpop.f32.mrb[0].mxu0
      %v2927 = vadd.f32 0.0, %v2926
      %v2928 = vpop.f32.mrb[0].mxu0
      %2929 = vmatprep.mubr.bf16.mxu0 0
      %2930 = vmatmul.mubr.bf16.gmra.mrb[0].mxu0 %v2797
      %v2931 = vpop.f32.mrb[0].mxu0
      %v2932 = vadd.f32 0.0, %v2931
      %v2933 = vpop.f32.mrb[0].mxu0
      %v2934 = vpop.f32.mrb[0].mxu0
      %v2935 = vadd.f32 0.0, %v2934
      %v2936 = vpop.f32.mrb[0].mxu0
      %2937 = vmatprep.mubr.bf16.mxu0 0
      %2938 = vmatmul.mubr.bf16.gmra.mrb[0].mxu0 %v2800
      %v2939 = vpop.f32.mrb[0].mxu0
      %v2940 = vadd.f32 0.0, %v2939
      %v2941 = vpop.f32.mrb[0].mxu0
      %v2942 = vpop.f32.mrb[0].mxu0
      %v2943 = vadd.f32 0.0, %v2942
      %v2944 = vpop.f32.mrb[0].mxu0
      %2945 = vmatprep.mubr.bf16.mxu0 0
      %2946 = vmatmul.mubr.bf16.gmra.mrb[0].mxu0 %v2803
      %v2947 = vpop.f32.mrb[0].mxu0
      %v2948 = vadd.f32 0.0, %v2947
      %v2949 = vpop.f32.mrb[0].mxu0
      %v2950 = vpop.f32.mrb[0].mxu0
      %v2951 = vadd.f32 0.0, %v2950
      %v2952 = vpop.f32.mrb[0].mxu0
      %2953 = vmatprep.mubr.bf16.mxu0 0
      %2954 = vmatmul.mubr.bf16.gmra.mrb[0].mxu0 %v2806
      %v2955 = vpop.f32.mrb[0].mxu0
      %v2956 = vadd.f32 0.0, %v2955
      %v2957 = vpop.f32.mrb[0].mxu0
      %v2958 = vpop.f32.mrb[0].mxu0
      %v2959 = vadd.f32 0.0, %v2958
      %v2960 = vpop.f32.mrb[0].mxu0
      %2961 = vmatprep.mubr.bf16.mxu0 0
      %2962 = vmatmul.mubr.bf16.gmra.mrb[0].mxu0 %v2809
      %v2963 = vpop.f32.mrb[0].mxu0
      %v2964 = vadd.f32 0.0, %v2963
      %v2965 = vpop.f32.mrb[0].mxu0
      %v2966 = vpop.f32.mrb[0].mxu0
      %v2967 = vadd.f32 0.0, %v2966
      %v2968 = vpop.f32.mrb[0].mxu0
      %2969 = vmatprep.mubr.bf16.mxu0 0
      %2970 = vmatmul.mubr.bf16.gmra.mrb[0].mxu0 %v2812
      %v2971 = vpop.f32.mrb[0].mxu0
      %v2972 = vadd.f32 0.0, %v2971
      %v2973 = vpop.f32.mrb[0].mxu0
      %v2974 = vpop.f32.mrb[0].mxu0
      %v2975 = vadd.f32 0.0, %v2974
      %v2976 = vpop.f32.mrb[0].mxu0
      %2977 = vmatprep.mubr.bf16.mxu0 0
      %2978 = vmatmul.mubr.bf16.gmra.mrb[0].mxu0 %v2815
      %v2979 = vpop.f32.mrb[0].mxu0
      %v2980 = vadd.f32 0.0, %v2979
      %v2981 = vpop.f32.mrb[0].mxu0
      %v2982 = vpop.f32.mrb[0].mxu0
      %v2983 = vadd.f32 0.0, %v2982
      %v2984 = vpop.f32.mrb[0].mxu0
      %2985 = vmatprep.mubr.bf16.mxu0 0
      %2986 = vmatmul.mubr.bf16.gmra.mrb[0].mxu0 %v2818
      %v2987 = vpop.f32.mrb[0].mxu0
      %v2988 = vadd.f32 0.0, %v2987
      %v2989 = vpop.f32.mrb[0].mxu0
      %v2990 = vpop.f32.mrb[0].mxu0
      %v2991 = vadd.f32 0.0, %v2990
      %v2992 = vpop.f32.mrb[0].mxu0
      %2993 = vmatprep.mubr.bf16.mxu0 0
      %2994 = vmatmul.mubr.bf16.gmra.mrb[0].mxu0 %v2821
      %v2995 = vpop.f32.mrb[0].mxu0
      %v2996 = vadd.f32 0.0, %v2995
      %v2997 = vpop.f32.mrb[0].mxu0
      %v2998 = vpop.f32.mrb[0].mxu0
      %v2999 = vadd.f32 0.0, %v2998
      %v3000 = vpop.f32.mrb[0].mxu0
      %3001 = vmatprep.mubr.bf16.mxu0 0
      %3002 = vmatmul.mubr.bf16.gmra.mrb[0].mxu0 %v2824
      %v3003 = vpop.f32.mrb[0].mxu0
      %v3004 = vadd.f32 0.0, %v3003
      %v3005 = vpop.f32.mrb[0].mxu0
      %v3006 = vpop.f32.mrb[0].mxu0
      %v3007 = vadd.f32 0.0, %v3006
      %v3008 = vpop.f32.mrb[0].mxu0
      %3009 = vmatprep.mubr.bf16.mxu0 0
      %3010 = vmatmul.mubr.bf16.gmra.mrb[0].mxu0 %v2827
      %v3011 = vpop.f32.mrb[0].mxu0
      %v3012 = vadd.f32 0.0, %v3011
      %v3013 = vpop.f32.mrb[0].mxu0
      %v3014 = vpop.f32.mrb[0].mxu0
      %v3015 = vadd.f32 0.0, %v3014
      %v3016 = vpop.f32.mrb[0].mxu0
      %3017 = vmatprep.mubr.bf16.mxu0 0
      %3018 = vmatmul.mubr.bf16.gmra.mrb[0].mxu0 %v2830
      %v3019 = vpop.f32.mrb[0].mxu0
      %v3020 = vadd.f32 0.0, %v3019
      %v3021 = vpop.f32.mrb[0].mxu0
      %v3022 = vpop.f32.mrb[0].mxu0
      %v3023 = vadd.f32 0.0, %v3022
      %v3024 = vpop.f32.mrb[0].mxu0
      %3025 = vmatprep.mubr.bf16.mxu0 0
      %3026 = vmatmul.mubr.bf16.gmra.mrb[0].mxu0 %v2833
      %v3027 = vpop.f32.mrb[0].mxu0
      %v3028 = vadd.f32 0.0, %v3027
      %v3029 = vpop.f32.mrb[0].mxu0
      %v3030 = vpop.f32.mrb[0].mxu0
      %v3031 = vadd.f32 0.0, %v3030
      %v3032 = vpop.f32.mrb[0].mxu0
      %3033 = vmatprep.mubr.bf16.mxu0 0
      %3034 = vmatmul.mubr.bf16.gmra.mrb[0].mxu0 %v2836
      %v3035 = vpop.f32.mrb[0].mxu0
      %v3036 = vadd.f32 0.0, %v3035
      %v3037 = vpop.f32.mrb[0].mxu0
      %v3038 = vpop.f32.mrb[0].mxu0
      %v3039 = vpop.f32.mrb[0].mxu0
      %3040 = vdwg.mxu0
      %v3041 = vadd.f32 %v2546, %v2876
      %v3042 = vadd.f32 %v2549, %v2879
      %v3043 = vadd.f32 %v2554, %v2884
      %v3044 = vadd.f32 %v2557, %v2887
      %v3045 = vadd.f32 %v2562, %v2892
      %v3046 = vadd.f32 %v2565, %v2895
      %v3047 = vadd.f32 %v2570, %v2900
      %v3048 = vadd.f32 %v2573, %v2903
      %v3049 = vadd.f32 %v2578, %v2908
      %v3050 = vadd.f32 %v2581, %v2911
      %v3051 = vadd.f32 %v2586, %v2916
      %v3052 = vadd.f32 %v2589, %v2919
      %v3053 = vadd.f32 %v2594, %v2924
      %v3054 = vadd.f32 %v2597, %v2927
      %v3055 = vadd.f32 %v2602, %v2932
      %v3056 = vadd.f32 %v2605, %v2935
      %v3057 = vadd.f32 %v2610, %v2940
      %v3058 = vadd.f32 %v2613, %v2943
      %v3059 = vadd.f32 %v2618, %v2948
      %v3060 = vadd.f32 %v2621, %v2951
      %v3061 = vadd.f32 %v2626, %v2956
      %v3062 = vadd.f32 %v2629, %v2959
      %v3063 = vadd.f32 %v2634, %v2964
      %v3064 = vadd.f32 %v2637, %v2967
      %v3065 = vadd.f32 %v2642, %v2972
      %v3066 = vadd.f32 %v2645, %v2975
      %v3067 = vadd.f32 %v2650, %v2980
      %v3068 = vadd.f32 %v2653, %v2983
      %v3069 = vadd.f32 %v2658, %v2988
      %v3070 = vadd.f32 %v2661, %v2991
      %v3071 = vadd.f32 %v2666, %v2996
      %v3072 = vadd.f32 %v2669, %v2999
      %v3073 = vadd.f32 %v2674, %v3004
      %v3074 = vadd.f32 %v2677, %v3007
      %v3075 = vadd.f32 %v2682, %v3012
      %v3076 = vadd.f32 %v2685, %v3015
      %v3077 = vadd.f32 %v2690, %v3020
      %v3078 = vadd.f32 %v2693, %v3023
      %v3079 = vadd.f32 %v2698, %v3028
      %v3080 = vadd.f32 %v2701, %v3031
      %v3081 = vadd.f32 %v2706, %v3036
      %v3082 = vld [vmem:[#allocation2 + $0x17] sm:$0xff]
      %v3083 = vld [vmem:[#allocation2 + $0x1f] sm:$0xff]
      %v3084 = vld [vmem:[#allocation2 + $0x27] sm:$0xff]
      %v3085 = vld [vmem:[#allocation2 + $0x2f] sm:$0xff]
      %v3086 = vld [vmem:[#allocation2 + $0x37] sm:$0xff]
      %v3087 = vld [vmem:[#allocation2 + $0x3f] sm:$0xff]
      %v3088 = vld [vmem:[#allocation2 + $0x47] sm:$0xff]
      %v3089 = vld [vmem:[#allocation2 + $0x4f] sm:$0xff]
      %v3090 = vld [vmem:[#allocation2 + $0x57] sm:$0xff]
      %v3091 = vld [vmem:[#allocation2 + $0x5f] sm:$0xff]
      %v3092 = vld [vmem:[#allocation2 + $0x67] sm:$0xff]
      %v3093 = vld [vmem:[#allocation2 + $0x6f] sm:$0xff]
      %v3094 = vld [vmem:[#allocation2 + $0x77] sm:$0xff]
      %v3095 = vld [vmem:[#allocation2 + $0x7f] sm:$0xff]
      %v3096 = vld [vmem:[#allocation2 + $0x87] sm:$0xff]
      %v3097 = vld [vmem:[#allocation2 + $0x8f] sm:$0xff]
      %v3098 = vld [vmem:[#allocation2 + $0x97] sm:$0xff]
      %v3099 = vld [vmem:[#allocation2 + $0x9f] sm:$0xff]
      %v3100 = vld [vmem:[#allocation2 + $0xa7] sm:$0xff]
      %v3101 = vld [vmem:[#allocation2 + $0xaf] sm:$0xff]
      %v3102 = vld [vmem:[#allocation2 + $0xb7] sm:$0xff]
      %v3103 = vld [vmem:[#allocation2 + $0xbf] sm:$0xff]
      %v3104 = vld [vmem:[#allocation2 + $0xc7] sm:$0xff]
      %v3105 = vld [vmem:[#allocation2 + $0xcf] sm:$0xff]
      %v3106 = vld [vmem:[#allocation2 + $0xd7] sm:$0xff]
      %v3107 = vld [vmem:[#allocation2 + $0xdf] sm:$0xff]
      %v3108 = vld [vmem:[#allocation2 + $0xe7] sm:$0xff]
      %v3109 = vld [vmem:[#allocation2 + $0xef] sm:$0xff]
      %v3110 = vld [vmem:[#allocation2 + $0xf7] sm:$0xff]
      %v3111 = vld [vmem:[#allocation2 + $0xff] sm:$0xff]
      %v3112 = vld [vmem:[#allocation2 + $0x107] sm:$0xff]
      %v3113 = vld [vmem:[#allocation2 + $0x10f] sm:$0xff]
      %v3114 = vld [vmem:[#allocation2 + $0x117] sm:$0xff]
      %v3115 = vld [vmem:[#allocation2 + $0x11f] sm:$0xff]
      %v3116 = vld [vmem:[#allocation2 + $0x127] sm:$0xff]
      %v3117 = vld [vmem:[#allocation2 + $0x12f] sm:$0xff]
      %v3118 = vld [vmem:[#allocation2 + $0x137] sm:$0xff]
      %v3119 = vld [vmem:[#allocation2 + $0x13f] sm:$0xff]
      %v3120 = vld [vmem:[#allocation2 + $0x147] sm:$0xff]
      %v3121 = vld [vmem:[#allocation2 + $0x14f] sm:$0xff]
      %v3122 = vld [vmem:[#allocation2 + $0x157] sm:$0xf]
      %v3123 = vpack.c.bf16 %v3083, %v3082
      %v3124 = vpack.c.bf16 %v3085, %v3084
      %v3125 = vpack.c.bf16 %v3087, %v3086
      %v3126 = vpack.c.bf16 %v3089, %v3088
      %v3127 = vpack.c.bf16 %v3091, %v3090
      %v3128 = vpack.c.bf16 %v3093, %v3092
      %v3129 = vpack.c.bf16 %v3095, %v3094
      %v3130 = vpack.c.bf16 %v3097, %v3096
      %v3131 = vpack.c.bf16 %v3099, %v3098
      %v3132 = vpack.c.bf16 %v3101, %v3100
      %v3133 = vpack.c.bf16 %v3103, %v3102
      %v3134 = vpack.c.bf16 %v3105, %v3104
      %v3135 = vpack.c.bf16 %v3107, %v3106
      %v3136 = vpack.c.bf16 %v3109, %v3108
      %v3137 = vpack.c.bf16 %v3111, %v3110
      %v3138 = vpack.c.bf16 %v3113, %v3112
      %v3139 = vpack.c.bf16 %v3115, %v3114
      %v3140 = vpack.c.bf16 %v3117, %v3116
      %v3141 = vpack.c.bf16 %v3119, %v3118
      %v3142 = vpack.c.bf16 %v3121, %v3120
      %v3143 = vpack.c.bf16 %v3122, %v3122
      %s3144 = scalar_lea.vmem %s6, 3
      %v3145 = vld [vmem:[%s3144] sm:$0x1]
      %v3147 = vsel %vm1715, %v3123, 0
      %v3150 = vsel %vm1715, %v3124, 0
      %v3153 = vsel %vm1715, %v3125, 0
      %v3156 = vsel %vm1715, %v3126, 0
      %v3159 = vsel %vm1715, %v3127, 0
      %v3162 = vsel %vm1715, %v3128, 0
      %v3165 = vsel %vm1715, %v3129, 0
      %v3168 = vsel %vm1715, %v3130, 0
      %v3171 = vsel %vm1715, %v3131, 0
      %v3174 = vsel %vm1715, %v3132, 0
      %v3177 = vsel %vm1715, %v3133, 0
      %v3180 = vsel %vm1715, %v3134, 0
      %v3183 = vsel %vm1715, %v3135, 0
      %v3186 = vsel %vm1715, %v3136, 0
      %v3189 = vsel %vm1715, %v3137, 0
      %v3192 = vsel %vm1715, %v3138, 0
      %v3195 = vsel %vm1715, %v3139, 0
      %v3198 = vsel %vm1715, %v3140, 0
      %v3201 = vsel %vm1715, %v3141, 0
      %v3204 = vsel %vm1715, %v3142, 0
      %v3207 = vsel %vm1715, %v3143, 0
      %v3210 = vsel %vm2241, %v3145, 0
      %3212 = vmatprep.subr.bf16.mxu0 0
      %3213 = vmatpush1.bf16.msra.mxu0 %v3210
      %3214 = vmatprep.subr.bf16.mxu0 0
      %3215 = vmatpush1.bf16.msra.mxu0 0
      %3216 = vmatprep.subr.bf16.mxu0 0
      %3217 = vmatpush1.bf16.msra.mxu0 0
      %3218 = vmatprep.subr.bf16.mxu0 0
      %3219 = vmatpush1.bf16.msra.mxu0 0
      %3220 = vmatprep.subr.bf16.mxu0 0
      %3221 = vmatpush1.bf16.msra.mxu0 0
      %3222 = vmatprep.subr.bf16.mxu0 0
      %3223 = vmatpush1.bf16.msra.mxu0 0
      %3224 = vmatprep.subr.bf16.mxu0 0
      %3225 = vmatpush1.bf16.msra.mxu0 0
      %3226 = vmatprep.subr.bf16.mxu0 0
      %3227 = vmatpush1.bf16.msra.mxu0 0
      %3228 = vmatprep.subr.bf16.mxu0 0
      %3229 = vmatpush1.bf16.msra.mxu0 0
      %3230 = vmatprep.subr.bf16.mxu0 0
      %3231 = vmatpush1.bf16.msra.mxu0 0
      %3232 = vmatprep.subr.bf16.mxu0 0
      %3233 = vmatpush1.bf16.msra.mxu0 0
      %3234 = vmatprep.subr.bf16.mxu0 0
      %3235 = vmatpush1.bf16.msra.mxu0 0
      %3236 = vmatprep.subr.bf16.mxu0 0
      %3237 = vmatpush1.bf16.msra.mxu0 0
      %3238 = vmatprep.subr.bf16.mxu0 0
      %3239 = vmatpush1.bf16.msra.mxu0 0
      %3240 = vmatprep.subr.bf16.mxu0 0
      %3241 = vmatpush1.bf16.msra.mxu0 0
      %3242 = vmatprep.subr.bf16.mxu0 0
      %3243 = vmatpush1.bf16.msra.mxu0 0
      %3244 = vmatprep.mubr.bf16.mxu0 0
      %3245 = vmatmul.mubr.bf16.gmra.mrb[0].mxu0 %v3147
      %v3246 = vpop.f32.mrb[0].mxu0
      %v3247 = vadd.f32 0.0, %v3246
      %v3248 = vpop.f32.mrb[0].mxu0
      %v3249 = vpop.f32.mrb[0].mxu0
      %v3250 = vadd.f32 0.0, %v3249
      %v3251 = vpop.f32.mrb[0].mxu0
      %3252 = vmatprep.mubr.bf16.mxu0 0
      %3253 = vmatmul.mubr.bf16.gmra.mrb[0].mxu0 %v3150
      %v3254 = vpop.f32.mrb[0].mxu0
      %v3255 = vadd.f32 0.0, %v3254
      %v3256 = vpop.f32.mrb[0].mxu0
      %v3257 = vpop.f32.mrb[0].mxu0
      %v3258 = vadd.f32 0.0, %v3257
      %v3259 = vpop.f32.mrb[0].mxu0
      %3260 = vmatprep.mubr.bf16.mxu0 0
      %3261 = vmatmul.mubr.bf16.gmra.mrb[0].mxu0 %v3153
      %v3262 = vpop.f32.mrb[0].mxu0
      %v3263 = vadd.f32 0.0, %v3262
      %v3264 = vpop.f32.mrb[0].mxu0
      %v3265 = vpop.f32.mrb[0].mxu0
      %v3266 = vadd.f32 0.0, %v3265
      %v3267 = vpop.f32.mrb[0].mxu0
      %3268 = vmatprep.mubr.bf16.mxu0 0
      %3269 = vmatmul.mubr.bf16.gmra.mrb[0].mxu0 %v3156
      %v3270 = vpop.f32.mrb[0].mxu0
      %v3271 = vadd.f32 0.0, %v3270
      %v3272 = vpop.f32.mrb[0].mxu0
      %v3273 = vpop.f32.mrb[0].mxu0
      %v3274 = vadd.f32 0.0, %v3273
      %v3275 = vpop.f32.mrb[0].mxu0
      %3276 = vmatprep.mubr.bf16.mxu0 0
      %3277 = vmatmul.mubr.bf16.gmra.mrb[0].mxu0 %v3159
      %v3278 = vpop.f32.mrb[0].mxu0
      %v3279 = vadd.f32 0.0, %v3278
      %v3280 = vpop.f32.mrb[0].mxu0
      %v3281 = vpop.f32.mrb[0].mxu0
      %v3282 = vadd.f32 0.0, %v3281
      %v3283 = vpop.f32.mrb[0].mxu0
      %3284 = vmatprep.mubr.bf16.mxu0 0
      %3285 = vmatmul.mubr.bf16.gmra.mrb[0].mxu0 %v3162
      %v3286 = vpop.f32.mrb[0].mxu0
      %v3287 = vadd.f32 0.0, %v3286
      %v3288 = vpop.f32.mrb[0].mxu0
      %v3289 = vpop.f32.mrb[0].mxu0
      %v3290 = vadd.f32 0.0, %v3289
      %v3291 = vpop.f32.mrb[0].mxu0
      %3292 = vmatprep.mubr.bf16.mxu0 0
      %3293 = vmatmul.mubr.bf16.gmra.mrb[0].mxu0 %v3165
      %v3294 = vpop.f32.mrb[0].mxu0
      %v3295 = vadd.f32 0.0, %v3294
      %v3296 = vpop.f32.mrb[0].mxu0
      %v3297 = vpop.f32.mrb[0].mxu0
      %v3298 = vadd.f32 0.0, %v3297
      %v3299 = vpop.f32.mrb[0].mxu0
      %3300 = vmatprep.mubr.bf16.mxu0 0
      %3301 = vmatmul.mubr.bf16.gmra.mrb[0].mxu0 %v3168
      %v3302 = vpop.f32.mrb[0].mxu0
      %v3303 = vadd.f32 0.0, %v3302
      %v3304 = vpop.f32.mrb[0].mxu0
      %v3305 = vpop.f32.mrb[0].mxu0
      %v3306 = vadd.f32 0.0, %v3305
      %v3307 = vpop.f32.mrb[0].mxu0
      %3308 = vmatprep.mubr.bf16.mxu0 0
      %3309 = vmatmul.mubr.bf16.gmra.mrb[0].mxu0 %v3171
      %v3310 = vpop.f32.mrb[0].mxu0
      %v3311 = vadd.f32 0.0, %v3310
      %v3312 = vpop.f32.mrb[0].mxu0
      %v3313 = vpop.f32.mrb[0].mxu0
      %v3314 = vadd.f32 0.0, %v3313
      %v3315 = vpop.f32.mrb[0].mxu0
      %3316 = vmatprep.mubr.bf16.mxu0 0
      %3317 = vmatmul.mubr.bf16.gmra.mrb[0].mxu0 %v3174
      %v3318 = vpop.f32.mrb[0].mxu0
      %v3319 = vadd.f32 0.0, %v3318
      %v3320 = vpop.f32.mrb[0].mxu0
      %v3321 = vpop.f32.mrb[0].mxu0
      %v3322 = vadd.f32 0.0, %v3321
      %v3323 = vpop.f32.mrb[0].mxu0
      %3324 = vmatprep.mubr.bf16.mxu0 0
      %3325 = vmatmul.mubr.bf16.gmra.mrb[0].mxu0 %v3177
      %v3326 = vpop.f32.mrb[0].mxu0
      %v3327 = vadd.f32 0.0, %v3326
      %v3328 = vpop.f32.mrb[0].mxu0
      %v3329 = vpop.f32.mrb[0].mxu0
      %v3330 = vadd.f32 0.0, %v3329
      %v3331 = vpop.f32.mrb[0].mxu0
      %3332 = vmatprep.mubr.bf16.mxu0 0
      %3333 = vmatmul.mubr.bf16.gmra.mrb[0].mxu0 %v3180
      %v3334 = vpop.f32.mrb[0].mxu0
      %v3335 = vadd.f32 0.0, %v3334
      %v3336 = vpop.f32.mrb[0].mxu0
      %v3337 = vpop.f32.mrb[0].mxu0
      %v3338 = vadd.f32 0.0, %v3337
      %v3339 = vpop.f32.mrb[0].mxu0
      %3340 = vmatprep.mubr.bf16.mxu0 0
      %3341 = vmatmul.mubr.bf16.gmra.mrb[0].mxu0 %v3183
      %v3342 = vpop.f32.mrb[0].mxu0
      %v3343 = vadd.f32 0.0, %v3342
      %v3344 = vpop.f32.mrb[0].mxu0
      %v3345 = vpop.f32.mrb[0].mxu0
      %v3346 = vadd.f32 0.0, %v3345
      %v3347 = vpop.f32.mrb[0].mxu0
      %3348 = vmatprep.mubr.bf16.mxu0 0
      %3349 = vmatmul.mubr.bf16.gmra.mrb[0].mxu0 %v3186
      %v3350 = vpop.f32.mrb[0].mxu0
      %v3351 = vadd.f32 0.0, %v3350
      %v3352 = vpop.f32.mrb[0].mxu0
      %v3353 = vpop.f32.mrb[0].mxu0
      %v3354 = vadd.f32 0.0, %v3353
      %v3355 = vpop.f32.mrb[0].mxu0
      %3356 = vmatprep.mubr.bf16.mxu0 0
      %3357 = vmatmul.mubr.bf16.gmra.mrb[0].mxu0 %v3189
      %v3358 = vpop.f32.mrb[0].mxu0
      %v3359 = vadd.f32 0.0, %v3358
      %v3360 = vpop.f32.mrb[0].mxu0
      %v3361 = vpop.f32.mrb[0].mxu0
      %v3362 = vadd.f32 0.0, %v3361
      %v3363 = vpop.f32.mrb[0].mxu0
      %3364 = vmatprep.mubr.bf16.mxu0 0
      %3365 = vmatmul.mubr.bf16.gmra.mrb[0].mxu0 %v3192
      %v3366 = vpop.f32.mrb[0].mxu0
      %v3367 = vadd.f32 0.0, %v3366
      %v3368 = vpop.f32.mrb[0].mxu0
      %v3369 = vpop.f32.mrb[0].mxu0
      %v3370 = vadd.f32 0.0, %v3369
      %v3371 = vpop.f32.mrb[0].mxu0
      %3372 = vmatprep.mubr.bf16.mxu0 0
      %3373 = vmatmul.mubr.bf16.gmra.mrb[0].mxu0 %v3195
      %v3374 = vpop.f32.mrb[0].mxu0
      %v3375 = vadd.f32 0.0, %v3374
      %v3376 = vpop.f32.mrb[0].mxu0
      %v3377 = vpop.f32.mrb[0].mxu0
      %v3378 = vadd.f32 0.0, %v3377
      %v3379 = vpop.f32.mrb[0].mxu0
      %3380 = vmatprep.mubr.bf16.mxu0 0
      %3381 = vmatmul.mubr.bf16.gmra.mrb[0].mxu0 %v3198
      %v3382 = vpop.f32.mrb[0].mxu0
      %v3383 = vadd.f32 0.0, %v3382
      %v3384 = vpop.f32.mrb[0].mxu0
      %v3385 = vpop.f32.mrb[0].mxu0
      %v3386 = vadd.f32 0.0, %v3385
      %v3387 = vpop.f32.mrb[0].mxu0
      %3388 = vmatprep.mubr.bf16.mxu0 0
      %3389 = vmatmul.mubr.bf16.gmra.mrb[0].mxu0 %v3201
      %v3390 = vpop.f32.mrb[0].mxu0
      %v3391 = vadd.f32 0.0, %v3390
      %v3392 = vpop.f32.mrb[0].mxu0
      %v3393 = vpop.f32.mrb[0].mxu0
      %v3394 = vadd.f32 0.0, %v3393
      %v3395 = vpop.f32.mrb[0].mxu0
      %3396 = vmatprep.mubr.bf16.mxu0 0
      %3397 = vmatmul.mubr.bf16.gmra.mrb[0].mxu0 %v3204
      %v3398 = vpop.f32.mrb[0].mxu0
      %v3399 = vadd.f32 0.0, %v3398
      %v3400 = vpop.f32.mrb[0].mxu0
      %v3401 = vpop.f32.mrb[0].mxu0
      %v3402 = vadd.f32 0.0, %v3401
      %v3403 = vpop.f32.mrb[0].mxu0
      %3404 = vmatprep.mubr.bf16.mxu0 0
      %3405 = vmatmul.mubr.bf16.gmra.mrb[0].mxu0 %v3207
      %v3406 = vpop.f32.mrb[0].mxu0
      %v3407 = vadd.f32 0.0, %v3406
      %v3408 = vpop.f32.mrb[0].mxu0
      %v3409 = vpop.f32.mrb[0].mxu0
      %v3410 = vpop.f32.mrb[0].mxu0
      %3411 = vdwg.mxu0
      %v3412 = vadd.f32 %v3041, %v3247
      %v3413 = vadd.f32 %v3042, %v3250
      %v3414 = vadd.f32 %v3043, %v3255
      %v3415 = vadd.f32 %v3044, %v3258
      %v3416 = vadd.f32 %v3045, %v3263
      %v3417 = vadd.f32 %v3046, %v3266
      %v3418 = vadd.f32 %v3047, %v3271
      %v3419 = vadd.f32 %v3048, %v3274
      %v3420 = vadd.f32 %v3049, %v3279
      %v3421 = vadd.f32 %v3050, %v3282
      %v3422 = vadd.f32 %v3051, %v3287
      %v3423 = vadd.f32 %v3052, %v3290
      %v3424 = vadd.f32 %v3053, %v3295
      %v3425 = vadd.f32 %v3054, %v3298
      %v3426 = vadd.f32 %v3055, %v3303
      %v3427 = vadd.f32 %v3056, %v3306
      %v3428 = vadd.f32 %v3057, %v3311
      %v3429 = vadd.f32 %v3058, %v3314
      %v3430 = vadd.f32 %v3059, %v3319
      %v3431 = vadd.f32 %v3060, %v3322
      %v3432 = vadd.f32 %v3061, %v3327
      %v3433 = vadd.f32 %v3062, %v3330
      %v3434 = vadd.f32 %v3063, %v3335
      %v3435 = vadd.f32 %v3064, %v3338
      %v3436 = vadd.f32 %v3065, %v3343
      %v3437 = vadd.f32 %v3066, %v3346
      %v3438 = vadd.f32 %v3067, %v3351
      %v3439 = vadd.f32 %v3068, %v3354
      %v3440 = vadd.f32 %v3069, %v3359
      %v3441 = vadd.f32 %v3070, %v3362
      %v3442 = vadd.f32 %v3071, %v3367
      %v3443 = vadd.f32 %v3072, %v3370
      %v3444 = vadd.f32 %v3073, %v3375
      %v3445 = vadd.f32 %v3074, %v3378
      %v3446 = vadd.f32 %v3075, %v3383
      %v3447 = vadd.f32 %v3076, %v3386
      %v3448 = vadd.f32 %v3077, %v3391
      %v3449 = vadd.f32 %v3078, %v3394
      %v3450 = vadd.f32 %v3079, %v3399
      %v3451 = vadd.f32 %v3080, %v3402
      %v3452 = vadd.f32 %v3081, %v3407
      %v3453 = vld [vmem:[#allocation2 + $0x18] sm:$0xff]
      %v3454 = vld [vmem:[#allocation2 + $0x20] sm:$0xff]
      %v3455 = vld [vmem:[#allocation2 + $0x28] sm:$0xff]
      %v3456 = vld [vmem:[#allocation2 + $0x30] sm:$0xff]
      %v3457 = vld [vmem:[#allocation2 + $0x38] sm:$0xff]
      %v3458 = vld [vmem:[#allocation2 + $0x40] sm:$0xff]
      %v3459 = vld [vmem:[#allocation2 + $0x48] sm:$0xff]
      %v3460 = vld [vmem:[#allocation2 + $0x50] sm:$0xff]
      %v3461 = vld [vmem:[#allocation2 + $0x58] sm:$0xff]
      %v3462 = vld [vmem:[#allocation2 + $0x60] sm:$0xff]
      %v3463 = vld [vmem:[#allocation2 + $0x68] sm:$0xff]
      %v3464 = vld [vmem:[#allocation2 + $0x70] sm:$0xff]
      %v3465 = vld [vmem:[#allocation2 + $0x78] sm:$0xff]
      %v3466 = vld [vmem:[#allocation2 + $0x80] sm:$0xff]
      %v3467 = vld [vmem:[#allocation2 + $0x88] sm:$0xff]
      %v3468 = vld [vmem:[#allocation2 + $0x90] sm:$0xff]
      %v3469 = vld [vmem:[#allocation2 + $0x98] sm:$0xff]
      %v3470 = vld [vmem:[#allocation2 + $0xa0] sm:$0xff]
      %v3471 = vld [vmem:[#allocation2 + $0xa8] sm:$0xff]
      %v3472 = vld [vmem:[#allocation2 + $0xb0] sm:$0xff]
      %v3473 = vld [vmem:[#allocation2 + $0xb8] sm:$0xff]
      %v3474 = vld [vmem:[#allocation2 + $0xc0] sm:$0xff]
      %v3475 = vld [vmem:[#allocation2 + $0xc8] sm:$0xff]
      %v3476 = vld [vmem:[#allocation2 + $0xd0] sm:$0xff]
      %v3477 = vld [vmem:[#allocation2 + $0xd8] sm:$0xff]
      %v3478 = vld [vmem:[#allocation2 + $0xe0] sm:$0xff]
      %v3479 = vld [vmem:[#allocation2 + $0xe8] sm:$0xff]
      %v3480 = vld [vmem:[#allocation2 + $0xf0] sm:$0xff]
      %v3481 = vld [vmem:[#allocation2 + $0xf8] sm:$0xff]
      %v3482 = vld [vmem:[#allocation2 + $0x100] sm:$0xff]
      %v3483 = vld [vmem:[#allocation2 + $0x108] sm:$0xff]
      %v3484 = vld [vmem:[#allocation2 + $0x110] sm:$0xff]
      %v3485 = vld [vmem:[#allocation2 + $0x118] sm:$0xff]
      %v3486 = vld [vmem:[#allocation2 + $0x120] sm:$0xff]
      %v3487 = vld [vmem:[#allocation2 + $0x128] sm:$0xff]
      %v3488 = vld [vmem:[#allocation2 + $0x130] sm:$0xff]
      %v3489 = vld [vmem:[#allocation2 + $0x138] sm:$0xff]
      %v3490 = vld [vmem:[#allocation2 + $0x140] sm:$0xff]
      %v3491 = vld [vmem:[#allocation2 + $0x148] sm:$0xff]
      %v3492 = vld [vmem:[#allocation2 + $0x150] sm:$0xff]
      %v3493 = vld [vmem:[#allocation2 + $0x158] sm:$0xf]
      %v3494 = vpack.c.bf16 %v3454, %v3453
      %v3495 = vpack.c.bf16 %v3456, %v3455
      %v3496 = vpack.c.bf16 %v3458, %v3457
      %v3497 = vpack.c.bf16 %v3460, %v3459
      %v3498 = vpack.c.bf16 %v3462, %v3461
      %v3499 = vpack.c.bf16 %v3464, %v3463
      %v3500 = vpack.c.bf16 %v3466, %v3465
      %v3501 = vpack.c.bf16 %v3468, %v3467
      %v3502 = vpack.c.bf16 %v3470, %v3469
      %v3503 = vpack.c.bf16 %v3472, %v3471
      %v3504 = vpack.c.bf16 %v3474, %v3473
      %v3505 = vpack.c.bf16 %v3476, %v3475
      %v3506 = vpack.c.bf16 %v3478, %v3477
      %v3507 = vpack.c.bf16 %v3480, %v3479
      %v3508 = vpack.c.bf16 %v3482, %v3481
      %v3509 = vpack.c.bf16 %v3484, %v3483
      %v3510 = vpack.c.bf16 %v3486, %v3485
      %v3511 = vpack.c.bf16 %v3488, %v3487
      %v3512 = vpack.c.bf16 %v3490, %v3489
      %v3513 = vpack.c.bf16 %v3492, %v3491
      %v3514 = vpack.c.bf16 %v3493, %v3493
      %s3515 = scalar_lea.vmem %s6, 4
      %v3516 = vld [vmem:[%s3515] sm:$0x1]
      %v3518 = vsel %vm1715, %v3494, 0
      %v3521 = vsel %vm1715, %v3495, 0
      %v3524 = vsel %vm1715, %v3496, 0
      %v3527 = vsel %vm1715, %v3497, 0
      %v3530 = vsel %vm1715, %v3498, 0
      %v3533 = vsel %vm1715, %v3499, 0
      %v3536 = vsel %vm1715, %v3500, 0
      %v3539 = vsel %vm1715, %v3501, 0
      %v3542 = vsel %vm1715, %v3502, 0
      %v3545 = vsel %vm1715, %v3503, 0
      %v3548 = vsel %vm1715, %v3504, 0
      %v3551 = vsel %vm1715, %v3505, 0
      %v3554 = vsel %vm1715, %v3506, 0
      %v3557 = vsel %vm1715, %v3507, 0
      %v3560 = vsel %vm1715, %v3508, 0
      %v3563 = vsel %vm1715, %v3509, 0
      %v3566 = vsel %vm1715, %v3510, 0
      %v3569 = vsel %vm1715, %v3511, 0
      %v3572 = vsel %vm1715, %v3512, 0
      %v3575 = vsel %vm1715, %v3513, 0
      %v3578 = vsel %vm1715, %v3514, 0
      %v3581 = vsel %vm2241, %v3516, 0
      %3583 = vmatprep.subr.bf16.mxu0 0
      %3584 = vmatpush1.bf16.msra.mxu0 %v3581
      %3585 = vmatprep.subr.bf16.mxu0 0
      %3586 = vmatpush1.bf16.msra.mxu0 0
      %3587 = vmatprep.subr.bf16.mxu0 0
      %3588 = vmatpush1.bf16.msra.mxu0 0
      %3589 = vmatprep.subr.bf16.mxu0 0
      %3590 = vmatpush1.bf16.msra.mxu0 0
      %3591 = vmatprep.subr.bf16.mxu0 0
      %3592 = vmatpush1.bf16.msra.mxu0 0
      %3593 = vmatprep.subr.bf16.mxu0 0
      %3594 = vmatpush1.bf16.msra.mxu0 0
      %3595 = vmatprep.subr.bf16.mxu0 0
      %3596 = vmatpush1.bf16.msra.mxu0 0
      %3597 = vmatprep.subr.bf16.mxu0 0
      %3598 = vmatpush1.bf16.msra.mxu0 0
      %3599 = vmatprep.subr.bf16.mxu0 0
      %3600 = vmatpush1.bf16.msra.mxu0 0
      %3601 = vmatprep.subr.bf16.mxu0 0
      %3602 = vmatpush1.bf16.msra.mxu0 0
      %3603 = vmatprep.subr.bf16.mxu0 0
      %3604 = vmatpush1.bf16.msra.mxu0 0
      %3605 = vmatprep.subr.bf16.mxu0 0
      %3606 = vmatpush1.bf16.msra.mxu0 0
      %3607 = vmatprep.subr.bf16.mxu0 0
      %3608 = vmatpush1.bf16.msra.mxu0 0
      %3609 = vmatprep.subr.bf16.mxu0 0
      %3610 = vmatpush1.bf16.msra.mxu0 0
      %3611 = vmatprep.subr.bf16.mxu0 0
      %3612 = vmatpush1.bf16.msra.mxu0 0
      %3613 = vmatprep.subr.bf16.mxu0 0
      %3614 = vmatpush1.bf16.msra.mxu0 0
      %3615 = vmatprep.mubr.bf16.mxu0 0
      %3616 = vmatmul.mubr.bf16.gmra.mrb[0].mxu0 %v3518
      %v3617 = vpop.f32.mrb[0].mxu0
      %v3618 = vadd.f32 0.0, %v3617
      %v3619 = vpop.f32.mrb[0].mxu0
      %v3620 = vpop.f32.mrb[0].mxu0
      %v3621 = vadd.f32 0.0, %v3620
      %v3622 = vpop.f32.mrb[0].mxu0
      %3623 = vmatprep.mubr.bf16.mxu0 0
      %3624 = vmatmul.mubr.bf16.gmra.mrb[0].mxu0 %v3521
      %v3625 = vpop.f32.mrb[0].mxu0
      %v3626 = vadd.f32 0.0, %v3625
      %v3627 = vpop.f32.mrb[0].mxu0
      %v3628 = vpop.f32.mrb[0].mxu0
      %v3629 = vadd.f32 0.0, %v3628
      %v3630 = vpop.f32.mrb[0].mxu0
      %3631 = vmatprep.mubr.bf16.mxu0 0
      %3632 = vmatmul.mubr.bf16.gmra.mrb[0].mxu0 %v3524
      %v3633 = vpop.f32.mrb[0].mxu0
      %v3634 = vadd.f32 0.0, %v3633
      %v3635 = vpop.f32.mrb[0].mxu0
      %v3636 = vpop.f32.mrb[0].mxu0
      %v3637 = vadd.f32 0.0, %v3636
      %v3638 = vpop.f32.mrb[0].mxu0
      %3639 = vmatprep.mubr.bf16.mxu0 0
      %3640 = vmatmul.mubr.bf16.gmra.mrb[0].mxu0 %v3527
      %v3641 = vpop.f32.mrb[0].mxu0
      %v3642 = vadd.f32 0.0, %v3641
      %v3643 = vpop.f32.mrb[0].mxu0
      %v3644 = vpop.f32.mrb[0].mxu0
      %v3645 = vadd.f32 0.0, %v3644
      %v3646 = vpop.f32.mrb[0].mxu0
      %3647 = vmatprep.mubr.bf16.mxu0 0
      %3648 = vmatmul.mubr.bf16.gmra.mrb[0].mxu0 %v3530
      %v3649 = vpop.f32.mrb[0].mxu0
      %v3650 = vadd.f32 0.0, %v3649
      %v3651 = vpop.f32.mrb[0].mxu0
      %v3652 = vpop.f32.mrb[0].mxu0
      %v3653 = vadd.f32 0.0, %v3652
      %v3654 = vpop.f32.mrb[0].mxu0
      %3655 = vmatprep.mubr.bf16.mxu0 0
      %3656 = vmatmul.mubr.bf16.gmra.mrb[0].mxu0 %v3533
      %v3657 = vpop.f32.mrb[0].mxu0
      %v3658 = vadd.f32 0.0, %v3657
      %v3659 = vpop.f32.mrb[0].mxu0
      %v3660 = vpop.f32.mrb[0].mxu0
      %v3661 = vadd.f32 0.0, %v3660
      %v3662 = vpop.f32.mrb[0].mxu0
      %3663 = vmatprep.mubr.bf16.mxu0 0
      %3664 = vmatmul.mubr.bf16.gmra.mrb[0].mxu0 %v3536
      %v3665 = vpop.f32.mrb[0].mxu0
      %v3666 = vadd.f32 0.0, %v3665
      %v3667 = vpop.f32.mrb[0].mxu0
      %v3668 = vpop.f32.mrb[0].mxu0
      %v3669 = vadd.f32 0.0, %v3668
      %v3670 = vpop.f32.mrb[0].mxu0
      %3671 = vmatprep.mubr.bf16.mxu0 0
      %3672 = vmatmul.mubr.bf16.gmra.mrb[0].mxu0 %v3539
      %v3673 = vpop.f32.mrb[0].mxu0
      %v3674 = vadd.f32 0.0, %v3673
      %v3675 = vpop.f32.mrb[0].mxu0
      %v3676 = vpop.f32.mrb[0].mxu0
      %v3677 = vadd.f32 0.0, %v3676
      %v3678 = vpop.f32.mrb[0].mxu0
      %3679 = vmatprep.mubr.bf16.mxu0 0
      %3680 = vmatmul.mubr.bf16.gmra.mrb[0].mxu0 %v3542
      %v3681 = vpop.f32.mrb[0].mxu0
      %v3682 = vadd.f32 0.0, %v3681
      %v3683 = vpop.f32.mrb[0].mxu0
      %v3684 = vpop.f32.mrb[0].mxu0
      %v3685 = vadd.f32 0.0, %v3684
      %v3686 = vpop.f32.mrb[0].mxu0
      %3687 = vmatprep.mubr.bf16.mxu0 0
      %3688 = vmatmul.mubr.bf16.gmra.mrb[0].mxu0 %v3545
      %v3689 = vpop.f32.mrb[0].mxu0
      %v3690 = vadd.f32 0.0, %v3689
      %v3691 = vpop.f32.mrb[0].mxu0
      %v3692 = vpop.f32.mrb[0].mxu0
      %v3693 = vadd.f32 0.0, %v3692
      %v3694 = vpop.f32.mrb[0].mxu0
      %3695 = vmatprep.mubr.bf16.mxu0 0
      %3696 = vmatmul.mubr.bf16.gmra.mrb[0].mxu0 %v3548
      %v3697 = vpop.f32.mrb[0].mxu0
      %v3698 = vadd.f32 0.0, %v3697
      %v3699 = vpop.f32.mrb[0].mxu0
      %v3700 = vpop.f32.mrb[0].mxu0
      %v3701 = vadd.f32 0.0, %v3700
      %v3702 = vpop.f32.mrb[0].mxu0
      %3703 = vmatprep.mubr.bf16.mxu0 0
      %3704 = vmatmul.mubr.bf16.gmra.mrb[0].mxu0 %v3551
      %v3705 = vpop.f32.mrb[0].mxu0
      %v3706 = vadd.f32 0.0, %v3705
      %v3707 = vpop.f32.mrb[0].mxu0
      %v3708 = vpop.f32.mrb[0].mxu0
      %v3709 = vadd.f32 0.0, %v3708
      %v3710 = vpop.f32.mrb[0].mxu0
      %3711 = vmatprep.mubr.bf16.mxu0 0
      %3712 = vmatmul.mubr.bf16.gmra.mrb[0].mxu0 %v3554
      %v3713 = vpop.f32.mrb[0].mxu0
      %v3714 = vadd.f32 0.0, %v3713
      %v3715 = vpop.f32.mrb[0].mxu0
      %v3716 = vpop.f32.mrb[0].mxu0
      %v3717 = vadd.f32 0.0, %v3716
      %v3718 = vpop.f32.mrb[0].mxu0
      %3719 = vmatprep.mubr.bf16.mxu0 0
      %3720 = vmatmul.mubr.bf16.gmra.mrb[0].mxu0 %v3557
      %v3721 = vpop.f32.mrb[0].mxu0
      %v3722 = vadd.f32 0.0, %v3721
      %v3723 = vpop.f32.mrb[0].mxu0
      %v3724 = vpop.f32.mrb[0].mxu0
      %v3725 = vadd.f32 0.0, %v3724
      %v3726 = vpop.f32.mrb[0].mxu0
      %3727 = vmatprep.mubr.bf16.mxu0 0
      %3728 = vmatmul.mubr.bf16.gmra.mrb[0].mxu0 %v3560
      %v3729 = vpop.f32.mrb[0].mxu0
      %v3730 = vadd.f32 0.0, %v3729
      %v3731 = vpop.f32.mrb[0].mxu0
      %v3732 = vpop.f32.mrb[0].mxu0
      %v3733 = vadd.f32 0.0, %v3732
      %v3734 = vpop.f32.mrb[0].mxu0
      %3735 = vmatprep.mubr.bf16.mxu0 0
      %3736 = vmatmul.mubr.bf16.gmra.mrb[0].mxu0 %v3563
      %v3737 = vpop.f32.mrb[0].mxu0
      %v3738 = vadd.f32 0.0, %v3737
      %v3739 = vpop.f32.mrb[0].mxu0
      %v3740 = vpop.f32.mrb[0].mxu0
      %v3741 = vadd.f32 0.0, %v3740
      %v3742 = vpop.f32.mrb[0].mxu0
      %3743 = vmatprep.mubr.bf16.mxu0 0
      %3744 = vmatmul.mubr.bf16.gmra.mrb[0].mxu0 %v3566
      %v3745 = vpop.f32.mrb[0].mxu0
      %v3746 = vadd.f32 0.0, %v3745
      %v3747 = vpop.f32.mrb[0].mxu0
      %v3748 = vpop.f32.mrb[0].mxu0
      %v3749 = vadd.f32 0.0, %v3748
      %v3750 = vpop.f32.mrb[0].mxu0
      %3751 = vmatprep.mubr.bf16.mxu0 0
      %3752 = vmatmul.mubr.bf16.gmra.mrb[0].mxu0 %v3569
      %v3753 = vpop.f32.mrb[0].mxu0
      %v3754 = vadd.f32 0.0, %v3753
      %v3755 = vpop.f32.mrb[0].mxu0
      %v3756 = vpop.f32.mrb[0].mxu0
      %v3757 = vadd.f32 0.0, %v3756
      %v3758 = vpop.f32.mrb[0].mxu0
      %3759 = vmatprep.mubr.bf16.mxu0 0
      %3760 = vmatmul.mubr.bf16.gmra.mrb[0].mxu0 %v3572
      %v3761 = vpop.f32.mrb[0].mxu0
      %v3762 = vadd.f32 0.0, %v3761
      %v3763 = vpop.f32.mrb[0].mxu0
      %v3764 = vpop.f32.mrb[0].mxu0
      %v3765 = vadd.f32 0.0, %v3764
      %v3766 = vpop.f32.mrb[0].mxu0
      %3767 = vmatprep.mubr.bf16.mxu0 0
      %3768 = vmatmul.mubr.bf16.gmra.mrb[0].mxu0 %v3575
      %v3769 = vpop.f32.mrb[0].mxu0
      %v3770 = vadd.f32 0.0, %v3769
      %v3771 = vpop.f32.mrb[0].mxu0
      %v3772 = vpop.f32.mrb[0].mxu0
      %v3773 = vadd.f32 0.0, %v3772
      %v3774 = vpop.f32.mrb[0].mxu0
      %3775 = vmatprep.mubr.bf16.mxu0 0
      %3776 = vmatmul.mubr.bf16.gmra.mrb[0].mxu0 %v3578
      %v3777 = vpop.f32.mrb[0].mxu0
      %v3778 = vadd.f32 0.0, %v3777
      %v3779 = vpop.f32.mrb[0].mxu0
      %v3780 = vpop.f32.mrb[0].mxu0
      %v3781 = vpop.f32.mrb[0].mxu0
      %3782 = vdwg.mxu0
      %v3783 = vadd.f32 %v3412, %v3618
      %v3784 = vadd.f32 %v3413, %v3621
      %v3785 = vadd.f32 %v3414, %v3626
      %v3786 = vadd.f32 %v3415, %v3629
      %v3787 = vadd.f32 %v3416, %v3634
      %v3788 = vadd.f32 %v3417, %v3637
      %v3789 = vadd.f32 %v3418, %v3642
      %v3790 = vadd.f32 %v3419, %v3645
      %v3791 = vadd.f32 %v3420, %v3650
      %v3792 = vadd.f32 %v3421, %v3653
      %v3793 = vadd.f32 %v3422, %v3658
      %v3794 = vadd.f32 %v3423, %v3661
      %v3795 = vadd.f32 %v3424, %v3666
      %v3796 = vadd.f32 %v3425, %v3669
      %v3797 = vadd.f32 %v3426, %v3674
      %v3798 = vadd.f32 %v3427, %v3677
      %v3799 = vadd.f32 %v3428, %v3682
      %v3800 = vadd.f32 %v3429, %v3685
      %v3801 = vadd.f32 %v3430, %v3690
      %v3802 = vadd.f32 %v3431, %v3693
      %v3803 = vadd.f32 %v3432, %v3698
      %v3804 = vadd.f32 %v3433, %v3701
      %v3805 = vadd.f32 %v3434, %v3706
      %v3806 = vadd.f32 %v3435, %v3709
      %v3807 = vadd.f32 %v3436, %v3714
      %v3808 = vadd.f32 %v3437, %v3717
      %v3809 = vadd.f32 %v3438, %v3722
      %v3810 = vadd.f32 %v3439, %v3725
      %v3811 = vadd.f32 %v3440, %v3730
      %v3812 = vadd.f32 %v3441, %v3733
      %v3813 = vadd.f32 %v3442, %v3738
      %v3814 = vadd.f32 %v3443, %v3741
      %v3815 = vadd.f32 %v3444, %v3746
      %v3816 = vadd.f32 %v3445, %v3749
      %v3817 = vadd.f32 %v3446, %v3754
      %v3818 = vadd.f32 %v3447, %v3757
      %v3819 = vadd.f32 %v3448, %v3762
      %v3820 = vadd.f32 %v3449, %v3765
      %v3821 = vadd.f32 %v3450, %v3770
      %v3822 = vadd.f32 %v3451, %v3773
      %v3823 = vadd.f32 %v3452, %v3778
      %v3824 = vld [vmem:[#allocation2 + $0x19] sm:$0xff]
      %v3825 = vld [vmem:[#allocation2 + $0x21] sm:$0xff]
      %v3826 = vld [vmem:[#allocation2 + $0x29] sm:$0xff]
      %v3827 = vld [vmem:[#allocation2 + $0x31] sm:$0xff]
      %v3828 = vld [vmem:[#allocation2 + $0x39] sm:$0xff]
      %v3829 = vld [vmem:[#allocation2 + $0x41] sm:$0xff]
      %v3830 = vld [vmem:[#allocation2 + $0x49] sm:$0xff]
      %v3831 = vld [vmem:[#allocation2 + $0x51] sm:$0xff]
      %v3832 = vld [vmem:[#allocation2 + $0x59] sm:$0xff]
      %v3833 = vld [vmem:[#allocation2 + $0x61] sm:$0xff]
      %v3834 = vld [vmem:[#allocation2 + $0x69] sm:$0xff]
      %v3835 = vld [vmem:[#allocation2 + $0x71] sm:$0xff]
      %v3836 = vld [vmem:[#allocation2 + $0x79] sm:$0xff]
      %v3837 = vld [vmem:[#allocation2 + $0x81] sm:$0xff]
      %v3838 = vld [vmem:[#allocation2 + $0x89] sm:$0xff]
      %v3839 = vld [vmem:[#allocation2 + $0x91] sm:$0xff]
      %v3840 = vld [vmem:[#allocation2 + $0x99] sm:$0xff]
      %v3841 = vld [vmem:[#allocation2 + $0xa1] sm:$0xff]
      %v3842 = vld [vmem:[#allocation2 + $0xa9] sm:$0xff]
      %v3843 = vld [vmem:[#allocation2 + $0xb1] sm:$0xff]
      %v3844 = vld [vmem:[#allocation2 + $0xb9] sm:$0xff]
      %v3845 = vld [vmem:[#allocation2 + $0xc1] sm:$0xff]
      %v3846 = vld [vmem:[#allocation2 + $0xc9] sm:$0xff]
      %v3847 = vld [vmem:[#allocation2 + $0xd1] sm:$0xff]
      %v3848 = vld [vmem:[#allocation2 + $0xd9] sm:$0xff]
      %v3849 = vld [vmem:[#allocation2 + $0xe1] sm:$0xff]
      %v3850 = vld [vmem:[#allocation2 + $0xe9] sm:$0xff]
      %v3851 = vld [vmem:[#allocation2 + $0xf1] sm:$0xff]
      %v3852 = vld [vmem:[#allocation2 + $0xf9] sm:$0xff]
      %v3853 = vld [vmem:[#allocation2 + $0x101] sm:$0xff]
      %v3854 = vld [vmem:[#allocation2 + $0x109] sm:$0xff]
      %v3855 = vld [vmem:[#allocation2 + $0x111] sm:$0xff]
      %v3856 = vld [vmem:[#allocation2 + $0x119] sm:$0xff]
      %v3857 = vld [vmem:[#allocation2 + $0x121] sm:$0xff]
      %v3858 = vld [vmem:[#allocation2 + $0x129] sm:$0xff]
      %v3859 = vld [vmem:[#allocation2 + $0x131] sm:$0xff]
      %v3860 = vld [vmem:[#allocation2 + $0x139] sm:$0xff]
      %v3861 = vld [vmem:[#allocation2 + $0x141] sm:$0xff]
      %v3862 = vld [vmem:[#allocation2 + $0x149] sm:$0xff]
      %v3863 = vld [vmem:[#allocation2 + $0x151] sm:$0xff]
      %v3864 = vld [vmem:[#allocation2 + $0x159] sm:$0xf]
      %v3865 = vpack.c.bf16 %v3825, %v3824
      %v3866 = vpack.c.bf16 %v3827, %v3826
      %v3867 = vpack.c.bf16 %v3829, %v3828
      %v3868 = vpack.c.bf16 %v3831, %v3830
      %v3869 = vpack.c.bf16 %v3833, %v3832
      %v3870 = vpack.c.bf16 %v3835, %v3834
      %v3871 = vpack.c.bf16 %v3837, %v3836
      %v3872 = vpack.c.bf16 %v3839, %v3838
      %v3873 = vpack.c.bf16 %v3841, %v3840
      %v3874 = vpack.c.bf16 %v3843, %v3842
      %v3875 = vpack.c.bf16 %v3845, %v3844
      %v3876 = vpack.c.bf16 %v3847, %v3846
      %v3877 = vpack.c.bf16 %v3849, %v3848
      %v3878 = vpack.c.bf16 %v3851, %v3850
      %v3879 = vpack.c.bf16 %v3853, %v3852
      %v3880 = vpack.c.bf16 %v3855, %v3854
      %v3881 = vpack.c.bf16 %v3857, %v3856
      %v3882 = vpack.c.bf16 %v3859, %v3858
      %v3883 = vpack.c.bf16 %v3861, %v3860
      %v3884 = vpack.c.bf16 %v3863, %v3862
      %v3885 = vpack.c.bf16 %v3864, %v3864
      %s3886 = scalar_lea.vmem %s6, 5
      %v3887 = vld [vmem:[%s3886] sm:$0x1]
      %v3889 = vsel %vm1715, %v3865, 0
      %v3892 = vsel %vm1715, %v3866, 0
      %v3895 = vsel %vm1715, %v3867, 0
      %v3898 = vsel %vm1715, %v3868, 0
      %v3901 = vsel %vm1715, %v3869, 0
      %v3904 = vsel %vm1715, %v3870, 0
      %v3907 = vsel %vm1715, %v3871, 0
      %v3910 = vsel %vm1715, %v3872, 0
      %v3913 = vsel %vm1715, %v3873, 0
      %v3916 = vsel %vm1715, %v3874, 0
      %v3919 = vsel %vm1715, %v3875, 0
      %v3922 = vsel %vm1715, %v3876, 0
      %v3925 = vsel %vm1715, %v3877, 0
      %v3928 = vsel %vm1715, %v3878, 0
      %v3931 = vsel %vm1715, %v3879, 0
      %v3934 = vsel %vm1715, %v3880, 0
      %v3937 = vsel %vm1715, %v3881, 0
      %v3940 = vsel %vm1715, %v3882, 0
      %v3943 = vsel %vm1715, %v3883, 0
      %v3946 = vsel %vm1715, %v3884, 0
      %v3949 = vsel %vm1715, %v3885, 0
      %v3952 = vsel %vm2241, %v3887, 0
      %3954 = vmatprep.subr.bf16.mxu0 0
      %3955 = vmatpush1.bf16.msra.mxu0 %v3952
      %3956 = vmatprep.subr.bf16.mxu0 0
      %3957 = vmatpush1.bf16.msra.mxu0 0
      %3958 = vmatprep.subr.bf16.mxu0 0
      %3959 = vmatpush1.bf16.msra.mxu0 0
      %3960 = vmatprep.subr.bf16.mxu0 0
      %3961 = vmatpush1.bf16.msra.mxu0 0
      %3962 = vmatprep.subr.bf16.mxu0 0
      %3963 = vmatpush1.bf16.msra.mxu0 0
      %3964 = vmatprep.subr.bf16.mxu0 0
      %3965 = vmatpush1.bf16.msra.mxu0 0
      %3966 = vmatprep.subr.bf16.mxu0 0
      %3967 = vmatpush1.bf16.msra.mxu0 0
      %3968 = vmatprep.subr.bf16.mxu0 0
      %3969 = vmatpush1.bf16.msra.mxu0 0
      %3970 = vmatprep.subr.bf16.mxu0 0
      %3971 = vmatpush1.bf16.msra.mxu0 0
      %3972 = vmatprep.subr.bf16.mxu0 0
      %3973 = vmatpush1.bf16.msra.mxu0 0
      %3974 = vmatprep.subr.bf16.mxu0 0
      %3975 = vmatpush1.bf16.msra.mxu0 0
      %3976 = vmatprep.subr.bf16.mxu0 0
      %3977 = vmatpush1.bf16.msra.mxu0 0
      %3978 = vmatprep.subr.bf16.mxu0 0
      %3979 = vmatpush1.bf16.msra.mxu0 0
      %3980 = vmatprep.subr.bf16.mxu0 0
      %3981 = vmatpush1.bf16.msra.mxu0 0
      %3982 = vmatprep.subr.bf16.mxu0 0
      %3983 = vmatpush1.bf16.msra.mxu0 0
      %3984 = vmatprep.subr.bf16.mxu0 0
      %3985 = vmatpush1.bf16.msra.mxu0 0
      %3986 = vmatprep.mubr.bf16.mxu0 0
      %3987 = vmatmul.mubr.bf16.gmra.mrb[0].mxu0 %v3889
      %v3988 = vpop.f32.mrb[0].mxu0
      %v3989 = vadd.f32 0.0, %v3988
      %v3990 = vpop.f32.mrb[0].mxu0
      %v3991 = vpop.f32.mrb[0].mxu0
      %v3992 = vadd.f32 0.0, %v3991
      %v3993 = vpop.f32.mrb[0].mxu0
      %3994 = vmatprep.mubr.bf16.mxu0 0
      %3995 = vmatmul.mubr.bf16.gmra.mrb[0].mxu0 %v3892
      %v3996 = vpop.f32.mrb[0].mxu0
      %v3997 = vadd.f32 0.0, %v3996
      %v3998 = vpop.f32.mrb[0].mxu0
      %v3999 = vpop.f32.mrb[0].mxu0
      %v4000 = vadd.f32 0.0, %v3999
      %v4001 = vpop.f32.mrb[0].mxu0
      %4002 = vmatprep.mubr.bf16.mxu0 0
      %4003 = vmatmul.mubr.bf16.gmra.mrb[0].mxu0 %v3895
      %v4004 = vpop.f32.mrb[0].mxu0
      %v4005 = vadd.f32 0.0, %v4004
      %v4006 = vpop.f32.mrb[0].mxu0
      %v4007 = vpop.f32.mrb[0].mxu0
      %v4008 = vadd.f32 0.0, %v4007
      %v4009 = vpop.f32.mrb[0].mxu0
      %4010 = vmatprep.mubr.bf16.mxu0 0
      %4011 = vmatmul.mubr.bf16.gmra.mrb[0].mxu0 %v3898
      %v4012 = vpop.f32.mrb[0].mxu0
      %v4013 = vadd.f32 0.0, %v4012
      %v4014 = vpop.f32.mrb[0].mxu0
      %v4015 = vpop.f32.mrb[0].mxu0
      %v4016 = vadd.f32 0.0, %v4015
      %v4017 = vpop.f32.mrb[0].mxu0
      %4018 = vmatprep.mubr.bf16.mxu0 0
      %4019 = vmatmul.mubr.bf16.gmra.mrb[0].mxu0 %v3901
      %v4020 = vpop.f32.mrb[0].mxu0
      %v4021 = vadd.f32 0.0, %v4020
      %v4022 = vpop.f32.mrb[0].mxu0
      %v4023 = vpop.f32.mrb[0].mxu0
      %v4024 = vadd.f32 0.0, %v4023
      %v4025 = vpop.f32.mrb[0].mxu0
      %4026 = vmatprep.mubr.bf16.mxu0 0
      %4027 = vmatmul.mubr.bf16.gmra.mrb[0].mxu0 %v3904
      %v4028 = vpop.f32.mrb[0].mxu0
      %v4029 = vadd.f32 0.0, %v4028
      %v4030 = vpop.f32.mrb[0].mxu0
      %v4031 = vpop.f32.mrb[0].mxu0
      %v4032 = vadd.f32 0.0, %v4031
      %v4033 = vpop.f32.mrb[0].mxu0
      %4034 = vmatprep.mubr.bf16.mxu0 0
      %4035 = vmatmul.mubr.bf16.gmra.mrb[0].mxu0 %v3907
      %v4036 = vpop.f32.mrb[0].mxu0
      %v4037 = vadd.f32 0.0, %v4036
      %v4038 = vpop.f32.mrb[0].mxu0
      %v4039 = vpop.f32.mrb[0].mxu0
      %v4040 = vadd.f32 0.0, %v4039
      %v4041 = vpop.f32.mrb[0].mxu0
      %4042 = vmatprep.mubr.bf16.mxu0 0
      %4043 = vmatmul.mubr.bf16.gmra.mrb[0].mxu0 %v3910
      %v4044 = vpop.f32.mrb[0].mxu0
      %v4045 = vadd.f32 0.0, %v4044
      %v4046 = vpop.f32.mrb[0].mxu0
      %v4047 = vpop.f32.mrb[0].mxu0
      %v4048 = vadd.f32 0.0, %v4047
      %v4049 = vpop.f32.mrb[0].mxu0
      %4050 = vmatprep.mubr.bf16.mxu0 0
      %4051 = vmatmul.mubr.bf16.gmra.mrb[0].mxu0 %v3913
      %v4052 = vpop.f32.mrb[0].mxu0
      %v4053 = vadd.f32 0.0, %v4052
      %v4054 = vpop.f32.mrb[0].mxu0
      %v4055 = vpop.f32.mrb[0].mxu0
      %v4056 = vadd.f32 0.0, %v4055
      %v4057 = vpop.f32.mrb[0].mxu0
      %4058 = vmatprep.mubr.bf16.mxu0 0
      %4059 = vmatmul.mubr.bf16.gmra.mrb[0].mxu0 %v3916
      %v4060 = vpop.f32.mrb[0].mxu0
      %v4061 = vadd.f32 0.0, %v4060
      %v4062 = vpop.f32.mrb[0].mxu0
      %v4063 = vpop.f32.mrb[0].mxu0
      %v4064 = vadd.f32 0.0, %v4063
      %v4065 = vpop.f32.mrb[0].mxu0
      %4066 = vmatprep.mubr.bf16.mxu0 0
      %4067 = vmatmul.mubr.bf16.gmra.mrb[0].mxu0 %v3919
      %v4068 = vpop.f32.mrb[0].mxu0
      %v4069 = vadd.f32 0.0, %v4068
      %v4070 = vpop.f32.mrb[0].mxu0
      %v4071 = vpop.f32.mrb[0].mxu0
      %v4072 = vadd.f32 0.0, %v4071
      %v4073 = vpop.f32.mrb[0].mxu0
      %4074 = vmatprep.mubr.bf16.mxu0 0
      %4075 = vmatmul.mubr.bf16.gmra.mrb[0].mxu0 %v3922
      %v4076 = vpop.f32.mrb[0].mxu0
      %v4077 = vadd.f32 0.0, %v4076
      %v4078 = vpop.f32.mrb[0].mxu0
      %v4079 = vpop.f32.mrb[0].mxu0
      %v4080 = vadd.f32 0.0, %v4079
      %v4081 = vpop.f32.mrb[0].mxu0
      %4082 = vmatprep.mubr.bf16.mxu0 0
      %4083 = vmatmul.mubr.bf16.gmra.mrb[0].mxu0 %v3925
      %v4084 = vpop.f32.mrb[0].mxu0
      %v4085 = vadd.f32 0.0, %v4084
      %v4086 = vpop.f32.mrb[0].mxu0
      %v4087 = vpop.f32.mrb[0].mxu0
      %v4088 = vadd.f32 0.0, %v4087
      %v4089 = vpop.f32.mrb[0].mxu0
      %4090 = vmatprep.mubr.bf16.mxu0 0
      %4091 = vmatmul.mubr.bf16.gmra.mrb[0].mxu0 %v3928
      %v4092 = vpop.f32.mrb[0].mxu0
      %v4093 = vadd.f32 0.0, %v4092
      %v4094 = vpop.f32.mrb[0].mxu0
      %v4095 = vpop.f32.mrb[0].mxu0
      %v4096 = vadd.f32 0.0, %v4095
      %v4097 = vpop.f32.mrb[0].mxu0
      %4098 = vmatprep.mubr.bf16.mxu0 0
      %4099 = vmatmul.mubr.bf16.gmra.mrb[0].mxu0 %v3931
      %v4100 = vpop.f32.mrb[0].mxu0
      %v4101 = vadd.f32 0.0, %v4100
      %v4102 = vpop.f32.mrb[0].mxu0
      %v4103 = vpop.f32.mrb[0].mxu0
      %v4104 = vadd.f32 0.0, %v4103
      %v4105 = vpop.f32.mrb[0].mxu0
      %4106 = vmatprep.mubr.bf16.mxu0 0
      %4107 = vmatmul.mubr.bf16.gmra.mrb[0].mxu0 %v3934
      %v4108 = vpop.f32.mrb[0].mxu0
      %v4109 = vadd.f32 0.0, %v4108
      %v4110 = vpop.f32.mrb[0].mxu0
      %v4111 = vpop.f32.mrb[0].mxu0
      %v4112 = vadd.f32 0.0, %v4111
      %v4113 = vpop.f32.mrb[0].mxu0
      %4114 = vmatprep.mubr.bf16.mxu0 0
      %4115 = vmatmul.mubr.bf16.gmra.mrb[0].mxu0 %v3937
      %v4116 = vpop.f32.mrb[0].mxu0
      %v4117 = vadd.f32 0.0, %v4116
      %v4118 = vpop.f32.mrb[0].mxu0
      %v4119 = vpop.f32.mrb[0].mxu0
      %v4120 = vadd.f32 0.0, %v4119
      %v4121 = vpop.f32.mrb[0].mxu0
      %4122 = vmatprep.mubr.bf16.mxu0 0
      %4123 = vmatmul.mubr.bf16.gmra.mrb[0].mxu0 %v3940
      %v4124 = vpop.f32.mrb[0].mxu0
      %v4125 = vadd.f32 0.0, %v4124
      %v4126 = vpop.f32.mrb[0].mxu0
      %v4127 = vpop.f32.mrb[0].mxu0
      %v4128 = vadd.f32 0.0, %v4127
      %v4129 = vpop.f32.mrb[0].mxu0
      %4130 = vmatprep.mubr.bf16.mxu0 0
      %4131 = vmatmul.mubr.bf16.gmra.mrb[0].mxu0 %v3943
      %v4132 = vpop.f32.mrb[0].mxu0
      %v4133 = vadd.f32 0.0, %v4132
      %v4134 = vpop.f32.mrb[0].mxu0
      %v4135 = vpop.f32.mrb[0].mxu0
      %v4136 = vadd.f32 0.0, %v4135
      %v4137 = vpop.f32.mrb[0].mxu0
      %4138 = vmatprep.mubr.bf16.mxu0 0
      %4139 = vmatmul.mubr.bf16.gmra.mrb[0].mxu0 %v3946
      %v4140 = vpop.f32.mrb[0].mxu0
      %v4141 = vadd.f32 0.0, %v4140
      %v4142 = vpop.f32.mrb[0].mxu0
      %v4143 = vpop.f32.mrb[0].mxu0
      %v4144 = vadd.f32 0.0, %v4143
      %v4145 = vpop.f32.mrb[0].mxu0
      %4146 = vmatprep.mubr.bf16.mxu0 0
      %4147 = vmatmul.mubr.bf16.gmra.mrb[0].mxu0 %v3949
      %v4148 = vpop.f32.mrb[0].mxu0
      %v4149 = vadd.f32 0.0, %v4148
      %v4150 = vpop.f32.mrb[0].mxu0
      %v4151 = vpop.f32.mrb[0].mxu0
      %v4152 = vpop.f32.mrb[0].mxu0
      %4153 = vdwg.mxu0
      %v4154 = vadd.f32 %v3783, %v3989
      %v4155 = vadd.f32 %v3784, %v3992
      %v4156 = vadd.f32 %v3785, %v3997
      %v4157 = vadd.f32 %v3786, %v4000
      %v4158 = vadd.f32 %v3787, %v4005
      %v4159 = vadd.f32 %v3788, %v4008
      %v4160 = vadd.f32 %v3789, %v4013
      %v4161 = vadd.f32 %v3790, %v4016
      %v4162 = vadd.f32 %v3791, %v4021
      %v4163 = vadd.f32 %v3792, %v4024
      %v4164 = vadd.f32 %v3793, %v4029
      %v4165 = vadd.f32 %v3794, %v4032
      %v4166 = vadd.f32 %v3795, %v4037
      %v4167 = vadd.f32 %v3796, %v4040
      %v4168 = vadd.f32 %v3797, %v4045
      %v4169 = vadd.f32 %v3798, %v4048
      %v4170 = vadd.f32 %v3799, %v4053
      %v4171 = vadd.f32 %v3800, %v4056
      %v4172 = vadd.f32 %v3801, %v4061
      %v4173 = vadd.f32 %v3802, %v4064
      %v4174 = vadd.f32 %v3803, %v4069
      %v4175 = vadd.f32 %v3804, %v4072
      %v4176 = vadd.f32 %v3805, %v4077
      %v4177 = vadd.f32 %v3806, %v4080
      %v4178 = vadd.f32 %v3807, %v4085
      %v4179 = vadd.f32 %v3808, %v4088
      %v4180 = vadd.f32 %v3809, %v4093
      %v4181 = vadd.f32 %v3810, %v4096
      %v4182 = vadd.f32 %v3811, %v4101
      %v4183 = vadd.f32 %v3812, %v4104
      %v4184 = vadd.f32 %v3813, %v4109
      %v4185 = vadd.f32 %v3814, %v4112
      %v4186 = vadd.f32 %v3815, %v4117
      %v4187 = vadd.f32 %v3816, %v4120
      %v4188 = vadd.f32 %v3817, %v4125
      %v4189 = vadd.f32 %v3818, %v4128
      %v4190 = vadd.f32 %v3819, %v4133
      %v4191 = vadd.f32 %v3820, %v4136
      %v4192 = vadd.f32 %v3821, %v4141
      %v4193 = vadd.f32 %v3822, %v4144
      %v4194 = vadd.f32 %v3823, %v4149
      %v4195 = vld [vmem:[#allocation2 + $0x29] sm:$0xff]
      %v4196 = vld [vmem:[#allocation2 + $0x31] sm:$0xff]
      %v4197 = vld [vmem:[#allocation2 + $0x39] sm:$0xff]
      %v4198 = vld [vmem:[#allocation2 + $0x41] sm:$0xff]
      %v4199 = vld [vmem:[#allocation2 + $0x49] sm:$0xff]
      %v4200 = vld [vmem:[#allocation2 + $0x51] sm:$0xff]
      %v4201 = vld [vmem:[#allocation2 + $0x59] sm:$0xff]
      %v4202 = vld [vmem:[#allocation2 + $0x61] sm:$0xff]
      %v4203 = vld [vmem:[#allocation2 + $0x69] sm:$0xff]
      %v4204 = vld [vmem:[#allocation2 + $0x71] sm:$0xff]
      %v4205 = vld [vmem:[#allocation2 + $0x79] sm:$0xff]
      %v4206 = vld [vmem:[#allocation2 + $0x81] sm:$0xff]
      %v4207 = vld [vmem:[#allocation2 + $0x89] sm:$0xff]
      %v4208 = vld [vmem:[#allocation2 + $0x91] sm:$0xff]
      %v4209 = vld [vmem:[#allocation2 + $0x99] sm:$0xff]
      %v4210 = vld [vmem:[#allocation2 + $0xa1] sm:$0xff]
      %v4211 = vld [vmem:[#allocation2 + $0xa9] sm:$0xff]
      %v4212 = vld [vmem:[#allocation2 + $0xb1] sm:$0xff]
      %v4213 = vld [vmem:[#allocation2 + $0xb9] sm:$0xff]
      %v4214 = vld [vmem:[#allocation2 + $0xc1] sm:$0xff]
      %v4215 = vld [vmem:[#allocation2 + $0xc9] sm:$0xff]
      %v4216 = vld [vmem:[#allocation2 + $0xd1] sm:$0xff]
      %v4217 = vld [vmem:[#allocation2 + $0xd9] sm:$0xff]
      %v4218 = vld [vmem:[#allocation2 + $0xe1] sm:$0xff]
      %v4219 = vld [vmem:[#allocation2 + $0xe9] sm:$0xff]
      %v4220 = vld [vmem:[#allocation2 + $0xf1] sm:$0xff]
      %v4221 = vld [vmem:[#allocation2 + $0xf9] sm:$0xff]
      %v4222 = vld [vmem:[#allocation2 + $0x101] sm:$0xff]
      %v4223 = vld [vmem:[#allocation2 + $0x109] sm:$0xff]
      %v4224 = vld [vmem:[#allocation2 + $0x111] sm:$0xff]
      %v4225 = vld [vmem:[#allocation2 + $0x119] sm:$0xff]
      %v4226 = vld [vmem:[#allocation2 + $0x121] sm:$0xff]
      %v4227 = vld [vmem:[#allocation2 + $0x129] sm:$0xff]
      %v4228 = vld [vmem:[#allocation2 + $0x131] sm:$0xff]
      %v4229 = vld [vmem:[#allocation2 + $0x139] sm:$0xff]
      %v4230 = vld [vmem:[#allocation2 + $0x141] sm:$0xff]
      %v4231 = vld [vmem:[#allocation2 + $0x149] sm:$0xff]
      %v4232 = vld [vmem:[#allocation2 + $0x151] sm:$0xff]
      %v4233 = vld [vmem:[#allocation2 + $0x159] sm:$0xff]
      %v4234 = vld [vmem:[#allocation2 + $0x161] sm:$0xff]
      %v4235 = vld [vmem:[#allocation2 + $0x169] sm:$0xf]
      %v4236 = vpack.c.bf16 %v4196, %v4195
      %v4237 = vpack.c.bf16 %v4198, %v4197
      %v4238 = vpack.c.bf16 %v4200, %v4199
      %v4239 = vpack.c.bf16 %v4202, %v4201
      %v4240 = vpack.c.bf16 %v4204, %v4203
      %v4241 = vpack.c.bf16 %v4206, %v4205
      %v4242 = vpack.c.bf16 %v4208, %v4207
      %v4243 = vpack.c.bf16 %v4210, %v4209
      %v4244 = vpack.c.bf16 %v4212, %v4211
      %v4245 = vpack.c.bf16 %v4214, %v4213
      %v4246 = vpack.c.bf16 %v4216, %v4215
      %v4247 = vpack.c.bf16 %v4218, %v4217
      %v4248 = vpack.c.bf16 %v4220, %v4219
      %v4249 = vpack.c.bf16 %v4222, %v4221
      %v4250 = vpack.c.bf16 %v4224, %v4223
      %v4251 = vpack.c.bf16 %v4226, %v4225
      %v4252 = vpack.c.bf16 %v4228, %v4227
      %v4253 = vpack.c.bf16 %v4230, %v4229
      %v4254 = vpack.c.bf16 %v4232, %v4231
      %v4255 = vpack.c.bf16 %v4234, %v4233
      %v4256 = vpack.c.bf16 %v4235, %v4235
      %s4257 = scalar_lea.vmem %s6, 6
      %v4258 = vld [vmem:[%s4257] sm:$0x1]
      %v4260 = vsel %vm1715, %v4236, 0
      %v4263 = vsel %vm1715, %v4237, 0
      %v4266 = vsel %vm1715, %v4238, 0
      %v4269 = vsel %vm1715, %v4239, 0
      %v4272 = vsel %vm1715, %v4240, 0
      %v4275 = vsel %vm1715, %v4241, 0
      %v4278 = vsel %vm1715, %v4242, 0
      %v4281 = vsel %vm1715, %v4243, 0
      %v4284 = vsel %vm1715, %v4244, 0
      %v4287 = vsel %vm1715, %v4245, 0
      %v4290 = vsel %vm1715, %v4246, 0
      %v4293 = vsel %vm1715, %v4247, 0
      %v4296 = vsel %vm1715, %v4248, 0
      %v4299 = vsel %vm1715, %v4249, 0
      %v4302 = vsel %vm1715, %v4250, 0
      %v4305 = vsel %vm1715, %v4251, 0
      %v4308 = vsel %vm1715, %v4252, 0
      %v4311 = vsel %vm1715, %v4253, 0
      %v4314 = vsel %vm1715, %v4254, 0
      %v4317 = vsel %vm1715, %v4255, 0
      %v4320 = vsel %vm1715, %v4256, 0
      %v4323 = vsel %vm2241, %v4258, 0
      %4325 = vmatprep.subr.bf16.mxu0 0
      %4326 = vmatpush1.bf16.msra.mxu0 %v4323
      %4327 = vmatprep.subr.bf16.mxu0 0
      %4328 = vmatpush1.bf16.msra.mxu0 0
      %4329 = vmatprep.subr.bf16.mxu0 0
      %4330 = vmatpush1.bf16.msra.mxu0 0
      %4331 = vmatprep.subr.bf16.mxu0 0
      %4332 = vmatpush1.bf16.msra.mxu0 0
      %4333 = vmatprep.subr.bf16.mxu0 0
      %4334 = vmatpush1.bf16.msra.mxu0 0
      %4335 = vmatprep.subr.bf16.mxu0 0
      %4336 = vmatpush1.bf16.msra.mxu0 0
      %4337 = vmatprep.subr.bf16.mxu0 0
      %4338 = vmatpush1.bf16.msra.mxu0 0
      %4339 = vmatprep.subr.bf16.mxu0 0
      %4340 = vmatpush1.bf16.msra.mxu0 0
      %4341 = vmatprep.subr.bf16.mxu0 0
      %4342 = vmatpush1.bf16.msra.mxu0 0
      %4343 = vmatprep.subr.bf16.mxu0 0
      %4344 = vmatpush1.bf16.msra.mxu0 0
      %4345 = vmatprep.subr.bf16.mxu0 0
      %4346 = vmatpush1.bf16.msra.mxu0 0
      %4347 = vmatprep.subr.bf16.mxu0 0
      %4348 = vmatpush1.bf16.msra.mxu0 0
      %4349 = vmatprep.subr.bf16.mxu0 0
      %4350 = vmatpush1.bf16.msra.mxu0 0
      %4351 = vmatprep.subr.bf16.mxu0 0
      %4352 = vmatpush1.bf16.msra.mxu0 0
      %4353 = vmatprep.subr.bf16.mxu0 0
      %4354 = vmatpush1.bf16.msra.mxu0 0
      %4355 = vmatprep.subr.bf16.mxu0 0
      %4356 = vmatpush1.bf16.msra.mxu0 0
      %4357 = vmatprep.mubr.bf16.mxu0 0
      %4358 = vmatmul.mubr.bf16.gmra.mrb[0].mxu0 %v4260
      %v4359 = vpop.f32.mrb[0].mxu0
      %v4360 = vadd.f32 0.0, %v4359
      %v4361 = vpop.f32.mrb[0].mxu0
      %v4362 = vpop.f32.mrb[0].mxu0
      %v4363 = vadd.f32 0.0, %v4362
      %v4364 = vpop.f32.mrb[0].mxu0
      %4365 = vmatprep.mubr.bf16.mxu0 0
      %4366 = vmatmul.mubr.bf16.gmra.mrb[0].mxu0 %v4263
      %v4367 = vpop.f32.mrb[0].mxu0
      %v4368 = vadd.f32 0.0, %v4367
      %v4369 = vpop.f32.mrb[0].mxu0
      %v4370 = vpop.f32.mrb[0].mxu0
      %v4371 = vadd.f32 0.0, %v4370
      %v4372 = vpop.f32.mrb[0].mxu0
      %4373 = vmatprep.mubr.bf16.mxu0 0
      %4374 = vmatmul.mubr.bf16.gmra.mrb[0].mxu0 %v4266
      %v4375 = vpop.f32.mrb[0].mxu0
      %v4376 = vadd.f32 0.0, %v4375
      %v4377 = vpop.f32.mrb[0].mxu0
      %v4378 = vpop.f32.mrb[0].mxu0
      %v4379 = vadd.f32 0.0, %v4378
      %v4380 = vpop.f32.mrb[0].mxu0
      %4381 = vmatprep.mubr.bf16.mxu0 0
      %4382 = vmatmul.mubr.bf16.gmra.mrb[0].mxu0 %v4269
      %v4383 = vpop.f32.mrb[0].mxu0
      %v4384 = vadd.f32 0.0, %v4383
      %v4385 = vpop.f32.mrb[0].mxu0
      %v4386 = vpop.f32.mrb[0].mxu0
      %v4387 = vadd.f32 0.0, %v4386
      %v4388 = vpop.f32.mrb[0].mxu0
      %4389 = vmatprep.mubr.bf16.mxu0 0
      %4390 = vmatmul.mubr.bf16.gmra.mrb[0].mxu0 %v4272
      %v4391 = vpop.f32.mrb[0].mxu0
      %v4392 = vadd.f32 0.0, %v4391
      %v4393 = vpop.f32.mrb[0].mxu0
      %v4394 = vpop.f32.mrb[0].mxu0
      %v4395 = vadd.f32 0.0, %v4394
      %v4396 = vpop.f32.mrb[0].mxu0
      %4397 = vmatprep.mubr.bf16.mxu0 0
      %4398 = vmatmul.mubr.bf16.gmra.mrb[0].mxu0 %v4275
      %v4399 = vpop.f32.mrb[0].mxu0
      %v4400 = vadd.f32 0.0, %v4399
      %v4401 = vpop.f32.mrb[0].mxu0
      %v4402 = vpop.f32.mrb[0].mxu0
      %v4403 = vadd.f32 0.0, %v4402
      %v4404 = vpop.f32.mrb[0].mxu0
      %4405 = vmatprep.mubr.bf16.mxu0 0
      %4406 = vmatmul.mubr.bf16.gmra.mrb[0].mxu0 %v4278
      %v4407 = vpop.f32.mrb[0].mxu0
      %v4408 = vadd.f32 0.0, %v4407
      %v4409 = vpop.f32.mrb[0].mxu0
      %v4410 = vpop.f32.mrb[0].mxu0
      %v4411 = vadd.f32 0.0, %v4410
      %v4412 = vpop.f32.mrb[0].mxu0
      %4413 = vmatprep.mubr.bf16.mxu0 0
      %4414 = vmatmul.mubr.bf16.gmra.mrb[0].mxu0 %v4281
      %v4415 = vpop.f32.mrb[0].mxu0
      %v4416 = vadd.f32 0.0, %v4415
      %v4417 = vpop.f32.mrb[0].mxu0
      %v4418 = vpop.f32.mrb[0].mxu0
      %v4419 = vadd.f32 0.0, %v4418
      %v4420 = vpop.f32.mrb[0].mxu0
      %4421 = vmatprep.mubr.bf16.mxu0 0
      %4422 = vmatmul.mubr.bf16.gmra.mrb[0].mxu0 %v4284
      %v4423 = vpop.f32.mrb[0].mxu0
      %v4424 = vadd.f32 0.0, %v4423
      %v4425 = vpop.f32.mrb[0].mxu0
      %v4426 = vpop.f32.mrb[0].mxu0
      %v4427 = vadd.f32 0.0, %v4426
      %v4428 = vpop.f32.mrb[0].mxu0
      %4429 = vmatprep.mubr.bf16.mxu0 0
      %4430 = vmatmul.mubr.bf16.gmra.mrb[0].mxu0 %v4287
      %v4431 = vpop.f32.mrb[0].mxu0
      %v4432 = vadd.f32 0.0, %v4431
      %v4433 = vpop.f32.mrb[0].mxu0
      %v4434 = vpop.f32.mrb[0].mxu0
      %v4435 = vadd.f32 0.0, %v4434
      %v4436 = vpop.f32.mrb[0].mxu0
      %4437 = vmatprep.mubr.bf16.mxu0 0
      %4438 = vmatmul.mubr.bf16.gmra.mrb[0].mxu0 %v4290
      %v4439 = vpop.f32.mrb[0].mxu0
      %v4440 = vadd.f32 0.0, %v4439
      %v4441 = vpop.f32.mrb[0].mxu0
      %v4442 = vpop.f32.mrb[0].mxu0
      %v4443 = vadd.f32 0.0, %v4442
      %v4444 = vpop.f32.mrb[0].mxu0
      %4445 = vmatprep.mubr.bf16.mxu0 0
      %4446 = vmatmul.mubr.bf16.gmra.mrb[0].mxu0 %v4293
      %v4447 = vpop.f32.mrb[0].mxu0
      %v4448 = vadd.f32 0.0, %v4447
      %v4449 = vpop.f32.mrb[0].mxu0
      %v4450 = vpop.f32.mrb[0].mxu0
      %v4451 = vadd.f32 0.0, %v4450
      %v4452 = vpop.f32.mrb[0].mxu0
      %4453 = vmatprep.mubr.bf16.mxu0 0
      %4454 = vmatmul.mubr.bf16.gmra.mrb[0].mxu0 %v4296
      %v4455 = vpop.f32.mrb[0].mxu0
      %v4456 = vadd.f32 0.0, %v4455
      %v4457 = vpop.f32.mrb[0].mxu0
      %v4458 = vpop.f32.mrb[0].mxu0
      %v4459 = vadd.f32 0.0, %v4458
      %v4460 = vpop.f32.mrb[0].mxu0
      %4461 = vmatprep.mubr.bf16.mxu0 0
      %4462 = vmatmul.mubr.bf16.gmra.mrb[0].mxu0 %v4299
      %v4463 = vpop.f32.mrb[0].mxu0
      %v4464 = vadd.f32 0.0, %v4463
      %v4465 = vpop.f32.mrb[0].mxu0
      %v4466 = vpop.f32.mrb[0].mxu0
      %v4467 = vadd.f32 0.0, %v4466
      %v4468 = vpop.f32.mrb[0].mxu0
      %4469 = vmatprep.mubr.bf16.mxu0 0
      %4470 = vmatmul.mubr.bf16.gmra.mrb[0].mxu0 %v4302
      %v4471 = vpop.f32.mrb[0].mxu0
      %v4472 = vadd.f32 0.0, %v4471
      %v4473 = vpop.f32.mrb[0].mxu0
      %v4474 = vpop.f32.mrb[0].mxu0
      %v4475 = vadd.f32 0.0, %v4474
      %v4476 = vpop.f32.mrb[0].mxu0
      %4477 = vmatprep.mubr.bf16.mxu0 0
      %4478 = vmatmul.mubr.bf16.gmra.mrb[0].mxu0 %v4305
      %v4479 = vpop.f32.mrb[0].mxu0
      %v4480 = vadd.f32 0.0, %v4479
      %v4481 = vpop.f32.mrb[0].mxu0
      %v4482 = vpop.f32.mrb[0].mxu0
      %v4483 = vadd.f32 0.0, %v4482
      %v4484 = vpop.f32.mrb[0].mxu0
      %4485 = vmatprep.mubr.bf16.mxu0 0
      %4486 = vmatmul.mubr.bf16.gmra.mrb[0].mxu0 %v4308
      %v4487 = vpop.f32.mrb[0].mxu0
      %v4488 = vadd.f32 0.0, %v4487
      %v4489 = vpop.f32.mrb[0].mxu0
      %v4490 = vpop.f32.mrb[0].mxu0
      %v4491 = vadd.f32 0.0, %v4490
      %v4492 = vpop.f32.mrb[0].mxu0
      %4493 = vmatprep.mubr.bf16.mxu0 0
      %4494 = vmatmul.mubr.bf16.gmra.mrb[0].mxu0 %v4311
      %v4495 = vpop.f32.mrb[0].mxu0
      %v4496 = vadd.f32 0.0, %v4495
      %v4497 = vpop.f32.mrb[0].mxu0
      %v4498 = vpop.f32.mrb[0].mxu0
      %v4499 = vadd.f32 0.0, %v4498
      %v4500 = vpop.f32.mrb[0].mxu0
      %4501 = vmatprep.mubr.bf16.mxu0 0
      %4502 = vmatmul.mubr.bf16.gmra.mrb[0].mxu0 %v4314
      %v4503 = vpop.f32.mrb[0].mxu0
      %v4504 = vadd.f32 0.0, %v4503
      %v4505 = vpop.f32.mrb[0].mxu0
      %v4506 = vpop.f32.mrb[0].mxu0
      %v4507 = vadd.f32 0.0, %v4506
      %v4508 = vpop.f32.mrb[0].mxu0
      %4509 = vmatprep.mubr.bf16.mxu0 0
      %4510 = vmatmul.mubr.bf16.gmra.mrb[0].mxu0 %v4317
      %v4511 = vpop.f32.mrb[0].mxu0
      %v4512 = vadd.f32 0.0, %v4511
      %v4513 = vpop.f32.mrb[0].mxu0
      %v4514 = vpop.f32.mrb[0].mxu0
      %v4515 = vadd.f32 0.0, %v4514
      %v4516 = vpop.f32.mrb[0].mxu0
      %4517 = vmatprep.mubr.bf16.mxu0 0
      %4518 = vmatmul.mubr.bf16.gmra.mrb[0].mxu0 %v4320
      %v4519 = vpop.f32.mrb[0].mxu0
      %v4520 = vadd.f32 0.0, %v4519
      %v4521 = vpop.f32.mrb[0].mxu0
      %v4522 = vpop.f32.mrb[0].mxu0
      %v4523 = vpop.f32.mrb[0].mxu0
      %4524 = vdwg.mxu0
      %v4525 = vadd.f32 %v4154, %v4360
      %v4526 = vadd.f32 %v4155, %v4363
      %v4527 = vadd.f32 %v4156, %v4368
      %v4528 = vadd.f32 %v4157, %v4371
      %v4529 = vadd.f32 %v4158, %v4376
      %v4530 = vadd.f32 %v4159, %v4379
      %v4531 = vadd.f32 %v4160, %v4384
      %v4532 = vadd.f32 %v4161, %v4387
      %v4533 = vadd.f32 %v4162, %v4392
      %v4534 = vadd.f32 %v4163, %v4395
      %v4535 = vadd.f32 %v4164, %v4400
      %v4536 = vadd.f32 %v4165, %v4403
      %v4537 = vadd.f32 %v4166, %v4408
      %v4538 = vadd.f32 %v4167, %v4411
      %v4539 = vadd.f32 %v4168, %v4416
      %v4540 = vadd.f32 %v4169, %v4419
      %v4541 = vadd.f32 %v4170, %v4424
      %v4542 = vadd.f32 %v4171, %v4427
      %v4543 = vadd.f32 %v4172, %v4432
      %v4544 = vadd.f32 %v4173, %v4435
      %v4545 = vadd.f32 %v4174, %v4440
      %v4546 = vadd.f32 %v4175, %v4443
      %v4547 = vadd.f32 %v4176, %v4448
      %v4548 = vadd.f32 %v4177, %v4451
      %v4549 = vadd.f32 %v4178, %v4456
      %v4550 = vadd.f32 %v4179, %v4459
      %v4551 = vadd.f32 %v4180, %v4464
      %v4552 = vadd.f32 %v4181, %v4467
      %v4553 = vadd.f32 %v4182, %v4472
      %v4554 = vadd.f32 %v4183, %v4475
      %v4555 = vadd.f32 %v4184, %v4480
      %v4556 = vadd.f32 %v4185, %v4483
      %v4557 = vadd.f32 %v4186, %v4488
      %v4558 = vadd.f32 %v4187, %v4491
      %v4559 = vadd.f32 %v4188, %v4496
      %v4560 = vadd.f32 %v4189, %v4499
      %v4561 = vadd.f32 %v4190, %v4504
      %v4562 = vadd.f32 %v4191, %v4507
      %v4563 = vadd.f32 %v4192, %v4512
      %v4564 = vadd.f32 %v4193, %v4515
      %v4565 = vadd.f32 %v4194, %v4520
      %v4566 = vld [vmem:[#allocation2 + $0x2a] sm:$0xff]
      %v4567 = vld [vmem:[#allocation2 + $0x32] sm:$0xff]
      %v4568 = vld [vmem:[#allocation2 + $0x3a] sm:$0xff]
      %v4569 = vld [vmem:[#allocation2 + $0x42] sm:$0xff]
      %v4570 = vld [vmem:[#allocation2 + $0x4a] sm:$0xff]
      %v4571 = vld [vmem:[#allocation2 + $0x52] sm:$0xff]
      %v4572 = vld [vmem:[#allocation2 + $0x5a] sm:$0xff]
      %v4573 = vld [vmem:[#allocation2 + $0x62] sm:$0xff]
      %v4574 = vld [vmem:[#allocation2 + $0x6a] sm:$0xff]
      %v4575 = vld [vmem:[#allocation2 + $0x72] sm:$0xff]
      %v4576 = vld [vmem:[#allocation2 + $0x7a] sm:$0xff]
      %v4577 = vld [vmem:[#allocation2 + $0x82] sm:$0xff]
      %v4578 = vld [vmem:[#allocation2 + $0x8a] sm:$0xff]
      %v4579 = vld [vmem:[#allocation2 + $0x92] sm:$0xff]
      %v4580 = vld [vmem:[#allocation2 + $0x9a] sm:$0xff]
      %v4581 = vld [vmem:[#allocation2 + $0xa2] sm:$0xff]
      %v4582 = vld [vmem:[#allocation2 + $0xaa] sm:$0xff]
      %v4583 = vld [vmem:[#allocation2 + $0xb2] sm:$0xff]
      %v4584 = vld [vmem:[#allocation2 + $0xba] sm:$0xff]
      %v4585 = vld [vmem:[#allocation2 + $0xc2] sm:$0xff]
      %v4586 = vld [vmem:[#allocation2 + $0xca] sm:$0xff]
      %v4587 = vld [vmem:[#allocation2 + $0xd2] sm:$0xff]
      %v4588 = vld [vmem:[#allocation2 + $0xda] sm:$0xff]
      %v4589 = vld [vmem:[#allocation2 + $0xe2] sm:$0xff]
      %v4590 = vld [vmem:[#allocation2 + $0xea] sm:$0xff]
      %v4591 = vld [vmem:[#allocation2 + $0xf2] sm:$0xff]
      %v4592 = vld [vmem:[#allocation2 + $0xfa] sm:$0xff]
      %v4593 = vld [vmem:[#allocation2 + $0x102] sm:$0xff]
      %v4594 = vld [vmem:[#allocation2 + $0x10a] sm:$0xff]
      %v4595 = vld [vmem:[#allocation2 + $0x112] sm:$0xff]
      %v4596 = vld [vmem:[#allocation2 + $0x11a] sm:$0xff]
      %v4597 = vld [vmem:[#allocation2 + $0x122] sm:$0xff]
      %v4598 = vld [vmem:[#allocation2 + $0x12a] sm:$0xff]
      %v4599 = vld [vmem:[#allocation2 + $0x132] sm:$0xff]
      %v4600 = vld [vmem:[#allocation2 + $0x13a] sm:$0xff]
      %v4601 = vld [vmem:[#allocation2 + $0x142] sm:$0xff]
      %v4602 = vld [vmem:[#allocation2 + $0x14a] sm:$0xff]
      %v4603 = vld [vmem:[#allocation2 + $0x152] sm:$0xff]
      %v4604 = vld [vmem:[#allocation2 + $0x15a] sm:$0xff]
      %v4605 = vld [vmem:[#allocation2 + $0x162] sm:$0xff]
      %v4606 = vld [vmem:[#allocation2 + $0x16a] sm:$0xf]
      %v4607 = vpack.c.bf16 %v4567, %v4566
      %v4608 = vpack.c.bf16 %v4569, %v4568
      %v4609 = vpack.c.bf16 %v4571, %v4570
      %v4610 = vpack.c.bf16 %v4573, %v4572
      %v4611 = vpack.c.bf16 %v4575, %v4574
      %v4612 = vpack.c.bf16 %v4577, %v4576
      %v4613 = vpack.c.bf16 %v4579, %v4578
      %v4614 = vpack.c.bf16 %v4581, %v4580
      %v4615 = vpack.c.bf16 %v4583, %v4582
      %v4616 = vpack.c.bf16 %v4585, %v4584
      %v4617 = vpack.c.bf16 %v4587, %v4586
      %v4618 = vpack.c.bf16 %v4589, %v4588
      %v4619 = vpack.c.bf16 %v4591, %v4590
      %v4620 = vpack.c.bf16 %v4593, %v4592
      %v4621 = vpack.c.bf16 %v4595, %v4594
      %v4622 = vpack.c.bf16 %v4597, %v4596
      %v4623 = vpack.c.bf16 %v4599, %v4598
      %v4624 = vpack.c.bf16 %v4601, %v4600
      %v4625 = vpack.c.bf16 %v4603, %v4602
      %v4626 = vpack.c.bf16 %v4605, %v4604
      %v4627 = vpack.c.bf16 %v4606, %v4606
      %s4628 = scalar_lea.vmem %s6, 7
      %v4629 = vld [vmem:[%s4628] sm:$0x1]
      %v4631 = vsel %vm1715, %v4607, 0
      %v4634 = vsel %vm1715, %v4608, 0
      %v4637 = vsel %vm1715, %v4609, 0
      %v4640 = vsel %vm1715, %v4610, 0
      %v4643 = vsel %vm1715, %v4611, 0
      %v4646 = vsel %vm1715, %v4612, 0
      %v4649 = vsel %vm1715, %v4613, 0
      %v4652 = vsel %vm1715, %v4614, 0
      %v4655 = vsel %vm1715, %v4615, 0
      %v4658 = vsel %vm1715, %v4616, 0
      %v4661 = vsel %vm1715, %v4617, 0
      %v4664 = vsel %vm1715, %v4618, 0
      %v4667 = vsel %vm1715, %v4619, 0
      %v4670 = vsel %vm1715, %v4620, 0
      %v4673 = vsel %vm1715, %v4621, 0
      %v4676 = vsel %vm1715, %v4622, 0
      %v4679 = vsel %vm1715, %v4623, 0
      %v4682 = vsel %vm1715, %v4624, 0
      %v4685 = vsel %vm1715, %v4625, 0
      %v4688 = vsel %vm1715, %v4626, 0
      %v4691 = vsel %vm1715, %v4627, 0
      %v4694 = vsel %vm2241, %v4629, 0
      %4696 = vmatprep.subr.bf16.mxu0 0
      %4697 = vmatpush1.bf16.msra.mxu0 %v4694
      %4698 = vmatprep.subr.bf16.mxu0 0
      %4699 = vmatpush1.bf16.msra.mxu0 0
      %4700 = vmatprep.subr.bf16.mxu0 0
      %4701 = vmatpush1.bf16.msra.mxu0 0
      %4702 = vmatprep.subr.bf16.mxu0 0
      %4703 = vmatpush1.bf16.msra.mxu0 0
      %4704 = vmatprep.subr.bf16.mxu0 0
      %4705 = vmatpush1.bf16.msra.mxu0 0
      %4706 = vmatprep.subr.bf16.mxu0 0
      %4707 = vmatpush1.bf16.msra.mxu0 0
      %4708 = vmatprep.subr.bf16.mxu0 0
      %4709 = vmatpush1.bf16.msra.mxu0 0
      %4710 = vmatprep.subr.bf16.mxu0 0
      %4711 = vmatpush1.bf16.msra.mxu0 0
      %4712 = vmatprep.subr.bf16.mxu0 0
      %4713 = vmatpush1.bf16.msra.mxu0 0
      %4714 = vmatprep.subr.bf16.mxu0 0
      %4715 = vmatpush1.bf16.msra.mxu0 0
      %4716 = vmatprep.subr.bf16.mxu0 0
      %4717 = vmatpush1.bf16.msra.mxu0 0
      %4718 = vmatprep.subr.bf16.mxu0 0
      %4719 = vmatpush1.bf16.msra.mxu0 0
      %4720 = vmatprep.subr.bf16.mxu0 0
      %4721 = vmatpush1.bf16.msra.mxu0 0
      %4722 = vmatprep.subr.bf16.mxu0 0
      %4723 = vmatpush1.bf16.msra.mxu0 0
      %4724 = vmatprep.subr.bf16.mxu0 0
      %4725 = vmatpush1.bf16.msra.mxu0 0
      %4726 = vmatprep.subr.bf16.mxu0 0
      %4727 = vmatpush1.bf16.msra.mxu0 0
      %4728 = vmatprep.mubr.bf16.mxu0 0
      %4729 = vmatmul.mubr.bf16.gmra.mrb[0].mxu0 %v4631
      %v4730 = vpop.f32.mrb[0].mxu0
      %v4731 = vadd.f32 0.0, %v4730
      %v4732 = vpop.f32.mrb[0].mxu0
      %v4733 = vpop.f32.mrb[0].mxu0
      %v4734 = vadd.f32 0.0, %v4733
      %v4735 = vpop.f32.mrb[0].mxu0
      %4736 = vmatprep.mubr.bf16.mxu0 0
      %4737 = vmatmul.mubr.bf16.gmra.mrb[0].mxu0 %v4634
      %v4738 = vpop.f32.mrb[0].mxu0
      %v4739 = vadd.f32 0.0, %v4738
      %v4740 = vpop.f32.mrb[0].mxu0
      %v4741 = vpop.f32.mrb[0].mxu0
      %v4742 = vadd.f32 0.0, %v4741
      %v4743 = vpop.f32.mrb[0].mxu0
      %4744 = vmatprep.mubr.bf16.mxu0 0
      %4745 = vmatmul.mubr.bf16.gmra.mrb[0].mxu0 %v4637
      %v4746 = vpop.f32.mrb[0].mxu0
      %v4747 = vadd.f32 0.0, %v4746
      %v4748 = vpop.f32.mrb[0].mxu0
      %v4749 = vpop.f32.mrb[0].mxu0
      %v4750 = vadd.f32 0.0, %v4749
      %v4751 = vpop.f32.mrb[0].mxu0
      %4752 = vmatprep.mubr.bf16.mxu0 0
      %4753 = vmatmul.mubr.bf16.gmra.mrb[0].mxu0 %v4640
      %v4754 = vpop.f32.mrb[0].mxu0
      %v4755 = vadd.f32 0.0, %v4754
      %v4756 = vpop.f32.mrb[0].mxu0
      %v4757 = vpop.f32.mrb[0].mxu0
      %v4758 = vadd.f32 0.0, %v4757
      %v4759 = vpop.f32.mrb[0].mxu0
      %4760 = vmatprep.mubr.bf16.mxu0 0
      %4761 = vmatmul.mubr.bf16.gmra.mrb[0].mxu0 %v4643
      %v4762 = vpop.f32.mrb[0].mxu0
      %v4763 = vadd.f32 0.0, %v4762
      %v4764 = vpop.f32.mrb[0].mxu0
      %v4765 = vpop.f32.mrb[0].mxu0
      %v4766 = vadd.f32 0.0, %v4765
      %v4767 = vpop.f32.mrb[0].mxu0
      %4768 = vmatprep.mubr.bf16.mxu0 0
      %4769 = vmatmul.mubr.bf16.gmra.mrb[0].mxu0 %v4646
      %v4770 = vpop.f32.mrb[0].mxu0
      %v4771 = vadd.f32 0.0, %v4770
      %v4772 = vpop.f32.mrb[0].mxu0
      %v4773 = vpop.f32.mrb[0].mxu0
      %v4774 = vadd.f32 0.0, %v4773
      %v4775 = vpop.f32.mrb[0].mxu0
      %4776 = vmatprep.mubr.bf16.mxu0 0
      %4777 = vmatmul.mubr.bf16.gmra.mrb[0].mxu0 %v4649
      %v4778 = vpop.f32.mrb[0].mxu0
      %v4779 = vadd.f32 0.0, %v4778
      %v4780 = vpop.f32.mrb[0].mxu0
      %v4781 = vpop.f32.mrb[0].mxu0
      %v4782 = vadd.f32 0.0, %v4781
      %v4783 = vpop.f32.mrb[0].mxu0
      %4784 = vmatprep.mubr.bf16.mxu0 0
      %4785 = vmatmul.mubr.bf16.gmra.mrb[0].mxu0 %v4652
      %v4786 = vpop.f32.mrb[0].mxu0
      %v4787 = vadd.f32 0.0, %v4786
      %v4788 = vpop.f32.mrb[0].mxu0
      %v4789 = vpop.f32.mrb[0].mxu0
      %v4790 = vadd.f32 0.0, %v4789
      %v4791 = vpop.f32.mrb[0].mxu0
      %4792 = vmatprep.mubr.bf16.mxu0 0
      %4793 = vmatmul.mubr.bf16.gmra.mrb[0].mxu0 %v4655
      %v4794 = vpop.f32.mrb[0].mxu0
      %v4795 = vadd.f32 0.0, %v4794
      %v4796 = vpop.f32.mrb[0].mxu0
      %v4797 = vpop.f32.mrb[0].mxu0
      %v4798 = vadd.f32 0.0, %v4797
      %v4799 = vpop.f32.mrb[0].mxu0
      %4800 = vmatprep.mubr.bf16.mxu0 0
      %4801 = vmatmul.mubr.bf16.gmra.mrb[0].mxu0 %v4658
      %v4802 = vpop.f32.mrb[0].mxu0
      %v4803 = vadd.f32 0.0, %v4802
      %v4804 = vpop.f32.mrb[0].mxu0
      %v4805 = vpop.f32.mrb[0].mxu0
      %v4806 = vadd.f32 0.0, %v4805
      %v4807 = vpop.f32.mrb[0].mxu0
      %4808 = vmatprep.mubr.bf16.mxu0 0
      %4809 = vmatmul.mubr.bf16.gmra.mrb[0].mxu0 %v4661
      %v4810 = vpop.f32.mrb[0].mxu0
      %v4811 = vadd.f32 0.0, %v4810
      %v4812 = vpop.f32.mrb[0].mxu0
      %v4813 = vpop.f32.mrb[0].mxu0
      %v4814 = vadd.f32 0.0, %v4813
      %v4815 = vpop.f32.mrb[0].mxu0
      %4816 = vmatprep.mubr.bf16.mxu0 0
      %4817 = vmatmul.mubr.bf16.gmra.mrb[0].mxu0 %v4664
      %v4818 = vpop.f32.mrb[0].mxu0
      %v4819 = vadd.f32 0.0, %v4818
      %v4820 = vpop.f32.mrb[0].mxu0
      %v4821 = vpop.f32.mrb[0].mxu0
      %v4822 = vadd.f32 0.0, %v4821
      %v4823 = vpop.f32.mrb[0].mxu0
      %4824 = vmatprep.mubr.bf16.mxu0 0
      %4825 = vmatmul.mubr.bf16.gmra.mrb[0].mxu0 %v4667
      %v4826 = vpop.f32.mrb[0].mxu0
      %v4827 = vadd.f32 0.0, %v4826
      %v4828 = vpop.f32.mrb[0].mxu0
      %v4829 = vpop.f32.mrb[0].mxu0
      %v4830 = vadd.f32 0.0, %v4829
      %v4831 = vpop.f32.mrb[0].mxu0
      %4832 = vmatprep.mubr.bf16.mxu0 0
      %4833 = vmatmul.mubr.bf16.gmra.mrb[0].mxu0 %v4670
      %v4834 = vpop.f32.mrb[0].mxu0
      %v4835 = vadd.f32 0.0, %v4834
      %v4836 = vpop.f32.mrb[0].mxu0
      %v4837 = vpop.f32.mrb[0].mxu0
      %v4838 = vadd.f32 0.0, %v4837
      %v4839 = vpop.f32.mrb[0].mxu0
      %4840 = vmatprep.mubr.bf16.mxu0 0
      %4841 = vmatmul.mubr.bf16.gmra.mrb[0].mxu0 %v4673
      %v4842 = vpop.f32.mrb[0].mxu0
      %v4843 = vadd.f32 0.0, %v4842
      %v4844 = vpop.f32.mrb[0].mxu0
      %v4845 = vpop.f32.mrb[0].mxu0
      %v4846 = vadd.f32 0.0, %v4845
      %v4847 = vpop.f32.mrb[0].mxu0
      %4848 = vmatprep.mubr.bf16.mxu0 0
      %4849 = vmatmul.mubr.bf16.gmra.mrb[0].mxu0 %v4676
      %v4850 = vpop.f32.mrb[0].mxu0
      %v4851 = vadd.f32 0.0, %v4850
      %v4852 = vpop.f32.mrb[0].mxu0
      %v4853 = vpop.f32.mrb[0].mxu0
      %v4854 = vadd.f32 0.0, %v4853
      %v4855 = vpop.f32.mrb[0].mxu0
      %4856 = vmatprep.mubr.bf16.mxu0 0
      %4857 = vmatmul.mubr.bf16.gmra.mrb[0].mxu0 %v4679
      %v4858 = vpop.f32.mrb[0].mxu0
      %v4859 = vadd.f32 0.0, %v4858
      %v4860 = vpop.f32.mrb[0].mxu0
      %v4861 = vpop.f32.mrb[0].mxu0
      %v4862 = vadd.f32 0.0, %v4861
      %v4863 = vpop.f32.mrb[0].mxu0
      %4864 = vmatprep.mubr.bf16.mxu0 0
      %4865 = vmatmul.mubr.bf16.gmra.mrb[0].mxu0 %v4682
      %v4866 = vpop.f32.mrb[0].mxu0
      %v4867 = vadd.f32 0.0, %v4866
      %v4868 = vpop.f32.mrb[0].mxu0
      %v4869 = vpop.f32.mrb[0].mxu0
      %v4870 = vadd.f32 0.0, %v4869
      %v4871 = vpop.f32.mrb[0].mxu0
      %4872 = vmatprep.mubr.bf16.mxu0 0
      %4873 = vmatmul.mubr.bf16.gmra.mrb[0].mxu0 %v4685
      %v4874 = vpop.f32.mrb[0].mxu0
      %v4875 = vadd.f32 0.0, %v4874
      %v4876 = vpop.f32.mrb[0].mxu0
      %v4877 = vpop.f32.mrb[0].mxu0
      %v4878 = vadd.f32 0.0, %v4877
      %v4879 = vpop.f32.mrb[0].mxu0
      %4880 = vmatprep.mubr.bf16.mxu0 0
      %4881 = vmatmul.mubr.bf16.gmra.mrb[0].mxu0 %v4688
      %v4882 = vpop.f32.mrb[0].mxu0
      %v4883 = vadd.f32 0.0, %v4882
      %v4884 = vpop.f32.mrb[0].mxu0
      %v4885 = vpop.f32.mrb[0].mxu0
      %v4886 = vadd.f32 0.0, %v4885
      %v4887 = vpop.f32.mrb[0].mxu0
      %4888 = vmatprep.mubr.bf16.mxu0 0
      %4889 = vmatmul.mubr.bf16.gmra.mrb[0].mxu0 %v4691
      %v4890 = vpop.f32.mrb[0].mxu0
      %v4891 = vadd.f32 0.0, %v4890
      %v4892 = vpop.f32.mrb[0].mxu0
      %v4893 = vpop.f32.mrb[0].mxu0
      %v4894 = vpop.f32.mrb[0].mxu0
      %4895 = vdwg.mxu0
      %v4896 = vadd.f32 %v4525, %v4731
      %v4897 = vadd.f32 %v4526, %v4734
      %v4898 = vadd.f32 %v4527, %v4739
      %v4899 = vadd.f32 %v4528, %v4742
      %v4900 = vadd.f32 %v4529, %v4747
      %v4901 = vadd.f32 %v4530, %v4750
      %v4902 = vadd.f32 %v4531, %v4755
      %v4903 = vadd.f32 %v4532, %v4758
      %v4904 = vadd.f32 %v4533, %v4763
      %v4905 = vadd.f32 %v4534, %v4766
      %v4906 = vadd.f32 %v4535, %v4771
      %v4907 = vadd.f32 %v4536, %v4774
      %v4908 = vadd.f32 %v4537, %v4779
      %v4909 = vadd.f32 %v4538, %v4782
      %v4910 = vadd.f32 %v4539, %v4787
      %v4911 = vadd.f32 %v4540, %v4790
      %v4912 = vadd.f32 %v4541, %v4795
      %v4913 = vadd.f32 %v4542, %v4798
      %v4914 = vadd.f32 %v4543, %v4803
      %v4915 = vadd.f32 %v4544, %v4806
      %v4916 = vadd.f32 %v4545, %v4811
      %v4917 = vadd.f32 %v4546, %v4814
      %v4918 = vadd.f32 %v4547, %v4819
      %v4919 = vadd.f32 %v4548, %v4822
      %v4920 = vadd.f32 %v4549, %v4827
      %v4921 = vadd.f32 %v4550, %v4830
      %v4922 = vadd.f32 %v4551, %v4835
      %v4923 = vadd.f32 %v4552, %v4838
      %v4924 = vadd.f32 %v4553, %v4843
      %v4925 = vadd.f32 %v4554, %v4846
      %v4926 = vadd.f32 %v4555, %v4851
      %v4927 = vadd.f32 %v4556, %v4854
      %v4928 = vadd.f32 %v4557, %v4859
      %v4929 = vadd.f32 %v4558, %v4862
      %v4930 = vadd.f32 %v4559, %v4867
      %v4931 = vadd.f32 %v4560, %v4870
      %v4932 = vadd.f32 %v4561, %v4875
      %v4933 = vadd.f32 %v4562, %v4878
      %v4934 = vadd.f32 %v4563, %v4883
      %v4935 = vadd.f32 %v4564, %v4886
      %v4936 = vadd.f32 %v4565, %v4891
      %v4937 = vld [vmem:[#allocation2 + $0x2b] sm:$0xff]
      %v4938 = vld [vmem:[#allocation2 + $0x33] sm:$0xff]
      %v4939 = vld [vmem:[#allocation2 + $0x3b] sm:$0xff]
      %v4940 = vld [vmem:[#allocation2 + $0x43] sm:$0xff]
      %v4941 = vld [vmem:[#allocation2 + $0x4b] sm:$0xff]
      %v4942 = vld [vmem:[#allocation2 + $0x53] sm:$0xff]
      %v4943 = vld [vmem:[#allocation2 + $0x5b] sm:$0xff]
      %v4944 = vld [vmem:[#allocation2 + $0x63] sm:$0xff]
      %v4945 = vld [vmem:[#allocation2 + $0x6b] sm:$0xff]
      %v4946 = vld [vmem:[#allocation2 + $0x73] sm:$0xff]
      %v4947 = vld [vmem:[#allocation2 + $0x7b] sm:$0xff]
      %v4948 = vld [vmem:[#allocation2 + $0x83] sm:$0xff]
      %v4949 = vld [vmem:[#allocation2 + $0x8b] sm:$0xff]
      %v4950 = vld [vmem:[#allocation2 + $0x93] sm:$0xff]
      %v4951 = vld [vmem:[#allocation2 + $0x9b] sm:$0xff]
      %v4952 = vld [vmem:[#allocation2 + $0xa3] sm:$0xff]
      %v4953 = vld [vmem:[#allocation2 + $0xab] sm:$0xff]
      %v4954 = vld [vmem:[#allocation2 + $0xb3] sm:$0xff]
      %v4955 = vld [vmem:[#allocation2 + $0xbb] sm:$0xff]
      %v4956 = vld [vmem:[#allocation2 + $0xc3] sm:$0xff]
      %v4957 = vld [vmem:[#allocation2 + $0xcb] sm:$0xff]
      %v4958 = vld [vmem:[#allocation2 + $0xd3] sm:$0xff]
      %v4959 = vld [vmem:[#allocation2 + $0xdb] sm:$0xff]
      %v4960 = vld [vmem:[#allocation2 + $0xe3] sm:$0xff]
      %v4961 = vld [vmem:[#allocation2 + $0xeb] sm:$0xff]
      %v4962 = vld [vmem:[#allocation2 + $0xf3] sm:$0xff]
      %v4963 = vld [vmem:[#allocation2 + $0xfb] sm:$0xff]
      %v4964 = vld [vmem:[#allocation2 + $0x103] sm:$0xff]
      %v4965 = vld [vmem:[#allocation2 + $0x10b] sm:$0xff]
      %v4966 = vld [vmem:[#allocation2 + $0x113] sm:$0xff]
      %v4967 = vld [vmem:[#allocation2 + $0x11b] sm:$0xff]
      %v4968 = vld [vmem:[#allocation2 + $0x123] sm:$0xff]
      %v4969 = vld [vmem:[#allocation2 + $0x12b] sm:$0xff]
      %v4970 = vld [vmem:[#allocation2 + $0x133] sm:$0xff]
      %v4971 = vld [vmem:[#allocation2 + $0x13b] sm:$0xff]
      %v4972 = vld [vmem:[#allocation2 + $0x143] sm:$0xff]
      %v4973 = vld [vmem:[#allocation2 + $0x14b] sm:$0xff]
      %v4974 = vld [vmem:[#allocation2 + $0x153] sm:$0xff]
      %v4975 = vld [vmem:[#allocation2 + $0x15b] sm:$0xff]
      %v4976 = vld [vmem:[#allocation2 + $0x163] sm:$0xff]
      %v4977 = vld [vmem:[#allocation2 + $0x16b] sm:$0xf]
      %v4978 = vpack.c.bf16 %v4938, %v4937
      %v4979 = vpack.c.bf16 %v4940, %v4939
      %v4980 = vpack.c.bf16 %v4942, %v4941
      %v4981 = vpack.c.bf16 %v4944, %v4943
      %v4982 = vpack.c.bf16 %v4946, %v4945
      %v4983 = vpack.c.bf16 %v4948, %v4947
      %v4984 = vpack.c.bf16 %v4950, %v4949
      %v4985 = vpack.c.bf16 %v4952, %v4951
      %v4986 = vpack.c.bf16 %v4954, %v4953
      %v4987 = vpack.c.bf16 %v4956, %v4955
      %v4988 = vpack.c.bf16 %v4958, %v4957
      %v4989 = vpack.c.bf16 %v4960, %v4959
      %v4990 = vpack.c.bf16 %v4962, %v4961
      %v4991 = vpack.c.bf16 %v4964, %v4963
      %v4992 = vpack.c.bf16 %v4966, %v4965
      %v4993 = vpack.c.bf16 %v4968, %v4967
      %v4994 = vpack.c.bf16 %v4970, %v4969
      %v4995 = vpack.c.bf16 %v4972, %v4971
      %v4996 = vpack.c.bf16 %v4974, %v4973
      %v4997 = vpack.c.bf16 %v4976, %v4975
      %v4998 = vpack.c.bf16 %v4977, %v4977
      %s4999 = scalar_lea.vmem %s6, 8
      %v5000 = vld [vmem:[%s4999] sm:$0x1]
      %v5002 = vsel %vm1715, %v4978, 0
      %v5005 = vsel %vm1715, %v4979, 0
      %v5008 = vsel %vm1715, %v4980, 0
      %v5011 = vsel %vm1715, %v4981, 0
      %v5014 = vsel %vm1715, %v4982, 0
      %v5017 = vsel %vm1715, %v4983, 0
      %v5020 = vsel %vm1715, %v4984, 0
      %v5023 = vsel %vm1715, %v4985, 0
      %v5026 = vsel %vm1715, %v4986, 0
      %v5029 = vsel %vm1715, %v4987, 0
      %v5032 = vsel %vm1715, %v4988, 0
      %v5035 = vsel %vm1715, %v4989, 0
      %v5038 = vsel %vm1715, %v4990, 0
      %v5041 = vsel %vm1715, %v4991, 0
      %v5044 = vsel %vm1715, %v4992, 0
      %v5047 = vsel %vm1715, %v4993, 0
      %v5050 = vsel %vm1715, %v4994, 0
      %v5053 = vsel %vm1715, %v4995, 0
      %v5056 = vsel %vm1715, %v4996, 0
      %v5059 = vsel %vm1715, %v4997, 0
      %v5062 = vsel %vm1715, %v4998, 0
      %v5065 = vsel %vm2241, %v5000, 0
      %5067 = vmatprep.subr.bf16.mxu0 0
      %5068 = vmatpush1.bf16.msra.mxu0 %v5065
      %5069 = vmatprep.subr.bf16.mxu0 0
      %5070 = vmatpush1.bf16.msra.mxu0 0
      %5071 = vmatprep.subr.bf16.mxu0 0
      %5072 = vmatpush1.bf16.msra.mxu0 0
      %5073 = vmatprep.subr.bf16.mxu0 0
      %5074 = vmatpush1.bf16.msra.mxu0 0
      %5075 = vmatprep.subr.bf16.mxu0 0
      %5076 = vmatpush1.bf16.msra.mxu0 0
      %5077 = vmatprep.subr.bf16.mxu0 0
      %5078 = vmatpush1.bf16.msra.mxu0 0
      %5079 = vmatprep.subr.bf16.mxu0 0
      %5080 = vmatpush1.bf16.msra.mxu0 0
      %5081 = vmatprep.subr.bf16.mxu0 0
      %5082 = vmatpush1.bf16.msra.mxu0 0
      %5083 = vmatprep.subr.bf16.mxu0 0
      %5084 = vmatpush1.bf16.msra.mxu0 0
      %5085 = vmatprep.subr.bf16.mxu0 0
      %5086 = vmatpush1.bf16.msra.mxu0 0
      %5087 = vmatprep.subr.bf16.mxu0 0
      %5088 = vmatpush1.bf16.msra.mxu0 0
      %5089 = vmatprep.subr.bf16.mxu0 0
      %5090 = vmatpush1.bf16.msra.mxu0 0
      %5091 = vmatprep.subr.bf16.mxu0 0
      %5092 = vmatpush1.bf16.msra.mxu0 0
      %5093 = vmatprep.subr.bf16.mxu0 0
      %5094 = vmatpush1.bf16.msra.mxu0 0
      %5095 = vmatprep.subr.bf16.mxu0 0
      %5096 = vmatpush1.bf16.msra.mxu0 0
      %5097 = vmatprep.subr.bf16.mxu0 0
      %5098 = vmatpush1.bf16.msra.mxu0 0
      %5099 = vmatprep.mubr.bf16.mxu0 0
      %5100 = vmatmul.mubr.bf16.gmra.mrb[0].mxu0 %v5002
      %v5101 = vpop.f32.mrb[0].mxu0
      %v5102 = vadd.f32 0.0, %v5101
      %v5103 = vpop.f32.mrb[0].mxu0
      %v5104 = vpop.f32.mrb[0].mxu0
      %v5105 = vadd.f32 0.0, %v5104
      %v5106 = vpop.f32.mrb[0].mxu0
      %5107 = vmatprep.mubr.bf16.mxu0 0
      %5108 = vmatmul.mubr.bf16.gmra.mrb[0].mxu0 %v5005
      %v5109 = vpop.f32.mrb[0].mxu0
      %v5110 = vadd.f32 0.0, %v5109
      %v5111 = vpop.f32.mrb[0].mxu0
      %v5112 = vpop.f32.mrb[0].mxu0
      %v5113 = vadd.f32 0.0, %v5112
      %v5114 = vpop.f32.mrb[0].mxu0
      %5115 = vmatprep.mubr.bf16.mxu0 0
      %5116 = vmatmul.mubr.bf16.gmra.mrb[0].mxu0 %v5008
      %v5117 = vpop.f32.mrb[0].mxu0
      %v5118 = vadd.f32 0.0, %v5117
      %v5119 = vpop.f32.mrb[0].mxu0
      %v5120 = vpop.f32.mrb[0].mxu0
      %v5121 = vadd.f32 0.0, %v5120
      %v5122 = vpop.f32.mrb[0].mxu0
      %5123 = vmatprep.mubr.bf16.mxu0 0
      %5124 = vmatmul.mubr.bf16.gmra.mrb[0].mxu0 %v5011
      %v5125 = vpop.f32.mrb[0].mxu0
      %v5126 = vadd.f32 0.0, %v5125
      %v5127 = vpop.f32.mrb[0].mxu0
      %v5128 = vpop.f32.mrb[0].mxu0
      %v5129 = vadd.f32 0.0, %v5128
      %v5130 = vpop.f32.mrb[0].mxu0
      %5131 = vmatprep.mubr.bf16.mxu0 0
      %5132 = vmatmul.mubr.bf16.gmra.mrb[0].mxu0 %v5014
      %v5133 = vpop.f32.mrb[0].mxu0
      %v5134 = vadd.f32 0.0, %v5133
      %v5135 = vpop.f32.mrb[0].mxu0
      %v5136 = vpop.f32.mrb[0].mxu0
      %v5137 = vadd.f32 0.0, %v5136
      %v5138 = vpop.f32.mrb[0].mxu0
      %5139 = vmatprep.mubr.bf16.mxu0 0
      %5140 = vmatmul.mubr.bf16.gmra.mrb[0].mxu0 %v5017
      %v5141 = vpop.f32.mrb[0].mxu0
      %v5142 = vadd.f32 0.0, %v5141
      %v5143 = vpop.f32.mrb[0].mxu0
      %v5144 = vpop.f32.mrb[0].mxu0
      %v5145 = vadd.f32 0.0, %v5144
      %v5146 = vpop.f32.mrb[0].mxu0
      %5147 = vmatprep.mubr.bf16.mxu0 0
      %5148 = vmatmul.mubr.bf16.gmra.mrb[0].mxu0 %v5020
      %v5149 = vpop.f32.mrb[0].mxu0
      %v5150 = vadd.f32 0.0, %v5149
      %v5151 = vpop.f32.mrb[0].mxu0
      %v5152 = vpop.f32.mrb[0].mxu0
      %v5153 = vadd.f32 0.0, %v5152
      %v5154 = vpop.f32.mrb[0].mxu0
      %5155 = vmatprep.mubr.bf16.mxu0 0
      %5156 = vmatmul.mubr.bf16.gmra.mrb[0].mxu0 %v5023
      %v5157 = vpop.f32.mrb[0].mxu0
      %v5158 = vadd.f32 0.0, %v5157
      %v5159 = vpop.f32.mrb[0].mxu0
      %v5160 = vpop.f32.mrb[0].mxu0
      %v5161 = vadd.f32 0.0, %v5160
      %v5162 = vpop.f32.mrb[0].mxu0
      %5163 = vmatprep.mubr.bf16.mxu0 0
      %5164 = vmatmul.mubr.bf16.gmra.mrb[0].mxu0 %v5026
      %v5165 = vpop.f32.mrb[0].mxu0
      %v5166 = vadd.f32 0.0, %v5165
      %v5167 = vpop.f32.mrb[0].mxu0
      %v5168 = vpop.f32.mrb[0].mxu0
      %v5169 = vadd.f32 0.0, %v5168
      %v5170 = vpop.f32.mrb[0].mxu0
      %5171 = vmatprep.mubr.bf16.mxu0 0
      %5172 = vmatmul.mubr.bf16.gmra.mrb[0].mxu0 %v5029
      %v5173 = vpop.f32.mrb[0].mxu0
      %v5174 = vadd.f32 0.0, %v5173
      %v5175 = vpop.f32.mrb[0].mxu0
      %v5176 = vpop.f32.mrb[0].mxu0
      %v5177 = vadd.f32 0.0, %v5176
      %v5178 = vpop.f32.mrb[0].mxu0
      %5179 = vmatprep.mubr.bf16.mxu0 0
      %5180 = vmatmul.mubr.bf16.gmra.mrb[0].mxu0 %v5032
      %v5181 = vpop.f32.mrb[0].mxu0
      %v5182 = vadd.f32 0.0, %v5181
      %v5183 = vpop.f32.mrb[0].mxu0
      %v5184 = vpop.f32.mrb[0].mxu0
      %v5185 = vadd.f32 0.0, %v5184
      %v5186 = vpop.f32.mrb[0].mxu0
      %5187 = vmatprep.mubr.bf16.mxu0 0
      %5188 = vmatmul.mubr.bf16.gmra.mrb[0].mxu0 %v5035
      %v5189 = vpop.f32.mrb[0].mxu0
      %v5190 = vadd.f32 0.0, %v5189
      %v5191 = vpop.f32.mrb[0].mxu0
      %v5192 = vpop.f32.mrb[0].mxu0
      %v5193 = vadd.f32 0.0, %v5192
      %v5194 = vpop.f32.mrb[0].mxu0
      %5195 = vmatprep.mubr.bf16.mxu0 0
      %5196 = vmatmul.mubr.bf16.gmra.mrb[0].mxu0 %v5038
      %v5197 = vpop.f32.mrb[0].mxu0
      %v5198 = vadd.f32 0.0, %v5197
      %v5199 = vpop.f32.mrb[0].mxu0
      %v5200 = vpop.f32.mrb[0].mxu0
      %v5201 = vadd.f32 0.0, %v5200
      %v5202 = vpop.f32.mrb[0].mxu0
      %5203 = vmatprep.mubr.bf16.mxu0 0
      %5204 = vmatmul.mubr.bf16.gmra.mrb[0].mxu0 %v5041
      %v5205 = vpop.f32.mrb[0].mxu0
      %v5206 = vadd.f32 0.0, %v5205
      %v5207 = vpop.f32.mrb[0].mxu0
      %v5208 = vpop.f32.mrb[0].mxu0
      %v5209 = vadd.f32 0.0, %v5208
      %v5210 = vpop.f32.mrb[0].mxu0
      %5211 = vmatprep.mubr.bf16.mxu0 0
      %5212 = vmatmul.mubr.bf16.gmra.mrb[0].mxu0 %v5044
      %v5213 = vpop.f32.mrb[0].mxu0
      %v5214 = vadd.f32 0.0, %v5213
      %v5215 = vpop.f32.mrb[0].mxu0
      %v5216 = vpop.f32.mrb[0].mxu0
      %v5217 = vadd.f32 0.0, %v5216
      %v5218 = vpop.f32.mrb[0].mxu0
      %5219 = vmatprep.mubr.bf16.mxu0 0
      %5220 = vmatmul.mubr.bf16.gmra.mrb[0].mxu0 %v5047
      %v5221 = vpop.f32.mrb[0].mxu0
      %v5222 = vadd.f32 0.0, %v5221
      %v5223 = vpop.f32.mrb[0].mxu0
      %v5224 = vpop.f32.mrb[0].mxu0
      %v5225 = vadd.f32 0.0, %v5224
      %v5226 = vpop.f32.mrb[0].mxu0
      %5227 = vmatprep.mubr.bf16.mxu0 0
      %5228 = vmatmul.mubr.bf16.gmra.mrb[0].mxu0 %v5050
      %v5229 = vpop.f32.mrb[0].mxu0
      %v5230 = vadd.f32 0.0, %v5229
      %v5231 = vpop.f32.mrb[0].mxu0
      %v5232 = vpop.f32.mrb[0].mxu0
      %v5233 = vadd.f32 0.0, %v5232
      %v5234 = vpop.f32.mrb[0].mxu0
      %5235 = vmatprep.mubr.bf16.mxu0 0
      %5236 = vmatmul.mubr.bf16.gmra.mrb[0].mxu0 %v5053
      %v5237 = vpop.f32.mrb[0].mxu0
      %v5238 = vadd.f32 0.0, %v5237
      %v5239 = vpop.f32.mrb[0].mxu0
      %v5240 = vpop.f32.mrb[0].mxu0
      %v5241 = vadd.f32 0.0, %v5240
      %v5242 = vpop.f32.mrb[0].mxu0
      %5243 = vmatprep.mubr.bf16.mxu0 0
      %5244 = vmatmul.mubr.bf16.gmra.mrb[0].mxu0 %v5056
      %v5245 = vpop.f32.mrb[0].mxu0
      %v5246 = vadd.f32 0.0, %v5245
      %v5247 = vpop.f32.mrb[0].mxu0
      %v5248 = vpop.f32.mrb[0].mxu0
      %v5249 = vadd.f32 0.0, %v5248
      %v5250 = vpop.f32.mrb[0].mxu0
      %5251 = vmatprep.mubr.bf16.mxu0 0
      %5252 = vmatmul.mubr.bf16.gmra.mrb[0].mxu0 %v5059
      %v5253 = vpop.f32.mrb[0].mxu0
      %v5254 = vadd.f32 0.0, %v5253
      %v5255 = vpop.f32.mrb[0].mxu0
      %v5256 = vpop.f32.mrb[0].mxu0
      %v5257 = vadd.f32 0.0, %v5256
      %v5258 = vpop.f32.mrb[0].mxu0
      %5259 = vmatprep.mubr.bf16.mxu0 0
      %5260 = vmatmul.mubr.bf16.gmra.mrb[0].mxu0 %v5062
      %v5261 = vpop.f32.mrb[0].mxu0
      %v5262 = vadd.f32 0.0, %v5261
      %v5263 = vpop.f32.mrb[0].mxu0
      %v5264 = vpop.f32.mrb[0].mxu0
      %v5265 = vpop.f32.mrb[0].mxu0
      %5266 = vdwg.mxu0
      %v5267 = vadd.f32 %v4896, %v5102
      %v5268 = vadd.f32 %v4897, %v5105
      %v5269 = vadd.f32 %v4898, %v5110
      %v5270 = vadd.f32 %v4899, %v5113
      %v5271 = vadd.f32 %v4900, %v5118
      %v5272 = vadd.f32 %v4901, %v5121
      %v5273 = vadd.f32 %v4902, %v5126
      %v5274 = vadd.f32 %v4903, %v5129
      %v5275 = vadd.f32 %v4904, %v5134
      %v5276 = vadd.f32 %v4905, %v5137
      %v5277 = vadd.f32 %v4906, %v5142
      %v5278 = vadd.f32 %v4907, %v5145
      %v5279 = vadd.f32 %v4908, %v5150
      %v5280 = vadd.f32 %v4909, %v5153
      %v5281 = vadd.f32 %v4910, %v5158
      %v5282 = vadd.f32 %v4911, %v5161
      %v5283 = vadd.f32 %v4912, %v5166
      %v5284 = vadd.f32 %v4913, %v5169
      %v5285 = vadd.f32 %v4914, %v5174
      %v5286 = vadd.f32 %v4915, %v5177
      %v5287 = vadd.f32 %v4916, %v5182
      %v5288 = vadd.f32 %v4917, %v5185
      %v5289 = vadd.f32 %v4918, %v5190
      %v5290 = vadd.f32 %v4919, %v5193
      %v5291 = vadd.f32 %v4920, %v5198
      %v5292 = vadd.f32 %v4921, %v5201
      %v5293 = vadd.f32 %v4922, %v5206
      %v5294 = vadd.f32 %v4923, %v5209
      %v5295 = vadd.f32 %v4924, %v5214
      %v5296 = vadd.f32 %v4925, %v5217
      %v5297 = vadd.f32 %v4926, %v5222
      %v5298 = vadd.f32 %v4927, %v5225
      %v5299 = vadd.f32 %v4928, %v5230
      %v5300 = vadd.f32 %v4929, %v5233
      %v5301 = vadd.f32 %v4930, %v5238
      %v5302 = vadd.f32 %v4931, %v5241
      %v5303 = vadd.f32 %v4932, %v5246
      %v5304 = vadd.f32 %v4933, %v5249
      %v5305 = vadd.f32 %v4934, %v5254
      %v5306 = vadd.f32 %v4935, %v5257
      %v5307 = vadd.f32 %v4936, %v5262
      %v5308 = vld [vmem:[%s7] sm:$0x1]
      %v5310 = vlaneseq
      %v5311 = vshrl.u32 %v5310, 7
      %v5312 = vsub.s32 0, %v5311
      %v5313 = vrot.slane %v5308, %v5312
      %v5315 = vadd.f32 %v5267, %v5313
      %v5316 = vadd.f32 %v5268, %v5313
      %v5317 = vadd.f32 %v5269, %v5313
      %v5318 = vadd.f32 %v5270, %v5313
      %v5319 = vadd.f32 %v5271, %v5313
      %v5320 = vadd.f32 %v5272, %v5313
      %v5321 = vadd.f32 %v5273, %v5313
      %v5322 = vadd.f32 %v5274, %v5313
      %v5323 = vadd.f32 %v5275, %v5313
      %v5324 = vadd.f32 %v5276, %v5313
      %v5325 = vadd.f32 %v5277, %v5313
      %v5326 = vadd.f32 %v5278, %v5313
      %v5327 = vadd.f32 %v5279, %v5313
      %v5328 = vadd.f32 %v5280, %v5313
      %v5329 = vadd.f32 %v5281, %v5313
      %v5330 = vadd.f32 %v5282, %v5313
      %v5331 = vadd.f32 %v5283, %v5313
      %v5332 = vadd.f32 %v5284, %v5313
      %v5333 = vadd.f32 %v5285, %v5313
      %v5334 = vadd.f32 %v5286, %v5313
      %v5335 = vadd.f32 %v5287, %v5313
      %v5336 = vadd.f32 %v5288, %v5313
      %v5337 = vadd.f32 %v5289, %v5313
      %v5338 = vadd.f32 %v5290, %v5313
      %v5339 = vadd.f32 %v5291, %v5313
      %v5340 = vadd.f32 %v5292, %v5313
      %v5341 = vadd.f32 %v5293, %v5313
      %v5342 = vadd.f32 %v5294, %v5313
      %v5343 = vadd.f32 %v5295, %v5313
      %v5344 = vadd.f32 %v5296, %v5313
      %v5345 = vadd.f32 %v5297, %v5313
      %v5346 = vadd.f32 %v5298, %v5313
      %v5347 = vadd.f32 %v5299, %v5313
      %v5348 = vadd.f32 %v5300, %v5313
      %v5349 = vadd.f32 %v5301, %v5313
      %v5350 = vadd.f32 %v5302, %v5313
      %v5351 = vadd.f32 %v5303, %v5313
      %v5352 = vadd.f32 %v5304, %v5313
      %v5353 = vadd.f32 %v5305, %v5313
      %v5354 = vadd.f32 %v5306, %v5313
      %v5355 = vadd.f32 %v5307, %v5313
      %v5356 = vxor.u32 %v5315, 2147483648
      %v5357 = vxor.u32 %v5316, 2147483648
      %v5358 = vxor.u32 %v5317, 2147483648
      %v5359 = vxor.u32 %v5318, 2147483648
      %v5360 = vxor.u32 %v5319, 2147483648
      %v5361 = vxor.u32 %v5320, 2147483648
      %v5362 = vxor.u32 %v5321, 2147483648
      %v5363 = vxor.u32 %v5322, 2147483648
      %v5364 = vxor.u32 %v5323, 2147483648
      %v5365 = vxor.u32 %v5324, 2147483648
      %v5366 = vxor.u32 %v5325, 2147483648
      %v5367 = vxor.u32 %v5326, 2147483648
      %v5368 = vxor.u32 %v5327, 2147483648
      %v5369 = vxor.u32 %v5328, 2147483648
      %v5370 = vxor.u32 %v5329, 2147483648
      %v5371 = vxor.u32 %v5330, 2147483648
      %v5372 = vxor.u32 %v5331, 2147483648
      %v5373 = vxor.u32 %v5332, 2147483648
      %v5374 = vxor.u32 %v5333, 2147483648
      %v5375 = vxor.u32 %v5334, 2147483648
      %v5376 = vxor.u32 %v5335, 2147483648
      %v5377 = vxor.u32 %v5336, 2147483648
      %v5378 = vxor.u32 %v5337, 2147483648
      %v5379 = vxor.u32 %v5338, 2147483648
      %v5380 = vxor.u32 %v5339, 2147483648
      %v5381 = vxor.u32 %v5340, 2147483648
      %v5382 = vxor.u32 %v5341, 2147483648
      %v5383 = vxor.u32 %v5342, 2147483648
      %v5384 = vxor.u32 %v5343, 2147483648
      %v5385 = vxor.u32 %v5344, 2147483648
      %v5386 = vxor.u32 %v5345, 2147483648
      %v5387 = vxor.u32 %v5346, 2147483648
      %v5388 = vxor.u32 %v5347, 2147483648
      %v5389 = vxor.u32 %v5348, 2147483648
      %v5390 = vxor.u32 %v5349, 2147483648
      %v5391 = vxor.u32 %v5350, 2147483648
      %v5392 = vxor.u32 %v5351, 2147483648
      %v5393 = vxor.u32 %v5352, 2147483648
      %v5394 = vxor.u32 %v5353, 2147483648
      %v5395 = vxor.u32 %v5354, 2147483648
      %v5396 = vxor.u32 %v5355, 2147483648
      %v5397 = vmul.f32 %v5356, 1.442695
      %v5398 = vpow.pop %v5397
      %v5399 = vmul.f32 %v5357, 1.442695
      %v5400 = vpow.pop %v5399
      %v5401 = vmul.f32 %v5358, 1.442695
      %v5402 = vpow.pop %v5401
      %v5403 = vmul.f32 %v5359, 1.442695
      %v5404 = vpow.pop %v5403
      %v5405 = vmul.f32 %v5360, 1.442695
      %v5406 = vpow.pop %v5405
      %v5407 = vmul.f32 %v5361, 1.442695
      %v5408 = vpow.pop %v5407
      %v5409 = vmul.f32 %v5362, 1.442695
      %v5410 = vpow.pop %v5409
      %v5411 = vmul.f32 %v5363, 1.442695
      %v5412 = vpow.pop %v5411
      %v5413 = vmul.f32 %v5364, 1.442695
      %v5414 = vpow.pop %v5413
      %v5415 = vmul.f32 %v5365, 1.442695
      %v5416 = vpow.pop %v5415
      %v5417 = vmul.f32 %v5366, 1.442695
      %v5418 = vpow.pop %v5417
      %v5419 = vmul.f32 %v5367, 1.442695
      %v5420 = vpow.pop %v5419
      %v5421 = vmul.f32 %v5368, 1.442695
      %v5422 = vpow.pop %v5421
      %v5423 = vmul.f32 %v5369, 1.442695
      %v5424 = vpow.pop %v5423
      %v5425 = vmul.f32 %v5370, 1.442695
      %v5426 = vpow.pop %v5425
      %v5427 = vmul.f32 %v5371, 1.442695
      %v5428 = vpow.pop %v5427
      %v5429 = vmul.f32 %v5372, 1.442695
      %v5430 = vpow.pop %v5429
      %v5431 = vmul.f32 %v5373, 1.442695
      %v5432 = vpow.pop %v5431
      %v5433 = vmul.f32 %v5374, 1.442695
      %v5434 = vpow.pop %v5433
      %v5435 = vmul.f32 %v5375, 1.442695
      %v5436 = vpow.pop %v5435
      %v5437 = vmul.f32 %v5376, 1.442695
      %v5438 = vpow.pop %v5437
      %v5439 = vmul.f32 %v5377, 1.442695
      %v5440 = vpow.pop %v5439
      %v5441 = vmul.f32 %v5378, 1.442695
      %v5442 = vpow.pop %v5441
      %v5443 = vmul.f32 %v5379, 1.442695
      %v5444 = vpow.pop %v5443
      %v5445 = vmul.f32 %v5380, 1.442695
      %v5446 = vpow.pop %v5445
      %v5447 = vmul.f32 %v5381, 1.442695
      %v5448 = vpow.pop %v5447
      %v5449 = vmul.f32 %v5382, 1.442695
      %v5450 = vpow.pop %v5449
      %v5451 = vmul.f32 %v5383, 1.442695
      %v5452 = vpow.pop %v5451
      %v5453 = vmul.f32 %v5384, 1.442695
      %v5454 = vpow.pop %v5453
      %v5455 = vmul.f32 %v5385, 1.442695
      %v5456 = vpow.pop %v5455
      %v5457 = vmul.f32 %v5386, 1.442695
      %v5458 = vpow.pop %v5457
      %v5459 = vmul.f32 %v5387, 1.442695
      %v5460 = vpow.pop %v5459
      %v5461 = vmul.f32 %v5388, 1.442695
      %v5462 = vpow.pop %v5461
      %v5463 = vmul.f32 %v5389, 1.442695
      %v5464 = vpow.pop %v5463
      %v5465 = vmul.f32 %v5390, 1.442695
      %v5466 = vpow.pop %v5465
      %v5467 = vmul.f32 %v5391, 1.442695
      %v5468 = vpow.pop %v5467
      %v5469 = vmul.f32 %v5392, 1.442695
      %v5470 = vpow.pop %v5469
      %v5471 = vmul.f32 %v5393, 1.442695
      %v5472 = vpow.pop %v5471
      %v5473 = vmul.f32 %v5394, 1.442695
      %v5474 = vpow.pop %v5473
      %v5475 = vmul.f32 %v5395, 1.442695
      %v5476 = vpow.pop %v5475
      %v5477 = vmul.f32 %v5396, 1.442695
      %v5478 = vpow.pop %v5477
      %v5479 = vadd.f32 %v5398, 1.0
      %v5480 = vadd.f32 %v5400, 1.0
      %v5481 = vadd.f32 %v5402, 1.0
      %v5482 = vadd.f32 %v5404, 1.0
      %v5483 = vadd.f32 %v5406, 1.0
      %v5484 = vadd.f32 %v5408, 1.0
      %v5485 = vadd.f32 %v5410, 1.0
      %v5486 = vadd.f32 %v5412, 1.0
      %v5487 = vadd.f32 %v5414, 1.0
      %v5488 = vadd.f32 %v5416, 1.0
      %v5489 = vadd.f32 %v5418, 1.0
      %v5490 = vadd.f32 %v5420, 1.0
      %v5491 = vadd.f32 %v5422, 1.0
      %v5492 = vadd.f32 %v5424, 1.0
      %v5493 = vadd.f32 %v5426, 1.0
      %v5494 = vadd.f32 %v5428, 1.0
      %v5495 = vadd.f32 %v5430, 1.0
      %v5496 = vadd.f32 %v5432, 1.0
      %v5497 = vadd.f32 %v5434, 1.0
      %v5498 = vadd.f32 %v5436, 1.0
      %v5499 = vadd.f32 %v5438, 1.0
      %v5500 = vadd.f32 %v5440, 1.0
      %v5501 = vadd.f32 %v5442, 1.0
      %v5502 = vadd.f32 %v5444, 1.0
      %v5503 = vadd.f32 %v5446, 1.0
      %v5504 = vadd.f32 %v5448, 1.0
      %v5505 = vadd.f32 %v5450, 1.0
      %v5506 = vadd.f32 %v5452, 1.0
      %v5507 = vadd.f32 %v5454, 1.0
      %v5508 = vadd.f32 %v5456, 1.0
      %v5509 = vadd.f32 %v5458, 1.0
      %v5510 = vadd.f32 %v5460, 1.0
      %v5511 = vadd.f32 %v5462, 1.0
      %v5512 = vadd.f32 %v5464, 1.0
      %v5513 = vadd.f32 %v5466, 1.0
      %v5514 = vadd.f32 %v5468, 1.0
      %v5515 = vadd.f32 %v5470, 1.0
      %v5516 = vadd.f32 %v5472, 1.0
      %v5517 = vadd.f32 %v5474, 1.0
      %v5518 = vadd.f32 %v5476, 1.0
      %v5519 = vadd.f32 %v5478, 1.0
      %v5520 = vrcp.pop %v5479
      %v5521 = vmul.f32 1.0, %v5520
      %v5522 = vrcp.pop %v5480
      %v5523 = vmul.f32 1.0, %v5522
      %v5524 = vrcp.pop %v5481
      %v5525 = vmul.f32 1.0, %v5524
      %v5526 = vrcp.pop %v5482
      %v5527 = vmul.f32 1.0, %v5526
      %v5528 = vrcp.pop %v5483
      %v5529 = vmul.f32 1.0, %v5528
      %v5530 = vrcp.pop %v5484
      %v5531 = vmul.f32 1.0, %v5530
      %v5532 = vrcp.pop %v5485
      %v5533 = vmul.f32 1.0, %v5532
      %v5534 = vrcp.pop %v5486
      %v5535 = vmul.f32 1.0, %v5534
      %v5536 = vrcp.pop %v5487
      %v5537 = vmul.f32 1.0, %v5536
      %v5538 = vrcp.pop %v5488
      %v5539 = vmul.f32 1.0, %v5538
      %v5540 = vrcp.pop %v5489
      %v5541 = vmul.f32 1.0, %v5540
      %v5542 = vrcp.pop %v5490
      %v5543 = vmul.f32 1.0, %v5542
      %v5544 = vrcp.pop %v5491
      %v5545 = vmul.f32 1.0, %v5544
      %v5546 = vrcp.pop %v5492
      %v5547 = vmul.f32 1.0, %v5546
      %v5548 = vrcp.pop %v5493
      %v5549 = vmul.f32 1.0, %v5548
      %v5550 = vrcp.pop %v5494
      %v5551 = vmul.f32 1.0, %v5550
      %v5552 = vrcp.pop %v5495
      %v5553 = vmul.f32 1.0, %v5552
      %v5554 = vrcp.pop %v5496
      %v5555 = vmul.f32 1.0, %v5554
      %v5556 = vrcp.pop %v5497
      %v5557 = vmul.f32 1.0, %v5556
      %v5558 = vrcp.pop %v5498
      %v5559 = vmul.f32 1.0, %v5558
      %v5560 = vrcp.pop %v5499
      %v5561 = vmul.f32 1.0, %v5560
      %v5562 = vrcp.pop %v5500
      %v5563 = vmul.f32 1.0, %v5562
      %v5564 = vrcp.pop %v5501
      %v5565 = vmul.f32 1.0, %v5564
      %v5566 = vrcp.pop %v5502
      %v5567 = vmul.f32 1.0, %v5566
      %v5568 = vrcp.pop %v5503
      %v5569 = vmul.f32 1.0, %v5568
      %v5570 = vrcp.pop %v5504
      %v5571 = vmul.f32 1.0, %v5570
      %v5572 = vrcp.pop %v5505
      %v5573 = vmul.f32 1.0, %v5572
      %v5574 = vrcp.pop %v5506
      %v5575 = vmul.f32 1.0, %v5574
      %v5576 = vrcp.pop %v5507
      %v5577 = vmul.f32 1.0, %v5576
      %v5578 = vrcp.pop %v5508
      %v5579 = vmul.f32 1.0, %v5578
      %v5580 = vrcp.pop %v5509
      %v5581 = vmul.f32 1.0, %v5580
      %v5582 = vrcp.pop %v5510
      %v5583 = vmul.f32 1.0, %v5582
      %v5584 = vrcp.pop %v5511
      %v5585 = vmul.f32 1.0, %v5584
      %v5586 = vrcp.pop %v5512
      %v5587 = vmul.f32 1.0, %v5586
      %v5588 = vrcp.pop %v5513
      %v5589 = vmul.f32 1.0, %v5588
      %v5590 = vrcp.pop %v5514
      %v5591 = vmul.f32 1.0, %v5590
      %v5592 = vrcp.pop %v5515
      %v5593 = vmul.f32 1.0, %v5592
      %v5594 = vrcp.pop %v5516
      %v5595 = vmul.f32 1.0, %v5594
      %v5596 = vrcp.pop %v5517
      %v5597 = vmul.f32 1.0, %v5596
      %v5598 = vrcp.pop %v5518
      %v5599 = vmul.f32 1.0, %v5598
      %v5600 = vrcp.pop %v5519
      %v5601 = vmul.f32 1.0, %v5600
      %v5602 = vmul.f32 %v5315, %v5521
      %v5603 = vmul.f32 %v5316, %v5523
      %v5604 = vmul.f32 %v5317, %v5525
      %v5605 = vmul.f32 %v5318, %v5527
      %v5606 = vmul.f32 %v5319, %v5529
      %v5607 = vmul.f32 %v5320, %v5531
      %v5608 = vmul.f32 %v5321, %v5533
      %v5609 = vmul.f32 %v5322, %v5535
      %v5610 = vmul.f32 %v5323, %v5537
      %v5611 = vmul.f32 %v5324, %v5539
      %v5612 = vmul.f32 %v5325, %v5541
      %v5613 = vmul.f32 %v5326, %v5543
      %v5614 = vmul.f32 %v5327, %v5545
      %v5615 = vmul.f32 %v5328, %v5547
      %v5616 = vmul.f32 %v5329, %v5549
      %v5617 = vmul.f32 %v5330, %v5551
      %v5618 = vmul.f32 %v5331, %v5553
      %v5619 = vmul.f32 %v5332, %v5555
      %v5620 = vmul.f32 %v5333, %v5557
      %v5621 = vmul.f32 %v5334, %v5559
      %v5622 = vmul.f32 %v5335, %v5561
      %v5623 = vmul.f32 %v5336, %v5563
      %v5624 = vmul.f32 %v5337, %v5565
      %v5625 = vmul.f32 %v5338, %v5567
      %v5626 = vmul.f32 %v5339, %v5569
      %v5627 = vmul.f32 %v5340, %v5571
      %v5628 = vmul.f32 %v5341, %v5573
      %v5629 = vmul.f32 %v5342, %v5575
      %v5630 = vmul.f32 %v5343, %v5577
      %v5631 = vmul.f32 %v5344, %v5579
      %v5632 = vmul.f32 %v5345, %v5581
      %v5633 = vmul.f32 %v5346, %v5583
      %v5634 = vmul.f32 %v5347, %v5585
      %v5635 = vmul.f32 %v5348, %v5587
      %v5636 = vmul.f32 %v5349, %v5589
      %v5637 = vmul.f32 %v5350, %v5591
      %v5638 = vmul.f32 %v5351, %v5593
      %v5639 = vmul.f32 %v5352, %v5595
      %v5640 = vmul.f32 %v5353, %v5597
      %v5641 = vmul.f32 %v5354, %v5599
      %v5642 = vmul.f32 %v5355, %v5601
      %v5643 = vmul.f32 %v5602, %v1767
      %v5644 = vmul.f32 %v5603, %v1772
      %v5645 = vmul.f32 %v5604, %v1777
      %v5646 = vmul.f32 %v5605, %v1782
      %v5647 = vmul.f32 %v5606, %v1787
      %v5648 = vmul.f32 %v5607, %v1792
      %v5649 = vmul.f32 %v5608, %v1797
      %v5650 = vmul.f32 %v5609, %v1802
      %v5651 = vmul.f32 %v5610, %v1807
      %v5652 = vmul.f32 %v5611, %v1812
      %v5653 = vmul.f32 %v5612, %v1817
      %v5654 = vmul.f32 %v5613, %v1822
      %v5655 = vmul.f32 %v5614, %v1827
      %v5656 = vmul.f32 %v5615, %v1832
      %v5657 = vmul.f32 %v5616, %v1837
      %v5658 = vmul.f32 %v5617, %v1842
      %v5659 = vmul.f32 %v5618, %v1847
      %v5660 = vmul.f32 %v5619, %v1852
      %v5661 = vmul.f32 %v5620, %v1857
      %v5662 = vmul.f32 %v5621, %v1862
      %v5663 = vmul.f32 %v5622, %v1867
      %v5664 = vmul.f32 %v5623, %v1872
      %v5665 = vmul.f32 %v5624, %v1877
      %v5666 = vmul.f32 %v5625, %v1882
      %v5667 = vmul.f32 %v5626, %v1887
      %v5668 = vmul.f32 %v5627, %v1892
      %v5669 = vmul.f32 %v5628, %v1897
      %v5670 = vmul.f32 %v5629, %v1902
      %v5671 = vmul.f32 %v5630, %v1907
      %v5672 = vmul.f32 %v5631, %v1912
      %v5673 = vmul.f32 %v5632, %v1917
      %v5674 = vmul.f32 %v5633, %v1922
      %v5675 = vmul.f32 %v5634, %v1927
      %v5676 = vmul.f32 %v5635, %v1932
      %v5677 = vmul.f32 %v5636, %v1937
      %v5678 = vmul.f32 %v5637, %v1942
      %v5679 = vmul.f32 %v5638, %v1947
      %v5680 = vmul.f32 %v5639, %v1952
      %v5681 = vmul.f32 %v5640, %v1957
      %v5682 = vmul.f32 %v5641, %v1962
      %v5683 = vmul.f32 %v5642, %v1967
      %5684 = vst.msk [vmem:[#allocation2 + $0x18] sm:$0xff] %vm1715, %v5643
      %5685 = vst.msk [vmem:[#allocation2 + $0x20] sm:$0xff] %vm1715, %v5644
      %5686 = vst.msk [vmem:[#allocation2 + $0x28] sm:$0xff] %vm1715, %v5645
      %5687 = vst.msk [vmem:[#allocation2 + $0x30] sm:$0xff] %vm1715, %v5646
      %5688 = vst.msk [vmem:[#allocation2 + $0x38] sm:$0xff] %vm1715, %v5647
      %5689 = vst.msk [vmem:[#allocation2 + $0x40] sm:$0xff] %vm1715, %v5648
      %5690 = vst.msk [vmem:[#allocation2 + $0x48] sm:$0xff] %vm1715, %v5649
      %5691 = vst.msk [vmem:[#allocation2 + $0x50] sm:$0xff] %vm1715, %v5650
      %5692 = vst.msk [vmem:[#allocation2 + $0x58] sm:$0xff] %vm1715, %v5651
      %5693 = vst.msk [vmem:[#allocation2 + $0x60] sm:$0xff] %vm1715, %v5652
      %5694 = vst.msk [vmem:[#allocation2 + $0x68] sm:$0xff] %vm1715, %v5653
      %5695 = vst.msk [vmem:[#allocation2 + $0x70] sm:$0xff] %vm1715, %v5654
      %5696 = vst.msk [vmem:[#allocation2 + $0x78] sm:$0xff] %vm1715, %v5655
      %5697 = vst.msk [vmem:[#allocation2 + $0x80] sm:$0xff] %vm1715, %v5656
      %5698 = vst.msk [vmem:[#allocation2 + $0x88] sm:$0xff] %vm1715, %v5657
      %5699 = vst.msk [vmem:[#allocation2 + $0x90] sm:$0xff] %vm1715, %v5658
      %5700 = vst.msk [vmem:[#allocation2 + $0x98] sm:$0xff] %vm1715, %v5659
      %5701 = vst.msk [vmem:[#allocation2 + $0xa0] sm:$0xff] %vm1715, %v5660
      %5702 = vst.msk [vmem:[#allocation2 + $0xa8] sm:$0xff] %vm1715, %v5661
      %5703 = vst.msk [vmem:[#allocation2 + $0xb0] sm:$0xff] %vm1715, %v5662
      %5704 = vst.msk [vmem:[#allocation2 + $0xb8] sm:$0xff] %vm1715, %v5663
      %5705 = vst.msk [vmem:[#allocation2 + $0xc0] sm:$0xff] %vm1715, %v5664
      %5706 = vst.msk [vmem:[#allocation2 + $0xc8] sm:$0xff] %vm1715, %v5665
      %5707 = vst.msk [vmem:[#allocation2 + $0xd0] sm:$0xff] %vm1715, %v5666
      %5708 = vst.msk [vmem:[#allocation2 + $0xd8] sm:$0xff] %vm1715, %v5667
      %5709 = vst.msk [vmem:[#allocation2 + $0xe0] sm:$0xff] %vm1715, %v5668
      %5710 = vst.msk [vmem:[#allocation2 + $0xe8] sm:$0xff] %vm1715, %v5669
      %5711 = vst.msk [vmem:[#allocation2 + $0xf0] sm:$0xff] %vm1715, %v5670
      %5712 = vst.msk [vmem:[#allocation2 + $0xf8] sm:$0xff] %vm1715, %v5671
      %5713 = vst.msk [vmem:[#allocation2 + $0x100] sm:$0xff] %vm1715, %v5672
      %5714 = vst.msk [vmem:[#allocation2 + $0x108] sm:$0xff] %vm1715, %v5673
      %5715 = vst.msk [vmem:[#allocation2 + $0x110] sm:$0xff] %vm1715, %v5674
      %5716 = vst.msk [vmem:[#allocation2 + $0x118] sm:$0xff] %vm1715, %v5675
      %5717 = vst.msk [vmem:[#allocation2 + $0x120] sm:$0xff] %vm1715, %v5676
      %5718 = vst.msk [vmem:[#allocation2 + $0x128] sm:$0xff] %vm1715, %v5677
      %5719 = vst.msk [vmem:[#allocation2 + $0x130] sm:$0xff] %vm1715, %v5678
      %5720 = vst.msk [vmem:[#allocation2 + $0x138] sm:$0xff] %vm1715, %v5679
      %5721 = vst.msk [vmem:[#allocation2 + $0x140] sm:$0xff] %vm1715, %v5680
      %5722 = vst.msk [vmem:[#allocation2 + $0x148] sm:$0xff] %vm1715, %v5681
      %5723 = vst.msk [vmem:[#allocation2 + $0x150] sm:$0xff] %vm1715, %v5682
      %5724 = vst.msk [vmem:[#allocation2 + $0x158] sm:$0xf] %vm1762, %v5683
      %v5725 = vld [vmem:[#allocation2 + $0x5] sm:$0xff]
      %v5726 = vld [vmem:[#allocation2 + $0xd] sm:$0xff]
      %v5727 = vld [vmem:[#allocation2 + $0x15] sm:$0xff]
      %v5728 = vld [vmem:[#allocation2 + $0x1d] sm:$0xff]
      %v5729 = vld [vmem:[#allocation2 + $0x25] sm:$0xff]
      %v5730 = vld [vmem:[#allocation2 + $0x2d] sm:$0xff]
      %v5731 = vld [vmem:[#allocation2 + $0x35] sm:$0xff]
      %v5732 = vld [vmem:[#allocation2 + $0x3d] sm:$0xff]
      %v5733 = vld [vmem:[#allocation2 + $0x45] sm:$0xff]
      %v5734 = vld [vmem:[#allocation2 + $0x4d] sm:$0xff]
      %v5735 = vld [vmem:[#allocation2 + $0x55] sm:$0xff]
      %v5736 = vld [vmem:[#allocation2 + $0x5d] sm:$0xff]
      %v5737 = vld [vmem:[#allocation2 + $0x65] sm:$0xff]
      %v5738 = vld [vmem:[#allocation2 + $0x6d] sm:$0xff]
      %v5739 = vld [vmem:[#allocation2 + $0x75] sm:$0xff]
      %v5740 = vld [vmem:[#allocation2 + $0x7d] sm:$0xff]
      %v5741 = vld [vmem:[#allocation2 + $0x85] sm:$0xff]
      %v5742 = vld [vmem:[#allocation2 + $0x8d] sm:$0xff]
      %v5743 = vld [vmem:[#allocation2 + $0x95] sm:$0xff]
      %v5744 = vld [vmem:[#allocation2 + $0x9d] sm:$0xff]
      %v5745 = vld [vmem:[#allocation2 + $0xa5] sm:$0xff]
      %v5746 = vld [vmem:[#allocation2 + $0xad] sm:$0xff]
      %v5747 = vld [vmem:[#allocation2 + $0xb5] sm:$0xff]
      %v5748 = vld [vmem:[#allocation2 + $0xbd] sm:$0xff]
      %v5749 = vld [vmem:[#allocation2 + $0xc5] sm:$0xff]
      %v5750 = vld [vmem:[#allocation2 + $0xcd] sm:$0xff]
      %v5751 = vld [vmem:[#allocation2 + $0xd5] sm:$0xff]
      %v5752 = vld [vmem:[#allocation2 + $0xdd] sm:$0xff]
      %v5753 = vld [vmem:[#allocation2 + $0xe5] sm:$0xff]
      %v5754 = vld [vmem:[#allocation2 + $0xed] sm:$0xff]
      %v5755 = vld [vmem:[#allocation2 + $0xf5] sm:$0xff]
      %v5756 = vld [vmem:[#allocation2 + $0xfd] sm:$0xff]
      %v5757 = vld [vmem:[#allocation2 + $0x105] sm:$0xff]
      %v5758 = vld [vmem:[#allocation2 + $0x10d] sm:$0xff]
      %v5759 = vld [vmem:[#allocation2 + $0x115] sm:$0xff]
      %v5760 = vld [vmem:[#allocation2 + $0x11d] sm:$0xff]
      %v5761 = vld [vmem:[#allocation2 + $0x125] sm:$0xff]
      %v5762 = vld [vmem:[#allocation2 + $0x12d] sm:$0xff]
      %v5763 = vld [vmem:[#allocation2 + $0x135] sm:$0xff]
      %v5764 = vld [vmem:[#allocation2 + $0x13d] sm:$0xff]
      %v5765 = vld [vmem:[#allocation2 + $0x145] sm:$0xf]
      %v5766 = vpack.c.bf16 %v5726, %v5725
      %v5767 = vpack.c.bf16 %v5728, %v5727
      %v5768 = vpack.c.bf16 %v5730, %v5729
      %v5769 = vpack.c.bf16 %v5732, %v5731
      %v5770 = vpack.c.bf16 %v5734, %v5733
      %v5771 = vpack.c.bf16 %v5736, %v5735
      %v5772 = vpack.c.bf16 %v5738, %v5737
      %v5773 = vpack.c.bf16 %v5740, %v5739
      %v5774 = vpack.c.bf16 %v5742, %v5741
      %v5775 = vpack.c.bf16 %v5744, %v5743
      %v5776 = vpack.c.bf16 %v5746, %v5745
      %v5777 = vpack.c.bf16 %v5748, %v5747
      %v5778 = vpack.c.bf16 %v5750, %v5749
      %v5779 = vpack.c.bf16 %v5752, %v5751
      %v5780 = vpack.c.bf16 %v5754, %v5753
      %v5781 = vpack.c.bf16 %v5756, %v5755
      %v5782 = vpack.c.bf16 %v5758, %v5757
      %v5783 = vpack.c.bf16 %v5760, %v5759
      %v5784 = vpack.c.bf16 %v5762, %v5761
      %v5785 = vpack.c.bf16 %v5764, %v5763
      %v5786 = vpack.c.bf16 %v5765, %v5765
      %v5787 = vld [vmem:[%s8] sm:$0x1]
      %v5788 = vld [vmem:[#allocation2 + $0x6] sm:$0xff]
      %v5789 = vld [vmem:[#allocation2 + $0xe] sm:$0xff]
      %v5790 = vld [vmem:[#allocation2 + $0x16] sm:$0xff]
      %v5791 = vld [vmem:[#allocation2 + $0x1e] sm:$0xff]
      %v5792 = vld [vmem:[#allocation2 + $0x26] sm:$0xff]
      %v5793 = vld [vmem:[#allocation2 + $0x2e] sm:$0xff]
      %v5794 = vld [vmem:[#allocation2 + $0x36] sm:$0xff]
      %v5795 = vld [vmem:[#allocation2 + $0x3e] sm:$0xff]
      %v5796 = vld [vmem:[#allocation2 + $0x46] sm:$0xff]
      %v5797 = vld [vmem:[#allocation2 + $0x4e] sm:$0xff]
      %v5798 = vld [vmem:[#allocation2 + $0x56] sm:$0xff]
      %v5799 = vld [vmem:[#allocation2 + $0x5e] sm:$0xff]
      %v5800 = vld [vmem:[#allocation2 + $0x66] sm:$0xff]
      %v5801 = vld [vmem:[#allocation2 + $0x6e] sm:$0xff]
      %v5802 = vld [vmem:[#allocation2 + $0x76] sm:$0xff]
      %v5803 = vld [vmem:[#allocation2 + $0x7e] sm:$0xff]
      %v5804 = vld [vmem:[#allocation2 + $0x86] sm:$0xff]
      %v5805 = vld [vmem:[#allocation2 + $0x8e] sm:$0xff]
      %v5806 = vld [vmem:[#allocation2 + $0x96] sm:$0xff]
      %v5807 = vld [vmem:[#allocation2 + $0x9e] sm:$0xff]
      %v5808 = vld [vmem:[#allocation2 + $0xa6] sm:$0xff]
      %v5809 = vld [vmem:[#allocation2 + $0xae] sm:$0xff]
      %v5810 = vld [vmem:[#allocation2 + $0xb6] sm:$0xff]
      %v5811 = vld [vmem:[#allocation2 + $0xbe] sm:$0xff]
      %v5812 = vld [vmem:[#allocation2 + $0xc6] sm:$0xff]
      %v5813 = vld [vmem:[#allocation2 + $0xce] sm:$0xff]
      %v5814 = vld [vmem:[#allocation2 + $0xd6] sm:$0xff]
      %v5815 = vld [vmem:[#allocation2 + $0xde] sm:$0xff]
      %v5816 = vld [vmem:[#allocation2 + $0xe6] sm:$0xff]
      %v5817 = vld [vmem:[#allocation2 + $0xee] sm:$0xff]
      %v5818 = vld [vmem:[#allocation2 + $0xf6] sm:$0xff]
      %v5819 = vld [vmem:[#allocation2 + $0xfe] sm:$0xff]
      %v5820 = vld [vmem:[#allocation2 + $0x106] sm:$0xff]
      %v5821 = vld [vmem:[#allocation2 + $0x10e] sm:$0xff]
      %v5822 = vld [vmem:[#allocation2 + $0x116] sm:$0xff]
      %v5823 = vld [vmem:[#allocation2 + $0x11e] sm:$0xff]
      %v5824 = vld [vmem:[#allocation2 + $0x126] sm:$0xff]
      %v5825 = vld [vmem:[#allocation2 + $0x12e] sm:$0xff]
      %v5826 = vld [vmem:[#allocation2 + $0x136] sm:$0xff]
      %v5827 = vld [vmem:[#allocation2 + $0x13e] sm:$0xff]
      %v5828 = vld [vmem:[#allocation2 + $0x146] sm:$0xf]
      %v5829 = vpack.c.bf16 %v5789, %v5788
      %v5830 = vpack.c.bf16 %v5791, %v5790
      %v5831 = vpack.c.bf16 %v5793, %v5792
      %v5832 = vpack.c.bf16 %v5795, %v5794
      %v5833 = vpack.c.bf16 %v5797, %v5796
      %v5834 = vpack.c.bf16 %v5799, %v5798
      %v5835 = vpack.c.bf16 %v5801, %v5800
      %v5836 = vpack.c.bf16 %v5803, %v5802
      %v5837 = vpack.c.bf16 %v5805, %v5804
      %v5838 = vpack.c.bf16 %v5807, %v5806
      %v5839 = vpack.c.bf16 %v5809, %v5808
      %v5840 = vpack.c.bf16 %v5811, %v5810
      %v5841 = vpack.c.bf16 %v5813, %v5812
      %v5842 = vpack.c.bf16 %v5815, %v5814
      %v5843 = vpack.c.bf16 %v5817, %v5816
      %v5844 = vpack.c.bf16 %v5819, %v5818
      %v5845 = vpack.c.bf16 %v5821, %v5820
      %v5846 = vpack.c.bf16 %v5823, %v5822
      %v5847 = vpack.c.bf16 %v5825, %v5824
      %v5848 = vpack.c.bf16 %v5827, %v5826
      %v5849 = vpack.c.bf16 %v5828, %v5828
      %s5850 = scalar_lea.vmem %s8, 1
      %v5851 = vld [vmem:[%s5850] sm:$0x1]
      %v5853 = vsel %vm1715, %v5829, 0
      %v5856 = vsel %vm1715, %v5830, 0
      %v5859 = vsel %vm1715, %v5831, 0
      %v5862 = vsel %vm1715, %v5832, 0
      %v5865 = vsel %vm1715, %v5833, 0
      %v5868 = vsel %vm1715, %v5834, 0
      %v5871 = vsel %vm1715, %v5835, 0
      %v5874 = vsel %vm1715, %v5836, 0
      %v5877 = vsel %vm1715, %v5837, 0
      %v5880 = vsel %vm1715, %v5838, 0
      %v5883 = vsel %vm1715, %v5839, 0
      %v5886 = vsel %vm1715, %v5840, 0
      %v5889 = vsel %vm1715, %v5841, 0
      %v5892 = vsel %vm1715, %v5842, 0
      %v5895 = vsel %vm1715, %v5843, 0
      %v5898 = vsel %vm1715, %v5844, 0
      %v5901 = vsel %vm1715, %v5845, 0
      %v5904 = vsel %vm1715, %v5846, 0
      %v5907 = vsel %vm1715, %v5847, 0
      %v5910 = vsel %vm1715, %v5848, 0
      %v5913 = vsel %vm1715, %v5849, 0
      %v5916 = vsel %vm2241, %v5851, 0
      %5918 = vmatprep.subr.bf16.mxu0 0
      %5919 = vmatpush1.bf16.msra.mxu0 %v5916
      %5920 = vmatprep.subr.bf16.mxu0 0
      %5921 = vmatpush1.bf16.msra.mxu0 0
      %5922 = vmatprep.subr.bf16.mxu0 0
      %5923 = vmatpush1.bf16.msra.mxu0 0
      %5924 = vmatprep.subr.bf16.mxu0 0
      %5925 = vmatpush1.bf16.msra.mxu0 0
      %5926 = vmatprep.subr.bf16.mxu0 0
      %5927 = vmatpush1.bf16.msra.mxu0 0
      %5928 = vmatprep.subr.bf16.mxu0 0
      %5929 = vmatpush1.bf16.msra.mxu0 0
      %5930 = vmatprep.subr.bf16.mxu0 0
      %5931 = vmatpush1.bf16.msra.mxu0 0
      %5932 = vmatprep.subr.bf16.mxu0 0
      %5933 = vmatpush1.bf16.msra.mxu0 0
      %5934 = vmatprep.subr.bf16.mxu0 0
      %5935 = vmatpush1.bf16.msra.mxu0 0
      %5936 = vmatprep.subr.bf16.mxu0 0
      %5937 = vmatpush1.bf16.msra.mxu0 0
      %5938 = vmatprep.subr.bf16.mxu0 0
      %5939 = vmatpush1.bf16.msra.mxu0 0
      %5940 = vmatprep.subr.bf16.mxu0 0
      %5941 = vmatpush1.bf16.msra.mxu0 0
      %5942 = vmatprep.subr.bf16.mxu0 0
      %5943 = vmatpush1.bf16.msra.mxu0 0
      %5944 = vmatprep.subr.bf16.mxu0 0
      %5945 = vmatpush1.bf16.msra.mxu0 0
      %5946 = vmatprep.subr.bf16.mxu0 0
      %5947 = vmatpush1.bf16.msra.mxu0 0
      %5948 = vmatprep.subr.bf16.mxu0 0
      %5949 = vmatpush1.bf16.msra.mxu0 0
      %5950 = vmatprep.mubr.bf16.mxu0 0
      %5951 = vmatmul.mubr.bf16.gmra.mrb[0].mxu0 %v5853
      %v5952 = vpop.f32.mrb[0].mxu0
      %v5953 = vadd.f32 0.0, %v5952
      %v5954 = vpop.f32.mrb[0].mxu0
      %v5955 = vpop.f32.mrb[0].mxu0
      %v5956 = vadd.f32 0.0, %v5955
      %v5957 = vpop.f32.mrb[0].mxu0
      %5958 = vmatprep.mubr.bf16.mxu0 0
      %5959 = vmatmul.mubr.bf16.gmra.mrb[0].mxu0 %v5856
      %v5960 = vpop.f32.mrb[0].mxu0
      %v5961 = vadd.f32 0.0, %v5960
      %v5962 = vpop.f32.mrb[0].mxu0
      %v5963 = vpop.f32.mrb[0].mxu0
      %v5964 = vadd.f32 0.0, %v5963
      %v5965 = vpop.f32.mrb[0].mxu0
      %5966 = vmatprep.mubr.bf16.mxu0 0
      %5967 = vmatmul.mubr.bf16.gmra.mrb[0].mxu0 %v5859
      %v5968 = vpop.f32.mrb[0].mxu0
      %v5969 = vadd.f32 0.0, %v5968
      %v5970 = vpop.f32.mrb[0].mxu0
      %v5971 = vpop.f32.mrb[0].mxu0
      %v5972 = vadd.f32 0.0, %v5971
      %v5973 = vpop.f32.mrb[0].mxu0
      %5974 = vmatprep.mubr.bf16.mxu0 0
      %5975 = vmatmul.mubr.bf16.gmra.mrb[0].mxu0 %v5862
      %v5976 = vpop.f32.mrb[0].mxu0
      %v5977 = vadd.f32 0.0, %v5976
      %v5978 = vpop.f32.mrb[0].mxu0
      %v5979 = vpop.f32.mrb[0].mxu0
      %v5980 = vadd.f32 0.0, %v5979
      %v5981 = vpop.f32.mrb[0].mxu0
      %5982 = vmatprep.mubr.bf16.mxu0 0
      %5983 = vmatmul.mubr.bf16.gmra.mrb[0].mxu0 %v5865
      %v5984 = vpop.f32.mrb[0].mxu0
      %v5985 = vadd.f32 0.0, %v5984
      %v5986 = vpop.f32.mrb[0].mxu0
      %v5987 = vpop.f32.mrb[0].mxu0
      %v5988 = vadd.f32 0.0, %v5987
      %v5989 = vpop.f32.mrb[0].mxu0
      %5990 = vmatprep.mubr.bf16.mxu0 0
      %5991 = vmatmul.mubr.bf16.gmra.mrb[0].mxu0 %v5868
      %v5992 = vpop.f32.mrb[0].mxu0
      %v5993 = vadd.f32 0.0, %v5992
      %v5994 = vpop.f32.mrb[0].mxu0
      %v5995 = vpop.f32.mrb[0].mxu0
      %v5996 = vadd.f32 0.0, %v5995
      %v5997 = vpop.f32.mrb[0].mxu0
      %5998 = vmatprep.mubr.bf16.mxu0 0
      %5999 = vmatmul.mubr.bf16.gmra.mrb[0].mxu0 %v5871
      %v6000 = vpop.f32.mrb[0].mxu0
      %v6001 = vadd.f32 0.0, %v6000
      %v6002 = vpop.f32.mrb[0].mxu0
      %v6003 = vpop.f32.mrb[0].mxu0
      %v6004 = vadd.f32 0.0, %v6003
      %v6005 = vpop.f32.mrb[0].mxu0
      %6006 = vmatprep.mubr.bf16.mxu0 0
      %6007 = vmatmul.mubr.bf16.gmra.mrb[0].mxu0 %v5874
      %v6008 = vpop.f32.mrb[0].mxu0
      %v6009 = vadd.f32 0.0, %v6008
      %v6010 = vpop.f32.mrb[0].mxu0
      %v6011 = vpop.f32.mrb[0].mxu0
      %v6012 = vadd.f32 0.0, %v6011
      %v6013 = vpop.f32.mrb[0].mxu0
      %6014 = vmatprep.mubr.bf16.mxu0 0
      %6015 = vmatmul.mubr.bf16.gmra.mrb[0].mxu0 %v5877
      %v6016 = vpop.f32.mrb[0].mxu0
      %v6017 = vadd.f32 0.0, %v6016
      %v6018 = vpop.f32.mrb[0].mxu0
      %v6019 = vpop.f32.mrb[0].mxu0
      %v6020 = vadd.f32 0.0, %v6019
      %v6021 = vpop.f32.mrb[0].mxu0
      %6022 = vmatprep.mubr.bf16.mxu0 0
      %6023 = vmatmul.mubr.bf16.gmra.mrb[0].mxu0 %v5880
      %v6024 = vpop.f32.mrb[0].mxu0
      %v6025 = vadd.f32 0.0, %v6024
      %v6026 = vpop.f32.mrb[0].mxu0
      %v6027 = vpop.f32.mrb[0].mxu0
      %v6028 = vadd.f32 0.0, %v6027
      %v6029 = vpop.f32.mrb[0].mxu0
      %6030 = vmatprep.mubr.bf16.mxu0 0
      %6031 = vmatmul.mubr.bf16.gmra.mrb[0].mxu0 %v5883
      %v6032 = vpop.f32.mrb[0].mxu0
      %v6033 = vadd.f32 0.0, %v6032
      %v6034 = vpop.f32.mrb[0].mxu0
      %v6035 = vpop.f32.mrb[0].mxu0
      %v6036 = vadd.f32 0.0, %v6035
      %v6037 = vpop.f32.mrb[0].mxu0
      %6038 = vmatprep.mubr.bf16.mxu0 0
      %6039 = vmatmul.mubr.bf16.gmra.mrb[0].mxu0 %v5886
      %v6040 = vpop.f32.mrb[0].mxu0
      %v6041 = vadd.f32 0.0, %v6040
      %v6042 = vpop.f32.mrb[0].mxu0
      %v6043 = vpop.f32.mrb[0].mxu0
      %v6044 = vadd.f32 0.0, %v6043
      %v6045 = vpop.f32.mrb[0].mxu0
      %6046 = vmatprep.mubr.bf16.mxu0 0
      %6047 = vmatmul.mubr.bf16.gmra.mrb[0].mxu0 %v5889
      %v6048 = vpop.f32.mrb[0].mxu0
      %v6049 = vadd.f32 0.0, %v6048
      %v6050 = vpop.f32.mrb[0].mxu0
      %v6051 = vpop.f32.mrb[0].mxu0
      %v6052 = vadd.f32 0.0, %v6051
      %v6053 = vpop.f32.mrb[0].mxu0
      %6054 = vmatprep.mubr.bf16.mxu0 0
      %6055 = vmatmul.mubr.bf16.gmra.mrb[0].mxu0 %v5892
      %v6056 = vpop.f32.mrb[0].mxu0
      %v6057 = vadd.f32 0.0, %v6056
      %v6058 = vpop.f32.mrb[0].mxu0
      %v6059 = vpop.f32.mrb[0].mxu0
      %v6060 = vadd.f32 0.0, %v6059
      %v6061 = vpop.f32.mrb[0].mxu0
      %6062 = vmatprep.mubr.bf16.mxu0 0
      %6063 = vmatmul.mubr.bf16.gmra.mrb[0].mxu0 %v5895
      %v6064 = vpop.f32.mrb[0].mxu0
      %v6065 = vadd.f32 0.0, %v6064
      %v6066 = vpop.f32.mrb[0].mxu0
      %v6067 = vpop.f32.mrb[0].mxu0
      %v6068 = vadd.f32 0.0, %v6067
      %v6069 = vpop.f32.mrb[0].mxu0
      %6070 = vmatprep.mubr.bf16.mxu0 0
      %6071 = vmatmul.mubr.bf16.gmra.mrb[0].mxu0 %v5898
      %v6072 = vpop.f32.mrb[0].mxu0
      %v6073 = vadd.f32 0.0, %v6072
      %v6074 = vpop.f32.mrb[0].mxu0
      %v6075 = vpop.f32.mrb[0].mxu0
      %v6076 = vadd.f32 0.0, %v6075
      %v6077 = vpop.f32.mrb[0].mxu0
      %6078 = vmatprep.mubr.bf16.mxu0 0
      %6079 = vmatmul.mubr.bf16.gmra.mrb[0].mxu0 %v5901
      %v6080 = vpop.f32.mrb[0].mxu0
      %v6081 = vadd.f32 0.0, %v6080
      %v6082 = vpop.f32.mrb[0].mxu0
      %v6083 = vpop.f32.mrb[0].mxu0
      %v6084 = vadd.f32 0.0, %v6083
      %v6085 = vpop.f32.mrb[0].mxu0
      %6086 = vmatprep.mubr.bf16.mxu0 0
      %6087 = vmatmul.mubr.bf16.gmra.mrb[0].mxu0 %v5904
      %v6088 = vpop.f32.mrb[0].mxu0
      %v6089 = vadd.f32 0.0, %v6088
      %v6090 = vpop.f32.mrb[0].mxu0
      %v6091 = vpop.f32.mrb[0].mxu0
      %v6092 = vadd.f32 0.0, %v6091
      %v6093 = vpop.f32.mrb[0].mxu0
      %6094 = vmatprep.mubr.bf16.mxu0 0
      %6095 = vmatmul.mubr.bf16.gmra.mrb[0].mxu0 %v5907
      %v6096 = vpop.f32.mrb[0].mxu0
      %v6097 = vadd.f32 0.0, %v6096
      %v6098 = vpop.f32.mrb[0].mxu0
      %v6099 = vpop.f32.mrb[0].mxu0
      %v6100 = vadd.f32 0.0, %v6099
      %v6101 = vpop.f32.mrb[0].mxu0
      %6102 = vmatprep.mubr.bf16.mxu0 0
      %6103 = vmatmul.mubr.bf16.gmra.mrb[0].mxu0 %v5910
      %v6104 = vpop.f32.mrb[0].mxu0
      %v6105 = vadd.f32 0.0, %v6104
      %v6106 = vpop.f32.mrb[0].mxu0
      %v6107 = vpop.f32.mrb[0].mxu0
      %v6108 = vadd.f32 0.0, %v6107
      %v6109 = vpop.f32.mrb[0].mxu0
      %6110 = vmatprep.mubr.bf16.mxu0 0
      %6111 = vmatmul.mubr.bf16.gmra.mrb[0].mxu0 %v5913
      %v6112 = vpop.f32.mrb[0].mxu0
      %v6113 = vadd.f32 0.0, %v6112
      %v6114 = vpop.f32.mrb[0].mxu0
      %v6115 = vpop.f32.mrb[0].mxu0
      %v6116 = vpop.f32.mrb[0].mxu0
      %6117 = vdwg.mxu0
      %v6119 = vsel %vm1715, %v5766, 0
      %v6122 = vsel %vm1715, %v5767, 0
      %v6125 = vsel %vm1715, %v5768, 0
      %v6128 = vsel %vm1715, %v5769, 0
      %v6131 = vsel %vm1715, %v5770, 0
      %v6134 = vsel %vm1715, %v5771, 0
      %v6137 = vsel %vm1715, %v5772, 0
      %v6140 = vsel %vm1715, %v5773, 0
      %v6143 = vsel %vm1715, %v5774, 0
      %v6146 = vsel %vm1715, %v5775, 0
      %v6149 = vsel %vm1715, %v5776, 0
      %v6152 = vsel %vm1715, %v5777, 0
      %v6155 = vsel %vm1715, %v5778, 0
      %v6158 = vsel %vm1715, %v5779, 0
      %v6161 = vsel %vm1715, %v5780, 0
      %v6164 = vsel %vm1715, %v5781, 0
      %v6167 = vsel %vm1715, %v5782, 0
      %v6170 = vsel %vm1715, %v5783, 0
      %v6173 = vsel %vm1715, %v5784, 0
      %v6176 = vsel %vm1715, %v5785, 0
      %v6179 = vsel %vm1715, %v5786, 0
      %v6182 = vsel %vm2241, %v5787, 0
      %6184 = vmatprep.subr.bf16.mxu0 0
      %6185 = vmatpush1.bf16.msra.mxu0 %v6182
      %6186 = vmatprep.subr.bf16.mxu0 0
      %6187 = vmatpush1.bf16.msra.mxu0 0
      %6188 = vmatprep.subr.bf16.mxu0 0
      %6189 = vmatpush1.bf16.msra.mxu0 0
      %6190 = vmatprep.subr.bf16.mxu0 0
      %6191 = vmatpush1.bf16.msra.mxu0 0
      %6192 = vmatprep.subr.bf16.mxu0 0
      %6193 = vmatpush1.bf16.msra.mxu0 0
      %6194 = vmatprep.subr.bf16.mxu0 0
      %6195 = vmatpush1.bf16.msra.mxu0 0
      %6196 = vmatprep.subr.bf16.mxu0 0
      %6197 = vmatpush1.bf16.msra.mxu0 0
      %6198 = vmatprep.subr.bf16.mxu0 0
      %6199 = vmatpush1.bf16.msra.mxu0 0
      %6200 = vmatprep.subr.bf16.mxu0 0
      %6201 = vmatpush1.bf16.msra.mxu0 0
      %6202 = vmatprep.subr.bf16.mxu0 0
      %6203 = vmatpush1.bf16.msra.mxu0 0
      %6204 = vmatprep.subr.bf16.mxu0 0
      %6205 = vmatpush1.bf16.msra.mxu0 0
      %6206 = vmatprep.subr.bf16.mxu0 0
      %6207 = vmatpush1.bf16.msra.mxu0 0
      %6208 = vmatprep.subr.bf16.mxu0 0
      %6209 = vmatpush1.bf16.msra.mxu0 0
      %6210 = vmatprep.subr.bf16.mxu0 0
      %6211 = vmatpush1.bf16.msra.mxu0 0
      %6212 = vmatprep.subr.bf16.mxu0 0
      %6213 = vmatpush1.bf16.msra.mxu0 0
      %6214 = vmatprep.subr.bf16.mxu0 0
      %6215 = vmatpush1.bf16.msra.mxu0 0
      %6216 = vmatprep.mubr.bf16.mxu0 0
      %6217 = vmatmul.mubr.bf16.gmra.mrb[0].mxu0 %v6119
      %v6218 = vpop.f32.mrb[0].mxu0
      %v6219 = vadd.f32 %v5953, %v6218
      %v6220 = vpop.f32.mrb[0].mxu0
      %v6221 = vpop.f32.mrb[0].mxu0
      %v6222 = vadd.f32 %v5956, %v6221
      %v6223 = vpop.f32.mrb[0].mxu0
      %6224 = vmatprep.mubr.bf16.mxu0 0
      %6225 = vmatmul.mubr.bf16.gmra.mrb[0].mxu0 %v6122
      %v6226 = vpop.f32.mrb[0].mxu0
      %v6227 = vadd.f32 %v5961, %v6226
      %v6228 = vpop.f32.mrb[0].mxu0
      %v6229 = vpop.f32.mrb[0].mxu0
      %v6230 = vadd.f32 %v5964, %v6229
      %v6231 = vpop.f32.mrb[0].mxu0
      %6232 = vmatprep.mubr.bf16.mxu0 0
      %6233 = vmatmul.mubr.bf16.gmra.mrb[0].mxu0 %v6125
      %v6234 = vpop.f32.mrb[0].mxu0
      %v6235 = vadd.f32 %v5969, %v6234
      %v6236 = vpop.f32.mrb[0].mxu0
      %v6237 = vpop.f32.mrb[0].mxu0
      %v6238 = vadd.f32 %v5972, %v6237
      %v6239 = vpop.f32.mrb[0].mxu0
      %6240 = vmatprep.mubr.bf16.mxu0 0
      %6241 = vmatmul.mubr.bf16.gmra.mrb[0].mxu0 %v6128
      %v6242 = vpop.f32.mrb[0].mxu0
      %v6243 = vadd.f32 %v5977, %v6242
      %v6244 = vpop.f32.mrb[0].mxu0
      %v6245 = vpop.f32.mrb[0].mxu0
      %v6246 = vadd.f32 %v5980, %v6245
      %v6247 = vpop.f32.mrb[0].mxu0
      %6248 = vmatprep.mubr.bf16.mxu0 0
      %6249 = vmatmul.mubr.bf16.gmra.mrb[0].mxu0 %v6131
      %v6250 = vpop.f32.mrb[0].mxu0
      %v6251 = vadd.f32 %v5985, %v6250
      %v6252 = vpop.f32.mrb[0].mxu0
      %v6253 = vpop.f32.mrb[0].mxu0
      %v6254 = vadd.f32 %v5988, %v6253
      %v6255 = vpop.f32.mrb[0].mxu0
      %6256 = vmatprep.mubr.bf16.mxu0 0
      %6257 = vmatmul.mubr.bf16.gmra.mrb[0].mxu0 %v6134
      %v6258 = vpop.f32.mrb[0].mxu0
      %v6259 = vadd.f32 %v5993, %v6258
      %v6260 = vpop.f32.mrb[0].mxu0
      %v6261 = vpop.f32.mrb[0].mxu0
      %v6262 = vadd.f32 %v5996, %v6261
      %v6263 = vpop.f32.mrb[0].mxu0
      %6264 = vmatprep.mubr.bf16.mxu0 0
      %6265 = vmatmul.mubr.bf16.gmra.mrb[0].mxu0 %v6137
      %v6266 = vpop.f32.mrb[0].mxu0
      %v6267 = vadd.f32 %v6001, %v6266
      %v6268 = vpop.f32.mrb[0].mxu0
      %v6269 = vpop.f32.mrb[0].mxu0
      %v6270 = vadd.f32 %v6004, %v6269
      %v6271 = vpop.f32.mrb[0].mxu0
      %6272 = vmatprep.mubr.bf16.mxu0 0
      %6273 = vmatmul.mubr.bf16.gmra.mrb[0].mxu0 %v6140
      %v6274 = vpop.f32.mrb[0].mxu0
      %v6275 = vadd.f32 %v6009, %v6274
      %v6276 = vpop.f32.mrb[0].mxu0
      %v6277 = vpop.f32.mrb[0].mxu0
      %v6278 = vadd.f32 %v6012, %v6277
      %v6279 = vpop.f32.mrb[0].mxu0
      %6280 = vmatprep.mubr.bf16.mxu0 0
      %6281 = vmatmul.mubr.bf16.gmra.mrb[0].mxu0 %v6143
      %v6282 = vpop.f32.mrb[0].mxu0
      %v6283 = vadd.f32 %v6017, %v6282
      %v6284 = vpop.f32.mrb[0].mxu0
      %v6285 = vpop.f32.mrb[0].mxu0
      %v6286 = vadd.f32 %v6020, %v6285
      %v6287 = vpop.f32.mrb[0].mxu0
      %6288 = vmatprep.mubr.bf16.mxu0 0
      %6289 = vmatmul.mubr.bf16.gmra.mrb[0].mxu0 %v6146
      %v6290 = vpop.f32.mrb[0].mxu0
      %v6291 = vadd.f32 %v6025, %v6290
      %v6292 = vpop.f32.mrb[0].mxu0
      %v6293 = vpop.f32.mrb[0].mxu0
      %v6294 = vadd.f32 %v6028, %v6293
      %v6295 = vpop.f32.mrb[0].mxu0
      %6296 = vmatprep.mubr.bf16.mxu0 0
      %6297 = vmatmul.mubr.bf16.gmra.mrb[0].mxu0 %v6149
      %v6298 = vpop.f32.mrb[0].mxu0
      %v6299 = vadd.f32 %v6033, %v6298
      %v6300 = vpop.f32.mrb[0].mxu0
      %v6301 = vpop.f32.mrb[0].mxu0
      %v6302 = vadd.f32 %v6036, %v6301
      %v6303 = vpop.f32.mrb[0].mxu0
      %6304 = vmatprep.mubr.bf16.mxu0 0
      %6305 = vmatmul.mubr.bf16.gmra.mrb[0].mxu0 %v6152
      %v6306 = vpop.f32.mrb[0].mxu0
      %v6307 = vadd.f32 %v6041, %v6306
      %v6308 = vpop.f32.mrb[0].mxu0
      %v6309 = vpop.f32.mrb[0].mxu0
      %v6310 = vadd.f32 %v6044, %v6309
      %v6311 = vpop.f32.mrb[0].mxu0
      %6312 = vmatprep.mubr.bf16.mxu0 0
      %6313 = vmatmul.mubr.bf16.gmra.mrb[0].mxu0 %v6155
      %v6314 = vpop.f32.mrb[0].mxu0
      %v6315 = vadd.f32 %v6049, %v6314
      %v6316 = vpop.f32.mrb[0].mxu0
      %v6317 = vpop.f32.mrb[0].mxu0
      %v6318 = vadd.f32 %v6052, %v6317
      %v6319 = vpop.f32.mrb[0].mxu0
      %6320 = vmatprep.mubr.bf16.mxu0 0
      %6321 = vmatmul.mubr.bf16.gmra.mrb[0].mxu0 %v6158
      %v6322 = vpop.f32.mrb[0].mxu0
      %v6323 = vadd.f32 %v6057, %v6322
      %v6324 = vpop.f32.mrb[0].mxu0
      %v6325 = vpop.f32.mrb[0].mxu0
      %v6326 = vadd.f32 %v6060, %v6325
      %v6327 = vpop.f32.mrb[0].mxu0
      %6328 = vmatprep.mubr.bf16.mxu0 0
      %6329 = vmatmul.mubr.bf16.gmra.mrb[0].mxu0 %v6161
      %v6330 = vpop.f32.mrb[0].mxu0
      %v6331 = vadd.f32 %v6065, %v6330
      %v6332 = vpop.f32.mrb[0].mxu0
      %v6333 = vpop.f32.mrb[0].mxu0
      %v6334 = vadd.f32 %v6068, %v6333
      %v6335 = vpop.f32.mrb[0].mxu0
      %6336 = vmatprep.mubr.bf16.mxu0 0
      %6337 = vmatmul.mubr.bf16.gmra.mrb[0].mxu0 %v6164
      %v6338 = vpop.f32.mrb[0].mxu0
      %v6339 = vadd.f32 %v6073, %v6338
      %v6340 = vpop.f32.mrb[0].mxu0
      %v6341 = vpop.f32.mrb[0].mxu0
      %v6342 = vadd.f32 %v6076, %v6341
      %v6343 = vpop.f32.mrb[0].mxu0
      %6344 = vmatprep.mubr.bf16.mxu0 0
      %6345 = vmatmul.mubr.bf16.gmra.mrb[0].mxu0 %v6167
      %v6346 = vpop.f32.mrb[0].mxu0
      %v6347 = vadd.f32 %v6081, %v6346
      %v6348 = vpop.f32.mrb[0].mxu0
      %v6349 = vpop.f32.mrb[0].mxu0
      %v6350 = vadd.f32 %v6084, %v6349
      %v6351 = vpop.f32.mrb[0].mxu0
      %6352 = vmatprep.mubr.bf16.mxu0 0
      %6353 = vmatmul.mubr.bf16.gmra.mrb[0].mxu0 %v6170
      %v6354 = vpop.f32.mrb[0].mxu0
      %v6355 = vadd.f32 %v6089, %v6354
      %v6356 = vpop.f32.mrb[0].mxu0
      %v6357 = vpop.f32.mrb[0].mxu0
      %v6358 = vadd.f32 %v6092, %v6357
      %v6359 = vpop.f32.mrb[0].mxu0
      %6360 = vmatprep.mubr.bf16.mxu0 0
      %6361 = vmatmul.mubr.bf16.gmra.mrb[0].mxu0 %v6173
      %v6362 = vpop.f32.mrb[0].mxu0
      %v6363 = vadd.f32 %v6097, %v6362
      %v6364 = vpop.f32.mrb[0].mxu0
      %v6365 = vpop.f32.mrb[0].mxu0
      %v6366 = vadd.f32 %v6100, %v6365
      %v6367 = vpop.f32.mrb[0].mxu0
      %6368 = vmatprep.mubr.bf16.mxu0 0
      %6369 = vmatmul.mubr.bf16.gmra.mrb[0].mxu0 %v6176
      %v6370 = vpop.f32.mrb[0].mxu0
      %v6371 = vadd.f32 %v6105, %v6370
      %v6372 = vpop.f32.mrb[0].mxu0
      %v6373 = vpop.f32.mrb[0].mxu0
      %v6374 = vadd.f32 %v6108, %v6373
      %v6375 = vpop.f32.mrb[0].mxu0
      %6376 = vmatprep.mubr.bf16.mxu0 0
      %6377 = vmatmul.mubr.bf16.gmra.mrb[0].mxu0 %v6179
      %v6378 = vpop.f32.mrb[0].mxu0
      %v6379 = vadd.f32 %v6113, %v6378
      %v6380 = vpop.f32.mrb[0].mxu0
      %v6381 = vpop.f32.mrb[0].mxu0
      %v6382 = vpop.f32.mrb[0].mxu0
      %6383 = vdwg.mxu0
      %v6384 = vld [vmem:[#allocation2 + $0x7] sm:$0xff]
      %v6385 = vld [vmem:[#allocation2 + $0xf] sm:$0xff]
      %v6386 = vld [vmem:[#allocation2 + $0x17] sm:$0xff]
      %v6387 = vld [vmem:[#allocation2 + $0x1f] sm:$0xff]
      %v6388 = vld [vmem:[#allocation2 + $0x27] sm:$0xff]
      %v6389 = vld [vmem:[#allocation2 + $0x2f] sm:$0xff]
      %v6390 = vld [vmem:[#allocation2 + $0x37] sm:$0xff]
      %v6391 = vld [vmem:[#allocation2 + $0x3f] sm:$0xff]
      %v6392 = vld [vmem:[#allocation2 + $0x47] sm:$0xff]
      %v6393 = vld [vmem:[#allocation2 + $0x4f] sm:$0xff]
      %v6394 = vld [vmem:[#allocation2 + $0x57] sm:$0xff]
      %v6395 = vld [vmem:[#allocation2 + $0x5f] sm:$0xff]
      %v6396 = vld [vmem:[#allocation2 + $0x67] sm:$0xff]
      %v6397 = vld [vmem:[#allocation2 + $0x6f] sm:$0xff]
      %v6398 = vld [vmem:[#allocation2 + $0x77] sm:$0xff]
      %v6399 = vld [vmem:[#allocation2 + $0x7f] sm:$0xff]
      %v6400 = vld [vmem:[#allocation2 + $0x87] sm:$0xff]
      %v6401 = vld [vmem:[#allocation2 + $0x8f] sm:$0xff]
      %v6402 = vld [vmem:[#allocation2 + $0x97] sm:$0xff]
      %v6403 = vld [vmem:[#allocation2 + $0x9f] sm:$0xff]
      %v6404 = vld [vmem:[#allocation2 + $0xa7] sm:$0xff]
      %v6405 = vld [vmem:[#allocation2 + $0xaf] sm:$0xff]
      %v6406 = vld [vmem:[#allocation2 + $0xb7] sm:$0xff]
      %v6407 = vld [vmem:[#allocation2 + $0xbf] sm:$0xff]
      %v6408 = vld [vmem:[#allocation2 + $0xc7] sm:$0xff]
      %v6409 = vld [vmem:[#allocation2 + $0xcf] sm:$0xff]
      %v6410 = vld [vmem:[#allocation2 + $0xd7] sm:$0xff]
      %v6411 = vld [vmem:[#allocation2 + $0xdf] sm:$0xff]
      %v6412 = vld [vmem:[#allocation2 + $0xe7] sm:$0xff]
      %v6413 = vld [vmem:[#allocation2 + $0xef] sm:$0xff]
      %v6414 = vld [vmem:[#allocation2 + $0xf7] sm:$0xff]
      %v6415 = vld [vmem:[#allocation2 + $0xff] sm:$0xff]
      %v6416 = vld [vmem:[#allocation2 + $0x107] sm:$0xff]
      %v6417 = vld [vmem:[#allocation2 + $0x10f] sm:$0xff]
      %v6418 = vld [vmem:[#allocation2 + $0x117] sm:$0xff]
      %v6419 = vld [vmem:[#allocation2 + $0x11f] sm:$0xff]
      %v6420 = vld [vmem:[#allocation2 + $0x127] sm:$0xff]
      %v6421 = vld [vmem:[#allocation2 + $0x12f] sm:$0xff]
      %v6422 = vld [vmem:[#allocation2 + $0x137] sm:$0xff]
      %v6423 = vld [vmem:[#allocation2 + $0x13f] sm:$0xff]
      %v6424 = vld [vmem:[#allocation2 + $0x147] sm:$0xf]
      %v6425 = vpack.c.bf16 %v6385, %v6384
      %v6426 = vpack.c.bf16 %v6387, %v6386
      %v6427 = vpack.c.bf16 %v6389, %v6388
      %v6428 = vpack.c.bf16 %v6391, %v6390
      %v6429 = vpack.c.bf16 %v6393, %v6392
      %v6430 = vpack.c.bf16 %v6395, %v6394
      %v6431 = vpack.c.bf16 %v6397, %v6396
      %v6432 = vpack.c.bf16 %v6399, %v6398
      %v6433 = vpack.c.bf16 %v6401, %v6400
      %v6434 = vpack.c.bf16 %v6403, %v6402
      %v6435 = vpack.c.bf16 %v6405, %v6404
      %v6436 = vpack.c.bf16 %v6407, %v6406
      %v6437 = vpack.c.bf16 %v6409, %v6408
      %v6438 = vpack.c.bf16 %v6411, %v6410
      %v6439 = vpack.c.bf16 %v6413, %v6412
      %v6440 = vpack.c.bf16 %v6415, %v6414
      %v6441 = vpack.c.bf16 %v6417, %v6416
      %v6442 = vpack.c.bf16 %v6419, %v6418
      %v6443 = vpack.c.bf16 %v6421, %v6420
      %v6444 = vpack.c.bf16 %v6423, %v6422
      %v6445 = vpack.c.bf16 %v6424, %v6424
      %s6446 = scalar_lea.vmem %s8, 2
      %v6447 = vld [vmem:[%s6446] sm:$0x1]
      %v6449 = vsel %vm1715, %v6425, 0
      %v6452 = vsel %vm1715, %v6426, 0
      %v6455 = vsel %vm1715, %v6427, 0
      %v6458 = vsel %vm1715, %v6428, 0
      %v6461 = vsel %vm1715, %v6429, 0
      %v6464 = vsel %vm1715, %v6430, 0
      %v6467 = vsel %vm1715, %v6431, 0
      %v6470 = vsel %vm1715, %v6432, 0
      %v6473 = vsel %vm1715, %v6433, 0
      %v6476 = vsel %vm1715, %v6434, 0
      %v6479 = vsel %vm1715, %v6435, 0
      %v6482 = vsel %vm1715, %v6436, 0
      %v6485 = vsel %vm1715, %v6437, 0
      %v6488 = vsel %vm1715, %v6438, 0
      %v6491 = vsel %vm1715, %v6439, 0
      %v6494 = vsel %vm1715, %v6440, 0
      %v6497 = vsel %vm1715, %v6441, 0
      %v6500 = vsel %vm1715, %v6442, 0
      %v6503 = vsel %vm1715, %v6443, 0
      %v6506 = vsel %vm1715, %v6444, 0
      %v6509 = vsel %vm1715, %v6445, 0
      %v6512 = vsel %vm2241, %v6447, 0
      %6514 = vmatprep.subr.bf16.mxu0 0
      %6515 = vmatpush1.bf16.msra.mxu0 %v6512
      %6516 = vmatprep.subr.bf16.mxu0 0
      %6517 = vmatpush1.bf16.msra.mxu0 0
      %6518 = vmatprep.subr.bf16.mxu0 0
      %6519 = vmatpush1.bf16.msra.mxu0 0
      %6520 = vmatprep.subr.bf16.mxu0 0
      %6521 = vmatpush1.bf16.msra.mxu0 0
      %6522 = vmatprep.subr.bf16.mxu0 0
      %6523 = vmatpush1.bf16.msra.mxu0 0
      %6524 = vmatprep.subr.bf16.mxu0 0
      %6525 = vmatpush1.bf16.msra.mxu0 0
      %6526 = vmatprep.subr.bf16.mxu0 0
      %6527 = vmatpush1.bf16.msra.mxu0 0
      %6528 = vmatprep.subr.bf16.mxu0 0
      %6529 = vmatpush1.bf16.msra.mxu0 0
      %6530 = vmatprep.subr.bf16.mxu0 0
      %6531 = vmatpush1.bf16.msra.mxu0 0
      %6532 = vmatprep.subr.bf16.mxu0 0
      %6533 = vmatpush1.bf16.msra.mxu0 0
      %6534 = vmatprep.subr.bf16.mxu0 0
      %6535 = vmatpush1.bf16.msra.mxu0 0
      %6536 = vmatprep.subr.bf16.mxu0 0
      %6537 = vmatpush1.bf16.msra.mxu0 0
      %6538 = vmatprep.subr.bf16.mxu0 0
      %6539 = vmatpush1.bf16.msra.mxu0 0
      %6540 = vmatprep.subr.bf16.mxu0 0
      %6541 = vmatpush1.bf16.msra.mxu0 0
      %6542 = vmatprep.subr.bf16.mxu0 0
      %6543 = vmatpush1.bf16.msra.mxu0 0
      %6544 = vmatprep.subr.bf16.mxu0 0
      %6545 = vmatpush1.bf16.msra.mxu0 0
      %6546 = vmatprep.mubr.bf16.mxu0 0
      %6547 = vmatmul.mubr.bf16.gmra.mrb[0].mxu0 %v6449
      %v6548 = vpop.f32.mrb[0].mxu0
      %v6549 = vadd.f32 0.0, %v6548
      %v6550 = vpop.f32.mrb[0].mxu0
      %v6551 = vpop.f32.mrb[0].mxu0
      %v6552 = vadd.f32 0.0, %v6551
      %v6553 = vpop.f32.mrb[0].mxu0
      %6554 = vmatprep.mubr.bf16.mxu0 0
      %6555 = vmatmul.mubr.bf16.gmra.mrb[0].mxu0 %v6452
      %v6556 = vpop.f32.mrb[0].mxu0
      %v6557 = vadd.f32 0.0, %v6556
      %v6558 = vpop.f32.mrb[0].mxu0
      %v6559 = vpop.f32.mrb[0].mxu0
      %v6560 = vadd.f32 0.0, %v6559
      %v6561 = vpop.f32.mrb[0].mxu0
      %6562 = vmatprep.mubr.bf16.mxu0 0
      %6563 = vmatmul.mubr.bf16.gmra.mrb[0].mxu0 %v6455
      %v6564 = vpop.f32.mrb[0].mxu0
      %v6565 = vadd.f32 0.0, %v6564
      %v6566 = vpop.f32.mrb[0].mxu0
      %v6567 = vpop.f32.mrb[0].mxu0
      %v6568 = vadd.f32 0.0, %v6567
      %v6569 = vpop.f32.mrb[0].mxu0
      %6570 = vmatprep.mubr.bf16.mxu0 0
      %6571 = vmatmul.mubr.bf16.gmra.mrb[0].mxu0 %v6458
      %v6572 = vpop.f32.mrb[0].mxu0
      %v6573 = vadd.f32 0.0, %v6572
      %v6574 = vpop.f32.mrb[0].mxu0
      %v6575 = vpop.f32.mrb[0].mxu0
      %v6576 = vadd.f32 0.0, %v6575
      %v6577 = vpop.f32.mrb[0].mxu0
      %6578 = vmatprep.mubr.bf16.mxu0 0
      %6579 = vmatmul.mubr.bf16.gmra.mrb[0].mxu0 %v6461
      %v6580 = vpop.f32.mrb[0].mxu0
      %v6581 = vadd.f32 0.0, %v6580
      %v6582 = vpop.f32.mrb[0].mxu0
      %v6583 = vpop.f32.mrb[0].mxu0
      %v6584 = vadd.f32 0.0, %v6583
      %v6585 = vpop.f32.mrb[0].mxu0
      %6586 = vmatprep.mubr.bf16.mxu0 0
      %6587 = vmatmul.mubr.bf16.gmra.mrb[0].mxu0 %v6464
      %v6588 = vpop.f32.mrb[0].mxu0
      %v6589 = vadd.f32 0.0, %v6588
      %v6590 = vpop.f32.mrb[0].mxu0
      %v6591 = vpop.f32.mrb[0].mxu0
      %v6592 = vadd.f32 0.0, %v6591
      %v6593 = vpop.f32.mrb[0].mxu0
      %6594 = vmatprep.mubr.bf16.mxu0 0
      %6595 = vmatmul.mubr.bf16.gmra.mrb[0].mxu0 %v6467
      %v6596 = vpop.f32.mrb[0].mxu0
      %v6597 = vadd.f32 0.0, %v6596
      %v6598 = vpop.f32.mrb[0].mxu0
      %v6599 = vpop.f32.mrb[0].mxu0
      %v6600 = vadd.f32 0.0, %v6599
      %v6601 = vpop.f32.mrb[0].mxu0
      %6602 = vmatprep.mubr.bf16.mxu0 0
      %6603 = vmatmul.mubr.bf16.gmra.mrb[0].mxu0 %v6470
      %v6604 = vpop.f32.mrb[0].mxu0
      %v6605 = vadd.f32 0.0, %v6604
      %v6606 = vpop.f32.mrb[0].mxu0
      %v6607 = vpop.f32.mrb[0].mxu0
      %v6608 = vadd.f32 0.0, %v6607
      %v6609 = vpop.f32.mrb[0].mxu0
      %6610 = vmatprep.mubr.bf16.mxu0 0
      %6611 = vmatmul.mubr.bf16.gmra.mrb[0].mxu0 %v6473
      %v6612 = vpop.f32.mrb[0].mxu0
      %v6613 = vadd.f32 0.0, %v6612
      %v6614 = vpop.f32.mrb[0].mxu0
      %v6615 = vpop.f32.mrb[0].mxu0
      %v6616 = vadd.f32 0.0, %v6615
      %v6617 = vpop.f32.mrb[0].mxu0
      %6618 = vmatprep.mubr.bf16.mxu0 0
      %6619 = vmatmul.mubr.bf16.gmra.mrb[0].mxu0 %v6476
      %v6620 = vpop.f32.mrb[0].mxu0
      %v6621 = vadd.f32 0.0, %v6620
      %v6622 = vpop.f32.mrb[0].mxu0
      %v6623 = vpop.f32.mrb[0].mxu0
      %v6624 = vadd.f32 0.0, %v6623
      %v6625 = vpop.f32.mrb[0].mxu0
      %6626 = vmatprep.mubr.bf16.mxu0 0
      %6627 = vmatmul.mubr.bf16.gmra.mrb[0].mxu0 %v6479
      %v6628 = vpop.f32.mrb[0].mxu0
      %v6629 = vadd.f32 0.0, %v6628
      %v6630 = vpop.f32.mrb[0].mxu0
      %v6631 = vpop.f32.mrb[0].mxu0
      %v6632 = vadd.f32 0.0, %v6631
      %v6633 = vpop.f32.mrb[0].mxu0
      %6634 = vmatprep.mubr.bf16.mxu0 0
      %6635 = vmatmul.mubr.bf16.gmra.mrb[0].mxu0 %v6482
      %v6636 = vpop.f32.mrb[0].mxu0
      %v6637 = vadd.f32 0.0, %v6636
      %v6638 = vpop.f32.mrb[0].mxu0
      %v6639 = vpop.f32.mrb[0].mxu0
      %v6640 = vadd.f32 0.0, %v6639
      %v6641 = vpop.f32.mrb[0].mxu0
      %6642 = vmatprep.mubr.bf16.mxu0 0
      %6643 = vmatmul.mubr.bf16.gmra.mrb[0].mxu0 %v6485
      %v6644 = vpop.f32.mrb[0].mxu0
      %v6645 = vadd.f32 0.0, %v6644
      %v6646 = vpop.f32.mrb[0].mxu0
      %v6647 = vpop.f32.mrb[0].mxu0
      %v6648 = vadd.f32 0.0, %v6647
      %v6649 = vpop.f32.mrb[0].mxu0
      %6650 = vmatprep.mubr.bf16.mxu0 0
      %6651 = vmatmul.mubr.bf16.gmra.mrb[0].mxu0 %v6488
      %v6652 = vpop.f32.mrb[0].mxu0
      %v6653 = vadd.f32 0.0, %v6652
      %v6654 = vpop.f32.mrb[0].mxu0
      %v6655 = vpop.f32.mrb[0].mxu0
      %v6656 = vadd.f32 0.0, %v6655
      %v6657 = vpop.f32.mrb[0].mxu0
      %6658 = vmatprep.mubr.bf16.mxu0 0
      %6659 = vmatmul.mubr.bf16.gmra.mrb[0].mxu0 %v6491
      %v6660 = vpop.f32.mrb[0].mxu0
      %v6661 = vadd.f32 0.0, %v6660
      %v6662 = vpop.f32.mrb[0].mxu0
      %v6663 = vpop.f32.mrb[0].mxu0
      %v6664 = vadd.f32 0.0, %v6663
      %v6665 = vpop.f32.mrb[0].mxu0
      %6666 = vmatprep.mubr.bf16.mxu0 0
      %6667 = vmatmul.mubr.bf16.gmra.mrb[0].mxu0 %v6494
      %v6668 = vpop.f32.mrb[0].mxu0
      %v6669 = vadd.f32 0.0, %v6668
      %v6670 = vpop.f32.mrb[0].mxu0
      %v6671 = vpop.f32.mrb[0].mxu0
      %v6672 = vadd.f32 0.0, %v6671
      %v6673 = vpop.f32.mrb[0].mxu0
      %6674 = vmatprep.mubr.bf16.mxu0 0
      %6675 = vmatmul.mubr.bf16.gmra.mrb[0].mxu0 %v6497
      %v6676 = vpop.f32.mrb[0].mxu0
      %v6677 = vadd.f32 0.0, %v6676
      %v6678 = vpop.f32.mrb[0].mxu0
      %v6679 = vpop.f32.mrb[0].mxu0
      %v6680 = vadd.f32 0.0, %v6679
      %v6681 = vpop.f32.mrb[0].mxu0
      %6682 = vmatprep.mubr.bf16.mxu0 0
      %6683 = vmatmul.mubr.bf16.gmra.mrb[0].mxu0 %v6500
      %v6684 = vpop.f32.mrb[0].mxu0
      %v6685 = vadd.f32 0.0, %v6684
      %v6686 = vpop.f32.mrb[0].mxu0
      %v6687 = vpop.f32.mrb[0].mxu0
      %v6688 = vadd.f32 0.0, %v6687
      %v6689 = vpop.f32.mrb[0].mxu0
      %6690 = vmatprep.mubr.bf16.mxu0 0
      %6691 = vmatmul.mubr.bf16.gmra.mrb[0].mxu0 %v6503
      %v6692 = vpop.f32.mrb[0].mxu0
      %v6693 = vadd.f32 0.0, %v6692
      %v6694 = vpop.f32.mrb[0].mxu0
      %v6695 = vpop.f32.mrb[0].mxu0
      %v6696 = vadd.f32 0.0, %v6695
      %v6697 = vpop.f32.mrb[0].mxu0
      %6698 = vmatprep.mubr.bf16.mxu0 0
      %6699 = vmatmul.mubr.bf16.gmra.mrb[0].mxu0 %v6506
      %v6700 = vpop.f32.mrb[0].mxu0
      %v6701 = vadd.f32 0.0, %v6700
      %v6702 = vpop.f32.mrb[0].mxu0
      %v6703 = vpop.f32.mrb[0].mxu0
      %v6704 = vadd.f32 0.0, %v6703
      %v6705 = vpop.f32.mrb[0].mxu0
      %6706 = vmatprep.mubr.bf16.mxu0 0
      %6707 = vmatmul.mubr.bf16.gmra.mrb[0].mxu0 %v6509
      %v6708 = vpop.f32.mrb[0].mxu0
      %v6709 = vadd.f32 0.0, %v6708
      %v6710 = vpop.f32.mrb[0].mxu0
      %v6711 = vpop.f32.mrb[0].mxu0
      %v6712 = vpop.f32.mrb[0].mxu0
      %6713 = vdwg.mxu0
      %v6714 = vadd.f32 %v6219, %v6549
      %v6715 = vadd.f32 %v6222, %v6552
      %v6716 = vadd.f32 %v6227, %v6557
      %v6717 = vadd.f32 %v6230, %v6560
      %v6718 = vadd.f32 %v6235, %v6565
      %v6719 = vadd.f32 %v6238, %v6568
      %v6720 = vadd.f32 %v6243, %v6573
      %v6721 = vadd.f32 %v6246, %v6576
      %v6722 = vadd.f32 %v6251, %v6581
      %v6723 = vadd.f32 %v6254, %v6584
      %v6724 = vadd.f32 %v6259, %v6589
      %v6725 = vadd.f32 %v6262, %v6592
      %v6726 = vadd.f32 %v6267, %v6597
      %v6727 = vadd.f32 %v6270, %v6600
      %v6728 = vadd.f32 %v6275, %v6605
      %v6729 = vadd.f32 %v6278, %v6608
      %v6730 = vadd.f32 %v6283, %v6613
      %v6731 = vadd.f32 %v6286, %v6616
      %v6732 = vadd.f32 %v6291, %v6621
      %v6733 = vadd.f32 %v6294, %v6624
      %v6734 = vadd.f32 %v6299, %v6629
      %v6735 = vadd.f32 %v6302, %v6632
      %v6736 = vadd.f32 %v6307, %v6637
      %v6737 = vadd.f32 %v6310, %v6640
      %v6738 = vadd.f32 %v6315, %v6645
      %v6739 = vadd.f32 %v6318, %v6648
      %v6740 = vadd.f32 %v6323, %v6653
      %v6741 = vadd.f32 %v6326, %v6656
      %v6742 = vadd.f32 %v6331, %v6661
      %v6743 = vadd.f32 %v6334, %v6664
      %v6744 = vadd.f32 %v6339, %v6669
      %v6745 = vadd.f32 %v6342, %v6672
      %v6746 = vadd.f32 %v6347, %v6677
      %v6747 = vadd.f32 %v6350, %v6680
      %v6748 = vadd.f32 %v6355, %v6685
      %v6749 = vadd.f32 %v6358, %v6688
      %v6750 = vadd.f32 %v6363, %v6693
      %v6751 = vadd.f32 %v6366, %v6696
      %v6752 = vadd.f32 %v6371, %v6701
      %v6753 = vadd.f32 %v6374, %v6704
      %v6754 = vadd.f32 %v6379, %v6709
      %v6755 = vld [vmem:[#allocation2 + $0x17] sm:$0xff]
      %v6756 = vld [vmem:[#allocation2 + $0x1f] sm:$0xff]
      %v6757 = vld [vmem:[#allocation2 + $0x27] sm:$0xff]
      %v6758 = vld [vmem:[#allocation2 + $0x2f] sm:$0xff]
      %v6759 = vld [vmem:[#allocation2 + $0x37] sm:$0xff]
      %v6760 = vld [vmem:[#allocation2 + $0x3f] sm:$0xff]
      %v6761 = vld [vmem:[#allocation2 + $0x47] sm:$0xff]
      %v6762 = vld [vmem:[#allocation2 + $0x4f] sm:$0xff]
      %v6763 = vld [vmem:[#allocation2 + $0x57] sm:$0xff]
      %v6764 = vld [vmem:[#allocation2 + $0x5f] sm:$0xff]
      %v6765 = vld [vmem:[#allocation2 + $0x67] sm:$0xff]
      %v6766 = vld [vmem:[#allocation2 + $0x6f] sm:$0xff]
      %v6767 = vld [vmem:[#allocation2 + $0x77] sm:$0xff]
      %v6768 = vld [vmem:[#allocation2 + $0x7f] sm:$0xff]
      %v6769 = vld [vmem:[#allocation2 + $0x87] sm:$0xff]
      %v6770 = vld [vmem:[#allocation2 + $0x8f] sm:$0xff]
      %v6771 = vld [vmem:[#allocation2 + $0x97] sm:$0xff]
      %v6772 = vld [vmem:[#allocation2 + $0x9f] sm:$0xff]
      %v6773 = vld [vmem:[#allocation2 + $0xa7] sm:$0xff]
      %v6774 = vld [vmem:[#allocation2 + $0xaf] sm:$0xff]
      %v6775 = vld [vmem:[#allocation2 + $0xb7] sm:$0xff]
      %v6776 = vld [vmem:[#allocation2 + $0xbf] sm:$0xff]
      %v6777 = vld [vmem:[#allocation2 + $0xc7] sm:$0xff]
      %v6778 = vld [vmem:[#allocation2 + $0xcf] sm:$0xff]
      %v6779 = vld [vmem:[#allocation2 + $0xd7] sm:$0xff]
      %v6780 = vld [vmem:[#allocation2 + $0xdf] sm:$0xff]
      %v6781 = vld [vmem:[#allocation2 + $0xe7] sm:$0xff]
      %v6782 = vld [vmem:[#allocation2 + $0xef] sm:$0xff]
      %v6783 = vld [vmem:[#allocation2 + $0xf7] sm:$0xff]
      %v6784 = vld [vmem:[#allocation2 + $0xff] sm:$0xff]
      %v6785 = vld [vmem:[#allocation2 + $0x107] sm:$0xff]
      %v6786 = vld [vmem:[#allocation2 + $0x10f] sm:$0xff]
      %v6787 = vld [vmem:[#allocation2 + $0x117] sm:$0xff]
      %v6788 = vld [vmem:[#allocation2 + $0x11f] sm:$0xff]
      %v6789 = vld [vmem:[#allocation2 + $0x127] sm:$0xff]
      %v6790 = vld [vmem:[#allocation2 + $0x12f] sm:$0xff]
      %v6791 = vld [vmem:[#allocation2 + $0x137] sm:$0xff]
      %v6792 = vld [vmem:[#allocation2 + $0x13f] sm:$0xff]
      %v6793 = vld [vmem:[#allocation2 + $0x147] sm:$0xff]
      %v6794 = vld [vmem:[#allocation2 + $0x14f] sm:$0xff]
      %v6795 = vld [vmem:[#allocation2 + $0x157] sm:$0xf]
      %v6796 = vpack.c.bf16 %v6756, %v6755
      %v6797 = vpack.c.bf16 %v6758, %v6757
      %v6798 = vpack.c.bf16 %v6760, %v6759
      %v6799 = vpack.c.bf16 %v6762, %v6761
      %v6800 = vpack.c.bf16 %v6764, %v6763
      %v6801 = vpack.c.bf16 %v6766, %v6765
      %v6802 = vpack.c.bf16 %v6768, %v6767
      %v6803 = vpack.c.bf16 %v6770, %v6769
      %v6804 = vpack.c.bf16 %v6772, %v6771
      %v6805 = vpack.c.bf16 %v6774, %v6773
      %v6806 = vpack.c.bf16 %v6776, %v6775
      %v6807 = vpack.c.bf16 %v6778, %v6777
      %v6808 = vpack.c.bf16 %v6780, %v6779
      %v6809 = vpack.c.bf16 %v6782, %v6781
      %v6810 = vpack.c.bf16 %v6784, %v6783
      %v6811 = vpack.c.bf16 %v6786, %v6785
      %v6812 = vpack.c.bf16 %v6788, %v6787
      %v6813 = vpack.c.bf16 %v6790, %v6789
      %v6814 = vpack.c.bf16 %v6792, %v6791
      %v6815 = vpack.c.bf16 %v6794, %v6793
      %v6816 = vpack.c.bf16 %v6795, %v6795
      %s6817 = scalar_lea.vmem %s8, 3
      %v6818 = vld [vmem:[%s6817] sm:$0x1]
      %v6820 = vsel %vm1715, %v6796, 0
      %v6823 = vsel %vm1715, %v6797, 0
      %v6826 = vsel %vm1715, %v6798, 0
      %v6829 = vsel %vm1715, %v6799, 0
      %v6832 = vsel %vm1715, %v6800, 0
      %v6835 = vsel %vm1715, %v6801, 0
      %v6838 = vsel %vm1715, %v6802, 0
      %v6841 = vsel %vm1715, %v6803, 0
      %v6844 = vsel %vm1715, %v6804, 0
      %v6847 = vsel %vm1715, %v6805, 0
      %v6850 = vsel %vm1715, %v6806, 0
      %v6853 = vsel %vm1715, %v6807, 0
      %v6856 = vsel %vm1715, %v6808, 0
      %v6859 = vsel %vm1715, %v6809, 0
      %v6862 = vsel %vm1715, %v6810, 0
      %v6865 = vsel %vm1715, %v6811, 0
      %v6868 = vsel %vm1715, %v6812, 0
      %v6871 = vsel %vm1715, %v6813, 0
      %v6874 = vsel %vm1715, %v6814, 0
      %v6877 = vsel %vm1715, %v6815, 0
      %v6880 = vsel %vm1715, %v6816, 0
      %v6883 = vsel %vm2241, %v6818, 0
      %6885 = vmatprep.subr.bf16.mxu0 0
      %6886 = vmatpush1.bf16.msra.mxu0 %v6883
      %6887 = vmatprep.subr.bf16.mxu0 0
      %6888 = vmatpush1.bf16.msra.mxu0 0
      %6889 = vmatprep.subr.bf16.mxu0 0
      %6890 = vmatpush1.bf16.msra.mxu0 0
      %6891 = vmatprep.subr.bf16.mxu0 0
      %6892 = vmatpush1.bf16.msra.mxu0 0
      %6893 = vmatprep.subr.bf16.mxu0 0
      %6894 = vmatpush1.bf16.msra.mxu0 0
      %6895 = vmatprep.subr.bf16.mxu0 0
      %6896 = vmatpush1.bf16.msra.mxu0 0
      %6897 = vmatprep.subr.bf16.mxu0 0
      %6898 = vmatpush1.bf16.msra.mxu0 0
      %6899 = vmatprep.subr.bf16.mxu0 0
      %6900 = vmatpush1.bf16.msra.mxu0 0
      %6901 = vmatprep.subr.bf16.mxu0 0
      %6902 = vmatpush1.bf16.msra.mxu0 0
      %6903 = vmatprep.subr.bf16.mxu0 0
      %6904 = vmatpush1.bf16.msra.mxu0 0
      %6905 = vmatprep.subr.bf16.mxu0 0
      %6906 = vmatpush1.bf16.msra.mxu0 0
      %6907 = vmatprep.subr.bf16.mxu0 0
      %6908 = vmatpush1.bf16.msra.mxu0 0
      %6909 = vmatprep.subr.bf16.mxu0 0
      %6910 = vmatpush1.bf16.msra.mxu0 0
      %6911 = vmatprep.subr.bf16.mxu0 0
      %6912 = vmatpush1.bf16.msra.mxu0 0
      %6913 = vmatprep.subr.bf16.mxu0 0
      %6914 = vmatpush1.bf16.msra.mxu0 0
      %6915 = vmatprep.subr.bf16.mxu0 0
      %6916 = vmatpush1.bf16.msra.mxu0 0
      %6917 = vmatprep.mubr.bf16.mxu0 0
      %6918 = vmatmul.mubr.bf16.gmra.mrb[0].mxu0 %v6820
      %v6919 = vpop.f32.mrb[0].mxu0
      %v6920 = vadd.f32 0.0, %v6919
      %v6921 = vpop.f32.mrb[0].mxu0
      %v6922 = vpop.f32.mrb[0].mxu0
      %v6923 = vadd.f32 0.0, %v6922
      %v6924 = vpop.f32.mrb[0].mxu0
      %6925 = vmatprep.mubr.bf16.mxu0 0
      %6926 = vmatmul.mubr.bf16.gmra.mrb[0].mxu0 %v6823
      %v6927 = vpop.f32.mrb[0].mxu0
      %v6928 = vadd.f32 0.0, %v6927
      %v6929 = vpop.f32.mrb[0].mxu0
      %v6930 = vpop.f32.mrb[0].mxu0
      %v6931 = vadd.f32 0.0, %v6930
      %v6932 = vpop.f32.mrb[0].mxu0
      %6933 = vmatprep.mubr.bf16.mxu0 0
      %6934 = vmatmul.mubr.bf16.gmra.mrb[0].mxu0 %v6826
      %v6935 = vpop.f32.mrb[0].mxu0
      %v6936 = vadd.f32 0.0, %v6935
      %v6937 = vpop.f32.mrb[0].mxu0
      %v6938 = vpop.f32.mrb[0].mxu0
      %v6939 = vadd.f32 0.0, %v6938
      %v6940 = vpop.f32.mrb[0].mxu0
      %6941 = vmatprep.mubr.bf16.mxu0 0
      %6942 = vmatmul.mubr.bf16.gmra.mrb[0].mxu0 %v6829
      %v6943 = vpop.f32.mrb[0].mxu0
      %v6944 = vadd.f32 0.0, %v6943
      %v6945 = vpop.f32.mrb[0].mxu0
      %v6946 = vpop.f32.mrb[0].mxu0
      %v6947 = vadd.f32 0.0, %v6946
      %v6948 = vpop.f32.mrb[0].mxu0
      %6949 = vmatprep.mubr.bf16.mxu0 0
      %6950 = vmatmul.mubr.bf16.gmra.mrb[0].mxu0 %v6832
      %v6951 = vpop.f32.mrb[0].mxu0
      %v6952 = vadd.f32 0.0, %v6951
      %v6953 = vpop.f32.mrb[0].mxu0
      %v6954 = vpop.f32.mrb[0].mxu0
      %v6955 = vadd.f32 0.0, %v6954
      %v6956 = vpop.f32.mrb[0].mxu0
      %6957 = vmatprep.mubr.bf16.mxu0 0
      %6958 = vmatmul.mubr.bf16.gmra.mrb[0].mxu0 %v6835
      %v6959 = vpop.f32.mrb[0].mxu0
      %v6960 = vadd.f32 0.0, %v6959
      %v6961 = vpop.f32.mrb[0].mxu0
      %v6962 = vpop.f32.mrb[0].mxu0
      %v6963 = vadd.f32 0.0, %v6962
      %v6964 = vpop.f32.mrb[0].mxu0
      %6965 = vmatprep.mubr.bf16.mxu0 0
      %6966 = vmatmul.mubr.bf16.gmra.mrb[0].mxu0 %v6838
      %v6967 = vpop.f32.mrb[0].mxu0
      %v6968 = vadd.f32 0.0, %v6967
      %v6969 = vpop.f32.mrb[0].mxu0
      %v6970 = vpop.f32.mrb[0].mxu0
      %v6971 = vadd.f32 0.0, %v6970
      %v6972 = vpop.f32.mrb[0].mxu0
      %6973 = vmatprep.mubr.bf16.mxu0 0
      %6974 = vmatmul.mubr.bf16.gmra.mrb[0].mxu0 %v6841
      %v6975 = vpop.f32.mrb[0].mxu0
      %v6976 = vadd.f32 0.0, %v6975
      %v6977 = vpop.f32.mrb[0].mxu0
      %v6978 = vpop.f32.mrb[0].mxu0
      %v6979 = vadd.f32 0.0, %v6978
      %v6980 = vpop.f32.mrb[0].mxu0
      %6981 = vmatprep.mubr.bf16.mxu0 0
      %6982 = vmatmul.mubr.bf16.gmra.mrb[0].mxu0 %v6844
      %v6983 = vpop.f32.mrb[0].mxu0
      %v6984 = vadd.f32 0.0, %v6983
      %v6985 = vpop.f32.mrb[0].mxu0
      %v6986 = vpop.f32.mrb[0].mxu0
      %v6987 = vadd.f32 0.0, %v6986
      %v6988 = vpop.f32.mrb[0].mxu0
      %6989 = vmatprep.mubr.bf16.mxu0 0
      %6990 = vmatmul.mubr.bf16.gmra.mrb[0].mxu0 %v6847
      %v6991 = vpop.f32.mrb[0].mxu0
      %v6992 = vadd.f32 0.0, %v6991
      %v6993 = vpop.f32.mrb[0].mxu0
      %v6994 = vpop.f32.mrb[0].mxu0
      %v6995 = vadd.f32 0.0, %v6994
      %v6996 = vpop.f32.mrb[0].mxu0
      %6997 = vmatprep.mubr.bf16.mxu0 0
      %6998 = vmatmul.mubr.bf16.gmra.mrb[0].mxu0 %v6850
      %v6999 = vpop.f32.mrb[0].mxu0
      %v7000 = vadd.f32 0.0, %v6999
      %v7001 = vpop.f32.mrb[0].mxu0
      %v7002 = vpop.f32.mrb[0].mxu0
      %v7003 = vadd.f32 0.0, %v7002
      %v7004 = vpop.f32.mrb[0].mxu0
      %7005 = vmatprep.mubr.bf16.mxu0 0
      %7006 = vmatmul.mubr.bf16.gmra.mrb[0].mxu0 %v6853
      %v7007 = vpop.f32.mrb[0].mxu0
      %v7008 = vadd.f32 0.0, %v7007
      %v7009 = vpop.f32.mrb[0].mxu0
      %v7010 = vpop.f32.mrb[0].mxu0
      %v7011 = vadd.f32 0.0, %v7010
      %v7012 = vpop.f32.mrb[0].mxu0
      %7013 = vmatprep.mubr.bf16.mxu0 0
      %7014 = vmatmul.mubr.bf16.gmra.mrb[0].mxu0 %v6856
      %v7015 = vpop.f32.mrb[0].mxu0
      %v7016 = vadd.f32 0.0, %v7015
      %v7017 = vpop.f32.mrb[0].mxu0
      %v7018 = vpop.f32.mrb[0].mxu0
      %v7019 = vadd.f32 0.0, %v7018
      %v7020 = vpop.f32.mrb[0].mxu0
      %7021 = vmatprep.mubr.bf16.mxu0 0
      %7022 = vmatmul.mubr.bf16.gmra.mrb[0].mxu0 %v6859
      %v7023 = vpop.f32.mrb[0].mxu0
      %v7024 = vadd.f32 0.0, %v7023
      %v7025 = vpop.f32.mrb[0].mxu0
      %v7026 = vpop.f32.mrb[0].mxu0
      %v7027 = vadd.f32 0.0, %v7026
      %v7028 = vpop.f32.mrb[0].mxu0
      %7029 = vmatprep.mubr.bf16.mxu0 0
      %7030 = vmatmul.mubr.bf16.gmra.mrb[0].mxu0 %v6862
      %v7031 = vpop.f32.mrb[0].mxu0
      %v7032 = vadd.f32 0.0, %v7031
      %v7033 = vpop.f32.mrb[0].mxu0
      %v7034 = vpop.f32.mrb[0].mxu0
      %v7035 = vadd.f32 0.0, %v7034
      %v7036 = vpop.f32.mrb[0].mxu0
      %7037 = vmatprep.mubr.bf16.mxu0 0
      %7038 = vmatmul.mubr.bf16.gmra.mrb[0].mxu0 %v6865
      %v7039 = vpop.f32.mrb[0].mxu0
      %v7040 = vadd.f32 0.0, %v7039
      %v7041 = vpop.f32.mrb[0].mxu0
      %v7042 = vpop.f32.mrb[0].mxu0
      %v7043 = vadd.f32 0.0, %v7042
      %v7044 = vpop.f32.mrb[0].mxu0
      %7045 = vmatprep.mubr.bf16.mxu0 0
      %7046 = vmatmul.mubr.bf16.gmra.mrb[0].mxu0 %v6868
      %v7047 = vpop.f32.mrb[0].mxu0
      %v7048 = vadd.f32 0.0, %v7047
      %v7049 = vpop.f32.mrb[0].mxu0
      %v7050 = vpop.f32.mrb[0].mxu0
      %v7051 = vadd.f32 0.0, %v7050
      %v7052 = vpop.f32.mrb[0].mxu0
      %7053 = vmatprep.mubr.bf16.mxu0 0
      %7054 = vmatmul.mubr.bf16.gmra.mrb[0].mxu0 %v6871
      %v7055 = vpop.f32.mrb[0].mxu0
      %v7056 = vadd.f32 0.0, %v7055
      %v7057 = vpop.f32.mrb[0].mxu0
      %v7058 = vpop.f32.mrb[0].mxu0
      %v7059 = vadd.f32 0.0, %v7058
      %v7060 = vpop.f32.mrb[0].mxu0
      %7061 = vmatprep.mubr.bf16.mxu0 0
      %7062 = vmatmul.mubr.bf16.gmra.mrb[0].mxu0 %v6874
      %v7063 = vpop.f32.mrb[0].mxu0
      %v7064 = vadd.f32 0.0, %v7063
      %v7065 = vpop.f32.mrb[0].mxu0
      %v7066 = vpop.f32.mrb[0].mxu0
      %v7067 = vadd.f32 0.0, %v7066
      %v7068 = vpop.f32.mrb[0].mxu0
      %7069 = vmatprep.mubr.bf16.mxu0 0
      %7070 = vmatmul.mubr.bf16.gmra.mrb[0].mxu0 %v6877
      %v7071 = vpop.f32.mrb[0].mxu0
      %v7072 = vadd.f32 0.0, %v7071
      %v7073 = vpop.f32.mrb[0].mxu0
      %v7074 = vpop.f32.mrb[0].mxu0
      %v7075 = vadd.f32 0.0, %v7074
      %v7076 = vpop.f32.mrb[0].mxu0
      %7077 = vmatprep.mubr.bf16.mxu0 0
      %7078 = vmatmul.mubr.bf16.gmra.mrb[0].mxu0 %v6880
      %v7079 = vpop.f32.mrb[0].mxu0
      %v7080 = vadd.f32 0.0, %v7079
      %v7081 = vpop.f32.mrb[0].mxu0
      %v7082 = vpop.f32.mrb[0].mxu0
      %v7083 = vpop.f32.mrb[0].mxu0
      %7084 = vdwg.mxu0
      %v7085 = vadd.f32 %v6714, %v6920
      %v7086 = vadd.f32 %v6715, %v6923
      %v7087 = vadd.f32 %v6716, %v6928
      %v7088 = vadd.f32 %v6717, %v6931
      %v7089 = vadd.f32 %v6718, %v6936
      %v7090 = vadd.f32 %v6719, %v6939
      %v7091 = vadd.f32 %v6720, %v6944
      %v7092 = vadd.f32 %v6721, %v6947
      %v7093 = vadd.f32 %v6722, %v6952
      %v7094 = vadd.f32 %v6723, %v6955
      %v7095 = vadd.f32 %v6724, %v6960
      %v7096 = vadd.f32 %v6725, %v6963
      %v7097 = vadd.f32 %v6726, %v6968
      %v7098 = vadd.f32 %v6727, %v6971
      %v7099 = vadd.f32 %v6728, %v6976
      %v7100 = vadd.f32 %v6729, %v6979
      %v7101 = vadd.f32 %v6730, %v6984
      %v7102 = vadd.f32 %v6731, %v6987
      %v7103 = vadd.f32 %v6732, %v6992
      %v7104 = vadd.f32 %v6733, %v6995
      %v7105 = vadd.f32 %v6734, %v7000
      %v7106 = vadd.f32 %v6735, %v7003
      %v7107 = vadd.f32 %v6736, %v7008
      %v7108 = vadd.f32 %v6737, %v7011
      %v7109 = vadd.f32 %v6738, %v7016
      %v7110 = vadd.f32 %v6739, %v7019
      %v7111 = vadd.f32 %v6740, %v7024
      %v7112 = vadd.f32 %v6741, %v7027
      %v7113 = vadd.f32 %v6742, %v7032
      %v7114 = vadd.f32 %v6743, %v7035
      %v7115 = vadd.f32 %v6744, %v7040
      %v7116 = vadd.f32 %v6745, %v7043
      %v7117 = vadd.f32 %v6746, %v7048
      %v7118 = vadd.f32 %v6747, %v7051
      %v7119 = vadd.f32 %v6748, %v7056
      %v7120 = vadd.f32 %v6749, %v7059
      %v7121 = vadd.f32 %v6750, %v7064
      %v7122 = vadd.f32 %v6751, %v7067
      %v7123 = vadd.f32 %v6752, %v7072
      %v7124 = vadd.f32 %v6753, %v7075
      %v7125 = vadd.f32 %v6754, %v7080
      %v7126 = vld [vmem:[#allocation2 + $0x18] sm:$0xff]
      %v7127 = vld [vmem:[#allocation2 + $0x20] sm:$0xff]
      %v7128 = vld [vmem:[#allocation2 + $0x28] sm:$0xff]
      %v7129 = vld [vmem:[#allocation2 + $0x30] sm:$0xff]
      %v7130 = vld [vmem:[#allocation2 + $0x38] sm:$0xff]
      %v7131 = vld [vmem:[#allocation2 + $0x40] sm:$0xff]
      %v7132 = vld [vmem:[#allocation2 + $0x48] sm:$0xff]
      %v7133 = vld [vmem:[#allocation2 + $0x50] sm:$0xff]
      %v7134 = vld [vmem:[#allocation2 + $0x58] sm:$0xff]
      %v7135 = vld [vmem:[#allocation2 + $0x60] sm:$0xff]
      %v7136 = vld [vmem:[#allocation2 + $0x68] sm:$0xff]
      %v7137 = vld [vmem:[#allocation2 + $0x70] sm:$0xff]
      %v7138 = vld [vmem:[#allocation2 + $0x78] sm:$0xff]
      %v7139 = vld [vmem:[#allocation2 + $0x80] sm:$0xff]
      %v7140 = vld [vmem:[#allocation2 + $0x88] sm:$0xff]
      %v7141 = vld [vmem:[#allocation2 + $0x90] sm:$0xff]
      %v7142 = vld [vmem:[#allocation2 + $0x98] sm:$0xff]
      %v7143 = vld [vmem:[#allocation2 + $0xa0] sm:$0xff]
      %v7144 = vld [vmem:[#allocation2 + $0xa8] sm:$0xff]
      %v7145 = vld [vmem:[#allocation2 + $0xb0] sm:$0xff]
      %v7146 = vld [vmem:[#allocation2 + $0xb8] sm:$0xff]
      %v7147 = vld [vmem:[#allocation2 + $0xc0] sm:$0xff]
      %v7148 = vld [vmem:[#allocation2 + $0xc8] sm:$0xff]
      %v7149 = vld [vmem:[#allocation2 + $0xd0] sm:$0xff]
      %v7150 = vld [vmem:[#allocation2 + $0xd8] sm:$0xff]
      %v7151 = vld [vmem:[#allocation2 + $0xe0] sm:$0xff]
      %v7152 = vld [vmem:[#allocation2 + $0xe8] sm:$0xff]
      %v7153 = vld [vmem:[#allocation2 + $0xf0] sm:$0xff]
      %v7154 = vld [vmem:[#allocation2 + $0xf8] sm:$0xff]
      %v7155 = vld [vmem:[#allocation2 + $0x100] sm:$0xff]
      %v7156 = vld [vmem:[#allocation2 + $0x108] sm:$0xff]
      %v7157 = vld [vmem:[#allocation2 + $0x110] sm:$0xff]
      %v7158 = vld [vmem:[#allocation2 + $0x118] sm:$0xff]
      %v7159 = vld [vmem:[#allocation2 + $0x120] sm:$0xff]
      %v7160 = vld [vmem:[#allocation2 + $0x128] sm:$0xff]
      %v7161 = vld [vmem:[#allocation2 + $0x130] sm:$0xff]
      %v7162 = vld [vmem:[#allocation2 + $0x138] sm:$0xff]
      %v7163 = vld [vmem:[#allocation2 + $0x140] sm:$0xff]
      %v7164 = vld [vmem:[#allocation2 + $0x148] sm:$0xff]
      %v7165 = vld [vmem:[#allocation2 + $0x150] sm:$0xff]
      %v7166 = vld [vmem:[#allocation2 + $0x158] sm:$0xf]
      %v7167 = vpack.c.bf16 %v7127, %v7126
      %v7168 = vpack.c.bf16 %v7129, %v7128
      %v7169 = vpack.c.bf16 %v7131, %v7130
      %v7170 = vpack.c.bf16 %v7133, %v7132
      %v7171 = vpack.c.bf16 %v7135, %v7134
      %v7172 = vpack.c.bf16 %v7137, %v7136
      %v7173 = vpack.c.bf16 %v7139, %v7138
      %v7174 = vpack.c.bf16 %v7141, %v7140
      %v7175 = vpack.c.bf16 %v7143, %v7142
      %v7176 = vpack.c.bf16 %v7145, %v7144
      %v7177 = vpack.c.bf16 %v7147, %v7146
      %v7178 = vpack.c.bf16 %v7149, %v7148
      %v7179 = vpack.c.bf16 %v7151, %v7150
      %v7180 = vpack.c.bf16 %v7153, %v7152
      %v7181 = vpack.c.bf16 %v7155, %v7154
      %v7182 = vpack.c.bf16 %v7157, %v7156
      %v7183 = vpack.c.bf16 %v7159, %v7158
      %v7184 = vpack.c.bf16 %v7161, %v7160
      %v7185 = vpack.c.bf16 %v7163, %v7162
      %v7186 = vpack.c.bf16 %v7165, %v7164
      %v7187 = vpack.c.bf16 %v7166, %v7166
      %s7188 = scalar_lea.vmem %s8, 4
      %v7189 = vld [vmem:[%s7188] sm:$0x1]
      %v7191 = vsel %vm1715, %v7167, 0
      %v7194 = vsel %vm1715, %v7168, 0
      %v7197 = vsel %vm1715, %v7169, 0
      %v7200 = vsel %vm1715, %v7170, 0
      %v7203 = vsel %vm1715, %v7171, 0
      %v7206 = vsel %vm1715, %v7172, 0
      %v7209 = vsel %vm1715, %v7173, 0
      %v7212 = vsel %vm1715, %v7174, 0
      %v7215 = vsel %vm1715, %v7175, 0
      %v7218 = vsel %vm1715, %v7176, 0
      %v7221 = vsel %vm1715, %v7177, 0
      %v7224 = vsel %vm1715, %v7178, 0
      %v7227 = vsel %vm1715, %v7179, 0
      %v7230 = vsel %vm1715, %v7180, 0
      %v7233 = vsel %vm1715, %v7181, 0
      %v7236 = vsel %vm1715, %v7182, 0
      %v7239 = vsel %vm1715, %v7183, 0
      %v7242 = vsel %vm1715, %v7184, 0
      %v7245 = vsel %vm1715, %v7185, 0
      %v7248 = vsel %vm1715, %v7186, 0
      %v7251 = vsel %vm1715, %v7187, 0
      %v7254 = vsel %vm2241, %v7189, 0
      %7256 = vmatprep.subr.bf16.mxu0 0
      %7257 = vmatpush1.bf16.msra.mxu0 %v7254
      %7258 = vmatprep.subr.bf16.mxu0 0
      %7259 = vmatpush1.bf16.msra.mxu0 0
      %7260 = vmatprep.subr.bf16.mxu0 0
      %7261 = vmatpush1.bf16.msra.mxu0 0
      %7262 = vmatprep.subr.bf16.mxu0 0
      %7263 = vmatpush1.bf16.msra.mxu0 0
      %7264 = vmatprep.subr.bf16.mxu0 0
      %7265 = vmatpush1.bf16.msra.mxu0 0
      %7266 = vmatprep.subr.bf16.mxu0 0
      %7267 = vmatpush1.bf16.msra.mxu0 0
      %7268 = vmatprep.subr.bf16.mxu0 0
      %7269 = vmatpush1.bf16.msra.mxu0 0
      %7270 = vmatprep.subr.bf16.mxu0 0
      %7271 = vmatpush1.bf16.msra.mxu0 0
      %7272 = vmatprep.subr.bf16.mxu0 0
      %7273 = vmatpush1.bf16.msra.mxu0 0
      %7274 = vmatprep.subr.bf16.mxu0 0
      %7275 = vmatpush1.bf16.msra.mxu0 0
      %7276 = vmatprep.subr.bf16.mxu0 0
      %7277 = vmatpush1.bf16.msra.mxu0 0
      %7278 = vmatprep.subr.bf16.mxu0 0
      %7279 = vmatpush1.bf16.msra.mxu0 0
      %7280 = vmatprep.subr.bf16.mxu0 0
      %7281 = vmatpush1.bf16.msra.mxu0 0
      %7282 = vmatprep.subr.bf16.mxu0 0
      %7283 = vmatpush1.bf16.msra.mxu0 0
      %7284 = vmatprep.subr.bf16.mxu0 0
      %7285 = vmatpush1.bf16.msra.mxu0 0
      %7286 = vmatprep.subr.bf16.mxu0 0
      %7287 = vmatpush1.bf16.msra.mxu0 0
      %7288 = vmatprep.mubr.bf16.mxu0 0
      %7289 = vmatmul.mubr.bf16.gmra.mrb[0].mxu0 %v7191
      %v7290 = vpop.f32.mrb[0].mxu0
      %v7291 = vadd.f32 0.0, %v7290
      %v7292 = vpop.f32.mrb[0].mxu0
      %v7293 = vpop.f32.mrb[0].mxu0
      %v7294 = vadd.f32 0.0, %v7293
      %v7295 = vpop.f32.mrb[0].mxu0
      %7296 = vmatprep.mubr.bf16.mxu0 0
      %7297 = vmatmul.mubr.bf16.gmra.mrb[0].mxu0 %v7194
      %v7298 = vpop.f32.mrb[0].mxu0
      %v7299 = vadd.f32 0.0, %v7298
      %v7300 = vpop.f32.mrb[0].mxu0
      %v7301 = vpop.f32.mrb[0].mxu0
      %v7302 = vadd.f32 0.0, %v7301
      %v7303 = vpop.f32.mrb[0].mxu0
      %7304 = vmatprep.mubr.bf16.mxu0 0
      %7305 = vmatmul.mubr.bf16.gmra.mrb[0].mxu0 %v7197
      %v7306 = vpop.f32.mrb[0].mxu0
      %v7307 = vadd.f32 0.0, %v7306
      %v7308 = vpop.f32.mrb[0].mxu0
      %v7309 = vpop.f32.mrb[0].mxu0
      %v7310 = vadd.f32 0.0, %v7309
      %v7311 = vpop.f32.mrb[0].mxu0
      %7312 = vmatprep.mubr.bf16.mxu0 0
      %7313 = vmatmul.mubr.bf16.gmra.mrb[0].mxu0 %v7200
      %v7314 = vpop.f32.mrb[0].mxu0
      %v7315 = vadd.f32 0.0, %v7314
      %v7316 = vpop.f32.mrb[0].mxu0
      %v7317 = vpop.f32.mrb[0].mxu0
      %v7318 = vadd.f32 0.0, %v7317
      %v7319 = vpop.f32.mrb[0].mxu0
      %7320 = vmatprep.mubr.bf16.mxu0 0
      %7321 = vmatmul.mubr.bf16.gmra.mrb[0].mxu0 %v7203
      %v7322 = vpop.f32.mrb[0].mxu0
      %v7323 = vadd.f32 0.0, %v7322
      %v7324 = vpop.f32.mrb[0].mxu0
      %v7325 = vpop.f32.mrb[0].mxu0
      %v7326 = vadd.f32 0.0, %v7325
      %v7327 = vpop.f32.mrb[0].mxu0
      %7328 = vmatprep.mubr.bf16.mxu0 0
      %7329 = vmatmul.mubr.bf16.gmra.mrb[0].mxu0 %v7206
      %v7330 = vpop.f32.mrb[0].mxu0
      %v7331 = vadd.f32 0.0, %v7330
      %v7332 = vpop.f32.mrb[0].mxu0
      %v7333 = vpop.f32.mrb[0].mxu0
      %v7334 = vadd.f32 0.0, %v7333
      %v7335 = vpop.f32.mrb[0].mxu0
      %7336 = vmatprep.mubr.bf16.mxu0 0
      %7337 = vmatmul.mubr.bf16.gmra.mrb[0].mxu0 %v7209
      %v7338 = vpop.f32.mrb[0].mxu0
      %v7339 = vadd.f32 0.0, %v7338
      %v7340 = vpop.f32.mrb[0].mxu0
      %v7341 = vpop.f32.mrb[0].mxu0
      %v7342 = vadd.f32 0.0, %v7341
      %v7343 = vpop.f32.mrb[0].mxu0
      %7344 = vmatprep.mubr.bf16.mxu0 0
      %7345 = vmatmul.mubr.bf16.gmra.mrb[0].mxu0 %v7212
      %v7346 = vpop.f32.mrb[0].mxu0
      %v7347 = vadd.f32 0.0, %v7346
      %v7348 = vpop.f32.mrb[0].mxu0
      %v7349 = vpop.f32.mrb[0].mxu0
      %v7350 = vadd.f32 0.0, %v7349
      %v7351 = vpop.f32.mrb[0].mxu0
      %7352 = vmatprep.mubr.bf16.mxu0 0
      %7353 = vmatmul.mubr.bf16.gmra.mrb[0].mxu0 %v7215
      %v7354 = vpop.f32.mrb[0].mxu0
      %v7355 = vadd.f32 0.0, %v7354
      %v7356 = vpop.f32.mrb[0].mxu0
      %v7357 = vpop.f32.mrb[0].mxu0
      %v7358 = vadd.f32 0.0, %v7357
      %v7359 = vpop.f32.mrb[0].mxu0
      %7360 = vmatprep.mubr.bf16.mxu0 0
      %7361 = vmatmul.mubr.bf16.gmra.mrb[0].mxu0 %v7218
      %v7362 = vpop.f32.mrb[0].mxu0
      %v7363 = vadd.f32 0.0, %v7362
      %v7364 = vpop.f32.mrb[0].mxu0
      %v7365 = vpop.f32.mrb[0].mxu0
      %v7366 = vadd.f32 0.0, %v7365
      %v7367 = vpop.f32.mrb[0].mxu0
      %7368 = vmatprep.mubr.bf16.mxu0 0
      %7369 = vmatmul.mubr.bf16.gmra.mrb[0].mxu0 %v7221
      %v7370 = vpop.f32.mrb[0].mxu0
      %v7371 = vadd.f32 0.0, %v7370
      %v7372 = vpop.f32.mrb[0].mxu0
      %v7373 = vpop.f32.mrb[0].mxu0
      %v7374 = vadd.f32 0.0, %v7373
      %v7375 = vpop.f32.mrb[0].mxu0
      %7376 = vmatprep.mubr.bf16.mxu0 0
      %7377 = vmatmul.mubr.bf16.gmra.mrb[0].mxu0 %v7224
      %v7378 = vpop.f32.mrb[0].mxu0
      %v7379 = vadd.f32 0.0, %v7378
      %v7380 = vpop.f32.mrb[0].mxu0
      %v7381 = vpop.f32.mrb[0].mxu0
      %v7382 = vadd.f32 0.0, %v7381
      %v7383 = vpop.f32.mrb[0].mxu0
      %7384 = vmatprep.mubr.bf16.mxu0 0
      %7385 = vmatmul.mubr.bf16.gmra.mrb[0].mxu0 %v7227
      %v7386 = vpop.f32.mrb[0].mxu0
      %v7387 = vadd.f32 0.0, %v7386
      %v7388 = vpop.f32.mrb[0].mxu0
      %v7389 = vpop.f32.mrb[0].mxu0
      %v7390 = vadd.f32 0.0, %v7389
      %v7391 = vpop.f32.mrb[0].mxu0
      %7392 = vmatprep.mubr.bf16.mxu0 0
      %7393 = vmatmul.mubr.bf16.gmra.mrb[0].mxu0 %v7230
      %v7394 = vpop.f32.mrb[0].mxu0
      %v7395 = vadd.f32 0.0, %v7394
      %v7396 = vpop.f32.mrb[0].mxu0
      %v7397 = vpop.f32.mrb[0].mxu0
      %v7398 = vadd.f32 0.0, %v7397
      %v7399 = vpop.f32.mrb[0].mxu0
      %7400 = vmatprep.mubr.bf16.mxu0 0
      %7401 = vmatmul.mubr.bf16.gmra.mrb[0].mxu0 %v7233
      %v7402 = vpop.f32.mrb[0].mxu0
      %v7403 = vadd.f32 0.0, %v7402
      %v7404 = vpop.f32.mrb[0].mxu0
      %v7405 = vpop.f32.mrb[0].mxu0
      %v7406 = vadd.f32 0.0, %v7405
      %v7407 = vpop.f32.mrb[0].mxu0
      %7408 = vmatprep.mubr.bf16.mxu0 0
      %7409 = vmatmul.mubr.bf16.gmra.mrb[0].mxu0 %v7236
      %v7410 = vpop.f32.mrb[0].mxu0
      %v7411 = vadd.f32 0.0, %v7410
      %v7412 = vpop.f32.mrb[0].mxu0
      %v7413 = vpop.f32.mrb[0].mxu0
      %v7414 = vadd.f32 0.0, %v7413
      %v7415 = vpop.f32.mrb[0].mxu0
      %7416 = vmatprep.mubr.bf16.mxu0 0
      %7417 = vmatmul.mubr.bf16.gmra.mrb[0].mxu0 %v7239
      %v7418 = vpop.f32.mrb[0].mxu0
      %v7419 = vadd.f32 0.0, %v7418
      %v7420 = vpop.f32.mrb[0].mxu0
      %v7421 = vpop.f32.mrb[0].mxu0
      %v7422 = vadd.f32 0.0, %v7421
      %v7423 = vpop.f32.mrb[0].mxu0
      %7424 = vmatprep.mubr.bf16.mxu0 0
      %7425 = vmatmul.mubr.bf16.gmra.mrb[0].mxu0 %v7242
      %v7426 = vpop.f32.mrb[0].mxu0
      %v7427 = vadd.f32 0.0, %v7426
      %v7428 = vpop.f32.mrb[0].mxu0
      %v7429 = vpop.f32.mrb[0].mxu0
      %v7430 = vadd.f32 0.0, %v7429
      %v7431 = vpop.f32.mrb[0].mxu0
      %7432 = vmatprep.mubr.bf16.mxu0 0
      %7433 = vmatmul.mubr.bf16.gmra.mrb[0].mxu0 %v7245
      %v7434 = vpop.f32.mrb[0].mxu0
      %v7435 = vadd.f32 0.0, %v7434
      %v7436 = vpop.f32.mrb[0].mxu0
      %v7437 = vpop.f32.mrb[0].mxu0
      %v7438 = vadd.f32 0.0, %v7437
      %v7439 = vpop.f32.mrb[0].mxu0
      %7440 = vmatprep.mubr.bf16.mxu0 0
      %7441 = vmatmul.mubr.bf16.gmra.mrb[0].mxu0 %v7248
      %v7442 = vpop.f32.mrb[0].mxu0
      %v7443 = vadd.f32 0.0, %v7442
      %v7444 = vpop.f32.mrb[0].mxu0
      %v7445 = vpop.f32.mrb[0].mxu0
      %v7446 = vadd.f32 0.0, %v7445
      %v7447 = vpop.f32.mrb[0].mxu0
      %7448 = vmatprep.mubr.bf16.mxu0 0
      %7449 = vmatmul.mubr.bf16.gmra.mrb[0].mxu0 %v7251
      %v7450 = vpop.f32.mrb[0].mxu0
      %v7451 = vadd.f32 0.0, %v7450
      %v7452 = vpop.f32.mrb[0].mxu0
      %v7453 = vpop.f32.mrb[0].mxu0
      %v7454 = vpop.f32.mrb[0].mxu0
      %7455 = vdwg.mxu0
      %v7456 = vadd.f32 %v7085, %v7291
      %v7457 = vadd.f32 %v7086, %v7294
      %v7458 = vadd.f32 %v7087, %v7299
      %v7459 = vadd.f32 %v7088, %v7302
      %v7460 = vadd.f32 %v7089, %v7307
      %v7461 = vadd.f32 %v7090, %v7310
      %v7462 = vadd.f32 %v7091, %v7315
      %v7463 = vadd.f32 %v7092, %v7318
      %v7464 = vadd.f32 %v7093, %v7323
      %v7465 = vadd.f32 %v7094, %v7326
      %v7466 = vadd.f32 %v7095, %v7331
      %v7467 = vadd.f32 %v7096, %v7334
      %v7468 = vadd.f32 %v7097, %v7339
      %v7469 = vadd.f32 %v7098, %v7342
      %v7470 = vadd.f32 %v7099, %v7347
      %v7471 = vadd.f32 %v7100, %v7350
      %v7472 = vadd.f32 %v7101, %v7355
      %v7473 = vadd.f32 %v7102, %v7358
      %v7474 = vadd.f32 %v7103, %v7363
      %v7475 = vadd.f32 %v7104, %v7366
      %v7476 = vadd.f32 %v7105, %v7371
      %v7477 = vadd.f32 %v7106, %v7374
      %v7478 = vadd.f32 %v7107, %v7379
      %v7479 = vadd.f32 %v7108, %v7382
      %v7480 = vadd.f32 %v7109, %v7387
      %v7481 = vadd.f32 %v7110, %v7390
      %v7482 = vadd.f32 %v7111, %v7395
      %v7483 = vadd.f32 %v7112, %v7398
      %v7484 = vadd.f32 %v7113, %v7403
      %v7485 = vadd.f32 %v7114, %v7406
      %v7486 = vadd.f32 %v7115, %v7411
      %v7487 = vadd.f32 %v7116, %v7414
      %v7488 = vadd.f32 %v7117, %v7419
      %v7489 = vadd.f32 %v7118, %v7422
      %v7490 = vadd.f32 %v7119, %v7427
      %v7491 = vadd.f32 %v7120, %v7430
      %v7492 = vadd.f32 %v7121, %v7435
      %v7493 = vadd.f32 %v7122, %v7438
      %v7494 = vadd.f32 %v7123, %v7443
      %v7495 = vadd.f32 %v7124, %v7446
      %v7496 = vadd.f32 %v7125, %v7451
      %v7497 = vld [vmem:[#allocation2 + $0x19] sm:$0xff]
      %v7498 = vld [vmem:[#allocation2 + $0x21] sm:$0xff]
      %v7499 = vld [vmem:[#allocation2 + $0x29] sm:$0xff]
      %v7500 = vld [vmem:[#allocation2 + $0x31] sm:$0xff]
      %v7501 = vld [vmem:[#allocation2 + $0x39] sm:$0xff]
      %v7502 = vld [vmem:[#allocation2 + $0x41] sm:$0xff]
      %v7503 = vld [vmem:[#allocation2 + $0x49] sm:$0xff]
      %v7504 = vld [vmem:[#allocation2 + $0x51] sm:$0xff]
      %v7505 = vld [vmem:[#allocation2 + $0x59] sm:$0xff]
      %v7506 = vld [vmem:[#allocation2 + $0x61] sm:$0xff]
      %v7507 = vld [vmem:[#allocation2 + $0x69] sm:$0xff]
      %v7508 = vld [vmem:[#allocation2 + $0x71] sm:$0xff]
      %v7509 = vld [vmem:[#allocation2 + $0x79] sm:$0xff]
      %v7510 = vld [vmem:[#allocation2 + $0x81] sm:$0xff]
      %v7511 = vld [vmem:[#allocation2 + $0x89] sm:$0xff]
      %v7512 = vld [vmem:[#allocation2 + $0x91] sm:$0xff]
      %v7513 = vld [vmem:[#allocation2 + $0x99] sm:$0xff]
      %v7514 = vld [vmem:[#allocation2 + $0xa1] sm:$0xff]
      %v7515 = vld [vmem:[#allocation2 + $0xa9] sm:$0xff]
      %v7516 = vld [vmem:[#allocation2 + $0xb1] sm:$0xff]
      %v7517 = vld [vmem:[#allocation2 + $0xb9] sm:$0xff]
      %v7518 = vld [vmem:[#allocation2 + $0xc1] sm:$0xff]
      %v7519 = vld [vmem:[#allocation2 + $0xc9] sm:$0xff]
      %v7520 = vld [vmem:[#allocation2 + $0xd1] sm:$0xff]
      %v7521 = vld [vmem:[#allocation2 + $0xd9] sm:$0xff]
      %v7522 = vld [vmem:[#allocation2 + $0xe1] sm:$0xff]
      %v7523 = vld [vmem:[#allocation2 + $0xe9] sm:$0xff]
      %v7524 = vld [vmem:[#allocation2 + $0xf1] sm:$0xff]
      %v7525 = vld [vmem:[#allocation2 + $0xf9] sm:$0xff]
      %v7526 = vld [vmem:[#allocation2 + $0x101] sm:$0xff]
      %v7527 = vld [vmem:[#allocation2 + $0x109] sm:$0xff]
      %v7528 = vld [vmem:[#allocation2 + $0x111] sm:$0xff]
      %v7529 = vld [vmem:[#allocation2 + $0x119] sm:$0xff]
      %v7530 = vld [vmem:[#allocation2 + $0x121] sm:$0xff]
      %v7531 = vld [vmem:[#allocation2 + $0x129] sm:$0xff]
      %v7532 = vld [vmem:[#allocation2 + $0x131] sm:$0xff]
      %v7533 = vld [vmem:[#allocation2 + $0x139] sm:$0xff]
      %v7534 = vld [vmem:[#allocation2 + $0x141] sm:$0xff]
      %v7535 = vld [vmem:[#allocation2 + $0x149] sm:$0xff]
      %v7536 = vld [vmem:[#allocation2 + $0x151] sm:$0xff]
      %v7537 = vld [vmem:[#allocation2 + $0x159] sm:$0xf]
      %v7538 = vpack.c.bf16 %v7498, %v7497
      %v7539 = vpack.c.bf16 %v7500, %v7499
      %v7540 = vpack.c.bf16 %v7502, %v7501
      %v7541 = vpack.c.bf16 %v7504, %v7503
      %v7542 = vpack.c.bf16 %v7506, %v7505
      %v7543 = vpack.c.bf16 %v7508, %v7507
      %v7544 = vpack.c.bf16 %v7510, %v7509
      %v7545 = vpack.c.bf16 %v7512, %v7511
      %v7546 = vpack.c.bf16 %v7514, %v7513
      %v7547 = vpack.c.bf16 %v7516, %v7515
      %v7548 = vpack.c.bf16 %v7518, %v7517
      %v7549 = vpack.c.bf16 %v7520, %v7519
      %v7550 = vpack.c.bf16 %v7522, %v7521
      %v7551 = vpack.c.bf16 %v7524, %v7523
      %v7552 = vpack.c.bf16 %v7526, %v7525
      %v7553 = vpack.c.bf16 %v7528, %v7527
      %v7554 = vpack.c.bf16 %v7530, %v7529
      %v7555 = vpack.c.bf16 %v7532, %v7531
      %v7556 = vpack.c.bf16 %v7534, %v7533
      %v7557 = vpack.c.bf16 %v7536, %v7535
      %v7558 = vpack.c.bf16 %v7537, %v7537
      %s7559 = scalar_lea.vmem %s8, 5
      %v7560 = vld [vmem:[%s7559] sm:$0x1]
      %v7562 = vsel %vm1715, %v7538, 0
      %v7565 = vsel %vm1715, %v7539, 0
      %v7568 = vsel %vm1715, %v7540, 0
      %v7571 = vsel %vm1715, %v7541, 0
      %v7574 = vsel %vm1715, %v7542, 0
      %v7577 = vsel %vm1715, %v7543, 0
      %v7580 = vsel %vm1715, %v7544, 0
      %v7583 = vsel %vm1715, %v7545, 0
      %v7586 = vsel %vm1715, %v7546, 0
      %v7589 = vsel %vm1715, %v7547, 0
      %v7592 = vsel %vm1715, %v7548, 0
      %v7595 = vsel %vm1715, %v7549, 0
      %v7598 = vsel %vm1715, %v7550, 0
      %v7601 = vsel %vm1715, %v7551, 0
      %v7604 = vsel %vm1715, %v7552, 0
      %v7607 = vsel %vm1715, %v7553, 0
      %v7610 = vsel %vm1715, %v7554, 0
      %v7613 = vsel %vm1715, %v7555, 0
      %v7616 = vsel %vm1715, %v7556, 0
      %v7619 = vsel %vm1715, %v7557, 0
      %v7622 = vsel %vm1715, %v7558, 0
      %v7625 = vsel %vm2241, %v7560, 0
      %7627 = vmatprep.subr.bf16.mxu0 0
      %7628 = vmatpush1.bf16.msra.mxu0 %v7625
      %7629 = vmatprep.subr.bf16.mxu0 0
      %7630 = vmatpush1.bf16.msra.mxu0 0
      %7631 = vmatprep.subr.bf16.mxu0 0
      %7632 = vmatpush1.bf16.msra.mxu0 0
      %7633 = vmatprep.subr.bf16.mxu0 0
      %7634 = vmatpush1.bf16.msra.mxu0 0
      %7635 = vmatprep.subr.bf16.mxu0 0
      %7636 = vmatpush1.bf16.msra.mxu0 0
      %7637 = vmatprep.subr.bf16.mxu0 0
      %7638 = vmatpush1.bf16.msra.mxu0 0
      %7639 = vmatprep.subr.bf16.mxu0 0
      %7640 = vmatpush1.bf16.msra.mxu0 0
      %7641 = vmatprep.subr.bf16.mxu0 0
      %7642 = vmatpush1.bf16.msra.mxu0 0
      %7643 = vmatprep.subr.bf16.mxu0 0
      %7644 = vmatpush1.bf16.msra.mxu0 0
      %7645 = vmatprep.subr.bf16.mxu0 0
      %7646 = vmatpush1.bf16.msra.mxu0 0
      %7647 = vmatprep.subr.bf16.mxu0 0
      %7648 = vmatpush1.bf16.msra.mxu0 0
      %7649 = vmatprep.subr.bf16.mxu0 0
      %7650 = vmatpush1.bf16.msra.mxu0 0
      %7651 = vmatprep.subr.bf16.mxu0 0
      %7652 = vmatpush1.bf16.msra.mxu0 0
      %7653 = vmatprep.subr.bf16.mxu0 0
      %7654 = vmatpush1.bf16.msra.mxu0 0
      %7655 = vmatprep.subr.bf16.mxu0 0
      %7656 = vmatpush1.bf16.msra.mxu0 0
      %7657 = vmatprep.subr.bf16.mxu0 0
      %7658 = vmatpush1.bf16.msra.mxu0 0
      %7659 = vmatprep.mubr.bf16.mxu0 0
      %7660 = vmatmul.mubr.bf16.gmra.mrb[0].mxu0 %v7562
      %v7661 = vpop.f32.mrb[0].mxu0
      %v7662 = vadd.f32 0.0, %v7661
      %v7663 = vpop.f32.mrb[0].mxu0
      %v7664 = vpop.f32.mrb[0].mxu0
      %v7665 = vadd.f32 0.0, %v7664
      %v7666 = vpop.f32.mrb[0].mxu0
      %7667 = vmatprep.mubr.bf16.mxu0 0
      %7668 = vmatmul.mubr.bf16.gmra.mrb[0].mxu0 %v7565
      %v7669 = vpop.f32.mrb[0].mxu0
      %v7670 = vadd.f32 0.0, %v7669
      %v7671 = vpop.f32.mrb[0].mxu0
      %v7672 = vpop.f32.mrb[0].mxu0
      %v7673 = vadd.f32 0.0, %v7672
      %v7674 = vpop.f32.mrb[0].mxu0
      %7675 = vmatprep.mubr.bf16.mxu0 0
      %7676 = vmatmul.mubr.bf16.gmra.mrb[0].mxu0 %v7568
      %v7677 = vpop.f32.mrb[0].mxu0
      %v7678 = vadd.f32 0.0, %v7677
      %v7679 = vpop.f32.mrb[0].mxu0
      %v7680 = vpop.f32.mrb[0].mxu0
      %v7681 = vadd.f32 0.0, %v7680
      %v7682 = vpop.f32.mrb[0].mxu0
      %7683 = vmatprep.mubr.bf16.mxu0 0
      %7684 = vmatmul.mubr.bf16.gmra.mrb[0].mxu0 %v7571
      %v7685 = vpop.f32.mrb[0].mxu0
      %v7686 = vadd.f32 0.0, %v7685
      %v7687 = vpop.f32.mrb[0].mxu0
      %v7688 = vpop.f32.mrb[0].mxu0
      %v7689 = vadd.f32 0.0, %v7688
      %v7690 = vpop.f32.mrb[0].mxu0
      %7691 = vmatprep.mubr.bf16.mxu0 0
      %7692 = vmatmul.mubr.bf16.gmra.mrb[0].mxu0 %v7574
      %v7693 = vpop.f32.mrb[0].mxu0
      %v7694 = vadd.f32 0.0, %v7693
      %v7695 = vpop.f32.mrb[0].mxu0
      %v7696 = vpop.f32.mrb[0].mxu0
      %v7697 = vadd.f32 0.0, %v7696
      %v7698 = vpop.f32.mrb[0].mxu0
      %7699 = vmatprep.mubr.bf16.mxu0 0
      %7700 = vmatmul.mubr.bf16.gmra.mrb[0].mxu0 %v7577
      %v7701 = vpop.f32.mrb[0].mxu0
      %v7702 = vadd.f32 0.0, %v7701
      %v7703 = vpop.f32.mrb[0].mxu0
      %v7704 = vpop.f32.mrb[0].mxu0
      %v7705 = vadd.f32 0.0, %v7704
      %v7706 = vpop.f32.mrb[0].mxu0
      %7707 = vmatprep.mubr.bf16.mxu0 0
      %7708 = vmatmul.mubr.bf16.gmra.mrb[0].mxu0 %v7580
      %v7709 = vpop.f32.mrb[0].mxu0
      %v7710 = vadd.f32 0.0, %v7709
      %v7711 = vpop.f32.mrb[0].mxu0
      %v7712 = vpop.f32.mrb[0].mxu0
      %v7713 = vadd.f32 0.0, %v7712
      %v7714 = vpop.f32.mrb[0].mxu0
      %7715 = vmatprep.mubr.bf16.mxu0 0
      %7716 = vmatmul.mubr.bf16.gmra.mrb[0].mxu0 %v7583
      %v7717 = vpop.f32.mrb[0].mxu0
      %v7718 = vadd.f32 0.0, %v7717
      %v7719 = vpop.f32.mrb[0].mxu0
      %v7720 = vpop.f32.mrb[0].mxu0
      %v7721 = vadd.f32 0.0, %v7720
      %v7722 = vpop.f32.mrb[0].mxu0
      %7723 = vmatprep.mubr.bf16.mxu0 0
      %7724 = vmatmul.mubr.bf16.gmra.mrb[0].mxu0 %v7586
      %v7725 = vpop.f32.mrb[0].mxu0
      %v7726 = vadd.f32 0.0, %v7725
      %v7727 = vpop.f32.mrb[0].mxu0
      %v7728 = vpop.f32.mrb[0].mxu0
      %v7729 = vadd.f32 0.0, %v7728
      %v7730 = vpop.f32.mrb[0].mxu0
      %7731 = vmatprep.mubr.bf16.mxu0 0
      %7732 = vmatmul.mubr.bf16.gmra.mrb[0].mxu0 %v7589
      %v7733 = vpop.f32.mrb[0].mxu0
      %v7734 = vadd.f32 0.0, %v7733
      %v7735 = vpop.f32.mrb[0].mxu0
      %v7736 = vpop.f32.mrb[0].mxu0
      %v7737 = vadd.f32 0.0, %v7736
      %v7738 = vpop.f32.mrb[0].mxu0
      %7739 = vmatprep.mubr.bf16.mxu0 0
      %7740 = vmatmul.mubr.bf16.gmra.mrb[0].mxu0 %v7592
      %v7741 = vpop.f32.mrb[0].mxu0
      %v7742 = vadd.f32 0.0, %v7741
      %v7743 = vpop.f32.mrb[0].mxu0
      %v7744 = vpop.f32.mrb[0].mxu0
      %v7745 = vadd.f32 0.0, %v7744
      %v7746 = vpop.f32.mrb[0].mxu0
      %7747 = vmatprep.mubr.bf16.mxu0 0
      %7748 = vmatmul.mubr.bf16.gmra.mrb[0].mxu0 %v7595
      %v7749 = vpop.f32.mrb[0].mxu0
      %v7750 = vadd.f32 0.0, %v7749
      %v7751 = vpop.f32.mrb[0].mxu0
      %v7752 = vpop.f32.mrb[0].mxu0
      %v7753 = vadd.f32 0.0, %v7752
      %v7754 = vpop.f32.mrb[0].mxu0
      %7755 = vmatprep.mubr.bf16.mxu0 0
      %7756 = vmatmul.mubr.bf16.gmra.mrb[0].mxu0 %v7598
      %v7757 = vpop.f32.mrb[0].mxu0
      %v7758 = vadd.f32 0.0, %v7757
      %v7759 = vpop.f32.mrb[0].mxu0
      %v7760 = vpop.f32.mrb[0].mxu0
      %v7761 = vadd.f32 0.0, %v7760
      %v7762 = vpop.f32.mrb[0].mxu0
      %7763 = vmatprep.mubr.bf16.mxu0 0
      %7764 = vmatmul.mubr.bf16.gmra.mrb[0].mxu0 %v7601
      %v7765 = vpop.f32.mrb[0].mxu0
      %v7766 = vadd.f32 0.0, %v7765
      %v7767 = vpop.f32.mrb[0].mxu0
      %v7768 = vpop.f32.mrb[0].mxu0
      %v7769 = vadd.f32 0.0, %v7768
      %v7770 = vpop.f32.mrb[0].mxu0
      %7771 = vmatprep.mubr.bf16.mxu0 0
      %7772 = vmatmul.mubr.bf16.gmra.mrb[0].mxu0 %v7604
      %v7773 = vpop.f32.mrb[0].mxu0
      %v7774 = vadd.f32 0.0, %v7773
      %v7775 = vpop.f32.mrb[0].mxu0
      %v7776 = vpop.f32.mrb[0].mxu0
      %v7777 = vadd.f32 0.0, %v7776
      %v7778 = vpop.f32.mrb[0].mxu0
      %7779 = vmatprep.mubr.bf16.mxu0 0
      %7780 = vmatmul.mubr.bf16.gmra.mrb[0].mxu0 %v7607
      %v7781 = vpop.f32.mrb[0].mxu0
      %v7782 = vadd.f32 0.0, %v7781
      %v7783 = vpop.f32.mrb[0].mxu0
      %v7784 = vpop.f32.mrb[0].mxu0
      %v7785 = vadd.f32 0.0, %v7784
      %v7786 = vpop.f32.mrb[0].mxu0
      %7787 = vmatprep.mubr.bf16.mxu0 0
      %7788 = vmatmul.mubr.bf16.gmra.mrb[0].mxu0 %v7610
      %v7789 = vpop.f32.mrb[0].mxu0
      %v7790 = vadd.f32 0.0, %v7789
      %v7791 = vpop.f32.mrb[0].mxu0
      %v7792 = vpop.f32.mrb[0].mxu0
      %v7793 = vadd.f32 0.0, %v7792
      %v7794 = vpop.f32.mrb[0].mxu0
      %7795 = vmatprep.mubr.bf16.mxu0 0
      %7796 = vmatmul.mubr.bf16.gmra.mrb[0].mxu0 %v7613
      %v7797 = vpop.f32.mrb[0].mxu0
      %v7798 = vadd.f32 0.0, %v7797
      %v7799 = vpop.f32.mrb[0].mxu0
      %v7800 = vpop.f32.mrb[0].mxu0
      %v7801 = vadd.f32 0.0, %v7800
      %v7802 = vpop.f32.mrb[0].mxu0
      %7803 = vmatprep.mubr.bf16.mxu0 0
      %7804 = vmatmul.mubr.bf16.gmra.mrb[0].mxu0 %v7616
      %v7805 = vpop.f32.mrb[0].mxu0
      %v7806 = vadd.f32 0.0, %v7805
      %v7807 = vpop.f32.mrb[0].mxu0
      %v7808 = vpop.f32.mrb[0].mxu0
      %v7809 = vadd.f32 0.0, %v7808
      %v7810 = vpop.f32.mrb[0].mxu0
      %7811 = vmatprep.mubr.bf16.mxu0 0
      %7812 = vmatmul.mubr.bf16.gmra.mrb[0].mxu0 %v7619
      %v7813 = vpop.f32.mrb[0].mxu0
      %v7814 = vadd.f32 0.0, %v7813
      %v7815 = vpop.f32.mrb[0].mxu0
      %v7816 = vpop.f32.mrb[0].mxu0
      %v7817 = vadd.f32 0.0, %v7816
      %v7818 = vpop.f32.mrb[0].mxu0
      %7819 = vmatprep.mubr.bf16.mxu0 0
      %7820 = vmatmul.mubr.bf16.gmra.mrb[0].mxu0 %v7622
      %v7821 = vpop.f32.mrb[0].mxu0
      %v7822 = vadd.f32 0.0, %v7821
      %v7823 = vpop.f32.mrb[0].mxu0
      %v7824 = vpop.f32.mrb[0].mxu0
      %v7825 = vpop.f32.mrb[0].mxu0
      %7826 = vdwg.mxu0
      %v7827 = vadd.f32 %v7456, %v7662
      %v7828 = vadd.f32 %v7457, %v7665
      %v7829 = vadd.f32 %v7458, %v7670
      %v7830 = vadd.f32 %v7459, %v7673
      %v7831 = vadd.f32 %v7460, %v7678
      %v7832 = vadd.f32 %v7461, %v7681
      %v7833 = vadd.f32 %v7462, %v7686
      %v7834 = vadd.f32 %v7463, %v7689
      %v7835 = vadd.f32 %v7464, %v7694
      %v7836 = vadd.f32 %v7465, %v7697
      %v7837 = vadd.f32 %v7466, %v7702
      %v7838 = vadd.f32 %v7467, %v7705
      %v7839 = vadd.f32 %v7468, %v7710
      %v7840 = vadd.f32 %v7469, %v7713
      %v7841 = vadd.f32 %v7470, %v7718
      %v7842 = vadd.f32 %v7471, %v7721
      %v7843 = vadd.f32 %v7472, %v7726
      %v7844 = vadd.f32 %v7473, %v7729
      %v7845 = vadd.f32 %v7474, %v7734
      %v7846 = vadd.f32 %v7475, %v7737
      %v7847 = vadd.f32 %v7476, %v7742
      %v7848 = vadd.f32 %v7477, %v7745
      %v7849 = vadd.f32 %v7478, %v7750
      %v7850 = vadd.f32 %v7479, %v7753
      %v7851 = vadd.f32 %v7480, %v7758
      %v7852 = vadd.f32 %v7481, %v7761
      %v7853 = vadd.f32 %v7482, %v7766
      %v7854 = vadd.f32 %v7483, %v7769
      %v7855 = vadd.f32 %v7484, %v7774
      %v7856 = vadd.f32 %v7485, %v7777
      %v7857 = vadd.f32 %v7486, %v7782
      %v7858 = vadd.f32 %v7487, %v7785
      %v7859 = vadd.f32 %v7488, %v7790
      %v7860 = vadd.f32 %v7489, %v7793
      %v7861 = vadd.f32 %v7490, %v7798
      %v7862 = vadd.f32 %v7491, %v7801
      %v7863 = vadd.f32 %v7492, %v7806
      %v7864 = vadd.f32 %v7493, %v7809
      %v7865 = vadd.f32 %v7494, %v7814
      %v7866 = vadd.f32 %v7495, %v7817
      %v7867 = vadd.f32 %v7496, %v7822
      %v7868 = vld [vmem:[#allocation2 + $0x29] sm:$0xff]
      %v7869 = vld [vmem:[#allocation2 + $0x31] sm:$0xff]
      %v7870 = vld [vmem:[#allocation2 + $0x39] sm:$0xff]
      %v7871 = vld [vmem:[#allocation2 + $0x41] sm:$0xff]
      %v7872 = vld [vmem:[#allocation2 + $0x49] sm:$0xff]
      %v7873 = vld [vmem:[#allocation2 + $0x51] sm:$0xff]
      %v7874 = vld [vmem:[#allocation2 + $0x59] sm:$0xff]
      %v7875 = vld [vmem:[#allocation2 + $0x61] sm:$0xff]
      %v7876 = vld [vmem:[#allocation2 + $0x69] sm:$0xff]
      %v7877 = vld [vmem:[#allocation2 + $0x71] sm:$0xff]
      %v7878 = vld [vmem:[#allocation2 + $0x79] sm:$0xff]
      %v7879 = vld [vmem:[#allocation2 + $0x81] sm:$0xff]
      %v7880 = vld [vmem:[#allocation2 + $0x89] sm:$0xff]
      %v7881 = vld [vmem:[#allocation2 + $0x91] sm:$0xff]
      %v7882 = vld [vmem:[#allocation2 + $0x99] sm:$0xff]
      %v7883 = vld [vmem:[#allocation2 + $0xa1] sm:$0xff]
      %v7884 = vld [vmem:[#allocation2 + $0xa9] sm:$0xff]
      %v7885 = vld [vmem:[#allocation2 + $0xb1] sm:$0xff]
      %v7886 = vld [vmem:[#allocation2 + $0xb9] sm:$0xff]
      %v7887 = vld [vmem:[#allocation2 + $0xc1] sm:$0xff]
      %v7888 = vld [vmem:[#allocation2 + $0xc9] sm:$0xff]
      %v7889 = vld [vmem:[#allocation2 + $0xd1] sm:$0xff]
      %v7890 = vld [vmem:[#allocation2 + $0xd9] sm:$0xff]
      %v7891 = vld [vmem:[#allocation2 + $0xe1] sm:$0xff]
      %v7892 = vld [vmem:[#allocation2 + $0xe9] sm:$0xff]
      %v7893 = vld [vmem:[#allocation2 + $0xf1] sm:$0xff]
      %v7894 = vld [vmem:[#allocation2 + $0xf9] sm:$0xff]
      %v7895 = vld [vmem:[#allocation2 + $0x101] sm:$0xff]
      %v7896 = vld [vmem:[#allocation2 + $0x109] sm:$0xff]
      %v7897 = vld [vmem:[#allocation2 + $0x111] sm:$0xff]
      %v7898 = vld [vmem:[#allocation2 + $0x119] sm:$0xff]
      %v7899 = vld [vmem:[#allocation2 + $0x121] sm:$0xff]
      %v7900 = vld [vmem:[#allocation2 + $0x129] sm:$0xff]
      %v7901 = vld [vmem:[#allocation2 + $0x131] sm:$0xff]
      %v7902 = vld [vmem:[#allocation2 + $0x139] sm:$0xff]
      %v7903 = vld [vmem:[#allocation2 + $0x141] sm:$0xff]
      %v7904 = vld [vmem:[#allocation2 + $0x149] sm:$0xff]
      %v7905 = vld [vmem:[#allocation2 + $0x151] sm:$0xff]
      %v7906 = vld [vmem:[#allocation2 + $0x159] sm:$0xff]
      %v7907 = vld [vmem:[#allocation2 + $0x161] sm:$0xff]
      %v7908 = vld [vmem:[#allocation2 + $0x169] sm:$0xf]
      %v7909 = vpack.c.bf16 %v7869, %v7868
      %v7910 = vpack.c.bf16 %v7871, %v7870
      %v7911 = vpack.c.bf16 %v7873, %v7872
      %v7912 = vpack.c.bf16 %v7875, %v7874
      %v7913 = vpack.c.bf16 %v7877, %v7876
      %v7914 = vpack.c.bf16 %v7879, %v7878
      %v7915 = vpack.c.bf16 %v7881, %v7880
      %v7916 = vpack.c.bf16 %v7883, %v7882
      %v7917 = vpack.c.bf16 %v7885, %v7884
      %v7918 = vpack.c.bf16 %v7887, %v7886
      %v7919 = vpack.c.bf16 %v7889, %v7888
      %v7920 = vpack.c.bf16 %v7891, %v7890
      %v7921 = vpack.c.bf16 %v7893, %v7892
      %v7922 = vpack.c.bf16 %v7895, %v7894
      %v7923 = vpack.c.bf16 %v7897, %v7896
      %v7924 = vpack.c.bf16 %v7899, %v7898
      %v7925 = vpack.c.bf16 %v7901, %v7900
      %v7926 = vpack.c.bf16 %v7903, %v7902
      %v7927 = vpack.c.bf16 %v7905, %v7904
      %v7928 = vpack.c.bf16 %v7907, %v7906
      %v7929 = vpack.c.bf16 %v7908, %v7908
      %s7930 = scalar_lea.vmem %s8, 6
      %v7931 = vld [vmem:[%s7930] sm:$0x1]
      %v7933 = vsel %vm1715, %v7909, 0
      %v7936 = vsel %vm1715, %v7910, 0
      %v7939 = vsel %vm1715, %v7911, 0
      %v7942 = vsel %vm1715, %v7912, 0
      %v7945 = vsel %vm1715, %v7913, 0
      %v7948 = vsel %vm1715, %v7914, 0
      %v7951 = vsel %vm1715, %v7915, 0
      %v7954 = vsel %vm1715, %v7916, 0
      %v7957 = vsel %vm1715, %v7917, 0
      %v7960 = vsel %vm1715, %v7918, 0
      %v7963 = vsel %vm1715, %v7919, 0
      %v7966 = vsel %vm1715, %v7920, 0
      %v7969 = vsel %vm1715, %v7921, 0
      %v7972 = vsel %vm1715, %v7922, 0
      %v7975 = vsel %vm1715, %v7923, 0
      %v7978 = vsel %vm1715, %v7924, 0
      %v7981 = vsel %vm1715, %v7925, 0
      %v7984 = vsel %vm1715, %v7926, 0
      %v7987 = vsel %vm1715, %v7927, 0
      %v7990 = vsel %vm1715, %v7928, 0
      %v7993 = vsel %vm1715, %v7929, 0
      %v7996 = vsel %vm2241, %v7931, 0
      %7998 = vmatprep.subr.bf16.mxu0 0
      %7999 = vmatpush1.bf16.msra.mxu0 %v7996
      %8000 = vmatprep.subr.bf16.mxu0 0
      %8001 = vmatpush1.bf16.msra.mxu0 0
      %8002 = vmatprep.subr.bf16.mxu0 0
      %8003 = vmatpush1.bf16.msra.mxu0 0
      %8004 = vmatprep.subr.bf16.mxu0 0
      %8005 = vmatpush1.bf16.msra.mxu0 0
      %8006 = vmatprep.subr.bf16.mxu0 0
      %8007 = vmatpush1.bf16.msra.mxu0 0
      %8008 = vmatprep.subr.bf16.mxu0 0
      %8009 = vmatpush1.bf16.msra.mxu0 0
      %8010 = vmatprep.subr.bf16.mxu0 0
      %8011 = vmatpush1.bf16.msra.mxu0 0
      %8012 = vmatprep.subr.bf16.mxu0 0
      %8013 = vmatpush1.bf16.msra.mxu0 0
      %8014 = vmatprep.subr.bf16.mxu0 0
      %8015 = vmatpush1.bf16.msra.mxu0 0
      %8016 = vmatprep.subr.bf16.mxu0 0
      %8017 = vmatpush1.bf16.msra.mxu0 0
      %8018 = vmatprep.subr.bf16.mxu0 0
      %8019 = vmatpush1.bf16.msra.mxu0 0
      %8020 = vmatprep.subr.bf16.mxu0 0
      %8021 = vmatpush1.bf16.msra.mxu0 0
      %8022 = vmatprep.subr.bf16.mxu0 0
      %8023 = vmatpush1.bf16.msra.mxu0 0
      %8024 = vmatprep.subr.bf16.mxu0 0
      %8025 = vmatpush1.bf16.msra.mxu0 0
      %8026 = vmatprep.subr.bf16.mxu0 0
      %8027 = vmatpush1.bf16.msra.mxu0 0
      %8028 = vmatprep.subr.bf16.mxu0 0
      %8029 = vmatpush1.bf16.msra.mxu0 0
      %8030 = vmatprep.mubr.bf16.mxu0 0
      %8031 = vmatmul.mubr.bf16.gmra.mrb[0].mxu0 %v7933
      %v8032 = vpop.f32.mrb[0].mxu0
      %v8033 = vadd.f32 0.0, %v8032
      %v8034 = vpop.f32.mrb[0].mxu0
      %v8035 = vpop.f32.mrb[0].mxu0
      %v8036 = vadd.f32 0.0, %v8035
      %v8037 = vpop.f32.mrb[0].mxu0
      %8038 = vmatprep.mubr.bf16.mxu0 0
      %8039 = vmatmul.mubr.bf16.gmra.mrb[0].mxu0 %v7936
      %v8040 = vpop.f32.mrb[0].mxu0
      %v8041 = vadd.f32 0.0, %v8040
      %v8042 = vpop.f32.mrb[0].mxu0
      %v8043 = vpop.f32.mrb[0].mxu0
      %v8044 = vadd.f32 0.0, %v8043
      %v8045 = vpop.f32.mrb[0].mxu0
      %8046 = vmatprep.mubr.bf16.mxu0 0
      %8047 = vmatmul.mubr.bf16.gmra.mrb[0].mxu0 %v7939
      %v8048 = vpop.f32.mrb[0].mxu0
      %v8049 = vadd.f32 0.0, %v8048
      %v8050 = vpop.f32.mrb[0].mxu0
      %v8051 = vpop.f32.mrb[0].mxu0
      %v8052 = vadd.f32 0.0, %v8051
      %v8053 = vpop.f32.mrb[0].mxu0
      %8054 = vmatprep.mubr.bf16.mxu0 0
      %8055 = vmatmul.mubr.bf16.gmra.mrb[0].mxu0 %v7942
      %v8056 = vpop.f32.mrb[0].mxu0
      %v8057 = vadd.f32 0.0, %v8056
      %v8058 = vpop.f32.mrb[0].mxu0
      %v8059 = vpop.f32.mrb[0].mxu0
      %v8060 = vadd.f32 0.0, %v8059
      %v8061 = vpop.f32.mrb[0].mxu0
      %8062 = vmatprep.mubr.bf16.mxu0 0
      %8063 = vmatmul.mubr.bf16.gmra.mrb[0].mxu0 %v7945
      %v8064 = vpop.f32.mrb[0].mxu0
      %v8065 = vadd.f32 0.0, %v8064
      %v8066 = vpop.f32.mrb[0].mxu0
      %v8067 = vpop.f32.mrb[0].mxu0
      %v8068 = vadd.f32 0.0, %v8067
      %v8069 = vpop.f32.mrb[0].mxu0
      %8070 = vmatprep.mubr.bf16.mxu0 0
      %8071 = vmatmul.mubr.bf16.gmra.mrb[0].mxu0 %v7948
      %v8072 = vpop.f32.mrb[0].mxu0
      %v8073 = vadd.f32 0.0, %v8072
      %v8074 = vpop.f32.mrb[0].mxu0
      %v8075 = vpop.f32.mrb[0].mxu0
      %v8076 = vadd.f32 0.0, %v8075
      %v8077 = vpop.f32.mrb[0].mxu0
      %8078 = vmatprep.mubr.bf16.mxu0 0
      %8079 = vmatmul.mubr.bf16.gmra.mrb[0].mxu0 %v7951
      %v8080 = vpop.f32.mrb[0].mxu0
      %v8081 = vadd.f32 0.0, %v8080
      %v8082 = vpop.f32.mrb[0].mxu0
      %v8083 = vpop.f32.mrb[0].mxu0
      %v8084 = vadd.f32 0.0, %v8083
      %v8085 = vpop.f32.mrb[0].mxu0
      %8086 = vmatprep.mubr.bf16.mxu0 0
      %8087 = vmatmul.mubr.bf16.gmra.mrb[0].mxu0 %v7954
      %v8088 = vpop.f32.mrb[0].mxu0
      %v8089 = vadd.f32 0.0, %v8088
      %v8090 = vpop.f32.mrb[0].mxu0
      %v8091 = vpop.f32.mrb[0].mxu0
      %v8092 = vadd.f32 0.0, %v8091
      %v8093 = vpop.f32.mrb[0].mxu0
      %8094 = vmatprep.mubr.bf16.mxu0 0
      %8095 = vmatmul.mubr.bf16.gmra.mrb[0].mxu0 %v7957
      %v8096 = vpop.f32.mrb[0].mxu0
      %v8097 = vadd.f32 0.0, %v8096
      %v8098 = vpop.f32.mrb[0].mxu0
      %v8099 = vpop.f32.mrb[0].mxu0
      %v8100 = vadd.f32 0.0, %v8099
      %v8101 = vpop.f32.mrb[0].mxu0
      %8102 = vmatprep.mubr.bf16.mxu0 0
      %8103 = vmatmul.mubr.bf16.gmra.mrb[0].mxu0 %v7960
      %v8104 = vpop.f32.mrb[0].mxu0
      %v8105 = vadd.f32 0.0, %v8104
      %v8106 = vpop.f32.mrb[0].mxu0
      %v8107 = vpop.f32.mrb[0].mxu0
      %v8108 = vadd.f32 0.0, %v8107
      %v8109 = vpop.f32.mrb[0].mxu0
      %8110 = vmatprep.mubr.bf16.mxu0 0
      %8111 = vmatmul.mubr.bf16.gmra.mrb[0].mxu0 %v7963
      %v8112 = vpop.f32.mrb[0].mxu0
      %v8113 = vadd.f32 0.0, %v8112
      %v8114 = vpop.f32.mrb[0].mxu0
      %v8115 = vpop.f32.mrb[0].mxu0
      %v8116 = vadd.f32 0.0, %v8115
      %v8117 = vpop.f32.mrb[0].mxu0
      %8118 = vmatprep.mubr.bf16.mxu0 0
      %8119 = vmatmul.mubr.bf16.gmra.mrb[0].mxu0 %v7966
      %v8120 = vpop.f32.mrb[0].mxu0
      %v8121 = vadd.f32 0.0, %v8120
      %v8122 = vpop.f32.mrb[0].mxu0
      %v8123 = vpop.f32.mrb[0].mxu0
      %v8124 = vadd.f32 0.0, %v8123
      %v8125 = vpop.f32.mrb[0].mxu0
      %8126 = vmatprep.mubr.bf16.mxu0 0
      %8127 = vmatmul.mubr.bf16.gmra.mrb[0].mxu0 %v7969
      %v8128 = vpop.f32.mrb[0].mxu0
      %v8129 = vadd.f32 0.0, %v8128
      %v8130 = vpop.f32.mrb[0].mxu0
      %v8131 = vpop.f32.mrb[0].mxu0
      %v8132 = vadd.f32 0.0, %v8131
      %v8133 = vpop.f32.mrb[0].mxu0
      %8134 = vmatprep.mubr.bf16.mxu0 0
      %8135 = vmatmul.mubr.bf16.gmra.mrb[0].mxu0 %v7972
      %v8136 = vpop.f32.mrb[0].mxu0
      %v8137 = vadd.f32 0.0, %v8136
      %v8138 = vpop.f32.mrb[0].mxu0
      %v8139 = vpop.f32.mrb[0].mxu0
      %v8140 = vadd.f32 0.0, %v8139
      %v8141 = vpop.f32.mrb[0].mxu0
      %8142 = vmatprep.mubr.bf16.mxu0 0
      %8143 = vmatmul.mubr.bf16.gmra.mrb[0].mxu0 %v7975
      %v8144 = vpop.f32.mrb[0].mxu0
      %v8145 = vadd.f32 0.0, %v8144
      %v8146 = vpop.f32.mrb[0].mxu0
      %v8147 = vpop.f32.mrb[0].mxu0
      %v8148 = vadd.f32 0.0, %v8147
      %v8149 = vpop.f32.mrb[0].mxu0
      %8150 = vmatprep.mubr.bf16.mxu0 0
      %8151 = vmatmul.mubr.bf16.gmra.mrb[0].mxu0 %v7978
      %v8152 = vpop.f32.mrb[0].mxu0
      %v8153 = vadd.f32 0.0, %v8152
      %v8154 = vpop.f32.mrb[0].mxu0
      %v8155 = vpop.f32.mrb[0].mxu0
      %v8156 = vadd.f32 0.0, %v8155
      %v8157 = vpop.f32.mrb[0].mxu0
      %8158 = vmatprep.mubr.bf16.mxu0 0
      %8159 = vmatmul.mubr.bf16.gmra.mrb[0].mxu0 %v7981
      %v8160 = vpop.f32.mrb[0].mxu0
      %v8161 = vadd.f32 0.0, %v8160
      %v8162 = vpop.f32.mrb[0].mxu0
      %v8163 = vpop.f32.mrb[0].mxu0
      %v8164 = vadd.f32 0.0, %v8163
      %v8165 = vpop.f32.mrb[0].mxu0
      %8166 = vmatprep.mubr.bf16.mxu0 0
      %8167 = vmatmul.mubr.bf16.gmra.mrb[0].mxu0 %v7984
      %v8168 = vpop.f32.mrb[0].mxu0
      %v8169 = vadd.f32 0.0, %v8168
      %v8170 = vpop.f32.mrb[0].mxu0
      %v8171 = vpop.f32.mrb[0].mxu0
      %v8172 = vadd.f32 0.0, %v8171
      %v8173 = vpop.f32.mrb[0].mxu0
      %8174 = vmatprep.mubr.bf16.mxu0 0
      %8175 = vmatmul.mubr.bf16.gmra.mrb[0].mxu0 %v7987
      %v8176 = vpop.f32.mrb[0].mxu0
      %v8177 = vadd.f32 0.0, %v8176
      %v8178 = vpop.f32.mrb[0].mxu0
      %v8179 = vpop.f32.mrb[0].mxu0
      %v8180 = vadd.f32 0.0, %v8179
      %v8181 = vpop.f32.mrb[0].mxu0
      %8182 = vmatprep.mubr.bf16.mxu0 0
      %8183 = vmatmul.mubr.bf16.gmra.mrb[0].mxu0 %v7990
      %v8184 = vpop.f32.mrb[0].mxu0
      %v8185 = vadd.f32 0.0, %v8184
      %v8186 = vpop.f32.mrb[0].mxu0
      %v8187 = vpop.f32.mrb[0].mxu0
      %v8188 = vadd.f32 0.0, %v8187
      %v8189 = vpop.f32.mrb[0].mxu0
      %8190 = vmatprep.mubr.bf16.mxu0 0
      %8191 = vmatmul.mubr.bf16.gmra.mrb[0].mxu0 %v7993
      %v8192 = vpop.f32.mrb[0].mxu0
      %v8193 = vadd.f32 0.0, %v8192
      %v8194 = vpop.f32.mrb[0].mxu0
      %v8195 = vpop.f32.mrb[0].mxu0
      %v8196 = vpop.f32.mrb[0].mxu0
      %8197 = vdwg.mxu0
      %v8198 = vadd.f32 %v7827, %v8033
      %v8199 = vadd.f32 %v7828, %v8036
      %v8200 = vadd.f32 %v7829, %v8041
      %v8201 = vadd.f32 %v7830, %v8044
      %v8202 = vadd.f32 %v7831, %v8049
      %v8203 = vadd.f32 %v7832, %v8052
      %v8204 = vadd.f32 %v7833, %v8057
      %v8205 = vadd.f32 %v7834, %v8060
      %v8206 = vadd.f32 %v7835, %v8065
      %v8207 = vadd.f32 %v7836, %v8068
      %v8208 = vadd.f32 %v7837, %v8073
      %v8209 = vadd.f32 %v7838, %v8076
      %v8210 = vadd.f32 %v7839, %v8081
      %v8211 = vadd.f32 %v7840, %v8084
      %v8212 = vadd.f32 %v7841, %v8089
      %v8213 = vadd.f32 %v7842, %v8092
      %v8214 = vadd.f32 %v7843, %v8097
      %v8215 = vadd.f32 %v7844, %v8100
      %v8216 = vadd.f32 %v7845, %v8105
      %v8217 = vadd.f32 %v7846, %v8108
      %v8218 = vadd.f32 %v7847, %v8113
      %v8219 = vadd.f32 %v7848, %v8116
      %v8220 = vadd.f32 %v7849, %v8121
      %v8221 = vadd.f32 %v7850, %v8124
      %v8222 = vadd.f32 %v7851, %v8129
      %v8223 = vadd.f32 %v7852, %v8132
      %v8224 = vadd.f32 %v7853, %v8137
      %v8225 = vadd.f32 %v7854, %v8140
      %v8226 = vadd.f32 %v7855, %v8145
      %v8227 = vadd.f32 %v7856, %v8148
      %v8228 = vadd.f32 %v7857, %v8153
      %v8229 = vadd.f32 %v7858, %v8156
      %v8230 = vadd.f32 %v7859, %v8161
      %v8231 = vadd.f32 %v7860, %v8164
      %v8232 = vadd.f32 %v7861, %v8169
      %v8233 = vadd.f32 %v7862, %v8172
      %v8234 = vadd.f32 %v7863, %v8177
      %v8235 = vadd.f32 %v7864, %v8180
      %v8236 = vadd.f32 %v7865, %v8185
      %v8237 = vadd.f32 %v7866, %v8188
      %v8238 = vadd.f32 %v7867, %v8193
      %v8239 = vld [vmem:[#allocation2 + $0x2a] sm:$0xff]
      %v8240 = vld [vmem:[#allocation2 + $0x32] sm:$0xff]
      %v8241 = vld [vmem:[#allocation2 + $0x3a] sm:$0xff]
      %v8242 = vld [vmem:[#allocation2 + $0x42] sm:$0xff]
      %v8243 = vld [vmem:[#allocation2 + $0x4a] sm:$0xff]
      %v8244 = vld [vmem:[#allocation2 + $0x52] sm:$0xff]
      %v8245 = vld [vmem:[#allocation2 + $0x5a] sm:$0xff]
      %v8246 = vld [vmem:[#allocation2 + $0x62] sm:$0xff]
      %v8247 = vld [vmem:[#allocation2 + $0x6a] sm:$0xff]
      %v8248 = vld [vmem:[#allocation2 + $0x72] sm:$0xff]
      %v8249 = vld [vmem:[#allocation2 + $0x7a] sm:$0xff]
      %v8250 = vld [vmem:[#allocation2 + $0x82] sm:$0xff]
      %v8251 = vld [vmem:[#allocation2 + $0x8a] sm:$0xff]
      %v8252 = vld [vmem:[#allocation2 + $0x92] sm:$0xff]
      %v8253 = vld [vmem:[#allocation2 + $0x9a] sm:$0xff]
      %v8254 = vld [vmem:[#allocation2 + $0xa2] sm:$0xff]
      %v8255 = vld [vmem:[#allocation2 + $0xaa] sm:$0xff]
      %v8256 = vld [vmem:[#allocation2 + $0xb2] sm:$0xff]
      %v8257 = vld [vmem:[#allocation2 + $0xba] sm:$0xff]
      %v8258 = vld [vmem:[#allocation2 + $0xc2] sm:$0xff]
      %v8259 = vld [vmem:[#allocation2 + $0xca] sm:$0xff]
      %v8260 = vld [vmem:[#allocation2 + $0xd2] sm:$0xff]
      %v8261 = vld [vmem:[#allocation2 + $0xda] sm:$0xff]
      %v8262 = vld [vmem:[#allocation2 + $0xe2] sm:$0xff]
      %v8263 = vld [vmem:[#allocation2 + $0xea] sm:$0xff]
      %v8264 = vld [vmem:[#allocation2 + $0xf2] sm:$0xff]
      %v8265 = vld [vmem:[#allocation2 + $0xfa] sm:$0xff]
      %v8266 = vld [vmem:[#allocation2 + $0x102] sm:$0xff]
      %v8267 = vld [vmem:[#allocation2 + $0x10a] sm:$0xff]
      %v8268 = vld [vmem:[#allocation2 + $0x112] sm:$0xff]
      %v8269 = vld [vmem:[#allocation2 + $0x11a] sm:$0xff]
      %v8270 = vld [vmem:[#allocation2 + $0x122] sm:$0xff]
      %v8271 = vld [vmem:[#allocation2 + $0x12a] sm:$0xff]
      %v8272 = vld [vmem:[#allocation2 + $0x132] sm:$0xff]
      %v8273 = vld [vmem:[#allocation2 + $0x13a] sm:$0xff]
      %v8274 = vld [vmem:[#allocation2 + $0x142] sm:$0xff]
      %v8275 = vld [vmem:[#allocation2 + $0x14a] sm:$0xff]
      %v8276 = vld [vmem:[#allocation2 + $0x152] sm:$0xff]
      %v8277 = vld [vmem:[#allocation2 + $0x15a] sm:$0xff]
      %v8278 = vld [vmem:[#allocation2 + $0x162] sm:$0xff]
      %v8279 = vld [vmem:[#allocation2 + $0x16a] sm:$0xf]
      %v8280 = vpack.c.bf16 %v8240, %v8239
      %v8281 = vpack.c.bf16 %v8242, %v8241
      %v8282 = vpack.c.bf16 %v8244, %v8243
      %v8283 = vpack.c.bf16 %v8246, %v8245
      %v8284 = vpack.c.bf16 %v8248, %v8247
      %v8285 = vpack.c.bf16 %v8250, %v8249
      %v8286 = vpack.c.bf16 %v8252, %v8251
      %v8287 = vpack.c.bf16 %v8254, %v8253
      %v8288 = vpack.c.bf16 %v8256, %v8255
      %v8289 = vpack.c.bf16 %v8258, %v8257
      %v8290 = vpack.c.bf16 %v8260, %v8259
      %v8291 = vpack.c.bf16 %v8262, %v8261
      %v8292 = vpack.c.bf16 %v8264, %v8263
      %v8293 = vpack.c.bf16 %v8266, %v8265
      %v8294 = vpack.c.bf16 %v8268, %v8267
      %v8295 = vpack.c.bf16 %v8270, %v8269
      %v8296 = vpack.c.bf16 %v8272, %v8271
      %v8297 = vpack.c.bf16 %v8274, %v8273
      %v8298 = vpack.c.bf16 %v8276, %v8275
      %v8299 = vpack.c.bf16 %v8278, %v8277
      %v8300 = vpack.c.bf16 %v8279, %v8279
      %s8301 = scalar_lea.vmem %s8, 7
      %v8302 = vld [vmem:[%s8301] sm:$0x1]
      %v8304 = vsel %vm1715, %v8280, 0
      %v8307 = vsel %vm1715, %v8281, 0
      %v8310 = vsel %vm1715, %v8282, 0
      %v8313 = vsel %vm1715, %v8283, 0
      %v8316 = vsel %vm1715, %v8284, 0
      %v8319 = vsel %vm1715, %v8285, 0
      %v8322 = vsel %vm1715, %v8286, 0
      %v8325 = vsel %vm1715, %v8287, 0
      %v8328 = vsel %vm1715, %v8288, 0
      %v8331 = vsel %vm1715, %v8289, 0
      %v8334 = vsel %vm1715, %v8290, 0
      %v8337 = vsel %vm1715, %v8291, 0
      %v8340 = vsel %vm1715, %v8292, 0
      %v8343 = vsel %vm1715, %v8293, 0
      %v8346 = vsel %vm1715, %v8294, 0
      %v8349 = vsel %vm1715, %v8295, 0
      %v8352 = vsel %vm1715, %v8296, 0
      %v8355 = vsel %vm1715, %v8297, 0
      %v8358 = vsel %vm1715, %v8298, 0
      %v8361 = vsel %vm1715, %v8299, 0
      %v8364 = vsel %vm1715, %v8300, 0
      %v8367 = vsel %vm2241, %v8302, 0
      %8369 = vmatprep.subr.bf16.mxu0 0
      %8370 = vmatpush1.bf16.msra.mxu0 %v8367
      %8371 = vmatprep.subr.bf16.mxu0 0
      %8372 = vmatpush1.bf16.msra.mxu0 0
      %8373 = vmatprep.subr.bf16.mxu0 0
      %8374 = vmatpush1.bf16.msra.mxu0 0
      %8375 = vmatprep.subr.bf16.mxu0 0
      %8376 = vmatpush1.bf16.msra.mxu0 0
      %8377 = vmatprep.subr.bf16.mxu0 0
      %8378 = vmatpush1.bf16.msra.mxu0 0
      %8379 = vmatprep.subr.bf16.mxu0 0
      %8380 = vmatpush1.bf16.msra.mxu0 0
      %8381 = vmatprep.subr.bf16.mxu0 0
      %8382 = vmatpush1.bf16.msra.mxu0 0
      %8383 = vmatprep.subr.bf16.mxu0 0
      %8384 = vmatpush1.bf16.msra.mxu0 0
      %8385 = vmatprep.subr.bf16.mxu0 0
      %8386 = vmatpush1.bf16.msra.mxu0 0
      %8387 = vmatprep.subr.bf16.mxu0 0
      %8388 = vmatpush1.bf16.msra.mxu0 0
      %8389 = vmatprep.subr.bf16.mxu0 0
      %8390 = vmatpush1.bf16.msra.mxu0 0
      %8391 = vmatprep.subr.bf16.mxu0 0
      %8392 = vmatpush1.bf16.msra.mxu0 0
      %8393 = vmatprep.subr.bf16.mxu0 0
      %8394 = vmatpush1.bf16.msra.mxu0 0
      %8395 = vmatprep.subr.bf16.mxu0 0
      %8396 = vmatpush1.bf16.msra.mxu0 0
      %8397 = vmatprep.subr.bf16.mxu0 0
      %8398 = vmatpush1.bf16.msra.mxu0 0
      %8399 = vmatprep.subr.bf16.mxu0 0
      %8400 = vmatpush1.bf16.msra.mxu0 0
      %8401 = vmatprep.mubr.bf16.mxu0 0
      %8402 = vmatmul.mubr.bf16.gmra.mrb[0].mxu0 %v8304
      %v8403 = vpop.f32.mrb[0].mxu0
      %v8404 = vadd.f32 0.0, %v8403
      %v8405 = vpop.f32.mrb[0].mxu0
      %v8406 = vpop.f32.mrb[0].mxu0
      %v8407 = vadd.f32 0.0, %v8406
      %v8408 = vpop.f32.mrb[0].mxu0
      %8409 = vmatprep.mubr.bf16.mxu0 0
      %8410 = vmatmul.mubr.bf16.gmra.mrb[0].mxu0 %v8307
      %v8411 = vpop.f32.mrb[0].mxu0
      %v8412 = vadd.f32 0.0, %v8411
      %v8413 = vpop.f32.mrb[0].mxu0
      %v8414 = vpop.f32.mrb[0].mxu0
      %v8415 = vadd.f32 0.0, %v8414
      %v8416 = vpop.f32.mrb[0].mxu0
      %8417 = vmatprep.mubr.bf16.mxu0 0
      %8418 = vmatmul.mubr.bf16.gmra.mrb[0].mxu0 %v8310
      %v8419 = vpop.f32.mrb[0].mxu0
      %v8420 = vadd.f32 0.0, %v8419
      %v8421 = vpop.f32.mrb[0].mxu0
      %v8422 = vpop.f32.mrb[0].mxu0
      %v8423 = vadd.f32 0.0, %v8422
      %v8424 = vpop.f32.mrb[0].mxu0
      %8425 = vmatprep.mubr.bf16.mxu0 0
      %8426 = vmatmul.mubr.bf16.gmra.mrb[0].mxu0 %v8313
      %v8427 = vpop.f32.mrb[0].mxu0
      %v8428 = vadd.f32 0.0, %v8427
      %v8429 = vpop.f32.mrb[0].mxu0
      %v8430 = vpop.f32.mrb[0].mxu0
      %v8431 = vadd.f32 0.0, %v8430
      %v8432 = vpop.f32.mrb[0].mxu0
      %8433 = vmatprep.mubr.bf16.mxu0 0
      %8434 = vmatmul.mubr.bf16.gmra.mrb[0].mxu0 %v8316
      %v8435 = vpop.f32.mrb[0].mxu0
      %v8436 = vadd.f32 0.0, %v8435
      %v8437 = vpop.f32.mrb[0].mxu0
      %v8438 = vpop.f32.mrb[0].mxu0
      %v8439 = vadd.f32 0.0, %v8438
      %v8440 = vpop.f32.mrb[0].mxu0
      %8441 = vmatprep.mubr.bf16.mxu0 0
      %8442 = vmatmul.mubr.bf16.gmra.mrb[0].mxu0 %v8319
      %v8443 = vpop.f32.mrb[0].mxu0
      %v8444 = vadd.f32 0.0, %v8443
      %v8445 = vpop.f32.mrb[0].mxu0
      %v8446 = vpop.f32.mrb[0].mxu0
      %v8447 = vadd.f32 0.0, %v8446
      %v8448 = vpop.f32.mrb[0].mxu0
      %8449 = vmatprep.mubr.bf16.mxu0 0
      %8450 = vmatmul.mubr.bf16.gmra.mrb[0].mxu0 %v8322
      %v8451 = vpop.f32.mrb[0].mxu0
      %v8452 = vadd.f32 0.0, %v8451
      %v8453 = vpop.f32.mrb[0].mxu0
      %v8454 = vpop.f32.mrb[0].mxu0
      %v8455 = vadd.f32 0.0, %v8454
      %v8456 = vpop.f32.mrb[0].mxu0
      %8457 = vmatprep.mubr.bf16.mxu0 0
      %8458 = vmatmul.mubr.bf16.gmra.mrb[0].mxu0 %v8325
      %v8459 = vpop.f32.mrb[0].mxu0
      %v8460 = vadd.f32 0.0, %v8459
      %v8461 = vpop.f32.mrb[0].mxu0
      %v8462 = vpop.f32.mrb[0].mxu0
      %v8463 = vadd.f32 0.0, %v8462
      %v8464 = vpop.f32.mrb[0].mxu0
      %8465 = vmatprep.mubr.bf16.mxu0 0
      %8466 = vmatmul.mubr.bf16.gmra.mrb[0].mxu0 %v8328
      %v8467 = vpop.f32.mrb[0].mxu0
      %v8468 = vadd.f32 0.0, %v8467
      %v8469 = vpop.f32.mrb[0].mxu0
      %v8470 = vpop.f32.mrb[0].mxu0
      %v8471 = vadd.f32 0.0, %v8470
      %v8472 = vpop.f32.mrb[0].mxu0
      %8473 = vmatprep.mubr.bf16.mxu0 0
      %8474 = vmatmul.mubr.bf16.gmra.mrb[0].mxu0 %v8331
      %v8475 = vpop.f32.mrb[0].mxu0
      %v8476 = vadd.f32 0.0, %v8475
      %v8477 = vpop.f32.mrb[0].mxu0
      %v8478 = vpop.f32.mrb[0].mxu0
      %v8479 = vadd.f32 0.0, %v8478
      %v8480 = vpop.f32.mrb[0].mxu0
      %8481 = vmatprep.mubr.bf16.mxu0 0
      %8482 = vmatmul.mubr.bf16.gmra.mrb[0].mxu0 %v8334
      %v8483 = vpop.f32.mrb[0].mxu0
      %v8484 = vadd.f32 0.0, %v8483
      %v8485 = vpop.f32.mrb[0].mxu0
      %v8486 = vpop.f32.mrb[0].mxu0
      %v8487 = vadd.f32 0.0, %v8486
      %v8488 = vpop.f32.mrb[0].mxu0
      %8489 = vmatprep.mubr.bf16.mxu0 0
      %8490 = vmatmul.mubr.bf16.gmra.mrb[0].mxu0 %v8337
      %v8491 = vpop.f32.mrb[0].mxu0
      %v8492 = vadd.f32 0.0, %v8491
      %v8493 = vpop.f32.mrb[0].mxu0
      %v8494 = vpop.f32.mrb[0].mxu0
      %v8495 = vadd.f32 0.0, %v8494
      %v8496 = vpop.f32.mrb[0].mxu0
      %8497 = vmatprep.mubr.bf16.mxu0 0
      %8498 = vmatmul.mubr.bf16.gmra.mrb[0].mxu0 %v8340
      %v8499 = vpop.f32.mrb[0].mxu0
      %v8500 = vadd.f32 0.0, %v8499
      %v8501 = vpop.f32.mrb[0].mxu0
      %v8502 = vpop.f32.mrb[0].mxu0
      %v8503 = vadd.f32 0.0, %v8502
      %v8504 = vpop.f32.mrb[0].mxu0
      %8505 = vmatprep.mubr.bf16.mxu0 0
      %8506 = vmatmul.mubr.bf16.gmra.mrb[0].mxu0 %v8343
      %v8507 = vpop.f32.mrb[0].mxu0
      %v8508 = vadd.f32 0.0, %v8507
      %v8509 = vpop.f32.mrb[0].mxu0
      %v8510 = vpop.f32.mrb[0].mxu0
      %v8511 = vadd.f32 0.0, %v8510
      %v8512 = vpop.f32.mrb[0].mxu0
      %8513 = vmatprep.mubr.bf16.mxu0 0
      %8514 = vmatmul.mubr.bf16.gmra.mrb[0].mxu0 %v8346
      %v8515 = vpop.f32.mrb[0].mxu0
      %v8516 = vadd.f32 0.0, %v8515
      %v8517 = vpop.f32.mrb[0].mxu0
      %v8518 = vpop.f32.mrb[0].mxu0
      %v8519 = vadd.f32 0.0, %v8518
      %v8520 = vpop.f32.mrb[0].mxu0
      %8521 = vmatprep.mubr.bf16.mxu0 0
      %8522 = vmatmul.mubr.bf16.gmra.mrb[0].mxu0 %v8349
      %v8523 = vpop.f32.mrb[0].mxu0
      %v8524 = vadd.f32 0.0, %v8523
      %v8525 = vpop.f32.mrb[0].mxu0
      %v8526 = vpop.f32.mrb[0].mxu0
      %v8527 = vadd.f32 0.0, %v8526
      %v8528 = vpop.f32.mrb[0].mxu0
      %8529 = vmatprep.mubr.bf16.mxu0 0
      %8530 = vmatmul.mubr.bf16.gmra.mrb[0].mxu0 %v8352
      %v8531 = vpop.f32.mrb[0].mxu0
      %v8532 = vadd.f32 0.0, %v8531
      %v8533 = vpop.f32.mrb[0].mxu0
      %v8534 = vpop.f32.mrb[0].mxu0
      %v8535 = vadd.f32 0.0, %v8534
      %v8536 = vpop.f32.mrb[0].mxu0
      %8537 = vmatprep.mubr.bf16.mxu0 0
      %8538 = vmatmul.mubr.bf16.gmra.mrb[0].mxu0 %v8355
      %v8539 = vpop.f32.mrb[0].mxu0
      %v8540 = vadd.f32 0.0, %v8539
      %v8541 = vpop.f32.mrb[0].mxu0
      %v8542 = vpop.f32.mrb[0].mxu0
      %v8543 = vadd.f32 0.0, %v8542
      %v8544 = vpop.f32.mrb[0].mxu0
      %8545 = vmatprep.mubr.bf16.mxu0 0
      %8546 = vmatmul.mubr.bf16.gmra.mrb[0].mxu0 %v8358
      %v8547 = vpop.f32.mrb[0].mxu0
      %v8548 = vadd.f32 0.0, %v8547
      %v8549 = vpop.f32.mrb[0].mxu0
      %v8550 = vpop.f32.mrb[0].mxu0
      %v8551 = vadd.f32 0.0, %v8550
      %v8552 = vpop.f32.mrb[0].mxu0
      %8553 = vmatprep.mubr.bf16.mxu0 0
      %8554 = vmatmul.mubr.bf16.gmra.mrb[0].mxu0 %v8361
      %v8555 = vpop.f32.mrb[0].mxu0
      %v8556 = vadd.f32 0.0, %v8555
      %v8557 = vpop.f32.mrb[0].mxu0
      %v8558 = vpop.f32.mrb[0].mxu0
      %v8559 = vadd.f32 0.0, %v8558
      %v8560 = vpop.f32.mrb[0].mxu0
      %8561 = vmatprep.mubr.bf16.mxu0 0
      %8562 = vmatmul.mubr.bf16.gmra.mrb[0].mxu0 %v8364
      %v8563 = vpop.f32.mrb[0].mxu0
      %v8564 = vadd.f32 0.0, %v8563
      %v8565 = vpop.f32.mrb[0].mxu0
      %v8566 = vpop.f32.mrb[0].mxu0
      %v8567 = vpop.f32.mrb[0].mxu0
      %8568 = vdwg.mxu0
      %v8569 = vadd.f32 %v8198, %v8404
      %v8570 = vadd.f32 %v8199, %v8407
      %v8571 = vadd.f32 %v8200, %v8412
      %v8572 = vadd.f32 %v8201, %v8415
      %v8573 = vadd.f32 %v8202, %v8420
      %v8574 = vadd.f32 %v8203, %v8423
      %v8575 = vadd.f32 %v8204, %v8428
      %v8576 = vadd.f32 %v8205, %v8431
      %v8577 = vadd.f32 %v8206, %v8436
      %v8578 = vadd.f32 %v8207, %v8439
      %v8579 = vadd.f32 %v8208, %v8444
      %v8580 = vadd.f32 %v8209, %v8447
      %v8581 = vadd.f32 %v8210, %v8452
      %v8582 = vadd.f32 %v8211, %v8455
      %v8583 = vadd.f32 %v8212, %v8460
      %v8584 = vadd.f32 %v8213, %v8463
      %v8585 = vadd.f32 %v8214, %v8468
      %v8586 = vadd.f32 %v8215, %v8471
      %v8587 = vadd.f32 %v8216, %v8476
      %v8588 = vadd.f32 %v8217, %v8479
      %v8589 = vadd.f32 %v8218, %v8484
      %v8590 = vadd.f32 %v8219, %v8487
      %v8591 = vadd.f32 %v8220, %v8492
      %v8592 = vadd.f32 %v8221, %v8495
      %v8593 = vadd.f32 %v8222, %v8500
      %v8594 = vadd.f32 %v8223, %v8503
      %v8595 = vadd.f32 %v8224, %v8508
      %v8596 = vadd.f32 %v8225, %v8511
      %v8597 = vadd.f32 %v8226, %v8516
      %v8598 = vadd.f32 %v8227, %v8519
      %v8599 = vadd.f32 %v8228, %v8524
      %v8600 = vadd.f32 %v8229, %v8527
      %v8601 = vadd.f32 %v8230, %v8532
      %v8602 = vadd.f32 %v8231, %v8535
      %v8603 = vadd.f32 %v8232, %v8540
      %v8604 = vadd.f32 %v8233, %v8543
      %v8605 = vadd.f32 %v8234, %v8548
      %v8606 = vadd.f32 %v8235, %v8551
      %v8607 = vadd.f32 %v8236, %v8556
      %v8608 = vadd.f32 %v8237, %v8559
      %v8609 = vadd.f32 %v8238, %v8564
      %v8610 = vld [vmem:[#allocation2 + $0x2b] sm:$0xff]
      %v8611 = vld [vmem:[#allocation2 + $0x33] sm:$0xff]
      %v8612 = vld [vmem:[#allocation2 + $0x3b] sm:$0xff]
      %v8613 = vld [vmem:[#allocation2 + $0x43] sm:$0xff]
      %v8614 = vld [vmem:[#allocation2 + $0x4b] sm:$0xff]
      %v8615 = vld [vmem:[#allocation2 + $0x53] sm:$0xff]
      %v8616 = vld [vmem:[#allocation2 + $0x5b] sm:$0xff]
      %v8617 = vld [vmem:[#allocation2 + $0x63] sm:$0xff]
      %v8618 = vld [vmem:[#allocation2 + $0x6b] sm:$0xff]
      %v8619 = vld [vmem:[#allocation2 + $0x73] sm:$0xff]
      %v8620 = vld [vmem:[#allocation2 + $0x7b] sm:$0xff]
      %v8621 = vld [vmem:[#allocation2 + $0x83] sm:$0xff]
      %v8622 = vld [vmem:[#allocation2 + $0x8b] sm:$0xff]
      %v8623 = vld [vmem:[#allocation2 + $0x93] sm:$0xff]
      %v8624 = vld [vmem:[#allocation2 + $0x9b] sm:$0xff]
      %v8625 = vld [vmem:[#allocation2 + $0xa3] sm:$0xff]
      %v8626 = vld [vmem:[#allocation2 + $0xab] sm:$0xff]
      %v8627 = vld [vmem:[#allocation2 + $0xb3] sm:$0xff]
      %v8628 = vld [vmem:[#allocation2 + $0xbb] sm:$0xff]
      %v8629 = vld [vmem:[#allocation2 + $0xc3] sm:$0xff]
      %v8630 = vld [vmem:[#allocation2 + $0xcb] sm:$0xff]
      %v8631 = vld [vmem:[#allocation2 + $0xd3] sm:$0xff]
      %v8632 = vld [vmem:[#allocation2 + $0xdb] sm:$0xff]
      %v8633 = vld [vmem:[#allocation2 + $0xe3] sm:$0xff]
      %v8634 = vld [vmem:[#allocation2 + $0xeb] sm:$0xff]
      %v8635 = vld [vmem:[#allocation2 + $0xf3] sm:$0xff]
      %v8636 = vld [vmem:[#allocation2 + $0xfb] sm:$0xff]
      %v8637 = vld [vmem:[#allocation2 + $0x103] sm:$0xff]
      %v8638 = vld [vmem:[#allocation2 + $0x10b] sm:$0xff]
      %v8639 = vld [vmem:[#allocation2 + $0x113] sm:$0xff]
      %v8640 = vld [vmem:[#allocation2 + $0x11b] sm:$0xff]
      %v8641 = vld [vmem:[#allocation2 + $0x123] sm:$0xff]
      %v8642 = vld [vmem:[#allocation2 + $0x12b] sm:$0xff]
      %v8643 = vld [vmem:[#allocation2 + $0x133] sm:$0xff]
      %v8644 = vld [vmem:[#allocation2 + $0x13b] sm:$0xff]
      %v8645 = vld [vmem:[#allocation2 + $0x143] sm:$0xff]
      %v8646 = vld [vmem:[#allocation2 + $0x14b] sm:$0xff]
      %v8647 = vld [vmem:[#allocation2 + $0x153] sm:$0xff]
      %v8648 = vld [vmem:[#allocation2 + $0x15b] sm:$0xff]
      %v8649 = vld [vmem:[#allocation2 + $0x163] sm:$0xff]
      %v8650 = vld [vmem:[#allocation2 + $0x16b] sm:$0xf]
      %v8651 = vpack.c.bf16 %v8611, %v8610
      %v8652 = vpack.c.bf16 %v8613, %v8612
      %v8653 = vpack.c.bf16 %v8615, %v8614
      %v8654 = vpack.c.bf16 %v8617, %v8616
      %v8655 = vpack.c.bf16 %v8619, %v8618
      %v8656 = vpack.c.bf16 %v8621, %v8620
      %v8657 = vpack.c.bf16 %v8623, %v8622
      %v8658 = vpack.c.bf16 %v8625, %v8624
      %v8659 = vpack.c.bf16 %v8627, %v8626
      %v8660 = vpack.c.bf16 %v8629, %v8628
      %v8661 = vpack.c.bf16 %v8631, %v8630
      %v8662 = vpack.c.bf16 %v8633, %v8632
      %v8663 = vpack.c.bf16 %v8635, %v8634
      %v8664 = vpack.c.bf16 %v8637, %v8636
      %v8665 = vpack.c.bf16 %v8639, %v8638
      %v8666 = vpack.c.bf16 %v8641, %v8640
      %v8667 = vpack.c.bf16 %v8643, %v8642
      %v8668 = vpack.c.bf16 %v8645, %v8644
      %v8669 = vpack.c.bf16 %v8647, %v8646
      %v8670 = vpack.c.bf16 %v8649, %v8648
      %v8671 = vpack.c.bf16 %v8650, %v8650
      %s8672 = scalar_lea.vmem %s8, 8
      %v8673 = vld [vmem:[%s8672] sm:$0x1]
      %v8675 = vsel %vm1715, %v8651, 0
      %v8678 = vsel %vm1715, %v8652, 0
      %v8681 = vsel %vm1715, %v8653, 0
      %v8684 = vsel %vm1715, %v8654, 0
      %v8687 = vsel %vm1715, %v8655, 0
      %v8690 = vsel %vm1715, %v8656, 0
      %v8693 = vsel %vm1715, %v8657, 0
      %v8696 = vsel %vm1715, %v8658, 0
      %v8699 = vsel %vm1715, %v8659, 0
      %v8702 = vsel %vm1715, %v8660, 0
      %v8705 = vsel %vm1715, %v8661, 0
      %v8708 = vsel %vm1715, %v8662, 0
      %v8711 = vsel %vm1715, %v8663, 0
      %v8714 = vsel %vm1715, %v8664, 0
      %v8717 = vsel %vm1715, %v8665, 0
      %v8720 = vsel %vm1715, %v8666, 0
      %v8723 = vsel %vm1715, %v8667, 0
      %v8726 = vsel %vm1715, %v8668, 0
      %v8729 = vsel %vm1715, %v8669, 0
      %v8732 = vsel %vm1715, %v8670, 0
      %v8735 = vsel %vm1715, %v8671, 0
      %v8738 = vsel %vm2241, %v8673, 0
      %8740 = vmatprep.subr.bf16.mxu0 0
      %8741 = vmatpush1.bf16.msra.mxu0 %v8738
      %8742 = vmatprep.subr.bf16.mxu0 0
      %8743 = vmatpush1.bf16.msra.mxu0 0
      %8744 = vmatprep.subr.bf16.mxu0 0
      %8745 = vmatpush1.bf16.msra.mxu0 0
      %8746 = vmatprep.subr.bf16.mxu0 0
      %8747 = vmatpush1.bf16.msra.mxu0 0
      %8748 = vmatprep.subr.bf16.mxu0 0
      %8749 = vmatpush1.bf16.msra.mxu0 0
      %8750 = vmatprep.subr.bf16.mxu0 0
      %8751 = vmatpush1.bf16.msra.mxu0 0
      %8752 = vmatprep.subr.bf16.mxu0 0
      %8753 = vmatpush1.bf16.msra.mxu0 0
      %8754 = vmatprep.subr.bf16.mxu0 0
      %8755 = vmatpush1.bf16.msra.mxu0 0
      %8756 = vmatprep.subr.bf16.mxu0 0
      %8757 = vmatpush1.bf16.msra.mxu0 0
      %8758 = vmatprep.subr.bf16.mxu0 0
      %8759 = vmatpush1.bf16.msra.mxu0 0
      %8760 = vmatprep.subr.bf16.mxu0 0
      %8761 = vmatpush1.bf16.msra.mxu0 0
      %8762 = vmatprep.subr.bf16.mxu0 0
      %8763 = vmatpush1.bf16.msra.mxu0 0
      %8764 = vmatprep.subr.bf16.mxu0 0
      %8765 = vmatpush1.bf16.msra.mxu0 0
      %8766 = vmatprep.subr.bf16.mxu0 0
      %8767 = vmatpush1.bf16.msra.mxu0 0
      %8768 = vmatprep.subr.bf16.mxu0 0
      %8769 = vmatpush1.bf16.msra.mxu0 0
      %8770 = vmatprep.subr.bf16.mxu0 0
      %8771 = vmatpush1.bf16.msra.mxu0 0
      %8772 = vmatprep.mubr.bf16.mxu0 0
      %8773 = vmatmul.mubr.bf16.gmra.mrb[0].mxu0 %v8675
      %v8774 = vpop.f32.mrb[0].mxu0
      %v8775 = vadd.f32 0.0, %v8774
      %v8776 = vpop.f32.mrb[0].mxu0
      %v8777 = vpop.f32.mrb[0].mxu0
      %v8778 = vadd.f32 0.0, %v8777
      %v8779 = vpop.f32.mrb[0].mxu0
      %8780 = vmatprep.mubr.bf16.mxu0 0
      %8781 = vmatmul.mubr.bf16.gmra.mrb[0].mxu0 %v8678
      %v8782 = vpop.f32.mrb[0].mxu0
      %v8783 = vadd.f32 0.0, %v8782
      %v8784 = vpop.f32.mrb[0].mxu0
      %v8785 = vpop.f32.mrb[0].mxu0
      %v8786 = vadd.f32 0.0, %v8785
      %v8787 = vpop.f32.mrb[0].mxu0
      %8788 = vmatprep.mubr.bf16.mxu0 0
      %8789 = vmatmul.mubr.bf16.gmra.mrb[0].mxu0 %v8681
      %v8790 = vpop.f32.mrb[0].mxu0
      %v8791 = vadd.f32 0.0, %v8790
      %v8792 = vpop.f32.mrb[0].mxu0
      %v8793 = vpop.f32.mrb[0].mxu0
      %v8794 = vadd.f32 0.0, %v8793
      %v8795 = vpop.f32.mrb[0].mxu0
      %8796 = vmatprep.mubr.bf16.mxu0 0
      %8797 = vmatmul.mubr.bf16.gmra.mrb[0].mxu0 %v8684
      %v8798 = vpop.f32.mrb[0].mxu0
      %v8799 = vadd.f32 0.0, %v8798
      %v8800 = vpop.f32.mrb[0].mxu0
      %v8801 = vpop.f32.mrb[0].mxu0
      %v8802 = vadd.f32 0.0, %v8801
      %v8803 = vpop.f32.mrb[0].mxu0
      %8804 = vmatprep.mubr.bf16.mxu0 0
      %8805 = vmatmul.mubr.bf16.gmra.mrb[0].mxu0 %v8687
      %v8806 = vpop.f32.mrb[0].mxu0
      %v8807 = vadd.f32 0.0, %v8806
      %v8808 = vpop.f32.mrb[0].mxu0
      %v8809 = vpop.f32.mrb[0].mxu0
      %v8810 = vadd.f32 0.0, %v8809
      %v8811 = vpop.f32.mrb[0].mxu0
      %8812 = vmatprep.mubr.bf16.mxu0 0
      %8813 = vmatmul.mubr.bf16.gmra.mrb[0].mxu0 %v8690
      %v8814 = vpop.f32.mrb[0].mxu0
      %v8815 = vadd.f32 0.0, %v8814
      %v8816 = vpop.f32.mrb[0].mxu0
      %v8817 = vpop.f32.mrb[0].mxu0
      %v8818 = vadd.f32 0.0, %v8817
      %v8819 = vpop.f32.mrb[0].mxu0
      %8820 = vmatprep.mubr.bf16.mxu0 0
      %8821 = vmatmul.mubr.bf16.gmra.mrb[0].mxu0 %v8693
      %v8822 = vpop.f32.mrb[0].mxu0
      %v8823 = vadd.f32 0.0, %v8822
      %v8824 = vpop.f32.mrb[0].mxu0
      %v8825 = vpop.f32.mrb[0].mxu0
      %v8826 = vadd.f32 0.0, %v8825
      %v8827 = vpop.f32.mrb[0].mxu0
      %8828 = vmatprep.mubr.bf16.mxu0 0
      %8829 = vmatmul.mubr.bf16.gmra.mrb[0].mxu0 %v8696
      %v8830 = vpop.f32.mrb[0].mxu0
      %v8831 = vadd.f32 0.0, %v8830
      %v8832 = vpop.f32.mrb[0].mxu0
      %v8833 = vpop.f32.mrb[0].mxu0
      %v8834 = vadd.f32 0.0, %v8833
      %v8835 = vpop.f32.mrb[0].mxu0
      %8836 = vmatprep.mubr.bf16.mxu0 0
      %8837 = vmatmul.mubr.bf16.gmra.mrb[0].mxu0 %v8699
      %v8838 = vpop.f32.mrb[0].mxu0
      %v8839 = vadd.f32 0.0, %v8838
      %v8840 = vpop.f32.mrb[0].mxu0
      %v8841 = vpop.f32.mrb[0].mxu0
      %v8842 = vadd.f32 0.0, %v8841
      %v8843 = vpop.f32.mrb[0].mxu0
      %8844 = vmatprep.mubr.bf16.mxu0 0
      %8845 = vmatmul.mubr.bf16.gmra.mrb[0].mxu0 %v8702
      %v8846 = vpop.f32.mrb[0].mxu0
      %v8847 = vadd.f32 0.0, %v8846
      %v8848 = vpop.f32.mrb[0].mxu0
      %v8849 = vpop.f32.mrb[0].mxu0
      %v8850 = vadd.f32 0.0, %v8849
      %v8851 = vpop.f32.mrb[0].mxu0
      %8852 = vmatprep.mubr.bf16.mxu0 0
      %8853 = vmatmul.mubr.bf16.gmra.mrb[0].mxu0 %v8705
      %v8854 = vpop.f32.mrb[0].mxu0
      %v8855 = vadd.f32 0.0, %v8854
      %v8856 = vpop.f32.mrb[0].mxu0
      %v8857 = vpop.f32.mrb[0].mxu0
      %v8858 = vadd.f32 0.0, %v8857
      %v8859 = vpop.f32.mrb[0].mxu0
      %8860 = vmatprep.mubr.bf16.mxu0 0
      %8861 = vmatmul.mubr.bf16.gmra.mrb[0].mxu0 %v8708
      %v8862 = vpop.f32.mrb[0].mxu0
      %v8863 = vadd.f32 0.0, %v8862
      %v8864 = vpop.f32.mrb[0].mxu0
      %v8865 = vpop.f32.mrb[0].mxu0
      %v8866 = vadd.f32 0.0, %v8865
      %v8867 = vpop.f32.mrb[0].mxu0
      %8868 = vmatprep.mubr.bf16.mxu0 0
      %8869 = vmatmul.mubr.bf16.gmra.mrb[0].mxu0 %v8711
      %v8870 = vpop.f32.mrb[0].mxu0
      %v8871 = vadd.f32 0.0, %v8870
      %v8872 = vpop.f32.mrb[0].mxu0
      %v8873 = vpop.f32.mrb[0].mxu0
      %v8874 = vadd.f32 0.0, %v8873
      %v8875 = vpop.f32.mrb[0].mxu0
      %8876 = vmatprep.mubr.bf16.mxu0 0
      %8877 = vmatmul.mubr.bf16.gmra.mrb[0].mxu0 %v8714
      %v8878 = vpop.f32.mrb[0].mxu0
      %v8879 = vadd.f32 0.0, %v8878
      %v8880 = vpop.f32.mrb[0].mxu0
      %v8881 = vpop.f32.mrb[0].mxu0
      %v8882 = vadd.f32 0.0, %v8881
      %v8883 = vpop.f32.mrb[0].mxu0
      %8884 = vmatprep.mubr.bf16.mxu0 0
      %8885 = vmatmul.mubr.bf16.gmra.mrb[0].mxu0 %v8717
      %v8886 = vpop.f32.mrb[0].mxu0
      %v8887 = vadd.f32 0.0, %v8886
      %v8888 = vpop.f32.mrb[0].mxu0
      %v8889 = vpop.f32.mrb[0].mxu0
      %v8890 = vadd.f32 0.0, %v8889
      %v8891 = vpop.f32.mrb[0].mxu0
      %8892 = vmatprep.mubr.bf16.mxu0 0
      %8893 = vmatmul.mubr.bf16.gmra.mrb[0].mxu0 %v8720
      %v8894 = vpop.f32.mrb[0].mxu0
      %v8895 = vadd.f32 0.0, %v8894
      %v8896 = vpop.f32.mrb[0].mxu0
      %v8897 = vpop.f32.mrb[0].mxu0
      %v8898 = vadd.f32 0.0, %v8897
      %v8899 = vpop.f32.mrb[0].mxu0
      %8900 = vmatprep.mubr.bf16.mxu0 0
      %8901 = vmatmul.mubr.bf16.gmra.mrb[0].mxu0 %v8723
      %v8902 = vpop.f32.mrb[0].mxu0
      %v8903 = vadd.f32 0.0, %v8902
      %v8904 = vpop.f32.mrb[0].mxu0
      %v8905 = vpop.f32.mrb[0].mxu0
      %v8906 = vadd.f32 0.0, %v8905
      %v8907 = vpop.f32.mrb[0].mxu0
      %8908 = vmatprep.mubr.bf16.mxu0 0
      %8909 = vmatmul.mubr.bf16.gmra.mrb[0].mxu0 %v8726
      %v8910 = vpop.f32.mrb[0].mxu0
      %v8911 = vadd.f32 0.0, %v8910
      %v8912 = vpop.f32.mrb[0].mxu0
      %v8913 = vpop.f32.mrb[0].mxu0
      %v8914 = vadd.f32 0.0, %v8913
      %v8915 = vpop.f32.mrb[0].mxu0
      %8916 = vmatprep.mubr.bf16.mxu0 0
      %8917 = vmatmul.mubr.bf16.gmra.mrb[0].mxu0 %v8729
      %v8918 = vpop.f32.mrb[0].mxu0
      %v8919 = vadd.f32 0.0, %v8918
      %v8920 = vpop.f32.mrb[0].mxu0
      %v8921 = vpop.f32.mrb[0].mxu0
      %v8922 = vadd.f32 0.0, %v8921
      %v8923 = vpop.f32.mrb[0].mxu0
      %8924 = vmatprep.mubr.bf16.mxu0 0
      %8925 = vmatmul.mubr.bf16.gmra.mrb[0].mxu0 %v8732
      %v8926 = vpop.f32.mrb[0].mxu0
      %v8927 = vadd.f32 0.0, %v8926
      %v8928 = vpop.f32.mrb[0].mxu0
      %v8929 = vpop.f32.mrb[0].mxu0
      %v8930 = vadd.f32 0.0, %v8929
      %v8931 = vpop.f32.mrb[0].mxu0
      %8932 = vmatprep.mubr.bf16.mxu0 0
      %8933 = vmatmul.mubr.bf16.gmra.mrb[0].mxu0 %v8735
      %v8934 = vpop.f32.mrb[0].mxu0
      %v8935 = vadd.f32 0.0, %v8934
      %v8936 = vpop.f32.mrb[0].mxu0
      %v8937 = vpop.f32.mrb[0].mxu0
      %v8938 = vpop.f32.mrb[0].mxu0
      %8939 = vdwg.mxu0
      %v8940 = vadd.f32 %v8569, %v8775
      %v8941 = vadd.f32 %v8570, %v8778
      %v8942 = vadd.f32 %v8571, %v8783
      %v8943 = vadd.f32 %v8572, %v8786
      %v8944 = vadd.f32 %v8573, %v8791
      %v8945 = vadd.f32 %v8574, %v8794
      %v8946 = vadd.f32 %v8575, %v8799
      %v8947 = vadd.f32 %v8576, %v8802
      %v8948 = vadd.f32 %v8577, %v8807
      %v8949 = vadd.f32 %v8578, %v8810
      %v8950 = vadd.f32 %v8579, %v8815
      %v8951 = vadd.f32 %v8580, %v8818
      %v8952 = vadd.f32 %v8581, %v8823
      %v8953 = vadd.f32 %v8582, %v8826
      %v8954 = vadd.f32 %v8583, %v8831
      %v8955 = vadd.f32 %v8584, %v8834
      %v8956 = vadd.f32 %v8585, %v8839
      %v8957 = vadd.f32 %v8586, %v8842
      %v8958 = vadd.f32 %v8587, %v8847
      %v8959 = vadd.f32 %v8588, %v8850
      %v8960 = vadd.f32 %v8589, %v8855
      %v8961 = vadd.f32 %v8590, %v8858
      %v8962 = vadd.f32 %v8591, %v8863
      %v8963 = vadd.f32 %v8592, %v8866
      %v8964 = vadd.f32 %v8593, %v8871
      %v8965 = vadd.f32 %v8594, %v8874
      %v8966 = vadd.f32 %v8595, %v8879
      %v8967 = vadd.f32 %v8596, %v8882
      %v8968 = vadd.f32 %v8597, %v8887
      %v8969 = vadd.f32 %v8598, %v8890
      %v8970 = vadd.f32 %v8599, %v8895
      %v8971 = vadd.f32 %v8600, %v8898
      %v8972 = vadd.f32 %v8601, %v8903
      %v8973 = vadd.f32 %v8602, %v8906
      %v8974 = vadd.f32 %v8603, %v8911
      %v8975 = vadd.f32 %v8604, %v8914
      %v8976 = vadd.f32 %v8605, %v8919
      %v8977 = vadd.f32 %v8606, %v8922
      %v8978 = vadd.f32 %v8607, %v8927
      %v8979 = vadd.f32 %v8608, %v8930
      %v8980 = vadd.f32 %v8609, %v8935
      %v8981 = vld [vmem:[%s9] sm:$0x1]
      %v8983 = vlaneseq
      %v8984 = vshrl.u32 %v8983, 7
      %v8985 = vsub.s32 0, %v8984
      %v8986 = vrot.slane %v8981, %v8985
      %v8988 = vadd.f32 %v8940, %v8986
      %v8989 = vadd.f32 %v8941, %v8986
      %v8990 = vadd.f32 %v8942, %v8986
      %v8991 = vadd.f32 %v8943, %v8986
      %v8992 = vadd.f32 %v8944, %v8986
      %v8993 = vadd.f32 %v8945, %v8986
      %v8994 = vadd.f32 %v8946, %v8986
      %v8995 = vadd.f32 %v8947, %v8986
      %v8996 = vadd.f32 %v8948, %v8986
      %v8997 = vadd.f32 %v8949, %v8986
      %v8998 = vadd.f32 %v8950, %v8986
      %v8999 = vadd.f32 %v8951, %v8986
      %v9000 = vadd.f32 %v8952, %v8986
      %v9001 = vadd.f32 %v8953, %v8986
      %v9002 = vadd.f32 %v8954, %v8986
      %v9003 = vadd.f32 %v8955, %v8986
      %v9004 = vadd.f32 %v8956, %v8986
      %v9005 = vadd.f32 %v8957, %v8986
      %v9006 = vadd.f32 %v8958, %v8986
      %v9007 = vadd.f32 %v8959, %v8986
      %v9008 = vadd.f32 %v8960, %v8986
      %v9009 = vadd.f32 %v8961, %v8986
      %v9010 = vadd.f32 %v8962, %v8986
      %v9011 = vadd.f32 %v8963, %v8986
      %v9012 = vadd.f32 %v8964, %v8986
      %v9013 = vadd.f32 %v8965, %v8986
      %v9014 = vadd.f32 %v8966, %v8986
      %v9015 = vadd.f32 %v8967, %v8986
      %v9016 = vadd.f32 %v8968, %v8986
      %v9017 = vadd.f32 %v8969, %v8986
      %v9018 = vadd.f32 %v8970, %v8986
      %v9019 = vadd.f32 %v8971, %v8986
      %v9020 = vadd.f32 %v8972, %v8986
      %v9021 = vadd.f32 %v8973, %v8986
      %v9022 = vadd.f32 %v8974, %v8986
      %v9023 = vadd.f32 %v8975, %v8986
      %v9024 = vadd.f32 %v8976, %v8986
      %v9025 = vadd.f32 %v8977, %v8986
      %v9026 = vadd.f32 %v8978, %v8986
      %v9027 = vadd.f32 %v8979, %v8986
      %v9028 = vadd.f32 %v8980, %v8986
      %v9029 = vxor.u32 %v8988, 2147483648
      %v9030 = vxor.u32 %v8989, 2147483648
      %v9031 = vxor.u32 %v8990, 2147483648
      %v9032 = vxor.u32 %v8991, 2147483648
      %v9033 = vxor.u32 %v8992, 2147483648
      %v9034 = vxor.u32 %v8993, 2147483648
      %v9035 = vxor.u32 %v8994, 2147483648
      %v9036 = vxor.u32 %v8995, 2147483648
      %v9037 = vxor.u32 %v8996, 2147483648
      %v9038 = vxor.u32 %v8997, 2147483648
      %v9039 = vxor.u32 %v8998, 2147483648
      %v9040 = vxor.u32 %v8999, 2147483648
      %v9041 = vxor.u32 %v9000, 2147483648
      %v9042 = vxor.u32 %v9001, 2147483648
      %v9043 = vxor.u32 %v9002, 2147483648
      %v9044 = vxor.u32 %v9003, 2147483648
      %v9045 = vxor.u32 %v9004, 2147483648
      %v9046 = vxor.u32 %v9005, 2147483648
      %v9047 = vxor.u32 %v9006, 2147483648
      %v9048 = vxor.u32 %v9007, 2147483648
      %v9049 = vxor.u32 %v9008, 2147483648
      %v9050 = vxor.u32 %v9009, 2147483648
      %v9051 = vxor.u32 %v9010, 2147483648
      %v9052 = vxor.u32 %v9011, 2147483648
      %v9053 = vxor.u32 %v9012, 2147483648
      %v9054 = vxor.u32 %v9013, 2147483648
      %v9055 = vxor.u32 %v9014, 2147483648
      %v9056 = vxor.u32 %v9015, 2147483648
      %v9057 = vxor.u32 %v9016, 2147483648
      %v9058 = vxor.u32 %v9017, 2147483648
      %v9059 = vxor.u32 %v9018, 2147483648
      %v9060 = vxor.u32 %v9019, 2147483648
      %v9061 = vxor.u32 %v9020, 2147483648
      %v9062 = vxor.u32 %v9021, 2147483648
      %v9063 = vxor.u32 %v9022, 2147483648
      %v9064 = vxor.u32 %v9023, 2147483648
      %v9065 = vxor.u32 %v9024, 2147483648
      %v9066 = vxor.u32 %v9025, 2147483648
      %v9067 = vxor.u32 %v9026, 2147483648
      %v9068 = vxor.u32 %v9027, 2147483648
      %v9069 = vxor.u32 %v9028, 2147483648
      %v9070 = vmul.f32 %v9029, 1.442695
      %v9071 = vpow.pop %v9070
      %v9072 = vmul.f32 %v9030, 1.442695
      %v9073 = vpow.pop %v9072
      %v9074 = vmul.f32 %v9031, 1.442695
      %v9075 = vpow.pop %v9074
      %v9076 = vmul.f32 %v9032, 1.442695
      %v9077 = vpow.pop %v9076
      %v9078 = vmul.f32 %v9033, 1.442695
      %v9079 = vpow.pop %v9078
      %v9080 = vmul.f32 %v9034, 1.442695
      %v9081 = vpow.pop %v9080
      %v9082 = vmul.f32 %v9035, 1.442695
      %v9083 = vpow.pop %v9082
      %v9084 = vmul.f32 %v9036, 1.442695
      %v9085 = vpow.pop %v9084
      %v9086 = vmul.f32 %v9037, 1.442695
      %v9087 = vpow.pop %v9086
      %v9088 = vmul.f32 %v9038, 1.442695
      %v9089 = vpow.pop %v9088
      %v9090 = vmul.f32 %v9039, 1.442695
      %v9091 = vpow.pop %v9090
      %v9092 = vmul.f32 %v9040, 1.442695
      %v9093 = vpow.pop %v9092
      %v9094 = vmul.f32 %v9041, 1.442695
      %v9095 = vpow.pop %v9094
      %v9096 = vmul.f32 %v9042, 1.442695
      %v9097 = vpow.pop %v9096
      %v9098 = vmul.f32 %v9043, 1.442695
      %v9099 = vpow.pop %v9098
      %v9100 = vmul.f32 %v9044, 1.442695
      %v9101 = vpow.pop %v9100
      %v9102 = vmul.f32 %v9045, 1.442695
      %v9103 = vpow.pop %v9102
      %v9104 = vmul.f32 %v9046, 1.442695
      %v9105 = vpow.pop %v9104
      %v9106 = vmul.f32 %v9047, 1.442695
      %v9107 = vpow.pop %v9106
      %v9108 = vmul.f32 %v9048, 1.442695
      %v9109 = vpow.pop %v9108
      %v9110 = vmul.f32 %v9049, 1.442695
      %v9111 = vpow.pop %v9110
      %v9112 = vmul.f32 %v9050, 1.442695
      %v9113 = vpow.pop %v9112
      %v9114 = vmul.f32 %v9051, 1.442695
      %v9115 = vpow.pop %v9114
      %v9116 = vmul.f32 %v9052, 1.442695
      %v9117 = vpow.pop %v9116
      %v9118 = vmul.f32 %v9053, 1.442695
      %v9119 = vpow.pop %v9118
      %v9120 = vmul.f32 %v9054, 1.442695
      %v9121 = vpow.pop %v9120
      %v9122 = vmul.f32 %v9055, 1.442695
      %v9123 = vpow.pop %v9122
      %v9124 = vmul.f32 %v9056, 1.442695
      %v9125 = vpow.pop %v9124
      %v9126 = vmul.f32 %v9057, 1.442695
      %v9127 = vpow.pop %v9126
      %v9128 = vmul.f32 %v9058, 1.442695
      %v9129 = vpow.pop %v9128
      %v9130 = vmul.f32 %v9059, 1.442695
      %v9131 = vpow.pop %v9130
      %v9132 = vmul.f32 %v9060, 1.442695
      %v9133 = vpow.pop %v9132
      %v9134 = vmul.f32 %v9061, 1.442695
      %v9135 = vpow.pop %v9134
      %v9136 = vmul.f32 %v9062, 1.442695
      %v9137 = vpow.pop %v9136
      %v9138 = vmul.f32 %v9063, 1.442695
      %v9139 = vpow.pop %v9138
      %v9140 = vmul.f32 %v9064, 1.442695
      %v9141 = vpow.pop %v9140
      %v9142 = vmul.f32 %v9065, 1.442695
      %v9143 = vpow.pop %v9142
      %v9144 = vmul.f32 %v9066, 1.442695
      %v9145 = vpow.pop %v9144
      %v9146 = vmul.f32 %v9067, 1.442695
      %v9147 = vpow.pop %v9146
      %v9148 = vmul.f32 %v9068, 1.442695
      %v9149 = vpow.pop %v9148
      %v9150 = vmul.f32 %v9069, 1.442695
      %v9151 = vpow.pop %v9150
      %v9152 = vadd.f32 %v9071, 1.0
      %v9153 = vadd.f32 %v9073, 1.0
      %v9154 = vadd.f32 %v9075, 1.0
      %v9155 = vadd.f32 %v9077, 1.0
      %v9156 = vadd.f32 %v9079, 1.0
      %v9157 = vadd.f32 %v9081, 1.0
      %v9158 = vadd.f32 %v9083, 1.0
      %v9159 = vadd.f32 %v9085, 1.0
      %v9160 = vadd.f32 %v9087, 1.0
      %v9161 = vadd.f32 %v9089, 1.0
      %v9162 = vadd.f32 %v9091, 1.0
      %v9163 = vadd.f32 %v9093, 1.0
      %v9164 = vadd.f32 %v9095, 1.0
      %v9165 = vadd.f32 %v9097, 1.0
      %v9166 = vadd.f32 %v9099, 1.0
      %v9167 = vadd.f32 %v9101, 1.0
      %v9168 = vadd.f32 %v9103, 1.0
      %v9169 = vadd.f32 %v9105, 1.0
      %v9170 = vadd.f32 %v9107, 1.0
      %v9171 = vadd.f32 %v9109, 1.0
      %v9172 = vadd.f32 %v9111, 1.0
      %v9173 = vadd.f32 %v9113, 1.0
      %v9174 = vadd.f32 %v9115, 1.0
      %v9175 = vadd.f32 %v9117, 1.0
      %v9176 = vadd.f32 %v9119, 1.0
      %v9177 = vadd.f32 %v9121, 1.0
      %v9178 = vadd.f32 %v9123, 1.0
      %v9179 = vadd.f32 %v9125, 1.0
      %v9180 = vadd.f32 %v9127, 1.0
      %v9181 = vadd.f32 %v9129, 1.0
      %v9182 = vadd.f32 %v9131, 1.0
      %v9183 = vadd.f32 %v9133, 1.0
      %v9184 = vadd.f32 %v9135, 1.0
      %v9185 = vadd.f32 %v9137, 1.0
      %v9186 = vadd.f32 %v9139, 1.0
      %v9187 = vadd.f32 %v9141, 1.0
      %v9188 = vadd.f32 %v9143, 1.0
      %v9189 = vadd.f32 %v9145, 1.0
      %v9190 = vadd.f32 %v9147, 1.0
      %v9191 = vadd.f32 %v9149, 1.0
      %v9192 = vadd.f32 %v9151, 1.0
      %v9193 = vrcp.pop %v9152
      %v9194 = vmul.f32 1.0, %v9193
      %v9195 = vrcp.pop %v9153
      %v9196 = vmul.f32 1.0, %v9195
      %v9197 = vrcp.pop %v9154
      %v9198 = vmul.f32 1.0, %v9197
      %v9199 = vrcp.pop %v9155
      %v9200 = vmul.f32 1.0, %v9199
      %v9201 = vrcp.pop %v9156
      %v9202 = vmul.f32 1.0, %v9201
      %v9203 = vrcp.pop %v9157
      %v9204 = vmul.f32 1.0, %v9203
      %v9205 = vrcp.pop %v9158
      %v9206 = vmul.f32 1.0, %v9205
      %v9207 = vrcp.pop %v9159
      %v9208 = vmul.f32 1.0, %v9207
      %v9209 = vrcp.pop %v9160
      %v9210 = vmul.f32 1.0, %v9209
      %v9211 = vrcp.pop %v9161
      %v9212 = vmul.f32 1.0, %v9211
      %v9213 = vrcp.pop %v9162
      %v9214 = vmul.f32 1.0, %v9213
      %v9215 = vrcp.pop %v9163
      %v9216 = vmul.f32 1.0, %v9215
      %v9217 = vrcp.pop %v9164
      %v9218 = vmul.f32 1.0, %v9217
      %v9219 = vrcp.pop %v9165
      %v9220 = vmul.f32 1.0, %v9219
      %v9221 = vrcp.pop %v9166
      %v9222 = vmul.f32 1.0, %v9221
      %v9223 = vrcp.pop %v9167
      %v9224 = vmul.f32 1.0, %v9223
      %v9225 = vrcp.pop %v9168
      %v9226 = vmul.f32 1.0, %v9225
      %v9227 = vrcp.pop %v9169
      %v9228 = vmul.f32 1.0, %v9227
      %v9229 = vrcp.pop %v9170
      %v9230 = vmul.f32 1.0, %v9229
      %v9231 = vrcp.pop %v9171
      %v9232 = vmul.f32 1.0, %v9231
      %v9233 = vrcp.pop %v9172
      %v9234 = vmul.f32 1.0, %v9233
      %v9235 = vrcp.pop %v9173
      %v9236 = vmul.f32 1.0, %v9235
      %v9237 = vrcp.pop %v9174
      %v9238 = vmul.f32 1.0, %v9237
      %v9239 = vrcp.pop %v9175
      %v9240 = vmul.f32 1.0, %v9239
      %v9241 = vrcp.pop %v9176
      %v9242 = vmul.f32 1.0, %v9241
      %v9243 = vrcp.pop %v9177
      %v9244 = vmul.f32 1.0, %v9243
      %v9245 = vrcp.pop %v9178
      %v9246 = vmul.f32 1.0, %v9245
      %v9247 = vrcp.pop %v9179
      %v9248 = vmul.f32 1.0, %v9247
      %v9249 = vrcp.pop %v9180
      %v9250 = vmul.f32 1.0, %v9249
      %v9251 = vrcp.pop %v9181
      %v9252 = vmul.f32 1.0, %v9251
      %v9253 = vrcp.pop %v9182
      %v9254 = vmul.f32 1.0, %v9253
      %v9255 = vrcp.pop %v9183
      %v9256 = vmul.f32 1.0, %v9255
      %v9257 = vrcp.pop %v9184
      %v9258 = vmul.f32 1.0, %v9257
      %v9259 = vrcp.pop %v9185
      %v9260 = vmul.f32 1.0, %v9259
      %v9261 = vrcp.pop %v9186
      %v9262 = vmul.f32 1.0, %v9261
      %v9263 = vrcp.pop %v9187
      %v9264 = vmul.f32 1.0, %v9263
      %v9265 = vrcp.pop %v9188
      %v9266 = vmul.f32 1.0, %v9265
      %v9267 = vrcp.pop %v9189
      %v9268 = vmul.f32 1.0, %v9267
      %v9269 = vrcp.pop %v9190
      %v9270 = vmul.f32 1.0, %v9269
      %v9271 = vrcp.pop %v9191
      %v9272 = vmul.f32 1.0, %v9271
      %v9273 = vrcp.pop %v9192
      %v9274 = vmul.f32 1.0, %v9273
      %v9275 = vmul.f32 %v8988, %v9194
      %v9276 = vmul.f32 %v8989, %v9196
      %v9277 = vmul.f32 %v8990, %v9198
      %v9278 = vmul.f32 %v8991, %v9200
      %v9279 = vmul.f32 %v8992, %v9202
      %v9280 = vmul.f32 %v8993, %v9204
      %v9281 = vmul.f32 %v8994, %v9206
      %v9282 = vmul.f32 %v8995, %v9208
      %v9283 = vmul.f32 %v8996, %v9210
      %v9284 = vmul.f32 %v8997, %v9212
      %v9285 = vmul.f32 %v8998, %v9214
      %v9286 = vmul.f32 %v8999, %v9216
      %v9287 = vmul.f32 %v9000, %v9218
      %v9288 = vmul.f32 %v9001, %v9220
      %v9289 = vmul.f32 %v9002, %v9222
      %v9290 = vmul.f32 %v9003, %v9224
      %v9291 = vmul.f32 %v9004, %v9226
      %v9292 = vmul.f32 %v9005, %v9228
      %v9293 = vmul.f32 %v9006, %v9230
      %v9294 = vmul.f32 %v9007, %v9232
      %v9295 = vmul.f32 %v9008, %v9234
      %v9296 = vmul.f32 %v9009, %v9236
      %v9297 = vmul.f32 %v9010, %v9238
      %v9298 = vmul.f32 %v9011, %v9240
      %v9299 = vmul.f32 %v9012, %v9242
      %v9300 = vmul.f32 %v9013, %v9244
      %v9301 = vmul.f32 %v9014, %v9246
      %v9302 = vmul.f32 %v9015, %v9248
      %v9303 = vmul.f32 %v9016, %v9250
      %v9304 = vmul.f32 %v9017, %v9252
      %v9305 = vmul.f32 %v9018, %v9254
      %v9306 = vmul.f32 %v9019, %v9256
      %v9307 = vmul.f32 %v9020, %v9258
      %v9308 = vmul.f32 %v9021, %v9260
      %v9309 = vmul.f32 %v9022, %v9262
      %v9310 = vmul.f32 %v9023, %v9264
      %v9311 = vmul.f32 %v9024, %v9266
      %v9312 = vmul.f32 %v9025, %v9268
      %v9313 = vmul.f32 %v9026, %v9270
      %v9314 = vmul.f32 %v9027, %v9272
      %v9315 = vmul.f32 %v9028, %v9274
      %v9316 = vpack.c.bf16 %v1177, %v1176
      %v9317 = vpack.c.bf16 %v1179, %v1178
      %v9318 = vpack.c.bf16 %v1181, %v1180
      %v9319 = vpack.c.bf16 %v1183, %v1182
      %v9320 = vpack.c.bf16 %v1185, %v1184
      %v9321 = vpack.c.bf16 %v1187, %v1186
      %v9322 = vpack.c.bf16 %v1189, %v1188
      %v9323 = vpack.c.bf16 %v1191, %v1190
      %v9324 = vpack.c.bf16 %v1193, %v1192
      %v9325 = vpack.c.bf16 %v1195, %v1194
      %v9326 = vpack.c.bf16 %v1197, %v1196
      %v9327 = vpack.c.bf16 %v1199, %v1198
      %v9328 = vpack.c.bf16 %v1201, %v1200
      %v9329 = vpack.c.bf16 %v1203, %v1202
      %v9330 = vpack.c.bf16 %v1205, %v1204
      %v9331 = vpack.c.bf16 %v1207, %v1206
      %v9332 = vpack.c.bf16 %v1209, %v1208
      %v9333 = vpack.c.bf16 %v1211, %v1210
      %v9334 = vpack.c.bf16 %v1213, %v1212
      %v9335 = vpack.c.bf16 %v1215, %v1214
      %v9336 = vpack.c.bf16 %v1216, %v1216
      %v9337 = vld [vmem:[%s10] sm:$0x1]
      %v9338 = vpack.c.bf16 %v1675, %v1674
      %v9339 = vpack.c.bf16 %v1677, %v1676
      %v9340 = vpack.c.bf16 %v1679, %v1678
      %v9341 = vpack.c.bf16 %v1681, %v1680
      %v9342 = vpack.c.bf16 %v1683, %v1682
      %v9343 = vpack.c.bf16 %v1685, %v1684
      %v9344 = vpack.c.bf16 %v1687, %v1686
      %v9345 = vpack.c.bf16 %v1689, %v1688
      %v9346 = vpack.c.bf16 %v1691, %v1690
      %v9347 = vpack.c.bf16 %v1693, %v1692
      %v9348 = vpack.c.bf16 %v1695, %v1694
      %v9349 = vpack.c.bf16 %v1697, %v1696
      %v9350 = vpack.c.bf16 %v1699, %v1698
      %v9351 = vpack.c.bf16 %v1701, %v1700
      %v9352 = vpack.c.bf16 %v1703, %v1702
      %v9353 = vpack.c.bf16 %v1705, %v1704
      %v9354 = vpack.c.bf16 %v1707, %v1706
      %v9355 = vpack.c.bf16 %v1709, %v1708
      %v9356 = vpack.c.bf16 %v1711, %v1710
      %v9357 = vpack.c.bf16 %v1713, %v1712
      %v9358 = vpack.c.bf16 %v1714, %v1714
      %v9359 = vld [vmem:[%s11] sm:$0x1]
      %v9361 = vsel %vm1715, %v9338, 0
      %v9364 = vsel %vm1715, %v9339, 0
      %v9367 = vsel %vm1715, %v9340, 0
      %v9370 = vsel %vm1715, %v9341, 0
      %v9373 = vsel %vm1715, %v9342, 0
      %v9376 = vsel %vm1715, %v9343, 0
      %v9379 = vsel %vm1715, %v9344, 0
      %v9382 = vsel %vm1715, %v9345, 0
      %v9385 = vsel %vm1715, %v9346, 0
      %v9388 = vsel %vm1715, %v9347, 0
      %v9391 = vsel %vm1715, %v9348, 0
      %v9394 = vsel %vm1715, %v9349, 0
      %v9397 = vsel %vm1715, %v9350, 0
      %v9400 = vsel %vm1715, %v9351, 0
      %v9403 = vsel %vm1715, %v9352, 0
      %v9406 = vsel %vm1715, %v9353, 0
      %v9409 = vsel %vm1715, %v9354, 0
      %v9412 = vsel %vm1715, %v9355, 0
      %v9415 = vsel %vm1715, %v9356, 0
      %v9418 = vsel %vm1715, %v9357, 0
      %v9421 = vsel %vm1715, %v9358, 0
      %v9424 = vsel %vm2241, %v9359, 0
      %9426 = vmatprep.subr.bf16.mxu0 0
      %9427 = vmatpush1.bf16.msra.mxu0 %v9424
      %9428 = vmatprep.subr.bf16.mxu0 0
      %9429 = vmatpush1.bf16.msra.mxu0 0
      %9430 = vmatprep.subr.bf16.mxu0 0
      %9431 = vmatpush1.bf16.msra.mxu0 0
      %9432 = vmatprep.subr.bf16.mxu0 0
      %9433 = vmatpush1.bf16.msra.mxu0 0
      %9434 = vmatprep.subr.bf16.mxu0 0
      %9435 = vmatpush1.bf16.msra.mxu0 0
      %9436 = vmatprep.subr.bf16.mxu0 0
      %9437 = vmatpush1.bf16.msra.mxu0 0
      %9438 = vmatprep.subr.bf16.mxu0 0
      %9439 = vmatpush1.bf16.msra.mxu0 0
      %9440 = vmatprep.subr.bf16.mxu0 0
      %9441 = vmatpush1.bf16.msra.mxu0 0
      %9442 = vmatprep.subr.bf16.mxu0 0
      %9443 = vmatpush1.bf16.msra.mxu0 0
      %9444 = vmatprep.subr.bf16.mxu0 0
      %9445 = vmatpush1.bf16.msra.mxu0 0
      %9446 = vmatprep.subr.bf16.mxu0 0
      %9447 = vmatpush1.bf16.msra.mxu0 0
      %9448 = vmatprep.subr.bf16.mxu0 0
      %9449 = vmatpush1.bf16.msra.mxu0 0
      %9450 = vmatprep.subr.bf16.mxu0 0
      %9451 = vmatpush1.bf16.msra.mxu0 0
      %9452 = vmatprep.subr.bf16.mxu0 0
      %9453 = vmatpush1.bf16.msra.mxu0 0
      %9454 = vmatprep.subr.bf16.mxu0 0
      %9455 = vmatpush1.bf16.msra.mxu0 0
      %9456 = vmatprep.subr.bf16.mxu0 0
      %9457 = vmatpush1.bf16.msra.mxu0 0
      %9458 = vmatprep.mubr.bf16.mxu0 0
      %9459 = vmatmul.mubr.bf16.gmra.mrb[0].mxu0 %v9361
      %v9460 = vpop.f32.mrb[0].mxu0
      %v9461 = vadd.f32 0.0, %v9460
      %v9462 = vpop.f32.mrb[0].mxu0
      %v9463 = vpop.f32.mrb[0].mxu0
      %v9464 = vadd.f32 0.0, %v9463
      %v9465 = vpop.f32.mrb[0].mxu0
      %9466 = vmatprep.mubr.bf16.mxu0 0
      %9467 = vmatmul.mubr.bf16.gmra.mrb[0].mxu0 %v9364
      %v9468 = vpop.f32.mrb[0].mxu0
      %v9469 = vadd.f32 0.0, %v9468
      %v9470 = vpop.f32.mrb[0].mxu0
      %v9471 = vpop.f32.mrb[0].mxu0
      %v9472 = vadd.f32 0.0, %v9471
      %v9473 = vpop.f32.mrb[0].mxu0
      %9474 = vmatprep.mubr.bf16.mxu0 0
      %9475 = vmatmul.mubr.bf16.gmra.mrb[0].mxu0 %v9367
      %v9476 = vpop.f32.mrb[0].mxu0
      %v9477 = vadd.f32 0.0, %v9476
      %v9478 = vpop.f32.mrb[0].mxu0
      %v9479 = vpop.f32.mrb[0].mxu0
      %v9480 = vadd.f32 0.0, %v9479
      %v9481 = vpop.f32.mrb[0].mxu0
      %9482 = vmatprep.mubr.bf16.mxu0 0
      %9483 = vmatmul.mubr.bf16.gmra.mrb[0].mxu0 %v9370
      %v9484 = vpop.f32.mrb[0].mxu0
      %v9485 = vadd.f32 0.0, %v9484
      %v9486 = vpop.f32.mrb[0].mxu0
      %v9487 = vpop.f32.mrb[0].mxu0
      %v9488 = vadd.f32 0.0, %v9487
      %v9489 = vpop.f32.mrb[0].mxu0
      %9490 = vmatprep.mubr.bf16.mxu0 0
      %9491 = vmatmul.mubr.bf16.gmra.mrb[0].mxu0 %v9373
      %v9492 = vpop.f32.mrb[0].mxu0
      %v9493 = vadd.f32 0.0, %v9492
      %v9494 = vpop.f32.mrb[0].mxu0
      %v9495 = vpop.f32.mrb[0].mxu0
      %v9496 = vadd.f32 0.0, %v9495
      %v9497 = vpop.f32.mrb[0].mxu0
      %9498 = vmatprep.mubr.bf16.mxu0 0
      %9499 = vmatmul.mubr.bf16.gmra.mrb[0].mxu0 %v9376
      %v9500 = vpop.f32.mrb[0].mxu0
      %v9501 = vadd.f32 0.0, %v9500
      %v9502 = vpop.f32.mrb[0].mxu0
      %v9503 = vpop.f32.mrb[0].mxu0
      %v9504 = vadd.f32 0.0, %v9503
      %v9505 = vpop.f32.mrb[0].mxu0
      %9506 = vmatprep.mubr.bf16.mxu0 0
      %9507 = vmatmul.mubr.bf16.gmra.mrb[0].mxu0 %v9379
      %v9508 = vpop.f32.mrb[0].mxu0
      %v9509 = vadd.f32 0.0, %v9508
      %v9510 = vpop.f32.mrb[0].mxu0
      %v9511 = vpop.f32.mrb[0].mxu0
      %v9512 = vadd.f32 0.0, %v9511
      %v9513 = vpop.f32.mrb[0].mxu0
      %9514 = vmatprep.mubr.bf16.mxu0 0
      %9515 = vmatmul.mubr.bf16.gmra.mrb[0].mxu0 %v9382
      %v9516 = vpop.f32.mrb[0].mxu0
      %v9517 = vadd.f32 0.0, %v9516
      %v9518 = vpop.f32.mrb[0].mxu0
      %v9519 = vpop.f32.mrb[0].mxu0
      %v9520 = vadd.f32 0.0, %v9519
      %v9521 = vpop.f32.mrb[0].mxu0
      %9522 = vmatprep.mubr.bf16.mxu0 0
      %9523 = vmatmul.mubr.bf16.gmra.mrb[0].mxu0 %v9385
      %v9524 = vpop.f32.mrb[0].mxu0
      %v9525 = vadd.f32 0.0, %v9524
      %v9526 = vpop.f32.mrb[0].mxu0
      %v9527 = vpop.f32.mrb[0].mxu0
      %v9528 = vadd.f32 0.0, %v9527
      %v9529 = vpop.f32.mrb[0].mxu0
      %9530 = vmatprep.mubr.bf16.mxu0 0
      %9531 = vmatmul.mubr.bf16.gmra.mrb[0].mxu0 %v9388
      %v9532 = vpop.f32.mrb[0].mxu0
      %v9533 = vadd.f32 0.0, %v9532
      %v9534 = vpop.f32.mrb[0].mxu0
      %v9535 = vpop.f32.mrb[0].mxu0
      %v9536 = vadd.f32 0.0, %v9535
      %v9537 = vpop.f32.mrb[0].mxu0
      %9538 = vmatprep.mubr.bf16.mxu0 0
      %9539 = vmatmul.mubr.bf16.gmra.mrb[0].mxu0 %v9391
      %v9540 = vpop.f32.mrb[0].mxu0
      %v9541 = vadd.f32 0.0, %v9540
      %v9542 = vpop.f32.mrb[0].mxu0
      %v9543 = vpop.f32.mrb[0].mxu0
      %v9544 = vadd.f32 0.0, %v9543
      %v9545 = vpop.f32.mrb[0].mxu0
      %9546 = vmatprep.mubr.bf16.mxu0 0
      %9547 = vmatmul.mubr.bf16.gmra.mrb[0].mxu0 %v9394
      %v9548 = vpop.f32.mrb[0].mxu0
      %v9549 = vadd.f32 0.0, %v9548
      %v9550 = vpop.f32.mrb[0].mxu0
      %v9551 = vpop.f32.mrb[0].mxu0
      %v9552 = vadd.f32 0.0, %v9551
      %v9553 = vpop.f32.mrb[0].mxu0
      %9554 = vmatprep.mubr.bf16.mxu0 0
      %9555 = vmatmul.mubr.bf16.gmra.mrb[0].mxu0 %v9397
      %v9556 = vpop.f32.mrb[0].mxu0
      %v9557 = vadd.f32 0.0, %v9556
      %v9558 = vpop.f32.mrb[0].mxu0
      %v9559 = vpop.f32.mrb[0].mxu0
      %v9560 = vadd.f32 0.0, %v9559
      %v9561 = vpop.f32.mrb[0].mxu0
      %9562 = vmatprep.mubr.bf16.mxu0 0
      %9563 = vmatmul.mubr.bf16.gmra.mrb[0].mxu0 %v9400
      %v9564 = vpop.f32.mrb[0].mxu0
      %v9565 = vadd.f32 0.0, %v9564
      %v9566 = vpop.f32.mrb[0].mxu0
      %v9567 = vpop.f32.mrb[0].mxu0
      %v9568 = vadd.f32 0.0, %v9567
      %v9569 = vpop.f32.mrb[0].mxu0
      %9570 = vmatprep.mubr.bf16.mxu0 0
      %9571 = vmatmul.mubr.bf16.gmra.mrb[0].mxu0 %v9403
      %v9572 = vpop.f32.mrb[0].mxu0
      %v9573 = vadd.f32 0.0, %v9572
      %v9574 = vpop.f32.mrb[0].mxu0
      %v9575 = vpop.f32.mrb[0].mxu0
      %v9576 = vadd.f32 0.0, %v9575
      %v9577 = vpop.f32.mrb[0].mxu0
      %9578 = vmatprep.mubr.bf16.mxu0 0
      %9579 = vmatmul.mubr.bf16.gmra.mrb[0].mxu0 %v9406
      %v9580 = vpop.f32.mrb[0].mxu0
      %v9581 = vadd.f32 0.0, %v9580
      %v9582 = vpop.f32.mrb[0].mxu0
      %v9583 = vpop.f32.mrb[0].mxu0
      %v9584 = vadd.f32 0.0, %v9583
      %v9585 = vpop.f32.mrb[0].mxu0
      %9586 = vmatprep.mubr.bf16.mxu0 0
      %9587 = vmatmul.mubr.bf16.gmra.mrb[0].mxu0 %v9409
      %v9588 = vpop.f32.mrb[0].mxu0
      %v9589 = vadd.f32 0.0, %v9588
      %v9590 = vpop.f32.mrb[0].mxu0
      %v9591 = vpop.f32.mrb[0].mxu0
      %v9592 = vadd.f32 0.0, %v9591
      %v9593 = vpop.f32.mrb[0].mxu0
      %9594 = vmatprep.mubr.bf16.mxu0 0
      %9595 = vmatmul.mubr.bf16.gmra.mrb[0].mxu0 %v9412
      %v9596 = vpop.f32.mrb[0].mxu0
      %v9597 = vadd.f32 0.0, %v9596
      %v9598 = vpop.f32.mrb[0].mxu0
      %v9599 = vpop.f32.mrb[0].mxu0
      %v9600 = vadd.f32 0.0, %v9599
      %v9601 = vpop.f32.mrb[0].mxu0
      %9602 = vmatprep.mubr.bf16.mxu0 0
      %9603 = vmatmul.mubr.bf16.gmra.mrb[0].mxu0 %v9415
      %v9604 = vpop.f32.mrb[0].mxu0
      %v9605 = vadd.f32 0.0, %v9604
      %v9606 = vpop.f32.mrb[0].mxu0
      %v9607 = vpop.f32.mrb[0].mxu0
      %v9608 = vadd.f32 0.0, %v9607
      %v9609 = vpop.f32.mrb[0].mxu0
      %9610 = vmatprep.mubr.bf16.mxu0 0
      %9611 = vmatmul.mubr.bf16.gmra.mrb[0].mxu0 %v9418
      %v9612 = vpop.f32.mrb[0].mxu0
      %v9613 = vadd.f32 0.0, %v9612
      %v9614 = vpop.f32.mrb[0].mxu0
      %v9615 = vpop.f32.mrb[0].mxu0
      %v9616 = vadd.f32 0.0, %v9615
      %v9617 = vpop.f32.mrb[0].mxu0
      %9618 = vmatprep.mubr.bf16.mxu0 0
      %9619 = vmatmul.mubr.bf16.gmra.mrb[0].mxu0 %v9421
      %v9620 = vpop.f32.mrb[0].mxu0
      %v9621 = vadd.f32 0.0, %v9620
      %v9622 = vpop.f32.mrb[0].mxu0
      %v9623 = vpop.f32.mrb[0].mxu0
      %v9624 = vpop.f32.mrb[0].mxu0
      %9625 = vdwg.mxu0
      %v9627 = vsel %vm1715, %v9316, 0
      %v9630 = vsel %vm1715, %v9317, 0
      %v9633 = vsel %vm1715, %v9318, 0
      %v9636 = vsel %vm1715, %v9319, 0
      %v9639 = vsel %vm1715, %v9320, 0
      %v9642 = vsel %vm1715, %v9321, 0
      %v9645 = vsel %vm1715, %v9322, 0
      %v9648 = vsel %vm1715, %v9323, 0
      %v9651 = vsel %vm1715, %v9324, 0
      %v9654 = vsel %vm1715, %v9325, 0
      %v9657 = vsel %vm1715, %v9326, 0
      %v9660 = vsel %vm1715, %v9327, 0
      %v9663 = vsel %vm1715, %v9328, 0
      %v9666 = vsel %vm1715, %v9329, 0
      %v9669 = vsel %vm1715, %v9330, 0
      %v9672 = vsel %vm1715, %v9331, 0
      %v9675 = vsel %vm1715, %v9332, 0
      %v9678 = vsel %vm1715, %v9333, 0
      %v9681 = vsel %vm1715, %v9334, 0
      %v9684 = vsel %vm1715, %v9335, 0
      %v9687 = vsel %vm1715, %v9336, 0
      %v9690 = vsel %vm2241, %v9337, 0
      %9692 = vmatprep.subr.bf16.mxu0 0
      %9693 = vmatpush1.bf16.msra.mxu0 %v9690
      %9694 = vmatprep.subr.bf16.mxu0 0
      %9695 = vmatpush1.bf16.msra.mxu0 0
      %9696 = vmatprep.subr.bf16.mxu0 0
      %9697 = vmatpush1.bf16.msra.mxu0 0
      %9698 = vmatprep.subr.bf16.mxu0 0
      %9699 = vmatpush1.bf16.msra.mxu0 0
      %9700 = vmatprep.subr.bf16.mxu0 0
      %9701 = vmatpush1.bf16.msra.mxu0 0
      %9702 = vmatprep.subr.bf16.mxu0 0
      %9703 = vmatpush1.bf16.msra.mxu0 0
      %9704 = vmatprep.subr.bf16.mxu0 0
      %9705 = vmatpush1.bf16.msra.mxu0 0
      %9706 = vmatprep.subr.bf16.mxu0 0
      %9707 = vmatpush1.bf16.msra.mxu0 0
      %9708 = vmatprep.subr.bf16.mxu0 0
      %9709 = vmatpush1.bf16.msra.mxu0 0
      %9710 = vmatprep.subr.bf16.mxu0 0
      %9711 = vmatpush1.bf16.msra.mxu0 0
      %9712 = vmatprep.subr.bf16.mxu0 0
      %9713 = vmatpush1.bf16.msra.mxu0 0
      %9714 = vmatprep.subr.bf16.mxu0 0
      %9715 = vmatpush1.bf16.msra.mxu0 0
      %9716 = vmatprep.subr.bf16.mxu0 0
      %9717 = vmatpush1.bf16.msra.mxu0 0
      %9718 = vmatprep.subr.bf16.mxu0 0
      %9719 = vmatpush1.bf16.msra.mxu0 0
      %9720 = vmatprep.subr.bf16.mxu0 0
      %9721 = vmatpush1.bf16.msra.mxu0 0
      %9722 = vmatprep.subr.bf16.mxu0 0
      %9723 = vmatpush1.bf16.msra.mxu0 0
      %9724 = vmatprep.mubr.bf16.mxu0 0
      %9725 = vmatmul.mubr.bf16.gmra.mrb[0].mxu0 %v9627
      %v9726 = vpop.f32.mrb[0].mxu0
      %v9727 = vadd.f32 %v9461, %v9726
      %v9728 = vpop.f32.mrb[0].mxu0
      %v9729 = vpop.f32.mrb[0].mxu0
      %v9730 = vadd.f32 %v9464, %v9729
      %v9731 = vpop.f32.mrb[0].mxu0
      %9732 = vmatprep.mubr.bf16.mxu0 0
      %9733 = vmatmul.mubr.bf16.gmra.mrb[0].mxu0 %v9630
      %v9734 = vpop.f32.mrb[0].mxu0
      %v9735 = vadd.f32 %v9469, %v9734
      %v9736 = vpop.f32.mrb[0].mxu0
      %v9737 = vpop.f32.mrb[0].mxu0
      %v9738 = vadd.f32 %v9472, %v9737
      %v9739 = vpop.f32.mrb[0].mxu0
      %9740 = vmatprep.mubr.bf16.mxu0 0
      %9741 = vmatmul.mubr.bf16.gmra.mrb[0].mxu0 %v9633
      %v9742 = vpop.f32.mrb[0].mxu0
      %v9743 = vadd.f32 %v9477, %v9742
      %v9744 = vpop.f32.mrb[0].mxu0
      %v9745 = vpop.f32.mrb[0].mxu0
      %v9746 = vadd.f32 %v9480, %v9745
      %v9747 = vpop.f32.mrb[0].mxu0
      %9748 = vmatprep.mubr.bf16.mxu0 0
      %9749 = vmatmul.mubr.bf16.gmra.mrb[0].mxu0 %v9636
      %v9750 = vpop.f32.mrb[0].mxu0
      %v9751 = vadd.f32 %v9485, %v9750
      %v9752 = vpop.f32.mrb[0].mxu0
      %v9753 = vpop.f32.mrb[0].mxu0
      %v9754 = vadd.f32 %v9488, %v9753
      %v9755 = vpop.f32.mrb[0].mxu0
      %9756 = vmatprep.mubr.bf16.mxu0 0
      %9757 = vmatmul.mubr.bf16.gmra.mrb[0].mxu0 %v9639
      %v9758 = vpop.f32.mrb[0].mxu0
      %v9759 = vadd.f32 %v9493, %v9758
      %v9760 = vpop.f32.mrb[0].mxu0
      %v9761 = vpop.f32.mrb[0].mxu0
      %v9762 = vadd.f32 %v9496, %v9761
      %v9763 = vpop.f32.mrb[0].mxu0
      %9764 = vmatprep.mubr.bf16.mxu0 0
      %9765 = vmatmul.mubr.bf16.gmra.mrb[0].mxu0 %v9642
      %v9766 = vpop.f32.mrb[0].mxu0
      %v9767 = vadd.f32 %v9501, %v9766
      %v9768 = vpop.f32.mrb[0].mxu0
      %v9769 = vpop.f32.mrb[0].mxu0
      %v9770 = vadd.f32 %v9504, %v9769
      %v9771 = vpop.f32.mrb[0].mxu0
      %9772 = vmatprep.mubr.bf16.mxu0 0
      %9773 = vmatmul.mubr.bf16.gmra.mrb[0].mxu0 %v9645
      %v9774 = vpop.f32.mrb[0].mxu0
      %v9775 = vadd.f32 %v9509, %v9774
      %v9776 = vpop.f32.mrb[0].mxu0
      %v9777 = vpop.f32.mrb[0].mxu0
      %v9778 = vadd.f32 %v9512, %v9777
      %v9779 = vpop.f32.mrb[0].mxu0
      %9780 = vmatprep.mubr.bf16.mxu0 0
      %9781 = vmatmul.mubr.bf16.gmra.mrb[0].mxu0 %v9648
      %v9782 = vpop.f32.mrb[0].mxu0
      %v9783 = vadd.f32 %v9517, %v9782
      %v9784 = vpop.f32.mrb[0].mxu0
      %v9785 = vpop.f32.mrb[0].mxu0
      %v9786 = vadd.f32 %v9520, %v9785
      %v9787 = vpop.f32.mrb[0].mxu0
      %9788 = vmatprep.mubr.bf16.mxu0 0
      %9789 = vmatmul.mubr.bf16.gmra.mrb[0].mxu0 %v9651
      %v9790 = vpop.f32.mrb[0].mxu0
      %v9791 = vadd.f32 %v9525, %v9790
      %v9792 = vpop.f32.mrb[0].mxu0
      %v9793 = vpop.f32.mrb[0].mxu0
      %v9794 = vadd.f32 %v9528, %v9793
      %v9795 = vpop.f32.mrb[0].mxu0
      %9796 = vmatprep.mubr.bf16.mxu0 0
      %9797 = vmatmul.mubr.bf16.gmra.mrb[0].mxu0 %v9654
      %v9798 = vpop.f32.mrb[0].mxu0
      %v9799 = vadd.f32 %v9533, %v9798
      %v9800 = vpop.f32.mrb[0].mxu0
      %v9801 = vpop.f32.mrb[0].mxu0
      %v9802 = vadd.f32 %v9536, %v9801
      %v9803 = vpop.f32.mrb[0].mxu0
      %9804 = vmatprep.mubr.bf16.mxu0 0
      %9805 = vmatmul.mubr.bf16.gmra.mrb[0].mxu0 %v9657
      %v9806 = vpop.f32.mrb[0].mxu0
      %v9807 = vadd.f32 %v9541, %v9806
      %v9808 = vpop.f32.mrb[0].mxu0
      %v9809 = vpop.f32.mrb[0].mxu0
      %v9810 = vadd.f32 %v9544, %v9809
      %v9811 = vpop.f32.mrb[0].mxu0
      %9812 = vmatprep.mubr.bf16.mxu0 0
      %9813 = vmatmul.mubr.bf16.gmra.mrb[0].mxu0 %v9660
      %v9814 = vpop.f32.mrb[0].mxu0
      %v9815 = vadd.f32 %v9549, %v9814
      %v9816 = vpop.f32.mrb[0].mxu0
      %v9817 = vpop.f32.mrb[0].mxu0
      %v9818 = vadd.f32 %v9552, %v9817
      %v9819 = vpop.f32.mrb[0].mxu0
      %9820 = vmatprep.mubr.bf16.mxu0 0
      %9821 = vmatmul.mubr.bf16.gmra.mrb[0].mxu0 %v9663
      %v9822 = vpop.f32.mrb[0].mxu0
      %v9823 = vadd.f32 %v9557, %v9822
      %v9824 = vpop.f32.mrb[0].mxu0
      %v9825 = vpop.f32.mrb[0].mxu0
      %v9826 = vadd.f32 %v9560, %v9825
      %v9827 = vpop.f32.mrb[0].mxu0
      %9828 = vmatprep.mubr.bf16.mxu0 0
      %9829 = vmatmul.mubr.bf16.gmra.mrb[0].mxu0 %v9666
      %v9830 = vpop.f32.mrb[0].mxu0
      %v9831 = vadd.f32 %v9565, %v9830
      %v9832 = vpop.f32.mrb[0].mxu0
      %v9833 = vpop.f32.mrb[0].mxu0
      %v9834 = vadd.f32 %v9568, %v9833
      %v9835 = vpop.f32.mrb[0].mxu0
      %9836 = vmatprep.mubr.bf16.mxu0 0
      %9837 = vmatmul.mubr.bf16.gmra.mrb[0].mxu0 %v9669
      %v9838 = vpop.f32.mrb[0].mxu0
      %v9839 = vadd.f32 %v9573, %v9838
      %v9840 = vpop.f32.mrb[0].mxu0
      %v9841 = vpop.f32.mrb[0].mxu0
      %v9842 = vadd.f32 %v9576, %v9841
      %v9843 = vpop.f32.mrb[0].mxu0
      %9844 = vmatprep.mubr.bf16.mxu0 0
      %9845 = vmatmul.mubr.bf16.gmra.mrb[0].mxu0 %v9672
      %v9846 = vpop.f32.mrb[0].mxu0
      %v9847 = vadd.f32 %v9581, %v9846
      %v9848 = vpop.f32.mrb[0].mxu0
      %v9849 = vpop.f32.mrb[0].mxu0
      %v9850 = vadd.f32 %v9584, %v9849
      %v9851 = vpop.f32.mrb[0].mxu0
      %9852 = vmatprep.mubr.bf16.mxu0 0
      %9853 = vmatmul.mubr.bf16.gmra.mrb[0].mxu0 %v9675
      %v9854 = vpop.f32.mrb[0].mxu0
      %v9855 = vadd.f32 %v9589, %v9854
      %v9856 = vpop.f32.mrb[0].mxu0
      %v9857 = vpop.f32.mrb[0].mxu0
      %v9858 = vadd.f32 %v9592, %v9857
      %v9859 = vpop.f32.mrb[0].mxu0
      %9860 = vmatprep.mubr.bf16.mxu0 0
      %9861 = vmatmul.mubr.bf16.gmra.mrb[0].mxu0 %v9678
      %v9862 = vpop.f32.mrb[0].mxu0
      %v9863 = vadd.f32 %v9597, %v9862
      %v9864 = vpop.f32.mrb[0].mxu0
      %v9865 = vpop.f32.mrb[0].mxu0
      %v9866 = vadd.f32 %v9600, %v9865
      %v9867 = vpop.f32.mrb[0].mxu0
      %9868 = vmatprep.mubr.bf16.mxu0 0
      %9869 = vmatmul.mubr.bf16.gmra.mrb[0].mxu0 %v9681
      %v9870 = vpop.f32.mrb[0].mxu0
      %v9871 = vadd.f32 %v9605, %v9870
      %v9872 = vpop.f32.mrb[0].mxu0
      %v9873 = vpop.f32.mrb[0].mxu0
      %v9874 = vadd.f32 %v9608, %v9873
      %v9875 = vpop.f32.mrb[0].mxu0
      %9876 = vmatprep.mubr.bf16.mxu0 0
      %9877 = vmatmul.mubr.bf16.gmra.mrb[0].mxu0 %v9684
      %v9878 = vpop.f32.mrb[0].mxu0
      %v9879 = vadd.f32 %v9613, %v9878
      %v9880 = vpop.f32.mrb[0].mxu0
      %v9881 = vpop.f32.mrb[0].mxu0
      %v9882 = vadd.f32 %v9616, %v9881
      %v9883 = vpop.f32.mrb[0].mxu0
      %9884 = vmatprep.mubr.bf16.mxu0 0
      %9885 = vmatmul.mubr.bf16.gmra.mrb[0].mxu0 %v9687
      %v9886 = vpop.f32.mrb[0].mxu0
      %v9887 = vadd.f32 %v9621, %v9886
      %v9888 = vpop.f32.mrb[0].mxu0
      %v9889 = vpop.f32.mrb[0].mxu0
      %v9890 = vpop.f32.mrb[0].mxu0
      %9891 = vdwg.mxu0
      %v9892 = vpack.c.bf16 %v9276, %v9275
      %v9893 = vpack.c.bf16 %v9278, %v9277
      %v9894 = vpack.c.bf16 %v9280, %v9279
      %v9895 = vpack.c.bf16 %v9282, %v9281
      %v9896 = vpack.c.bf16 %v9284, %v9283
      %v9897 = vpack.c.bf16 %v9286, %v9285
      %v9898 = vpack.c.bf16 %v9288, %v9287
      %v9899 = vpack.c.bf16 %v9290, %v9289
      %v9900 = vpack.c.bf16 %v9292, %v9291
      %v9901 = vpack.c.bf16 %v9294, %v9293
      %v9902 = vpack.c.bf16 %v9296, %v9295
      %v9903 = vpack.c.bf16 %v9298, %v9297
      %v9904 = vpack.c.bf16 %v9300, %v9299
      %v9905 = vpack.c.bf16 %v9302, %v9301
      %v9906 = vpack.c.bf16 %v9304, %v9303
      %v9907 = vpack.c.bf16 %v9306, %v9305
      %v9908 = vpack.c.bf16 %v9308, %v9307
      %v9909 = vpack.c.bf16 %v9310, %v9309
      %v9910 = vpack.c.bf16 %v9312, %v9311
      %v9911 = vpack.c.bf16 %v9314, %v9313
      %v9912 = vpack.c.bf16 %v9315, %v9315
      %v9913 = vld [vmem:[%s12] sm:$0x1]
      %v9915 = vsel %vm1715, %v9892, 0
      %v9918 = vsel %vm1715, %v9893, 0
      %v9921 = vsel %vm1715, %v9894, 0
      %v9924 = vsel %vm1715, %v9895, 0
      %v9927 = vsel %vm1715, %v9896, 0
      %v9930 = vsel %vm1715, %v9897, 0
      %v9933 = vsel %vm1715, %v9898, 0
      %v9936 = vsel %vm1715, %v9899, 0
      %v9939 = vsel %vm1715, %v9900, 0
      %v9942 = vsel %vm1715, %v9901, 0
      %v9945 = vsel %vm1715, %v9902, 0
      %v9948 = vsel %vm1715, %v9903, 0
      %v9951 = vsel %vm1715, %v9904, 0
      %v9954 = vsel %vm1715, %v9905, 0
      %v9957 = vsel %vm1715, %v9906, 0
      %v9960 = vsel %vm1715, %v9907, 0
      %v9963 = vsel %vm1715, %v9908, 0
      %v9966 = vsel %vm1715, %v9909, 0
      %v9969 = vsel %vm1715, %v9910, 0
      %v9972 = vsel %vm1715, %v9911, 0
      %v9975 = vsel %vm1715, %v9912, 0
      %v9978 = vsel %vm2241, %v9913, 0
      %9980 = vmatprep.subr.bf16.mxu0 0
      %9981 = vmatpush1.bf16.msra.mxu0 %v9978
      %9982 = vmatprep.subr.bf16.mxu0 0
      %9983 = vmatpush1.bf16.msra.mxu0 0
      %9984 = vmatprep.subr.bf16.mxu0 0
      %9985 = vmatpush1.bf16.msra.mxu0 0
      %9986 = vmatprep.subr.bf16.mxu0 0
      %9987 = vmatpush1.bf16.msra.mxu0 0
      %9988 = vmatprep.subr.bf16.mxu0 0
      %9989 = vmatpush1.bf16.msra.mxu0 0
      %9990 = vmatprep.subr.bf16.mxu0 0
      %9991 = vmatpush1.bf16.msra.mxu0 0
      %9992 = vmatprep.subr.bf16.mxu0 0
      %9993 = vmatpush1.bf16.msra.mxu0 0
      %9994 = vmatprep.subr.bf16.mxu0 0
      %9995 = vmatpush1.bf16.msra.mxu0 0
      %9996 = vmatprep.subr.bf16.mxu0 0
      %9997 = vmatpush1.bf16.msra.mxu0 0
      %9998 = vmatprep.subr.bf16.mxu0 0
      %9999 = vmatpush1.bf16.msra.mxu0 0
      %10000 = vmatprep.subr.bf16.mxu0 0
      %10001 = vmatpush1.bf16.msra.mxu0 0
      %10002 = vmatprep.subr.bf16.mxu0 0
      %10003 = vmatpush1.bf16.msra.mxu0 0
      %10004 = vmatprep.subr.bf16.mxu0 0
      %10005 = vmatpush1.bf16.msra.mxu0 0
      %10006 = vmatprep.subr.bf16.mxu0 0
      %10007 = vmatpush1.bf16.msra.mxu0 0
      %10008 = vmatprep.subr.bf16.mxu0 0
      %10009 = vmatpush1.bf16.msra.mxu0 0
      %10010 = vmatprep.subr.bf16.mxu0 0
      %10011 = vmatpush1.bf16.msra.mxu0 0
      %10012 = vmatprep.mubr.bf16.mxu0 0
      %10013 = vmatmul.mubr.bf16.gmra.mrb[0].mxu0 %v9915
      %v10014 = vpop.f32.mrb[0].mxu0
      %v10015 = vadd.f32 0.0, %v10014
      %v10016 = vpop.f32.mrb[0].mxu0
      %v10017 = vpop.f32.mrb[0].mxu0
      %v10018 = vadd.f32 0.0, %v10017
      %v10019 = vpop.f32.mrb[0].mxu0
      %10020 = vmatprep.mubr.bf16.mxu0 0
      %10021 = vmatmul.mubr.bf16.gmra.mrb[0].mxu0 %v9918
      %v10022 = vpop.f32.mrb[0].mxu0
      %v10023 = vadd.f32 0.0, %v10022
      %v10024 = vpop.f32.mrb[0].mxu0
      %v10025 = vpop.f32.mrb[0].mxu0
      %v10026 = vadd.f32 0.0, %v10025
      %v10027 = vpop.f32.mrb[0].mxu0
      %10028 = vmatprep.mubr.bf16.mxu0 0
      %10029 = vmatmul.mubr.bf16.gmra.mrb[0].mxu0 %v9921
      %v10030 = vpop.f32.mrb[0].mxu0
      %v10031 = vadd.f32 0.0, %v10030
      %v10032 = vpop.f32.mrb[0].mxu0
      %v10033 = vpop.f32.mrb[0].mxu0
      %v10034 = vadd.f32 0.0, %v10033
      %v10035 = vpop.f32.mrb[0].mxu0
      %10036 = vmatprep.mubr.bf16.mxu0 0
      %10037 = vmatmul.mubr.bf16.gmra.mrb[0].mxu0 %v9924
      %v10038 = vpop.f32.mrb[0].mxu0
      %v10039 = vadd.f32 0.0, %v10038
      %v10040 = vpop.f32.mrb[0].mxu0
      %v10041 = vpop.f32.mrb[0].mxu0
      %v10042 = vadd.f32 0.0, %v10041
      %v10043 = vpop.f32.mrb[0].mxu0
      %10044 = vmatprep.mubr.bf16.mxu0 0
      %10045 = vmatmul.mubr.bf16.gmra.mrb[0].mxu0 %v9927
      %v10046 = vpop.f32.mrb[0].mxu0
      %v10047 = vadd.f32 0.0, %v10046
      %v10048 = vpop.f32.mrb[0].mxu0
      %v10049 = vpop.f32.mrb[0].mxu0
      %v10050 = vadd.f32 0.0, %v10049
      %v10051 = vpop.f32.mrb[0].mxu0
      %10052 = vmatprep.mubr.bf16.mxu0 0
      %10053 = vmatmul.mubr.bf16.gmra.mrb[0].mxu0 %v9930
      %v10054 = vpop.f32.mrb[0].mxu0
      %v10055 = vadd.f32 0.0, %v10054
      %v10056 = vpop.f32.mrb[0].mxu0
      %v10057 = vpop.f32.mrb[0].mxu0
      %v10058 = vadd.f32 0.0, %v10057
      %v10059 = vpop.f32.mrb[0].mxu0
      %10060 = vmatprep.mubr.bf16.mxu0 0
      %10061 = vmatmul.mubr.bf16.gmra.mrb[0].mxu0 %v9933
      %v10062 = vpop.f32.mrb[0].mxu0
      %v10063 = vadd.f32 0.0, %v10062
      %v10064 = vpop.f32.mrb[0].mxu0
      %v10065 = vpop.f32.mrb[0].mxu0
      %v10066 = vadd.f32 0.0, %v10065
      %v10067 = vpop.f32.mrb[0].mxu0
      %10068 = vmatprep.mubr.bf16.mxu0 0
      %10069 = vmatmul.mubr.bf16.gmra.mrb[0].mxu0 %v9936
      %v10070 = vpop.f32.mrb[0].mxu0
      %v10071 = vadd.f32 0.0, %v10070
      %v10072 = vpop.f32.mrb[0].mxu0
      %v10073 = vpop.f32.mrb[0].mxu0
      %v10074 = vadd.f32 0.0, %v10073
      %v10075 = vpop.f32.mrb[0].mxu0
      %10076 = vmatprep.mubr.bf16.mxu0 0
      %10077 = vmatmul.mubr.bf16.gmra.mrb[0].mxu0 %v9939
      %v10078 = vpop.f32.mrb[0].mxu0
      %v10079 = vadd.f32 0.0, %v10078
      %v10080 = vpop.f32.mrb[0].mxu0
      %v10081 = vpop.f32.mrb[0].mxu0
      %v10082 = vadd.f32 0.0, %v10081
      %v10083 = vpop.f32.mrb[0].mxu0
      %10084 = vmatprep.mubr.bf16.mxu0 0
      %10085 = vmatmul.mubr.bf16.gmra.mrb[0].mxu0 %v9942
      %v10086 = vpop.f32.mrb[0].mxu0
      %v10087 = vadd.f32 0.0, %v10086
      %v10088 = vpop.f32.mrb[0].mxu0
      %v10089 = vpop.f32.mrb[0].mxu0
      %v10090 = vadd.f32 0.0, %v10089
      %v10091 = vpop.f32.mrb[0].mxu0
      %10092 = vmatprep.mubr.bf16.mxu0 0
      %10093 = vmatmul.mubr.bf16.gmra.mrb[0].mxu0 %v9945
      %v10094 = vpop.f32.mrb[0].mxu0
      %v10095 = vadd.f32 0.0, %v10094
      %v10096 = vpop.f32.mrb[0].mxu0
      %v10097 = vpop.f32.mrb[0].mxu0
      %v10098 = vadd.f32 0.0, %v10097
      %v10099 = vpop.f32.mrb[0].mxu0
      %10100 = vmatprep.mubr.bf16.mxu0 0
      %10101 = vmatmul.mubr.bf16.gmra.mrb[0].mxu0 %v9948
      %v10102 = vpop.f32.mrb[0].mxu0
      %v10103 = vadd.f32 0.0, %v10102
      %v10104 = vpop.f32.mrb[0].mxu0
      %v10105 = vpop.f32.mrb[0].mxu0
      %v10106 = vadd.f32 0.0, %v10105
      %v10107 = vpop.f32.mrb[0].mxu0
      %10108 = vmatprep.mubr.bf16.mxu0 0
      %10109 = vmatmul.mubr.bf16.gmra.mrb[0].mxu0 %v9951
      %v10110 = vpop.f32.mrb[0].mxu0
      %v10111 = vadd.f32 0.0, %v10110
      %v10112 = vpop.f32.mrb[0].mxu0
      %v10113 = vpop.f32.mrb[0].mxu0
      %v10114 = vadd.f32 0.0, %v10113
      %v10115 = vpop.f32.mrb[0].mxu0
      %10116 = vmatprep.mubr.bf16.mxu0 0
      %10117 = vmatmul.mubr.bf16.gmra.mrb[0].mxu0 %v9954
      %v10118 = vpop.f32.mrb[0].mxu0
      %v10119 = vadd.f32 0.0, %v10118
      %v10120 = vpop.f32.mrb[0].mxu0
      %v10121 = vpop.f32.mrb[0].mxu0
      %v10122 = vadd.f32 0.0, %v10121
      %v10123 = vpop.f32.mrb[0].mxu0
      %10124 = vmatprep.mubr.bf16.mxu0 0
      %10125 = vmatmul.mubr.bf16.gmra.mrb[0].mxu0 %v9957
      %v10126 = vpop.f32.mrb[0].mxu0
      %v10127 = vadd.f32 0.0, %v10126
      %v10128 = vpop.f32.mrb[0].mxu0
      %v10129 = vpop.f32.mrb[0].mxu0
      %v10130 = vadd.f32 0.0, %v10129
      %v10131 = vpop.f32.mrb[0].mxu0
      %10132 = vmatprep.mubr.bf16.mxu0 0
      %10133 = vmatmul.mubr.bf16.gmra.mrb[0].mxu0 %v9960
      %v10134 = vpop.f32.mrb[0].mxu0
      %v10135 = vadd.f32 0.0, %v10134
      %v10136 = vpop.f32.mrb[0].mxu0
      %v10137 = vpop.f32.mrb[0].mxu0
      %v10138 = vadd.f32 0.0, %v10137
      %v10139 = vpop.f32.mrb[0].mxu0
      %10140 = vmatprep.mubr.bf16.mxu0 0
      %10141 = vmatmul.mubr.bf16.gmra.mrb[0].mxu0 %v9963
      %v10142 = vpop.f32.mrb[0].mxu0
      %v10143 = vadd.f32 0.0, %v10142
      %v10144 = vpop.f32.mrb[0].mxu0
      %v10145 = vpop.f32.mrb[0].mxu0
      %v10146 = vadd.f32 0.0, %v10145
      %v10147 = vpop.f32.mrb[0].mxu0
      %10148 = vmatprep.mubr.bf16.mxu0 0
      %10149 = vmatmul.mubr.bf16.gmra.mrb[0].mxu0 %v9966
      %v10150 = vpop.f32.mrb[0].mxu0
      %v10151 = vadd.f32 0.0, %v10150
      %v10152 = vpop.f32.mrb[0].mxu0
      %v10153 = vpop.f32.mrb[0].mxu0
      %v10154 = vadd.f32 0.0, %v10153
      %v10155 = vpop.f32.mrb[0].mxu0
      %10156 = vmatprep.mubr.bf16.mxu0 0
      %10157 = vmatmul.mubr.bf16.gmra.mrb[0].mxu0 %v9969
      %v10158 = vpop.f32.mrb[0].mxu0
      %v10159 = vadd.f32 0.0, %v10158
      %v10160 = vpop.f32.mrb[0].mxu0
      %v10161 = vpop.f32.mrb[0].mxu0
      %v10162 = vadd.f32 0.0, %v10161
      %v10163 = vpop.f32.mrb[0].mxu0
      %10164 = vmatprep.mubr.bf16.mxu0 0
      %10165 = vmatmul.mubr.bf16.gmra.mrb[0].mxu0 %v9972
      %v10166 = vpop.f32.mrb[0].mxu0
      %v10167 = vadd.f32 0.0, %v10166
      %v10168 = vpop.f32.mrb[0].mxu0
      %v10169 = vpop.f32.mrb[0].mxu0
      %v10170 = vadd.f32 0.0, %v10169
      %v10171 = vpop.f32.mrb[0].mxu0
      %10172 = vmatprep.mubr.bf16.mxu0 0
      %10173 = vmatmul.mubr.bf16.gmra.mrb[0].mxu0 %v9975
      %v10174 = vpop.f32.mrb[0].mxu0
      %v10175 = vadd.f32 0.0, %v10174
      %v10176 = vpop.f32.mrb[0].mxu0
      %v10177 = vpop.f32.mrb[0].mxu0
      %v10178 = vpop.f32.mrb[0].mxu0
      %10179 = vdwg.mxu0
      %v10180 = vadd.f32 %v9727, %v10015
      %v10181 = vadd.f32 %v9730, %v10018
      %v10182 = vadd.f32 %v9735, %v10023
      %v10183 = vadd.f32 %v9738, %v10026
      %v10184 = vadd.f32 %v9743, %v10031
      %v10185 = vadd.f32 %v9746, %v10034
      %v10186 = vadd.f32 %v9751, %v10039
      %v10187 = vadd.f32 %v9754, %v10042
      %v10188 = vadd.f32 %v9759, %v10047
      %v10189 = vadd.f32 %v9762, %v10050
      %v10190 = vadd.f32 %v9767, %v10055
      %v10191 = vadd.f32 %v9770, %v10058
      %v10192 = vadd.f32 %v9775, %v10063
      %v10193 = vadd.f32 %v9778, %v10066
      %v10194 = vadd.f32 %v9783, %v10071
      %v10195 = vadd.f32 %v9786, %v10074
      %v10196 = vadd.f32 %v9791, %v10079
      %v10197 = vadd.f32 %v9794, %v10082
      %v10198 = vadd.f32 %v9799, %v10087
      %v10199 = vadd.f32 %v9802, %v10090
      %v10200 = vadd.f32 %v9807, %v10095
      %v10201 = vadd.f32 %v9810, %v10098
      %v10202 = vadd.f32 %v9815, %v10103
      %v10203 = vadd.f32 %v9818, %v10106
      %v10204 = vadd.f32 %v9823, %v10111
      %v10205 = vadd.f32 %v9826, %v10114
      %v10206 = vadd.f32 %v9831, %v10119
      %v10207 = vadd.f32 %v9834, %v10122
      %v10208 = vadd.f32 %v9839, %v10127
      %v10209 = vadd.f32 %v9842, %v10130
      %v10210 = vadd.f32 %v9847, %v10135
      %v10211 = vadd.f32 %v9850, %v10138
      %v10212 = vadd.f32 %v9855, %v10143
      %v10213 = vadd.f32 %v9858, %v10146
      %v10214 = vadd.f32 %v9863, %v10151
      %v10215 = vadd.f32 %v9866, %v10154
      %v10216 = vadd.f32 %v9871, %v10159
      %v10217 = vadd.f32 %v9874, %v10162
      %v10218 = vadd.f32 %v9879, %v10167
      %v10219 = vadd.f32 %v9882, %v10170
      %v10220 = vadd.f32 %v9887, %v10175
      %v10221 = vld [vmem:[%s13] sm:$0x1]
      %v10223 = vlaneseq
      %v10224 = vshrl.u32 %v10223, 7
      %v10225 = vsub.s32 0, %v10224
      %v10226 = vrot.slane %v10221, %v10225
      %v10228 = vadd.f32 %v10180, %v10226
      %v10229 = vadd.f32 %v10181, %v10226
      %v10230 = vadd.f32 %v10182, %v10226
      %v10231 = vadd.f32 %v10183, %v10226
      %v10232 = vadd.f32 %v10184, %v10226
      %v10233 = vadd.f32 %v10185, %v10226
      %v10234 = vadd.f32 %v10186, %v10226
      %v10235 = vadd.f32 %v10187, %v10226
      %v10236 = vadd.f32 %v10188, %v10226
      %v10237 = vadd.f32 %v10189, %v10226
      %v10238 = vadd.f32 %v10190, %v10226
      %v10239 = vadd.f32 %v10191, %v10226
      %v10240 = vadd.f32 %v10192, %v10226
      %v10241 = vadd.f32 %v10193, %v10226
      %v10242 = vadd.f32 %v10194, %v10226
      %v10243 = vadd.f32 %v10195, %v10226
      %v10244 = vadd.f32 %v10196, %v10226
      %v10245 = vadd.f32 %v10197, %v10226
      %v10246 = vadd.f32 %v10198, %v10226
      %v10247 = vadd.f32 %v10199, %v10226
      %v10248 = vadd.f32 %v10200, %v10226
      %v10249 = vadd.f32 %v10201, %v10226
      %v10250 = vadd.f32 %v10202, %v10226
      %v10251 = vadd.f32 %v10203, %v10226
      %v10252 = vadd.f32 %v10204, %v10226
      %v10253 = vadd.f32 %v10205, %v10226
      %v10254 = vadd.f32 %v10206, %v10226
      %v10255 = vadd.f32 %v10207, %v10226
      %v10256 = vadd.f32 %v10208, %v10226
      %v10257 = vadd.f32 %v10209, %v10226
      %v10258 = vadd.f32 %v10210, %v10226
      %v10259 = vadd.f32 %v10211, %v10226
      %v10260 = vadd.f32 %v10212, %v10226
      %v10261 = vadd.f32 %v10213, %v10226
      %v10262 = vadd.f32 %v10214, %v10226
      %v10263 = vadd.f32 %v10215, %v10226
      %v10264 = vadd.f32 %v10216, %v10226
      %v10265 = vadd.f32 %v10217, %v10226
      %v10266 = vadd.f32 %v10218, %v10226
      %v10267 = vadd.f32 %v10219, %v10226
      %v10268 = vadd.f32 %v10220, %v10226
      %v10269 = vxor.u32 %v10228, 2147483648
      %v10270 = vxor.u32 %v10229, 2147483648
      %v10271 = vxor.u32 %v10230, 2147483648
      %v10272 = vxor.u32 %v10231, 2147483648
      %v10273 = vxor.u32 %v10232, 2147483648
      %v10274 = vxor.u32 %v10233, 2147483648
      %v10275 = vxor.u32 %v10234, 2147483648
      %v10276 = vxor.u32 %v10235, 2147483648
      %v10277 = vxor.u32 %v10236, 2147483648
      %v10278 = vxor.u32 %v10237, 2147483648
      %v10279 = vxor.u32 %v10238, 2147483648
      %v10280 = vxor.u32 %v10239, 2147483648
      %v10281 = vxor.u32 %v10240, 2147483648
      %v10282 = vxor.u32 %v10241, 2147483648
      %v10283 = vxor.u32 %v10242, 2147483648
      %v10284 = vxor.u32 %v10243, 2147483648
      %v10285 = vxor.u32 %v10244, 2147483648
      %v10286 = vxor.u32 %v10245, 2147483648
      %v10287 = vxor.u32 %v10246, 2147483648
      %v10288 = vxor.u32 %v10247, 2147483648
      %v10289 = vxor.u32 %v10248, 2147483648
      %v10290 = vxor.u32 %v10249, 2147483648
      %v10291 = vxor.u32 %v10250, 2147483648
      %v10292 = vxor.u32 %v10251, 2147483648
      %v10293 = vxor.u32 %v10252, 2147483648
      %v10294 = vxor.u32 %v10253, 2147483648
      %v10295 = vxor.u32 %v10254, 2147483648
      %v10296 = vxor.u32 %v10255, 2147483648
      %v10297 = vxor.u32 %v10256, 2147483648
      %v10298 = vxor.u32 %v10257, 2147483648
      %v10299 = vxor.u32 %v10258, 2147483648
      %v10300 = vxor.u32 %v10259, 2147483648
      %v10301 = vxor.u32 %v10260, 2147483648
      %v10302 = vxor.u32 %v10261, 2147483648
      %v10303 = vxor.u32 %v10262, 2147483648
      %v10304 = vxor.u32 %v10263, 2147483648
      %v10305 = vxor.u32 %v10264, 2147483648
      %v10306 = vxor.u32 %v10265, 2147483648
      %v10307 = vxor.u32 %v10266, 2147483648
      %v10308 = vxor.u32 %v10267, 2147483648
      %v10309 = vxor.u32 %v10268, 2147483648
      %v10310 = vmul.f32 %v10269, 1.442695
      %v10311 = vpow.pop %v10310
      %v10312 = vmul.f32 %v10270, 1.442695
      %v10313 = vpow.pop %v10312
      %v10314 = vmul.f32 %v10271, 1.442695
      %v10315 = vpow.pop %v10314
      %v10316 = vmul.f32 %v10272, 1.442695
      %v10317 = vpow.pop %v10316
      %v10318 = vmul.f32 %v10273, 1.442695
      %v10319 = vpow.pop %v10318
      %v10320 = vmul.f32 %v10274, 1.442695
      %v10321 = vpow.pop %v10320
      %v10322 = vmul.f32 %v10275, 1.442695
      %v10323 = vpow.pop %v10322
      %v10324 = vmul.f32 %v10276, 1.442695
      %v10325 = vpow.pop %v10324
      %v10326 = vmul.f32 %v10277, 1.442695
      %v10327 = vpow.pop %v10326
      %v10328 = vmul.f32 %v10278, 1.442695
      %v10329 = vpow.pop %v10328
      %v10330 = vmul.f32 %v10279, 1.442695
      %v10331 = vpow.pop %v10330
      %v10332 = vmul.f32 %v10280, 1.442695
      %v10333 = vpow.pop %v10332
      %v10334 = vmul.f32 %v10281, 1.442695
      %v10335 = vpow.pop %v10334
      %v10336 = vmul.f32 %v10282, 1.442695
      %v10337 = vpow.pop %v10336
      %v10338 = vmul.f32 %v10283, 1.442695
      %v10339 = vpow.pop %v10338
      %v10340 = vmul.f32 %v10284, 1.442695
      %v10341 = vpow.pop %v10340
      %v10342 = vmul.f32 %v10285, 1.442695
      %v10343 = vpow.pop %v10342
      %v10344 = vmul.f32 %v10286, 1.442695
      %v10345 = vpow.pop %v10344
      %v10346 = vmul.f32 %v10287, 1.442695
      %v10347 = vpow.pop %v10346
      %v10348 = vmul.f32 %v10288, 1.442695
      %v10349 = vpow.pop %v10348
      %v10350 = vmul.f32 %v10289, 1.442695
      %v10351 = vpow.pop %v10350
      %v10352 = vmul.f32 %v10290, 1.442695
      %v10353 = vpow.pop %v10352
      %v10354 = vmul.f32 %v10291, 1.442695
      %v10355 = vpow.pop %v10354
      %v10356 = vmul.f32 %v10292, 1.442695
      %v10357 = vpow.pop %v10356
      %v10358 = vmul.f32 %v10293, 1.442695
      %v10359 = vpow.pop %v10358
      %v10360 = vmul.f32 %v10294, 1.442695
      %v10361 = vpow.pop %v10360
      %v10362 = vmul.f32 %v10295, 1.442695
      %v10363 = vpow.pop %v10362
      %v10364 = vmul.f32 %v10296, 1.442695
      %v10365 = vpow.pop %v10364
      %v10366 = vmul.f32 %v10297, 1.442695
      %v10367 = vpow.pop %v10366
      %v10368 = vmul.f32 %v10298, 1.442695
      %v10369 = vpow.pop %v10368
      %v10370 = vmul.f32 %v10299, 1.442695
      %v10371 = vpow.pop %v10370
      %v10372 = vmul.f32 %v10300, 1.442695
      %v10373 = vpow.pop %v10372
      %v10374 = vmul.f32 %v10301, 1.442695
      %v10375 = vpow.pop %v10374
      %v10376 = vmul.f32 %v10302, 1.442695
      %v10377 = vpow.pop %v10376
      %v10378 = vmul.f32 %v10303, 1.442695
      %v10379 = vpow.pop %v10378
      %v10380 = vmul.f32 %v10304, 1.442695
      %v10381 = vpow.pop %v10380
      %v10382 = vmul.f32 %v10305, 1.442695
      %v10383 = vpow.pop %v10382
      %v10384 = vmul.f32 %v10306, 1.442695
      %v10385 = vpow.pop %v10384
      %v10386 = vmul.f32 %v10307, 1.442695
      %v10387 = vpow.pop %v10386
      %v10388 = vmul.f32 %v10308, 1.442695
      %v10389 = vpow.pop %v10388
      %v10390 = vmul.f32 %v10309, 1.442695
      %v10391 = vpow.pop %v10390
      %v10392 = vadd.f32 %v10311, 1.0
      %v10393 = vadd.f32 %v10313, 1.0
      %v10394 = vadd.f32 %v10315, 1.0
      %v10395 = vadd.f32 %v10317, 1.0
      %v10396 = vadd.f32 %v10319, 1.0
      %v10397 = vadd.f32 %v10321, 1.0
      %v10398 = vadd.f32 %v10323, 1.0
      %v10399 = vadd.f32 %v10325, 1.0
      %v10400 = vadd.f32 %v10327, 1.0
      %v10401 = vadd.f32 %v10329, 1.0
      %v10402 = vadd.f32 %v10331, 1.0
      %v10403 = vadd.f32 %v10333, 1.0
      %v10404 = vadd.f32 %v10335, 1.0
      %v10405 = vadd.f32 %v10337, 1.0
      %v10406 = vadd.f32 %v10339, 1.0
      %v10407 = vadd.f32 %v10341, 1.0
      %v10408 = vadd.f32 %v10343, 1.0
      %v10409 = vadd.f32 %v10345, 1.0
      %v10410 = vadd.f32 %v10347, 1.0
      %v10411 = vadd.f32 %v10349, 1.0
      %v10412 = vadd.f32 %v10351, 1.0
      %v10413 = vadd.f32 %v10353, 1.0
      %v10414 = vadd.f32 %v10355, 1.0
      %v10415 = vadd.f32 %v10357, 1.0
      %v10416 = vadd.f32 %v10359, 1.0
      %v10417 = vadd.f32 %v10361, 1.0
      %v10418 = vadd.f32 %v10363, 1.0
      %v10419 = vadd.f32 %v10365, 1.0
      %v10420 = vadd.f32 %v10367, 1.0
      %v10421 = vadd.f32 %v10369, 1.0
      %v10422 = vadd.f32 %v10371, 1.0
      %v10423 = vadd.f32 %v10373, 1.0
      %v10424 = vadd.f32 %v10375, 1.0
      %v10425 = vadd.f32 %v10377, 1.0
      %v10426 = vadd.f32 %v10379, 1.0
      %v10427 = vadd.f32 %v10381, 1.0
      %v10428 = vadd.f32 %v10383, 1.0
      %v10429 = vadd.f32 %v10385, 1.0
      %v10430 = vadd.f32 %v10387, 1.0
      %v10431 = vadd.f32 %v10389, 1.0
      %v10432 = vadd.f32 %v10391, 1.0
      %v10433 = vrcp.pop %v10392
      %v10434 = vmul.f32 1.0, %v10433
      %v10435 = vrcp.pop %v10393
      %v10436 = vmul.f32 1.0, %v10435
      %v10437 = vrcp.pop %v10394
      %v10438 = vmul.f32 1.0, %v10437
      %v10439 = vrcp.pop %v10395
      %v10440 = vmul.f32 1.0, %v10439
      %v10441 = vrcp.pop %v10396
      %v10442 = vmul.f32 1.0, %v10441
      %v10443 = vrcp.pop %v10397
      %v10444 = vmul.f32 1.0, %v10443
      %v10445 = vrcp.pop %v10398
      %v10446 = vmul.f32 1.0, %v10445
      %v10447 = vrcp.pop %v10399
      %v10448 = vmul.f32 1.0, %v10447
      %v10449 = vrcp.pop %v10400
      %v10450 = vmul.f32 1.0, %v10449
      %v10451 = vrcp.pop %v10401
      %v10452 = vmul.f32 1.0, %v10451
      %v10453 = vrcp.pop %v10402
      %v10454 = vmul.f32 1.0, %v10453
      %v10455 = vrcp.pop %v10403
      %v10456 = vmul.f32 1.0, %v10455
      %v10457 = vrcp.pop %v10404
      %v10458 = vmul.f32 1.0, %v10457
      %v10459 = vrcp.pop %v10405
      %v10460 = vmul.f32 1.0, %v10459
      %v10461 = vrcp.pop %v10406
      %v10462 = vmul.f32 1.0, %v10461
      %v10463 = vrcp.pop %v10407
      %v10464 = vmul.f32 1.0, %v10463
      %v10465 = vrcp.pop %v10408
      %v10466 = vmul.f32 1.0, %v10465
      %v10467 = vrcp.pop %v10409
      %v10468 = vmul.f32 1.0, %v10467
      %v10469 = vrcp.pop %v10410
      %v10470 = vmul.f32 1.0, %v10469
      %v10471 = vrcp.pop %v10411
      %v10472 = vmul.f32 1.0, %v10471
      %v10473 = vrcp.pop %v10412
      %v10474 = vmul.f32 1.0, %v10473
      %v10475 = vrcp.pop %v10413
      %v10476 = vmul.f32 1.0, %v10475
      %v10477 = vrcp.pop %v10414
      %v10478 = vmul.f32 1.0, %v10477
      %v10479 = vrcp.pop %v10415
      %v10480 = vmul.f32 1.0, %v10479
      %v10481 = vrcp.pop %v10416
      %v10482 = vmul.f32 1.0, %v10481
      %v10483 = vrcp.pop %v10417
      %v10484 = vmul.f32 1.0, %v10483
      %v10485 = vrcp.pop %v10418
      %v10486 = vmul.f32 1.0, %v10485
      %v10487 = vrcp.pop %v10419
      %v10488 = vmul.f32 1.0, %v10487
      %v10489 = vrcp.pop %v10420
      %v10490 = vmul.f32 1.0, %v10489
      %v10491 = vrcp.pop %v10421
      %v10492 = vmul.f32 1.0, %v10491
      %v10493 = vrcp.pop %v10422
      %v10494 = vmul.f32 1.0, %v10493
      %v10495 = vrcp.pop %v10423
      %v10496 = vmul.f32 1.0, %v10495
      %v10497 = vrcp.pop %v10424
      %v10498 = vmul.f32 1.0, %v10497
      %v10499 = vrcp.pop %v10425
      %v10500 = vmul.f32 1.0, %v10499
      %v10501 = vrcp.pop %v10426
      %v10502 = vmul.f32 1.0, %v10501
      %v10503 = vrcp.pop %v10427
      %v10504 = vmul.f32 1.0, %v10503
      %v10505 = vrcp.pop %v10428
      %v10506 = vmul.f32 1.0, %v10505
      %v10507 = vrcp.pop %v10429
      %v10508 = vmul.f32 1.0, %v10507
      %v10509 = vrcp.pop %v10430
      %v10510 = vmul.f32 1.0, %v10509
      %v10511 = vrcp.pop %v10431
      %v10512 = vmul.f32 1.0, %v10511
      %v10513 = vrcp.pop %v10432
      %v10514 = vmul.f32 1.0, %v10513
      %v10515 = vmul.f32 %v10228, %v10434
      %v10516 = vmul.f32 %v10229, %v10436
      %v10517 = vmul.f32 %v10230, %v10438
      %v10518 = vmul.f32 %v10231, %v10440
      %v10519 = vmul.f32 %v10232, %v10442
      %v10520 = vmul.f32 %v10233, %v10444
      %v10521 = vmul.f32 %v10234, %v10446
      %v10522 = vmul.f32 %v10235, %v10448
      %v10523 = vmul.f32 %v10236, %v10450
      %v10524 = vmul.f32 %v10237, %v10452
      %v10525 = vmul.f32 %v10238, %v10454
      %v10526 = vmul.f32 %v10239, %v10456
      %v10527 = vmul.f32 %v10240, %v10458
      %v10528 = vmul.f32 %v10241, %v10460
      %v10529 = vmul.f32 %v10242, %v10462
      %v10530 = vmul.f32 %v10243, %v10464
      %v10531 = vmul.f32 %v10244, %v10466
      %v10532 = vmul.f32 %v10245, %v10468
      %v10533 = vmul.f32 %v10246, %v10470
      %v10534 = vmul.f32 %v10247, %v10472
      %v10535 = vmul.f32 %v10248, %v10474
      %v10536 = vmul.f32 %v10249, %v10476
      %v10537 = vmul.f32 %v10250, %v10478
      %v10538 = vmul.f32 %v10251, %v10480
      %v10539 = vmul.f32 %v10252, %v10482
      %v10540 = vmul.f32 %v10253, %v10484
      %v10541 = vmul.f32 %v10254, %v10486
      %v10542 = vmul.f32 %v10255, %v10488
      %v10543 = vmul.f32 %v10256, %v10490
      %v10544 = vmul.f32 %v10257, %v10492
      %v10545 = vmul.f32 %v10258, %v10494
      %v10546 = vmul.f32 %v10259, %v10496
      %v10547 = vmul.f32 %v10260, %v10498
      %v10548 = vmul.f32 %v10261, %v10500
      %v10549 = vmul.f32 %v10262, %v10502
      %v10550 = vmul.f32 %v10263, %v10504
      %v10551 = vmul.f32 %v10264, %v10506
      %v10552 = vmul.f32 %v10265, %v10508
      %v10553 = vmul.f32 %v10266, %v10510
      %v10554 = vmul.f32 %v10267, %v10512
      %v10555 = vmul.f32 %v10268, %v10514
      %10556 = vst.msk [vmem:[%s467] sm:$0xff] %vm662, %v10515
      %10557 = vst.msk [vmem:[%s467 + $0x8] sm:$0xff] %vm662, %v10516
      %10558 = vst.msk [vmem:[%s467 + $0x10] sm:$0xff] %vm662, %v10517
      %10559 = vst.msk [vmem:[%s467 + $0x18] sm:$0xff] %vm662, %v10518
      %10560 = vst.msk [vmem:[%s467 + $0x20] sm:$0xff] %vm662, %v10519
      %10561 = vst.msk [vmem:[%s467 + $0x28] sm:$0xff] %vm662, %v10520
      %10562 = vst.msk [vmem:[%s467 + $0x30] sm:$0xff] %vm662, %v10521
      %10563 = vst.msk [vmem:[%s467 + $0x38] sm:$0xff] %vm662, %v10522
      %10564 = vst.msk [vmem:[%s467 + $0x40] sm:$0xff] %vm662, %v10523
      %10565 = vst.msk [vmem:[%s467 + $0x48] sm:$0xff] %vm662, %v10524
      %10566 = vst.msk [vmem:[%s467 + $0x50] sm:$0xff] %vm662, %v10525
      %10567 = vst.msk [vmem:[%s467 + $0x58] sm:$0xff] %vm662, %v10526
      %10568 = vst.msk [vmem:[%s467 + $0x60] sm:$0xff] %vm662, %v10527
      %10569 = vst.msk [vmem:[%s467 + $0x68] sm:$0xff] %vm662, %v10528
      %10570 = vst.msk [vmem:[%s467 + $0x70] sm:$0xff] %vm662, %v10529
      %10571 = vst.msk [vmem:[%s467 + $0x78] sm:$0xff] %vm662, %v10530
      %10572 = vst.msk [vmem:[%s467 + $0x80] sm:$0xff] %vm662, %v10531
      %10573 = vst.msk [vmem:[%s467 + $0x88] sm:$0xff] %vm662, %v10532
      %10574 = vst.msk [vmem:[%s467 + $0x90] sm:$0xff] %vm662, %v10533
      %10575 = vst.msk [vmem:[%s467 + $0x98] sm:$0xff] %vm662, %v10534
      %10576 = vst.msk [vmem:[%s467 + $0xa0] sm:$0xff] %vm662, %v10535
      %10577 = vst.msk [vmem:[%s467 + $0xa8] sm:$0xff] %vm662, %v10536
      %10578 = vst.msk [vmem:[%s467 + $0xb0] sm:$0xff] %vm662, %v10537
      %10579 = vst.msk [vmem:[%s467 + $0xb8] sm:$0xff] %vm662, %v10538
      %10580 = vst.msk [vmem:[%s467 + $0xc0] sm:$0xff] %vm662, %v10539
      %10581 = vst.msk [vmem:[%s467 + $0xc8] sm:$0xff] %vm662, %v10540
      %10582 = vst.msk [vmem:[%s467 + $0xd0] sm:$0xff] %vm662, %v10541
      %10583 = vst.msk [vmem:[%s467 + $0xd8] sm:$0xff] %vm662, %v10542
      %10584 = vst.msk [vmem:[%s467 + $0xe0] sm:$0xff] %vm662, %v10543
      %10585 = vst.msk [vmem:[%s467 + $0xe8] sm:$0xff] %vm662, %v10544
      %10586 = vst.msk [vmem:[%s467 + $0xf0] sm:$0xff] %vm662, %v10545
      %10587 = vst.msk [vmem:[%s467 + $0xf8] sm:$0xff] %vm662, %v10546
      %10588 = vst.msk [vmem:[%s467 + $0x100] sm:$0xff] %vm662, %v10547
      %10589 = vst.msk [vmem:[%s467 + $0x108] sm:$0xff] %vm662, %v10548
      %10590 = vst.msk [vmem:[%s467 + $0x110] sm:$0xff] %vm662, %v10549
      %10591 = vst.msk [vmem:[%s467 + $0x118] sm:$0xff] %vm662, %v10550
      %10592 = vst.msk [vmem:[%s467 + $0x120] sm:$0xff] %vm662, %v10551
      %10593 = vst.msk [vmem:[%s467 + $0x128] sm:$0xff] %vm662, %v10552
      %10594 = vst.msk [vmem:[%s467 + $0x130] sm:$0xff] %vm662, %v10553
      %10595 = vst.msk [vmem:[%s467 + $0x138] sm:$0xff] %vm662, %v10554
      %vm10596 = vcmask 27648
      %10597 = vst.msk [vmem:[%s467 + $0x140] sm:$0xf] %vm10596, %v10555
      %p10598 = scmp.lt.s32.totalorder %s25, 1
      %s10599 = scalar_select %p10598, %s25, 1
      %s10600 = smul.addr %s10599, 41
      %s10601 = smul.addr %s10600, 8
      %s10602 = scalar_lea.vmem %s14, %s10601
      // Predicated region
      $region77: #{c2f_forward.1} parent=75 // pred_check
        %p10603 = pneg %p342
      $region78: #{c2f_forward.1} parent=75 // pred_check_branch
        %10605 = sbr.rel (%p10603) target = $region80
      $region79: #{c2f_forward.1} parent=75 // pred_region
        _
      $region80: #{c2f_forward.1} parent=75 // pred_fallthru
        _
    $region76: #{c2f_forward.1} parent=5 // pred_fallthru
      _
    %p10606 = scmp.le.s32.totalorder 2, %s20
    // Predicated region
    $region81: #{c2f_forward.1} parent=5 // pred_check
      %p10607 = pneg %p10606
    $region82: #{c2f_forward.1} parent=5 // pred_check_branch
      %10609 = sbr.rel (%p10607) target = $region84
    $region83: #{c2f_forward.1} parent=5 // pred_region
      %s10610 = ssub.s32 %s20, 2
      // Predicated region
      $region85: #{c2f_forward.1} parent=83 // pred_check
        %p10611 = pneg %p348
      $region86: #{c2f_forward.1} parent=83 // pred_check_branch
        %10613 = sbr.rel (%p10611) target = $region88
      $region87: #{c2f_forward.1} parent=83 // pred_region
        %p10614 = scmp.lt.s32.totalorder %s26, 1
        %s10615 = scalar_select %p10614, %s26, 1
        %s10616 = smul.addr %s10615, 41
        %s10617 = smul.addr %s10616, 8
        %s10618 = scalar_lea.vmem %s14, %s10617
      $region88: #{c2f_forward.1} parent=83 // pred_fallthru
        _
    $region84: #{c2f_forward.1} parent=5 // pred_fallthru
      _
  $region6: #{c2f_forward.1} parent=0 // loop_footer
    %s24 = sadd.s32 1, %s20
  $region7: #{c2f_forward.1} parent=0 // loop_footer_branch
    %19 = sbr.rel target = $region3
  $region8: #{c2f_forward.1} parent=0 // loop_exit
    _

</llo_original>
